<compile_context>
chip_gen: v5e
topology: v5e:2x2
jax: 0.10.0
libtpu: 0.0.40
codegen_flags: <defaults>
</compile_context>

<pallas_src>
import jax
import jax.numpy as jnp
from jax.experimental import pallas as pl
from jax.experimental.pallas import tpu as pltpu

BN_EPS = 1e-5
CONV1_STRIDE = 16   # module default `stride`


# ----------------------------------------------------------------------------
# The single fused kernel (built as a closure over static per-layer BN counts)
# ----------------------------------------------------------------------------
def _build_m5_kernel(n_valid):
    """n_valid: tuple of per-layer valid-element counts (B * L_out) for BN."""

    def kernel(*refs):
        out_ref = refs[-1]
        idx = 0
        h = refs[idx][...]          # collapsed input (B*L/16, 16), f32
        idx += 1

        for n in n_valid:
            w_ref, b_ref, g_ref, be_ref, m_ref, s_ref = refs[idx:idx + 6]
            idx += 6
            taps, _, cout = w_ref.shape
            rows_out = h.shape[0] - (taps - 1)

            # --- Conv1d: sum over taps of shifted, batch-collapsed MXU matmuls
            #     (bf16 inputs, f32 accumulation; no per-batch loop, no scratch)
            y = jnp.zeros((rows_out, cout), jnp.float32)
            for k in range(taps):
                lhs = h[k:k + rows_out, :].astype(jnp.bfloat16)
                y = y + jnp.dot(lhs, w_ref[k],
                                preferred_element_type=jnp.float32)
            y = y + b_ref[...]

            # --- BatchNorm1d (training-mode batch stats), one fused pass:
            #     sum and sum-of-squares over valid rows only (0/1 row mask)
            msk = m_ref[...]                                   # (rows_out, 1)
            ym = y * msk
            mean = jnp.sum(ym, axis=0, keepdims=True) * (1.0 / n)
            var = jnp.sum(ym * y, axis=0, keepdims=True) * (1.0 / n) - mean * mean
            scale = g_ref[...] * jax.lax.rsqrt(var + BN_EPS)
            shift = be_ref[...] - mean * scale

            # --- ReLU (elementwise chain stays f32: v5e has no bf16 VPU path)
            y = jnp.maximum(y * scale + shift, 0.0)

            # --- MaxPool1d(4): vectorized sliding-window max, then a one-hot
            #     row-subsample matmul (exact selection on the MXU, f32)
            lm = rows_out - 3
            m = jnp.maximum(jnp.maximum(y[0:lm, :], y[1:lm + 1, :]),
                            jnp.maximum(y[2:lm + 2, :], y[3:lm + 3, :]))
            h = jnp.dot(s_ref[...], m, preferred_element_type=jnp.float32)

        # --- F.avg_pool1d(x, x.shape[-1]) as an averaging matmul, then FC
        a_ref, wfc_ref, bfc_ref = refs[idx:idx + 3]
        pooled = jnp.dot(a_ref[...], h, preferred_element_type=jnp.float32)
        logits = jnp.dot(pooled.astype(jnp.bfloat16), wfc_ref[...],
                         preferred_element_type=jnp.float32) + bfc_ref[...]

        # --- log_softmax over the class axis
        zmax = jnp.max(logits, axis=-1, keepdims=True)
        z = logits - zmax
        out_ref[...] = z - jnp.log(jnp.sum(jnp.exp(z), axis=-1, keepdims=True))

    return kernel


# ----------------------------------------------------------------------------
# XLA-side helpers: per-layer valid-row masks and one-hot pooling selectors
# ----------------------------------------------------------------------------
def _make_layer_consts(B, blk_in, taps):
    """For a conv layer whose input has per-batch block length `blk_in` (rows)
    and `taps` row-taps, build the BN valid-row mask and the MaxPool1d(4)
    one-hot row-selection matrix (both consumed by the fused kernel)."""
    rows_in = B * blk_in
    rows_out = rows_in - (taps - 1)
    valid = blk_in - (taps - 1)            # = conv L_out per batch
    lp = valid // 4                        # = pooled length per batch
    lm = rows_out - 3                      # rows of the sliding-max array

    r = jnp.arange(rows_out)
    mask = ((r % blk_in) < valid).astype(jnp.float32)[:, None]        # (rows_out, 1)

    q = jnp.arange(B * lp)
    tgt = (q // lp) * blk_in + 4 * (q % lp)                            # row of window start
    sel = (jnp.arange(lm)[None, :] == tgt[:, None]).astype(jnp.float32)  # (B*lp, lm)
    return mask, sel, lp, valid


# ----------------------------------------------------------------------------
# Forward pass
# ----------------------------------------------------------------------------
@jax.jit
def m5_forward(x_ncl, params):
    B, cin, L = x_ncl.shape
    assert cin == 1, "only n_input=1 (module default) is implemented"
    k1 = params["conv1_w"].shape[2]
    assert k1 % CONV1_STRIDE == 0 and L % CONV1_STRIDE == 0
    chunks = k1 // CONV1_STRIDE            # conv1 taps in stride-sized chunks (=5)
    blk = L // CONV1_STRIDE                # per-batch rows of the collapsed input

    # raw waveform viewed as (B*L/16, 16): conv1 im2col happens inside the kernel
    x2d = x_ncl.reshape(B * blk, CONV1_STRIDE).astype(jnp.float32)

    inputs = [x2d]
    n_valid = []
    layer_specs = [("conv1", "bn1", chunks), ("conv2", "bn2", 3),
                   ("conv3", "bn3", 3), ("conv4", "bn4", 3)]
    for conv, bn, taps in layer_specs:
        w = params[conv + "_w"]            # (Cout, Cin, K) PyTorch layout
        cout = w.shape[0]
        if conv == "conv1":
            # (Cout,1,80) -> (80,Cout) -> (5,16,Cout): tap j holds weights for
            # input samples 16j..16j+15 of the receptive field
            w_taps = jnp.transpose(w.reshape(cout, k1), (1, 0)).reshape(
                chunks, CONV1_STRIDE, cout)
        else:
            w_taps = jnp.transpose(w, (2, 1, 0))        # (K, Cin, Cout)
        mask, sel, lp, valid = _make_layer_consts(B, blk, taps)
        inputs += [w_taps.astype(jnp.bfloat16),
                   params[conv + "_b"].reshape(1, cout).astype(jnp.float32),
                   params[bn + "_g"].reshape(1, cout).astype(jnp.float32),
                   params[bn + "_b"].reshape(1, cout).astype(jnp.float32),
                   mask, sel]
        n_valid.append(float(B * valid))
        blk = lp                                        # next layer's block length

    # averaging matrix for F.avg_pool1d(x, full_length)
    lp4 = blk
    q = jnp.arange(B * lp4)
    avg_mat = ((q[None, :] // lp4) == jnp.arange(B)[:, None]).astype(jnp.float32) / lp4

    n_out = params["fc1_w"].shape[0]
    inputs += [avg_mat,
               jnp.transpose(params["fc1_w"]).astype(jnp.bfloat16),   # (2n, n_out)
               params["fc1_b"].reshape(1, n_out).astype(jnp.float32)]

    out = pl.pallas_call(
        _build_m5_kernel(tuple(n_valid)),
        out_shape=jax.ShapeDtypeStruct((B, n_out), jnp.float32),
        in_specs=[pl.BlockSpec(memory_space=pltpu.MemorySpace.VMEM)] * len(inputs),
        out_specs=pl.BlockSpec(memory_space=pltpu.MemorySpace.VMEM),
    )(*inputs)
    return out[:, None, :]                 # (B, 1, n_output), like PyTorch


# ----------------------------------------------------------------------------
# Parameters (PyTorch layouts) and a pure-JAX f32 reference for validation
# ----------------------------------------------------------------------------
def init_params(key, n_input=1, n_output=35, n_channel=32):
    ks = jax.random.split(key, 10)

    def w(k, shape, scale=0.05):
        return (scale * jax.random.normal(k, shape)).astype(jnp.float32)

    p = {}
    conv_shapes = [("conv1", "bn1", n_channel, n_input, 80),
                   ("conv2", "bn2", n_channel, n_channel, 3),
                   ("conv3", "bn3", 2 * n_channel, n_channel, 3),
                   ("conv4", "bn4", 2 * n_channel, 2 * n_channel, 3)]
    for i, (conv, bn, co, ci, kk) in enumerate(conv_shapes):
        p[conv + "_w"] = w(ks[2 * i], (co, ci, kk))
        p[conv + "_b"] = w(ks[2 * i + 1], (co,))
        p[bn + "_g"] = jnp.ones((co,), jnp.float32)
        p[bn + "_b"] = jnp.zeros((co,), jnp.float32)
    p["fc1_w"] = w(ks[8], (n_output, 2 * n_channel))
    p["fc1_b"] = w(ks[9], (n_output,))
    return p


@jax.jit
def m5_reference(x_ncl, params):
    """Plain-JAX (XLA, f32) reference of the PyTorch forward."""
    def conv1d(x, w, b, stride):
        y = jax.lax.conv_general_dilated(
            x, w, (stride,), "VALID",
            dimension_numbers=("NCH", "OIH", "NCH"))
        return y + b[None, :, None]

    def bn(x, g, be):
        mean = jnp.mean(x, axis=(0, 2), keepdims=True)
        var = jnp.mean((x - mean) ** 2, axis=(0, 2), keepdims=True)
        return (x - mean) * jax.lax.rsqrt(var + BN_EPS) * g[None, :, None] \
            + be[None, :, None]

    def maxpool4(x):
        B, C, L = x.shape
        lp = L // 4
        return jnp.max(x[:, :, :lp * 4].reshape(B, C, lp, 4), axis=-1)

    h = x_ncl
    for conv, bnm, s in [("conv1", "bn1", CONV1_STRIDE), ("conv2", "bn2", 1),
                         ("conv3", "bn3", 1), ("conv4", "bn4", 1)]:
        h = conv1d(h, params[conv + "_w"], params[conv + "_b"], s)
        h = jnp.maximum(bn(h, params[bnm + "_g"], params[bnm + "_b"]), 0.0)
        h = maxpool4(h)
    h = jnp.mean(h, axis=-1)                          # avg_pool1d(full length)
    logits = h @ params["fc1_w"].T + params["fc1_b"]
    return jax.nn.log_softmax(logits, axis=-1)[:, None, :]


if __name__ == "__main__":
    key = jax.random.PRNGKey(0)
    pkey, xkey = jax.random.split(key)
    params = init_params(pkey)

    # (B, C_in, L) = (2, 1, 8000): small clip; length survives conv1/16 + 4x pool/4.
    x = jax.random.normal(xkey, (2, 1, 8000), dtype=jnp.float32)

    out = jax.block_until_ready(m5_forward(x, params))

    assert out.shape == (2, 1, 35), out.shape
    assert bool(jnp.all(jnp.isfinite(out)))
    # log_softmax invariant: exp(out) sums to 1 along the class axis.
    probs = jnp.sum(jnp.exp(out), axis=-1)
    assert bool(jnp.all(jnp.abs(probs - 1.0) < 1e-3))

    # Loose check vs a pure-JAX f32 reference (kernel matmuls use bf16 inputs).
    ref = jax.block_until_ready(m5_reference(x, params))
    max_diff = float(jnp.max(jnp.abs(out - ref)))
    assert max_diff < 0.25, f"mismatch vs reference: {max_diff}"

    print("KERNEL_OK")
</pallas_src>

<mosaic_0001>
module attributes {stable_mosaic.version = 11 : i64} {
  func.func @kernel(%arg0: memref<1000x16xf32, #tpu.memory_space<vmem>>, %arg1: memref<5x16x32xbf16, #tpu.memory_space<vmem>>, %arg2: memref<1x32xf32, #tpu.memory_space<vmem>>, %arg3: memref<1x32xf32, #tpu.memory_space<vmem>>, %arg4: memref<1x32xf32, #tpu.memory_space<vmem>>, %arg5: memref<996x1xf32, #tpu.memory_space<vmem>>, %arg6: memref<248x993xf32, #tpu.memory_space<vmem>>, %arg7: memref<3x32x32xbf16, #tpu.memory_space<vmem>>, %arg8: memref<1x32xf32, #tpu.memory_space<vmem>>, %arg9: memref<1x32xf32, #tpu.memory_space<vmem>>, %arg10: memref<1x32xf32, #tpu.memory_space<vmem>>, %arg11: memref<246x1xf32, #tpu.memory_space<vmem>>, %arg12: memref<60x243xf32, #tpu.memory_space<vmem>>, %arg13: memref<3x32x64xbf16, #tpu.memory_space<vmem>>, %arg14: memref<1x64xf32, #tpu.memory_space<vmem>>, %arg15: memref<1x64xf32, #tpu.memory_space<vmem>>, %arg16: memref<1x64xf32, #tpu.memory_space<vmem>>, %arg17: memref<58x1xf32, #tpu.memory_space<vmem>>, %arg18: memref<14x55xf32, #tpu.memory_space<vmem>>, %arg19: memref<3x64x64xbf16, #tpu.memory_space<vmem>>, %arg20: memref<1x64xf32, #tpu.memory_space<vmem>>, %arg21: memref<1x64xf32, #tpu.memory_space<vmem>>, %arg22: memref<1x64xf32, #tpu.memory_space<vmem>>, %arg23: memref<12x1xf32, #tpu.memory_space<vmem>>, %arg24: memref<2x9xf32, #tpu.memory_space<vmem>>, %arg25: memref<2x2xf32, #tpu.memory_space<vmem>>, %arg26: memref<64x35xbf16, #tpu.memory_space<vmem>>, %arg27: memref<1x35xf32, #tpu.memory_space<vmem>>, %arg28: memref<2x35xf32, #tpu.memory_space<vmem>>) attributes {dimension_semantics = [], scalar_prefetch = 0 : i64, scratch_operands = 0 : i64, tpu.core_type = #tpu.core_type<tc>} {
    %c0 = arith.constant 0 : index
    %c0_0 = arith.constant 0 : index
    %0 = vector.load %arg0[%c0, %c0_0] : memref<1000x16xf32, #tpu.memory_space<vmem>>, vector<1000x16xf32>
    %cst = arith.constant 0.000000e+00 : f32
    %1 = vector.broadcast %cst : f32 to vector<996x32xf32>
    %2 = vector.extract_strided_slice %0 {offsets = [0, 0], sizes = [996, 16], strides = [1, 1]} : vector<1000x16xf32> to vector<996x16xf32>
    %3 = arith.truncf %2 : vector<996x16xf32> to vector<996x16xbf16>
    %c0_1 = arith.constant 0 : index
    %c0_2 = arith.constant 0 : index
    %c0_3 = arith.constant 0 : index
    %4 = vector.load %arg1[%c0_1, %c0_2, %c0_3] : memref<5x16x32xbf16, #tpu.memory_space<vmem>>, vector<1x16x32xbf16>
    %5 = vector.shape_cast %4 : vector<1x16x32xbf16> to vector<16x32xbf16>
    %cst_4 = arith.constant dense<0.000000e+00> : vector<996x32xf32>
    %6 = tpu.matmul %3, %5, %cst_4 {dimension_numbers = #tpu.dot_dimension_numbers<[1], [0], [0], [1], [0, 0, 1, 1], [], []>} : vector<996x16xbf16>, vector<16x32xbf16>, vector<996x32xf32> -> vector<996x32xf32>
    %7 = arith.addf %1, %6 : vector<996x32xf32>
    %8 = vector.extract_strided_slice %0 {offsets = [1, 0], sizes = [996, 16], strides = [1, 1]} : vector<1000x16xf32> to vector<996x16xf32>
    %9 = arith.truncf %8 : vector<996x16xf32> to vector<996x16xbf16>
    %c1 = arith.constant 1 : index
    %c0_5 = arith.constant 0 : index
    %c0_6 = arith.constant 0 : index
    %10 = vector.load %arg1[%c1, %c0_5, %c0_6] : memref<5x16x32xbf16, #tpu.memory_space<vmem>>, vector<1x16x32xbf16>
    %11 = vector.shape_cast %10 : vector<1x16x32xbf16> to vector<16x32xbf16>
    %cst_7 = arith.constant dense<0.000000e+00> : vector<996x32xf32>
    %12 = tpu.matmul %9, %11, %cst_7 {dimension_numbers = #tpu.dot_dimension_numbers<[1], [0], [0], [1], [0, 0, 1, 1], [], []>} : vector<996x16xbf16>, vector<16x32xbf16>, vector<996x32xf32> -> vector<996x32xf32>
    %13 = arith.addf %7, %12 : vector<996x32xf32>
    %14 = vector.extract_strided_slice %0 {offsets = [2, 0], sizes = [996, 16], strides = [1, 1]} : vector<1000x16xf32> to vector<996x16xf32>
    %15 = arith.truncf %14 : vector<996x16xf32> to vector<996x16xbf16>
    %c2 = arith.constant 2 : index
    %c0_8 = arith.constant 0 : index
    %c0_9 = arith.constant 0 : index
    %16 = vector.load %arg1[%c2, %c0_8, %c0_9] : memref<5x16x32xbf16, #tpu.memory_space<vmem>>, vector<1x16x32xbf16>
    %17 = vector.shape_cast %16 : vector<1x16x32xbf16> to vector<16x32xbf16>
    %cst_10 = arith.constant dense<0.000000e+00> : vector<996x32xf32>
    %18 = tpu.matmul %15, %17, %cst_10 {dimension_numbers = #tpu.dot_dimension_numbers<[1], [0], [0], [1], [0, 0, 1, 1], [], []>} : vector<996x16xbf16>, vector<16x32xbf16>, vector<996x32xf32> -> vector<996x32xf32>
    %19 = arith.addf %13, %18 : vector<996x32xf32>
    %20 = vector.extract_strided_slice %0 {offsets = [3, 0], sizes = [996, 16], strides = [1, 1]} : vector<1000x16xf32> to vector<996x16xf32>
    %21 = arith.truncf %20 : vector<996x16xf32> to vector<996x16xbf16>
    %c3 = arith.constant 3 : index
    %c0_11 = arith.constant 0 : index
    %c0_12 = arith.constant 0 : index
    %22 = vector.load %arg1[%c3, %c0_11, %c0_12] : memref<5x16x32xbf16, #tpu.memory_space<vmem>>, vector<1x16x32xbf16>
    %23 = vector.shape_cast %22 : vector<1x16x32xbf16> to vector<16x32xbf16>
    %cst_13 = arith.constant dense<0.000000e+00> : vector<996x32xf32>
    %24 = tpu.matmul %21, %23, %cst_13 {dimension_numbers = #tpu.dot_dimension_numbers<[1], [0], [0], [1], [0, 0, 1, 1], [], []>} : vector<996x16xbf16>, vector<16x32xbf16>, vector<996x32xf32> -> vector<996x32xf32>
    %25 = arith.addf %19, %24 : vector<996x32xf32>
    %26 = vector.extract_strided_slice %0 {offsets = [4, 0], sizes = [996, 16], strides = [1, 1]} : vector<1000x16xf32> to vector<996x16xf32>
    %27 = arith.truncf %26 : vector<996x16xf32> to vector<996x16xbf16>
    %c4 = arith.constant 4 : index
    %c0_14 = arith.constant 0 : index
    %c0_15 = arith.constant 0 : index
    %28 = vector.load %arg1[%c4, %c0_14, %c0_15] : memref<5x16x32xbf16, #tpu.memory_space<vmem>>, vector<1x16x32xbf16>
    %29 = vector.shape_cast %28 : vector<1x16x32xbf16> to vector<16x32xbf16>
    %cst_16 = arith.constant dense<0.000000e+00> : vector<996x32xf32>
    %30 = tpu.matmul %27, %29, %cst_16 {dimension_numbers = #tpu.dot_dimension_numbers<[1], [0], [0], [1], [0, 0, 1, 1], [], []>} : vector<996x16xbf16>, vector<16x32xbf16>, vector<996x32xf32> -> vector<996x32xf32>
    %31 = arith.addf %25, %30 : vector<996x32xf32>
    %c0_17 = arith.constant 0 : index
    %c0_18 = arith.constant 0 : index
    %32 = vector.load %arg2[%c0_17, %c0_18] : memref<1x32xf32, #tpu.memory_space<vmem>>, vector<1x32xf32>
    %33 = vector.broadcast %32 : vector<1x32xf32> to vector<996x32xf32>
    %34 = arith.addf %31, %33 : vector<996x32xf32>
    %c0_19 = arith.constant 0 : index
    %c0_20 = arith.constant 0 : index
    %35 = vector.load %arg5[%c0_19, %c0_20] : memref<996x1xf32, #tpu.memory_space<vmem>>, vector<996x1xf32>
    %36 = vector.broadcast %35 : vector<996x1xf32> to vector<996x32xf32>
    %37 = arith.mulf %34, %36 : vector<996x32xf32>
    %cst_21 = arith.constant dense<0.000000e+00> : vector<32xf32>
    %38 = vector.multi_reduction <add>, %37, %cst_21 [0] : vector<996x32xf32> to vector<32xf32>
    %39 = vector.shape_cast %38 : vector<32xf32> to vector<1x32xf32>
    %cst_22 = arith.constant 0.00100806449 : f32
    %40 = vector.broadcast %cst_22 : f32 to vector<1x32xf32>
    %41 = arith.mulf %39, %40 : vector<1x32xf32>
    %42 = arith.mulf %37, %34 : vector<996x32xf32>
    %cst_23 = arith.constant dense<0.000000e+00> : vector<32xf32>
    %43 = vector.multi_reduction <add>, %42, %cst_23 [0] : vector<996x32xf32> to vector<32xf32>
    %44 = vector.shape_cast %43 : vector<32xf32> to vector<1x32xf32>
    %cst_24 = arith.constant 0.00100806449 : f32
    %45 = vector.broadcast %cst_24 : f32 to vector<1x32xf32>
    %46 = arith.mulf %44, %45 : vector<1x32xf32>
    %47 = arith.mulf %41, %41 : vector<1x32xf32>
    %48 = arith.subf %46, %47 : vector<1x32xf32>
    %c0_25 = arith.constant 0 : index
    %c0_26 = arith.constant 0 : index
    %49 = vector.load %arg3[%c0_25, %c0_26] : memref<1x32xf32, #tpu.memory_space<vmem>>, vector<1x32xf32>
    %cst_27 = arith.constant 9.99999974E-6 : f32
    %50 = vector.broadcast %cst_27 : f32 to vector<1x32xf32>
    %51 = arith.addf %48, %50 : vector<1x32xf32>
    %52 = math.rsqrt %51 : vector<1x32xf32>
    %53 = arith.mulf %49, %52 : vector<1x32xf32>
    %c0_28 = arith.constant 0 : index
    %c0_29 = arith.constant 0 : index
    %54 = vector.load %arg4[%c0_28, %c0_29] : memref<1x32xf32, #tpu.memory_space<vmem>>, vector<1x32xf32>
    %55 = arith.mulf %41, %53 : vector<1x32xf32>
    %56 = arith.subf %54, %55 : vector<1x32xf32>
    %57 = vector.broadcast %53 : vector<1x32xf32> to vector<996x32xf32>
    %58 = arith.mulf %34, %57 : vector<996x32xf32>
    %59 = vector.broadcast %56 : vector<1x32xf32> to vector<996x32xf32>
    %60 = arith.addf %58, %59 : vector<996x32xf32>
    %cst_30 = arith.constant 0.000000e+00 : f32
    %61 = vector.broadcast %cst_30 : f32 to vector<996x32xf32>
    %62 = arith.maximumf %60, %61 : vector<996x32xf32>
    %63 = vector.extract_strided_slice %62 {offsets = [0, 0], sizes = [993, 32], strides = [1, 1]} : vector<996x32xf32> to vector<993x32xf32>
    %64 = vector.extract_strided_slice %62 {offsets = [1, 0], sizes = [993, 32], strides = [1, 1]} : vector<996x32xf32> to vector<993x32xf32>
    %65 = arith.maximumf %63, %64 : vector<993x32xf32>
    %66 = vector.extract_strided_slice %62 {offsets = [2, 0], sizes = [993, 32], strides = [1, 1]} : vector<996x32xf32> to vector<993x32xf32>
    %67 = vector.extract_strided_slice %62 {offsets = [3, 0], sizes = [993, 32], strides = [1, 1]} : vector<996x32xf32> to vector<993x32xf32>
    %68 = arith.maximumf %66, %67 : vector<993x32xf32>
    %69 = arith.maximumf %65, %68 : vector<993x32xf32>
    %c0_31 = arith.constant 0 : index
    %c0_32 = arith.constant 0 : index
    %70 = vector.load %arg6[%c0_31, %c0_32] : memref<248x993xf32, #tpu.memory_space<vmem>>, vector<248x993xf32>
    %cst_33 = arith.constant dense<0.000000e+00> : vector<248x32xf32>
    %71 = tpu.matmul %70, %69, %cst_33 {dimension_numbers = #tpu.dot_dimension_numbers<[1], [0], [0], [1], [0, 0, 1, 1], [], []>} : vector<248x993xf32>, vector<993x32xf32>, vector<248x32xf32> -> vector<248x32xf32>
    %cst_34 = arith.constant 0.000000e+00 : f32
    %72 = vector.broadcast %cst_34 : f32 to vector<246x32xf32>
    %73 = vector.extract_strided_slice %71 {offsets = [0, 0], sizes = [246, 32], strides = [1, 1]} : vector<248x32xf32> to vector<246x32xf32>
    %74 = arith.truncf %73 : vector<246x32xf32> to vector<246x32xbf16>
    %c0_35 = arith.constant 0 : index
    %c0_36 = arith.constant 0 : index
    %c0_37 = arith.constant 0 : index
    %75 = vector.load %arg7[%c0_35, %c0_36, %c0_37] : memref<3x32x32xbf16, #tpu.memory_space<vmem>>, vector<1x32x32xbf16>
    %76 = vector.shape_cast %75 : vector<1x32x32xbf16> to vector<32x32xbf16>
    %cst_38 = arith.constant dense<0.000000e+00> : vector<246x32xf32>
    %77 = tpu.matmul %74, %76, %cst_38 {dimension_numbers = #tpu.dot_dimension_numbers<[1], [0], [0], [1], [0, 0, 1, 1], [], []>} : vector<246x32xbf16>, vector<32x32xbf16>, vector<246x32xf32> -> vector<246x32xf32>
    %78 = arith.addf %72, %77 : vector<246x32xf32>
    %79 = vector.extract_strided_slice %71 {offsets = [1, 0], sizes = [246, 32], strides = [1, 1]} : vector<248x32xf32> to vector<246x32xf32>
    %80 = arith.truncf %79 : vector<246x32xf32> to vector<246x32xbf16>
    %c1_39 = arith.constant 1 : index
    %c0_40 = arith.constant 0 : index
    %c0_41 = arith.constant 0 : index
    %81 = vector.load %arg7[%c1_39, %c0_40, %c0_41] : memref<3x32x32xbf16, #tpu.memory_space<vmem>>, vector<1x32x32xbf16>
    %82 = vector.shape_cast %81 : vector<1x32x32xbf16> to vector<32x32xbf16>
    %cst_42 = arith.constant dense<0.000000e+00> : vector<246x32xf32>
    %83 = tpu.matmul %80, %82, %cst_42 {dimension_numbers = #tpu.dot_dimension_numbers<[1], [0], [0], [1], [0, 0, 1, 1], [], []>} : vector<246x32xbf16>, vector<32x32xbf16>, vector<246x32xf32> -> vector<246x32xf32>
    %84 = arith.addf %78, %83 : vector<246x32xf32>
    %85 = vector.extract_strided_slice %71 {offsets = [2, 0], sizes = [246, 32], strides = [1, 1]} : vector<248x32xf32> to vector<246x32xf32>
    %86 = arith.truncf %85 : vector<246x32xf32> to vector<246x32xbf16>
    %c2_43 = arith.constant 2 : index
    %c0_44 = arith.constant 0 : index
    %c0_45 = arith.constant 0 : index
    %87 = vector.load %arg7[%c2_43, %c0_44, %c0_45] : memref<3x32x32xbf16, #tpu.memory_space<vmem>>, vector<1x32x32xbf16>
    %88 = vector.shape_cast %87 : vector<1x32x32xbf16> to vector<32x32xbf16>
    %cst_46 = arith.constant dense<0.000000e+00> : vector<246x32xf32>
    %89 = tpu.matmul %86, %88, %cst_46 {dimension_numbers = #tpu.dot_dimension_numbers<[1], [0], [0], [1], [0, 0, 1, 1], [], []>} : vector<246x32xbf16>, vector<32x32xbf16>, vector<246x32xf32> -> vector<246x32xf32>
    %90 = arith.addf %84, %89 : vector<246x32xf32>
    %c0_47 = arith.constant 0 : index
    %c0_48 = arith.constant 0 : index
    %91 = vector.load %arg8[%c0_47, %c0_48] : memref<1x32xf32, #tpu.memory_space<vmem>>, vector<1x32xf32>
    %92 = vector.broadcast %91 : vector<1x32xf32> to vector<246x32xf32>
    %93 = arith.addf %90, %92 : vector<246x32xf32>
    %c0_49 = arith.constant 0 : index
    %c0_50 = arith.constant 0 : index
    %94 = vector.load %arg11[%c0_49, %c0_50] : memref<246x1xf32, #tpu.memory_space<vmem>>, vector<246x1xf32>
    %95 = vector.broadcast %94 : vector<246x1xf32> to vector<246x32xf32>
    %96 = arith.mulf %93, %95 : vector<246x32xf32>
    %cst_51 = arith.constant dense<0.000000e+00> : vector<32xf32>
    %97 = vector.multi_reduction <add>, %96, %cst_51 [0] : vector<246x32xf32> to vector<32xf32>
    %98 = vector.shape_cast %97 : vector<32xf32> to vector<1x32xf32>
    %cst_52 = arith.constant 0.00409836043 : f32
    %99 = vector.broadcast %cst_52 : f32 to vector<1x32xf32>
    %100 = arith.mulf %98, %99 : vector<1x32xf32>
    %101 = arith.mulf %96, %93 : vector<246x32xf32>
    %cst_53 = arith.constant dense<0.000000e+00> : vector<32xf32>
    %102 = vector.multi_reduction <add>, %101, %cst_53 [0] : vector<246x32xf32> to vector<32xf32>
    %103 = vector.shape_cast %102 : vector<32xf32> to vector<1x32xf32>
    %cst_54 = arith.constant 0.00409836043 : f32
    %104 = vector.broadcast %cst_54 : f32 to vector<1x32xf32>
    %105 = arith.mulf %103, %104 : vector<1x32xf32>
    %106 = arith.mulf %100, %100 : vector<1x32xf32>
    %107 = arith.subf %105, %106 : vector<1x32xf32>
    %c0_55 = arith.constant 0 : index
    %c0_56 = arith.constant 0 : index
    %108 = vector.load %arg9[%c0_55, %c0_56] : memref<1x32xf32, #tpu.memory_space<vmem>>, vector<1x32xf32>
    %cst_57 = arith.constant 9.99999974E-6 : f32
    %109 = vector.broadcast %cst_57 : f32 to vector<1x32xf32>
    %110 = arith.addf %107, %109 : vector<1x32xf32>
    %111 = math.rsqrt %110 : vector<1x32xf32>
    %112 = arith.mulf %108, %111 : vector<1x32xf32>
    %c0_58 = arith.constant 0 : index
    %c0_59 = arith.constant 0 : index
    %113 = vector.load %arg10[%c0_58, %c0_59] : memref<1x32xf32, #tpu.memory_space<vmem>>, vector<1x32xf32>
    %114 = arith.mulf %100, %112 : vector<1x32xf32>
    %115 = arith.subf %113, %114 : vector<1x32xf32>
    %116 = vector.broadcast %112 : vector<1x32xf32> to vector<246x32xf32>
    %117 = arith.mulf %93, %116 : vector<246x32xf32>
    %118 = vector.broadcast %115 : vector<1x32xf32> to vector<246x32xf32>
    %119 = arith.addf %117, %118 : vector<246x32xf32>
    %cst_60 = arith.constant 0.000000e+00 : f32
    %120 = vector.broadcast %cst_60 : f32 to vector<246x32xf32>
    %121 = arith.maximumf %119, %120 : vector<246x32xf32>
    %122 = vector.extract_strided_slice %121 {offsets = [0, 0], sizes = [243, 32], strides = [1, 1]} : vector<246x32xf32> to vector<243x32xf32>
    %123 = vector.extract_strided_slice %121 {offsets = [1, 0], sizes = [243, 32], strides = [1, 1]} : vector<246x32xf32> to vector<243x32xf32>
    %124 = arith.maximumf %122, %123 : vector<243x32xf32>
    %125 = vector.extract_strided_slice %121 {offsets = [2, 0], sizes = [243, 32], strides = [1, 1]} : vector<246x32xf32> to vector<243x32xf32>
    %126 = vector.extract_strided_slice %121 {offsets = [3, 0], sizes = [243, 32], strides = [1, 1]} : vector<246x32xf32> to vector<243x32xf32>
    %127 = arith.maximumf %125, %126 : vector<243x32xf32>
    %128 = arith.maximumf %124, %127 : vector<243x32xf32>
    %c0_61 = arith.constant 0 : index
    %c0_62 = arith.constant 0 : index
    %129 = vector.load %arg12[%c0_61, %c0_62] : memref<60x243xf32, #tpu.memory_space<vmem>>, vector<60x243xf32>
    %cst_63 = arith.constant dense<0.000000e+00> : vector<60x32xf32>
    %130 = tpu.matmul %129, %128, %cst_63 {dimension_numbers = #tpu.dot_dimension_numbers<[1], [0], [0], [1], [0, 0, 1, 1], [], []>} : vector<60x243xf32>, vector<243x32xf32>, vector<60x32xf32> -> vector<60x32xf32>
    %cst_64 = arith.constant 0.000000e+00 : f32
    %131 = vector.broadcast %cst_64 : f32 to vector<58x64xf32>
    %132 = vector.extract_strided_slice %130 {offsets = [0, 0], sizes = [58, 32], strides = [1, 1]} : vector<60x32xf32> to vector<58x32xf32>
    %133 = arith.truncf %132 : vector<58x32xf32> to vector<58x32xbf16>
    %c0_65 = arith.constant 0 : index
    %c0_66 = arith.constant 0 : index
    %c0_67 = arith.constant 0 : index
    %134 = vector.load %arg13[%c0_65, %c0_66, %c0_67] : memref<3x32x64xbf16, #tpu.memory_space<vmem>>, vector<1x32x64xbf16>
    %135 = vector.shape_cast %134 : vector<1x32x64xbf16> to vector<32x64xbf16>
    %cst_68 = arith.constant dense<0.000000e+00> : vector<58x64xf32>
    %136 = tpu.matmul %133, %135, %cst_68 {dimension_numbers = #tpu.dot_dimension_numbers<[1], [0], [0], [1], [0, 0, 1, 1], [], []>} : vector<58x32xbf16>, vector<32x64xbf16>, vector<58x64xf32> -> vector<58x64xf32>
    %137 = arith.addf %131, %136 : vector<58x64xf32>
    %138 = vector.extract_strided_slice %130 {offsets = [1, 0], sizes = [58, 32], strides = [1, 1]} : vector<60x32xf32> to vector<58x32xf32>
    %139 = arith.truncf %138 : vector<58x32xf32> to vector<58x32xbf16>
    %c1_69 = arith.constant 1 : index
    %c0_70 = arith.constant 0 : index
    %c0_71 = arith.constant 0 : index
    %140 = vector.load %arg13[%c1_69, %c0_70, %c0_71] : memref<3x32x64xbf16, #tpu.memory_space<vmem>>, vector<1x32x64xbf16>
    %141 = vector.shape_cast %140 : vector<1x32x64xbf16> to vector<32x64xbf16>
    %cst_72 = arith.constant dense<0.000000e+00> : vector<58x64xf32>
    %142 = tpu.matmul %139, %141, %cst_72 {dimension_numbers = #tpu.dot_dimension_numbers<[1], [0], [0], [1], [0, 0, 1, 1], [], []>} : vector<58x32xbf16>, vector<32x64xbf16>, vector<58x64xf32> -> vector<58x64xf32>
    %143 = arith.addf %137, %142 : vector<58x64xf32>
    %144 = vector.extract_strided_slice %130 {offsets = [2, 0], sizes = [58, 32], strides = [1, 1]} : vector<60x32xf32> to vector<58x32xf32>
    %145 = arith.truncf %144 : vector<58x32xf32> to vector<58x32xbf16>
    %c2_73 = arith.constant 2 : index
    %c0_74 = arith.constant 0 : index
    %c0_75 = arith.constant 0 : index
    %146 = vector.load %arg13[%c2_73, %c0_74, %c0_75] : memref<3x32x64xbf16, #tpu.memory_space<vmem>>, vector<1x32x64xbf16>
    %147 = vector.shape_cast %146 : vector<1x32x64xbf16> to vector<32x64xbf16>
    %cst_76 = arith.constant dense<0.000000e+00> : vector<58x64xf32>
    %148 = tpu.matmul %145, %147, %cst_76 {dimension_numbers = #tpu.dot_dimension_numbers<[1], [0], [0], [1], [0, 0, 1, 1], [], []>} : vector<58x32xbf16>, vector<32x64xbf16>, vector<58x64xf32> -> vector<58x64xf32>
    %149 = arith.addf %143, %148 : vector<58x64xf32>
    %c0_77 = arith.constant 0 : index
    %c0_78 = arith.constant 0 : index
    %150 = vector.load %arg14[%c0_77, %c0_78] : memref<1x64xf32, #tpu.memory_space<vmem>>, vector<1x64xf32>
    %151 = vector.broadcast %150 : vector<1x64xf32> to vector<58x64xf32>
    %152 = arith.addf %149, %151 : vector<58x64xf32>
    %c0_79 = arith.constant 0 : index
    %c0_80 = arith.constant 0 : index
    %153 = vector.load %arg17[%c0_79, %c0_80] : memref<58x1xf32, #tpu.memory_space<vmem>>, vector<58x1xf32>
    %154 = vector.broadcast %153 : vector<58x1xf32> to vector<58x64xf32>
    %155 = arith.mulf %152, %154 : vector<58x64xf32>
    %cst_81 = arith.constant dense<0.000000e+00> : vector<64xf32>
    %156 = vector.multi_reduction <add>, %155, %cst_81 [0] : vector<58x64xf32> to vector<64xf32>
    %157 = vector.shape_cast %156 : vector<64xf32> to vector<1x64xf32>
    %cst_82 = arith.constant 0.0178571437 : f32
    %158 = vector.broadcast %cst_82 : f32 to vector<1x64xf32>
    %159 = arith.mulf %157, %158 : vector<1x64xf32>
    %160 = arith.mulf %155, %152 : vector<58x64xf32>
    %cst_83 = arith.constant dense<0.000000e+00> : vector<64xf32>
    %161 = vector.multi_reduction <add>, %160, %cst_83 [0] : vector<58x64xf32> to vector<64xf32>
    %162 = vector.shape_cast %161 : vector<64xf32> to vector<1x64xf32>
    %cst_84 = arith.constant 0.0178571437 : f32
    %163 = vector.broadcast %cst_84 : f32 to vector<1x64xf32>
    %164 = arith.mulf %162, %163 : vector<1x64xf32>
    %165 = arith.mulf %159, %159 : vector<1x64xf32>
    %166 = arith.subf %164, %165 : vector<1x64xf32>
    %c0_85 = arith.constant 0 : index
    %c0_86 = arith.constant 0 : index
    %167 = vector.load %arg15[%c0_85, %c0_86] : memref<1x64xf32, #tpu.memory_space<vmem>>, vector<1x64xf32>
    %cst_87 = arith.constant 9.99999974E-6 : f32
    %168 = vector.broadcast %cst_87 : f32 to vector<1x64xf32>
    %169 = arith.addf %166, %168 : vector<1x64xf32>
    %170 = math.rsqrt %169 : vector<1x64xf32>
    %171 = arith.mulf %167, %170 : vector<1x64xf32>
    %c0_88 = arith.constant 0 : index
    %c0_89 = arith.constant 0 : index
    %172 = vector.load %arg16[%c0_88, %c0_89] : memref<1x64xf32, #tpu.memory_space<vmem>>, vector<1x64xf32>
    %173 = arith.mulf %159, %171 : vector<1x64xf32>
    %174 = arith.subf %172, %173 : vector<1x64xf32>
    %175 = vector.broadcast %171 : vector<1x64xf32> to vector<58x64xf32>
    %176 = arith.mulf %152, %175 : vector<58x64xf32>
    %177 = vector.broadcast %174 : vector<1x64xf32> to vector<58x64xf32>
    %178 = arith.addf %176, %177 : vector<58x64xf32>
    %cst_90 = arith.constant 0.000000e+00 : f32
    %179 = vector.broadcast %cst_90 : f32 to vector<58x64xf32>
    %180 = arith.maximumf %178, %179 : vector<58x64xf32>
    %181 = vector.extract_strided_slice %180 {offsets = [0, 0], sizes = [55, 64], strides = [1, 1]} : vector<58x64xf32> to vector<55x64xf32>
    %182 = vector.extract_strided_slice %180 {offsets = [1, 0], sizes = [55, 64], strides = [1, 1]} : vector<58x64xf32> to vector<55x64xf32>
    %183 = arith.maximumf %181, %182 : vector<55x64xf32>
    %184 = vector.extract_strided_slice %180 {offsets = [2, 0], sizes = [55, 64], strides = [1, 1]} : vector<58x64xf32> to vector<55x64xf32>
    %185 = vector.extract_strided_slice %180 {offsets = [3, 0], sizes = [55, 64], strides = [1, 1]} : vector<58x64xf32> to vector<55x64xf32>
    %186 = arith.maximumf %184, %185 : vector<55x64xf32>
    %187 = arith.maximumf %183, %186 : vector<55x64xf32>
    %c0_91 = arith.constant 0 : index
    %c0_92 = arith.constant 0 : index
    %188 = vector.load %arg18[%c0_91, %c0_92] : memref<14x55xf32, #tpu.memory_space<vmem>>, vector<14x55xf32>
    %cst_93 = arith.constant dense<0.000000e+00> : vector<14x64xf32>
    %189 = tpu.matmul %188, %187, %cst_93 {dimension_numbers = #tpu.dot_dimension_numbers<[1], [0], [0], [1], [0, 0, 1, 1], [], []>} : vector<14x55xf32>, vector<55x64xf32>, vector<14x64xf32> -> vector<14x64xf32>
    %cst_94 = arith.constant 0.000000e+00 : f32
    %190 = vector.broadcast %cst_94 : f32 to vector<12x64xf32>
    %191 = vector.extract_strided_slice %189 {offsets = [0, 0], sizes = [12, 64], strides = [1, 1]} : vector<14x64xf32> to vector<12x64xf32>
    %192 = arith.truncf %191 : vector<12x64xf32> to vector<12x64xbf16>
    %c0_95 = arith.constant 0 : index
    %c0_96 = arith.constant 0 : index
    %c0_97 = arith.constant 0 : index
    %193 = vector.load %arg19[%c0_95, %c0_96, %c0_97] : memref<3x64x64xbf16, #tpu.memory_space<vmem>>, vector<1x64x64xbf16>
    %194 = vector.shape_cast %193 : vector<1x64x64xbf16> to vector<64x64xbf16>
    %cst_98 = arith.constant dense<0.000000e+00> : vector<12x64xf32>
    %195 = tpu.matmul %192, %194, %cst_98 {dimension_numbers = #tpu.dot_dimension_numbers<[1], [0], [0], [1], [0, 0, 1, 1], [], []>} : vector<12x64xbf16>, vector<64x64xbf16>, vector<12x64xf32> -> vector<12x64xf32>
    %196 = arith.addf %190, %195 : vector<12x64xf32>
    %197 = vector.extract_strided_slice %189 {offsets = [1, 0], sizes = [12, 64], strides = [1, 1]} : vector<14x64xf32> to vector<12x64xf32>
    %198 = arith.truncf %197 : vector<12x64xf32> to vector<12x64xbf16>
    %c1_99 = arith.constant 1 : index
    %c0_100 = arith.constant 0 : index
    %c0_101 = arith.constant 0 : index
    %199 = vector.load %arg19[%c1_99, %c0_100, %c0_101] : memref<3x64x64xbf16, #tpu.memory_space<vmem>>, vector<1x64x64xbf16>
    %200 = vector.shape_cast %199 : vector<1x64x64xbf16> to vector<64x64xbf16>
    %cst_102 = arith.constant dense<0.000000e+00> : vector<12x64xf32>
    %201 = tpu.matmul %198, %200, %cst_102 {dimension_numbers = #tpu.dot_dimension_numbers<[1], [0], [0], [1], [0, 0, 1, 1], [], []>} : vector<12x64xbf16>, vector<64x64xbf16>, vector<12x64xf32> -> vector<12x64xf32>
    %202 = arith.addf %196, %201 : vector<12x64xf32>
    %203 = vector.extract_strided_slice %189 {offsets = [2, 0], sizes = [12, 64], strides = [1, 1]} : vector<14x64xf32> to vector<12x64xf32>
    %204 = arith.truncf %203 : vector<12x64xf32> to vector<12x64xbf16>
    %c2_103 = arith.constant 2 : index
    %c0_104 = arith.constant 0 : index
    %c0_105 = arith.constant 0 : index
    %205 = vector.load %arg19[%c2_103, %c0_104, %c0_105] : memref<3x64x64xbf16, #tpu.memory_space<vmem>>, vector<1x64x64xbf16>
    %206 = vector.shape_cast %205 : vector<1x64x64xbf16> to vector<64x64xbf16>
    %cst_106 = arith.constant dense<0.000000e+00> : vector<12x64xf32>
    %207 = tpu.matmul %204, %206, %cst_106 {dimension_numbers = #tpu.dot_dimension_numbers<[1], [0], [0], [1], [0, 0, 1, 1], [], []>} : vector<12x64xbf16>, vector<64x64xbf16>, vector<12x64xf32> -> vector<12x64xf32>
    %208 = arith.addf %202, %207 : vector<12x64xf32>
    %c0_107 = arith.constant 0 : index
    %c0_108 = arith.constant 0 : index
    %209 = vector.load %arg20[%c0_107, %c0_108] : memref<1x64xf32, #tpu.memory_space<vmem>>, vector<1x64xf32>
    %210 = vector.broadcast %209 : vector<1x64xf32> to vector<12x64xf32>
    %211 = arith.addf %208, %210 : vector<12x64xf32>
    %c0_109 = arith.constant 0 : index
    %c0_110 = arith.constant 0 : index
    %212 = vector.load %arg23[%c0_109, %c0_110] : memref<12x1xf32, #tpu.memory_space<vmem>>, vector<12x1xf32>
    %213 = vector.broadcast %212 : vector<12x1xf32> to vector<12x64xf32>
    %214 = arith.mulf %211, %213 : vector<12x64xf32>
    %cst_111 = arith.constant dense<0.000000e+00> : vector<64xf32>
    %215 = vector.multi_reduction <add>, %214, %cst_111 [0] : vector<12x64xf32> to vector<64xf32>
    %216 = vector.shape_cast %215 : vector<64xf32> to vector<1x64xf32>
    %cst_112 = arith.constant 1.000000e-01 : f32
    %217 = vector.broadcast %cst_112 : f32 to vector<1x64xf32>
    %218 = arith.mulf %216, %217 : vector<1x64xf32>
    %219 = arith.mulf %214, %211 : vector<12x64xf32>
    %cst_113 = arith.constant dense<0.000000e+00> : vector<64xf32>
    %220 = vector.multi_reduction <add>, %219, %cst_113 [0] : vector<12x64xf32> to vector<64xf32>
    %221 = vector.shape_cast %220 : vector<64xf32> to vector<1x64xf32>
    %cst_114 = arith.constant 1.000000e-01 : f32
    %222 = vector.broadcast %cst_114 : f32 to vector<1x64xf32>
    %223 = arith.mulf %221, %222 : vector<1x64xf32>
    %224 = arith.mulf %218, %218 : vector<1x64xf32>
    %225 = arith.subf %223, %224 : vector<1x64xf32>
    %c0_115 = arith.constant 0 : index
    %c0_116 = arith.constant 0 : index
    %226 = vector.load %arg21[%c0_115, %c0_116] : memref<1x64xf32, #tpu.memory_space<vmem>>, vector<1x64xf32>
    %cst_117 = arith.constant 9.99999974E-6 : f32
    %227 = vector.broadcast %cst_117 : f32 to vector<1x64xf32>
    %228 = arith.addf %225, %227 : vector<1x64xf32>
    %229 = math.rsqrt %228 : vector<1x64xf32>
    %230 = arith.mulf %226, %229 : vector<1x64xf32>
    %c0_118 = arith.constant 0 : index
    %c0_119 = arith.constant 0 : index
    %231 = vector.load %arg22[%c0_118, %c0_119] : memref<1x64xf32, #tpu.memory_space<vmem>>, vector<1x64xf32>
    %232 = arith.mulf %218, %230 : vector<1x64xf32>
    %233 = arith.subf %231, %232 : vector<1x64xf32>
    %234 = vector.broadcast %230 : vector<1x64xf32> to vector<12x64xf32>
    %235 = arith.mulf %211, %234 : vector<12x64xf32>
    %236 = vector.broadcast %233 : vector<1x64xf32> to vector<12x64xf32>
    %237 = arith.addf %235, %236 : vector<12x64xf32>
    %cst_120 = arith.constant 0.000000e+00 : f32
    %238 = vector.broadcast %cst_120 : f32 to vector<12x64xf32>
    %239 = arith.maximumf %237, %238 : vector<12x64xf32>
    %240 = vector.extract_strided_slice %239 {offsets = [0, 0], sizes = [9, 64], strides = [1, 1]} : vector<12x64xf32> to vector<9x64xf32>
    %241 = vector.extract_strided_slice %239 {offsets = [1, 0], sizes = [9, 64], strides = [1, 1]} : vector<12x64xf32> to vector<9x64xf32>
    %242 = arith.maximumf %240, %241 : vector<9x64xf32>
    %243 = vector.extract_strided_slice %239 {offsets = [2, 0], sizes = [9, 64], strides = [1, 1]} : vector<12x64xf32> to vector<9x64xf32>
    %244 = vector.extract_strided_slice %239 {offsets = [3, 0], sizes = [9, 64], strides = [1, 1]} : vector<12x64xf32> to vector<9x64xf32>
    %245 = arith.maximumf %243, %244 : vector<9x64xf32>
    %246 = arith.maximumf %242, %245 : vector<9x64xf32>
    %c0_121 = arith.constant 0 : index
    %c0_122 = arith.constant 0 : index
    %247 = vector.load %arg24[%c0_121, %c0_122] : memref<2x9xf32, #tpu.memory_space<vmem>>, vector<2x9xf32>
    %cst_123 = arith.constant dense<0.000000e+00> : vector<2x64xf32>
    %248 = tpu.matmul %247, %246, %cst_123 {dimension_numbers = #tpu.dot_dimension_numbers<[1], [0], [0], [1], [0, 0, 1, 1], [], []>} : vector<2x9xf32>, vector<9x64xf32>, vector<2x64xf32> -> vector<2x64xf32>
    %c0_124 = arith.constant 0 : index
    %c0_125 = arith.constant 0 : index
    %249 = vector.load %arg25[%c0_124, %c0_125] : memref<2x2xf32, #tpu.memory_space<vmem>>, vector<2x2xf32>
    %cst_126 = arith.constant dense<0.000000e+00> : vector<2x64xf32>
    %250 = tpu.matmul %249, %248, %cst_126 {dimension_numbers = #tpu.dot_dimension_numbers<[1], [0], [0], [1], [0, 0, 1, 1], [], []>} : vector<2x2xf32>, vector<2x64xf32>, vector<2x64xf32> -> vector<2x64xf32>
    %251 = arith.truncf %250 : vector<2x64xf32> to vector<2x64xbf16>
    %c0_127 = arith.constant 0 : index
    %c0_128 = arith.constant 0 : index
    %252 = vector.load %arg26[%c0_127, %c0_128] : memref<64x35xbf16, #tpu.memory_space<vmem>>, vector<64x35xbf16>
    %cst_129 = arith.constant dense<0.000000e+00> : vector<2x35xf32>
    %253 = tpu.matmul %251, %252, %cst_129 {dimension_numbers = #tpu.dot_dimension_numbers<[1], [0], [0], [1], [0, 0, 1, 1], [], []>} : vector<2x64xbf16>, vector<64x35xbf16>, vector<2x35xf32> -> vector<2x35xf32>
    %c0_130 = arith.constant 0 : index
    %c0_131 = arith.constant 0 : index
    %254 = vector.load %arg27[%c0_130, %c0_131] : memref<1x35xf32, #tpu.memory_space<vmem>>, vector<1x35xf32>
    %255 = vector.broadcast %254 : vector<1x35xf32> to vector<2x35xf32>
    %256 = arith.addf %253, %255 : vector<2x35xf32>
    %cst_132 = arith.constant dense<0xFF800000> : vector<2xf32>
    %257 = vector.multi_reduction <maximumf>, %256, %cst_132 [1] : vector<2x35xf32> to vector<2xf32>
    %258 = vector.shape_cast %257 : vector<2xf32> to vector<2x1xf32>
    %259 = vector.broadcast %258 : vector<2x1xf32> to vector<2x35xf32>
    %260 = arith.subf %256, %259 : vector<2x35xf32>
    %261 = math.exp %260 : vector<2x35xf32>
    %cst_133 = arith.constant dense<0.000000e+00> : vector<2xf32>
    %262 = vector.multi_reduction <add>, %261, %cst_133 [1] : vector<2x35xf32> to vector<2xf32>
    %263 = vector.shape_cast %262 : vector<2xf32> to vector<2x1xf32>
    %264 = math.log %263 : vector<2x1xf32>
    %265 = vector.broadcast %264 : vector<2x1xf32> to vector<2x35xf32>
    %266 = arith.subf %260, %265 : vector<2x35xf32>
    %c0_134 = arith.constant 0 : index
    %c0_135 = arith.constant 0 : index
    %267 = vector.load %arg28[%c0_134, %c0_135] : memref<2x35xf32, #tpu.memory_space<vmem>>, vector<2x35xf32>
    tpu.vector_store %arg28[%c0_134, %c0_135], %266 {strides = array<i32>} : memref<2x35xf32, #tpu.memory_space<vmem>>, vector<2x35xf32>,
    return
  }
}

</mosaic_0001>

<llo_original>
// kernel: m5_forward.1
$region0: #{m5_forward.1}
  #allocation0 [shape = 'u32[]', space=smem, size = 0x4, offset = 0x4, fixed_abs, tag = 'smem constant byte address 0x4 - core index']
  #allocation1 [shape = 'u32[72,128]{1,0:T(1,128)}', space=vmem, size = 0x9000, scoped, tag = 'internal scratch']
  %s0 = inlined_call_operand.vmem [shape: f32[1000,16], index: 0, kind: input, shape index: {}]
  %s1 = inlined_call_operand.vmem [shape: bf16[5,16,32], index: 1, kind: input, shape index: {}]
  %s2 = inlined_call_operand.vmem [shape: f32[1,32], index: 2, kind: input, shape index: {}]
  %s3 = inlined_call_operand.vmem [shape: f32[1,32], index: 3, kind: input, shape index: {}]
  %s4 = inlined_call_operand.vmem [shape: f32[1,32], index: 4, kind: input, shape index: {}]
  %s5 = inlined_call_operand.vmem [shape: f32[996,1], index: 5, kind: input, shape index: {}]
  %s6 = inlined_call_operand.vmem [shape: f32[248,993], index: 6, kind: input, shape index: {}]
  %s7 = inlined_call_operand.vmem [shape: bf16[3,32,32], index: 7, kind: input, shape index: {}]
  %s8 = inlined_call_operand.vmem [shape: f32[1,32], index: 8, kind: input, shape index: {}]
  %s9 = inlined_call_operand.vmem [shape: f32[1,32], index: 9, kind: input, shape index: {}]
  %s10 = inlined_call_operand.vmem [shape: f32[1,32], index: 10, kind: input, shape index: {}]
  %s11 = inlined_call_operand.vmem [shape: f32[246,1], index: 11, kind: input, shape index: {}]
  %s12 = inlined_call_operand.vmem [shape: f32[60,243], index: 12, kind: input, shape index: {}]
  %s13 = inlined_call_operand.vmem [shape: bf16[3,32,64], index: 13, kind: input, shape index: {}]
  %s14 = inlined_call_operand.vmem [shape: f32[1,64], index: 14, kind: input, shape index: {}]
  %s15 = inlined_call_operand.vmem [shape: f32[1,64], index: 15, kind: input, shape index: {}]
  %s16 = inlined_call_operand.vmem [shape: f32[1,64], index: 16, kind: input, shape index: {}]
  %s17 = inlined_call_operand.vmem [shape: f32[58,1], index: 17, kind: input, shape index: {}]
  %s18 = inlined_call_operand.vmem [shape: f32[14,55], index: 18, kind: input, shape index: {}]
  %s19 = inlined_call_operand.vmem [shape: bf16[3,64,64], index: 19, kind: input, shape index: {}]
  %s20 = inlined_call_operand.vmem [shape: f32[1,64], index: 20, kind: input, shape index: {}]
  %s21 = inlined_call_operand.vmem [shape: f32[1,64], index: 21, kind: input, shape index: {}]
  %s22 = inlined_call_operand.vmem [shape: f32[1,64], index: 22, kind: input, shape index: {}]
  %s23 = inlined_call_operand.vmem [shape: f32[12,1], index: 23, kind: input, shape index: {}]
  %s24 = inlined_call_operand.vmem [shape: f32[2,9], index: 24, kind: input, shape index: {}]
  %s25 = inlined_call_operand.vmem [shape: f32[2,2], index: 25, kind: input, shape index: {}]
  %s26 = inlined_call_operand.vmem [shape: bf16[64,35], index: 26, kind: input, shape index: {}]
  %s27 = inlined_call_operand.vmem [shape: f32[1,35], index: 27, kind: input, shape index: {}]
  %s28 = inlined_call_operand.hbm [shape: f32[2,35], index: 28, kind: output, shape index: {}]
  %s29 = sld [smem:[#allocation0]]
  $region122: #{m5_forward.1} parent=0
    _
  %s31 = ssub.s32 1, %s29
  %s32 = scalar_select 0, %s31, %s29
  $region1: #{m5_forward.1} parent=0
    #allocation2 [shape = 'u8[1024]{0}', space=vmem, size = 0x400, scoped, tag = 'output window, operand 0, single buffered']
    #allocation3 [shape = 's32[1]{0}', space=sflag, size = 0x4, scoped, tag = 'scoped memory for m5_forward.1']
    %33 = vsyncpa [#allocation3], 0
    // Predicated region
    $region2: #{m5_forward.1} parent=1 // pred_check
      _
    $region3: #{m5_forward.1} parent=1 // pred_check_branch
      %35 = sbr.rel (0) target = $region5
    $region4: #{m5_forward.1} parent=1 // pred_region
      _
    $region5: #{m5_forward.1} parent=1 // pred_fallthru
      _
    // Predicated region
    $region6: #{m5_forward.1} parent=1 // pred_check
      _
    $region7: #{m5_forward.1} parent=1 // pred_check_branch
      %37 = sbr.rel (0) target = $region9
    $region8: #{m5_forward.1} parent=1 // pred_region
      _
    $region9: #{m5_forward.1} parent=1 // pred_fallthru
      _
    // Predicated region
    $region10: #{m5_forward.1} parent=1 // pred_check
      _
    $region11: #{m5_forward.1} parent=1 // pred_check_branch
      %39 = sbr.rel (0) target = $region13
    $region12: #{m5_forward.1} parent=1 // pred_region
      _
    $region13: #{m5_forward.1} parent=1 // pred_fallthru
      _
    // Predicated region
    $region14: #{m5_forward.1} parent=1 // pred_check
      _
    $region15: #{m5_forward.1} parent=1 // pred_check_branch
      %41 = sbr.rel (0) target = $region17
    $region16: #{m5_forward.1} parent=1 // pred_region
      _
    $region17: #{m5_forward.1} parent=1 // pred_fallthru
      _
    // Predicated region
    $region18: #{m5_forward.1} parent=1 // pred_check
      _
    $region19: #{m5_forward.1} parent=1 // pred_check_branch
      %43 = sbr.rel (0) target = $region21
    $region20: #{m5_forward.1} parent=1 // pred_region
      _
    $region21: #{m5_forward.1} parent=1 // pred_fallthru
      _
    // Predicated region
    $region22: #{m5_forward.1} parent=1 // pred_check
      _
    $region23: #{m5_forward.1} parent=1 // pred_check_branch
      %45 = sbr.rel (0) target = $region25
    $region24: #{m5_forward.1} parent=1 // pred_region
      _
    $region25: #{m5_forward.1} parent=1 // pred_fallthru
      _
    // Predicated region
    $region26: #{m5_forward.1} parent=1 // pred_check
      _
    $region27: #{m5_forward.1} parent=1 // pred_check_branch
      %47 = sbr.rel (0) target = $region29
    $region28: #{m5_forward.1} parent=1 // pred_region
      _
    $region29: #{m5_forward.1} parent=1 // pred_fallthru
      _
    // Predicated region
    $region30: #{m5_forward.1} parent=1 // pred_check
      _
    $region31: #{m5_forward.1} parent=1 // pred_check_branch
      %49 = sbr.rel (0) target = $region33
    $region32: #{m5_forward.1} parent=1 // pred_region
      _
    $region33: #{m5_forward.1} parent=1 // pred_fallthru
      _
    // Predicated region
    $region34: #{m5_forward.1} parent=1 // pred_check
      _
    $region35: #{m5_forward.1} parent=1 // pred_check_branch
      %51 = sbr.rel (0) target = $region37
    $region36: #{m5_forward.1} parent=1 // pred_region
      _
    $region37: #{m5_forward.1} parent=1 // pred_fallthru
      _
    // Predicated region
    $region38: #{m5_forward.1} parent=1 // pred_check
      _
    $region39: #{m5_forward.1} parent=1 // pred_check_branch
      %53 = sbr.rel (0) target = $region41
    $region40: #{m5_forward.1} parent=1 // pred_region
      _
    $region41: #{m5_forward.1} parent=1 // pred_fallthru
      _
    // Predicated region
    $region42: #{m5_forward.1} parent=1 // pred_check
      _
    $region43: #{m5_forward.1} parent=1 // pred_check_branch
      %55 = sbr.rel (0) target = $region45
    $region44: #{m5_forward.1} parent=1 // pred_region
      _
    $region45: #{m5_forward.1} parent=1 // pred_fallthru
      _
    // Predicated region
    $region46: #{m5_forward.1} parent=1 // pred_check
      _
    $region47: #{m5_forward.1} parent=1 // pred_check_branch
      %57 = sbr.rel (0) target = $region49
    $region48: #{m5_forward.1} parent=1 // pred_region
      _
    $region49: #{m5_forward.1} parent=1 // pred_fallthru
      _
    // Predicated region
    $region50: #{m5_forward.1} parent=1 // pred_check
      _
    $region51: #{m5_forward.1} parent=1 // pred_check_branch
      %59 = sbr.rel (0) target = $region53
    $region52: #{m5_forward.1} parent=1 // pred_region
      _
    $region53: #{m5_forward.1} parent=1 // pred_fallthru
      _
    // Predicated region
    $region54: #{m5_forward.1} parent=1 // pred_check
      _
    $region55: #{m5_forward.1} parent=1 // pred_check_branch
      %61 = sbr.rel (0) target = $region57
    $region56: #{m5_forward.1} parent=1 // pred_region
      _
    $region57: #{m5_forward.1} parent=1 // pred_fallthru
      _
    // Predicated region
    $region58: #{m5_forward.1} parent=1 // pred_check
      _
    $region59: #{m5_forward.1} parent=1 // pred_check_branch
      %63 = sbr.rel (0) target = $region61
    $region60: #{m5_forward.1} parent=1 // pred_region
      _
    $region61: #{m5_forward.1} parent=1 // pred_fallthru
      _
    // Predicated region
    $region62: #{m5_forward.1} parent=1 // pred_check
      _
    $region63: #{m5_forward.1} parent=1 // pred_check_branch
      %65 = sbr.rel (0) target = $region65
    $region64: #{m5_forward.1} parent=1 // pred_region
      _
    $region65: #{m5_forward.1} parent=1 // pred_fallthru
      _
    // Predicated region
    $region66: #{m5_forward.1} parent=1 // pred_check
      _
    $region67: #{m5_forward.1} parent=1 // pred_check_branch
      %67 = sbr.rel (0) target = $region69
    $region68: #{m5_forward.1} parent=1 // pred_region
      _
    $region69: #{m5_forward.1} parent=1 // pred_fallthru
      _
    // Predicated region
    $region70: #{m5_forward.1} parent=1 // pred_check
      _
    $region71: #{m5_forward.1} parent=1 // pred_check_branch
      %69 = sbr.rel (0) target = $region73
    $region72: #{m5_forward.1} parent=1 // pred_region
      _
    $region73: #{m5_forward.1} parent=1 // pred_fallthru
      _
    // Predicated region
    $region74: #{m5_forward.1} parent=1 // pred_check
      _
    $region75: #{m5_forward.1} parent=1 // pred_check_branch
      %71 = sbr.rel (0) target = $region77
    $region76: #{m5_forward.1} parent=1 // pred_region
      _
    $region77: #{m5_forward.1} parent=1 // pred_fallthru
      _
    // Predicated region
    $region78: #{m5_forward.1} parent=1 // pred_check
      _
    $region79: #{m5_forward.1} parent=1 // pred_check_branch
      %73 = sbr.rel (0) target = $region81
    $region80: #{m5_forward.1} parent=1 // pred_region
      _
    $region81: #{m5_forward.1} parent=1 // pred_fallthru
      _
    // Predicated region
    $region82: #{m5_forward.1} parent=1 // pred_check
      _
    $region83: #{m5_forward.1} parent=1 // pred_check_branch
      %75 = sbr.rel (0) target = $region85
    $region84: #{m5_forward.1} parent=1 // pred_region
      _
    $region85: #{m5_forward.1} parent=1 // pred_fallthru
      _
    // Predicated region
    $region86: #{m5_forward.1} parent=1 // pred_check
      _
    $region87: #{m5_forward.1} parent=1 // pred_check_branch
      %77 = sbr.rel (0) target = $region89
    $region88: #{m5_forward.1} parent=1 // pred_region
      _
    $region89: #{m5_forward.1} parent=1 // pred_fallthru
      _
    // Predicated region
    $region90: #{m5_forward.1} parent=1 // pred_check
      _
    $region91: #{m5_forward.1} parent=1 // pred_check_branch
      %79 = sbr.rel (0) target = $region93
    $region92: #{m5_forward.1} parent=1 // pred_region
      _
    $region93: #{m5_forward.1} parent=1 // pred_fallthru
      _
    // Predicated region
    $region94: #{m5_forward.1} parent=1 // pred_check
      _
    $region95: #{m5_forward.1} parent=1 // pred_check_branch
      %81 = sbr.rel (0) target = $region97
    $region96: #{m5_forward.1} parent=1 // pred_region
      _
    $region97: #{m5_forward.1} parent=1 // pred_fallthru
      _
    // Predicated region
    $region98: #{m5_forward.1} parent=1 // pred_check
      _
    $region99: #{m5_forward.1} parent=1 // pred_check_branch
      %83 = sbr.rel (0) target = $region101
    $region100: #{m5_forward.1} parent=1 // pred_region
      _
    $region101: #{m5_forward.1} parent=1 // pred_fallthru
      _
    // Predicated region
    $region102: #{m5_forward.1} parent=1 // pred_check
      _
    $region103: #{m5_forward.1} parent=1 // pred_check_branch
      %85 = sbr.rel (0) target = $region105
    $region104: #{m5_forward.1} parent=1 // pred_region
      _
    $region105: #{m5_forward.1} parent=1 // pred_fallthru
      _
    // Predicated region
    $region106: #{m5_forward.1} parent=1 // pred_check
      _
    $region107: #{m5_forward.1} parent=1 // pred_check_branch
      %87 = sbr.rel (0) target = $region109
    $region108: #{m5_forward.1} parent=1 // pred_region
      _
    $region109: #{m5_forward.1} parent=1 // pred_fallthru
      _
    // Predicated region
    $region110: #{m5_forward.1} parent=1 // pred_check
      _
    $region111: #{m5_forward.1} parent=1 // pred_check_branch
      %89 = sbr.rel (0) target = $region113
    $region112: #{m5_forward.1} parent=1 // pred_region
      _
    $region113: #{m5_forward.1} parent=1 // pred_fallthru
      _
    %v91 = vld [vmem:[%s0] sm:$0xff]
    %v92 = vld [vmem:[%s0 + $0x8] sm:$0xff]
    %v93 = vld [vmem:[%s0 + $0x10] sm:$0xff]
    %v94 = vld [vmem:[%s0 + $0x18] sm:$0xff]
    %v95 = vld [vmem:[%s0 + $0x20] sm:$0xff]
    %v96 = vld [vmem:[%s0 + $0x28] sm:$0xff]
    %v97 = vld [vmem:[%s0 + $0x30] sm:$0xff]
    %v98 = vld [vmem:[%s0 + $0x38] sm:$0xff]
    %v99 = vld [vmem:[%s0 + $0x40] sm:$0xff]
    %v100 = vld [vmem:[%s0 + $0x48] sm:$0xff]
    %v101 = vld [vmem:[%s0 + $0x50] sm:$0xff]
    %v102 = vld [vmem:[%s0 + $0x58] sm:$0xff]
    %v103 = vld [vmem:[%s0 + $0x60] sm:$0xff]
    %v104 = vld [vmem:[%s0 + $0x68] sm:$0xff]
    %v105 = vld [vmem:[%s0 + $0x70] sm:$0xff]
    %v106 = vld [vmem:[%s0 + $0x78] sm:$0xff]
    %v107 = vld [vmem:[%s0 + $0x80] sm:$0xff]
    %v108 = vld [vmem:[%s0 + $0x88] sm:$0xff]
    %v109 = vld [vmem:[%s0 + $0x90] sm:$0xff]
    %v110 = vld [vmem:[%s0 + $0x98] sm:$0xff]
    %v111 = vld [vmem:[%s0 + $0xa0] sm:$0xff]
    %v112 = vld [vmem:[%s0 + $0xa8] sm:$0xff]
    %v113 = vld [vmem:[%s0 + $0xb0] sm:$0xff]
    %v114 = vld [vmem:[%s0 + $0xb8] sm:$0xff]
    %v115 = vld [vmem:[%s0 + $0xc0] sm:$0xff]
    %v116 = vld [vmem:[%s0 + $0xc8] sm:$0xff]
    %v117 = vld [vmem:[%s0 + $0xd0] sm:$0xff]
    %v118 = vld [vmem:[%s0 + $0xd8] sm:$0xff]
    %v119 = vld [vmem:[%s0 + $0xe0] sm:$0xff]
    %v120 = vld [vmem:[%s0 + $0xe8] sm:$0xff]
    %v121 = vld [vmem:[%s0 + $0xf0] sm:$0xff]
    %v122 = vld [vmem:[%s0 + $0xf8] sm:$0xff]
    %v123 = vld [vmem:[%s0 + $0x100] sm:$0xff]
    %v124 = vld [vmem:[%s0 + $0x108] sm:$0xff]
    %v125 = vld [vmem:[%s0 + $0x110] sm:$0xff]
    %v126 = vld [vmem:[%s0 + $0x118] sm:$0xff]
    %v127 = vld [vmem:[%s0 + $0x120] sm:$0xff]
    %v128 = vld [vmem:[%s0 + $0x128] sm:$0xff]
    %v129 = vld [vmem:[%s0 + $0x130] sm:$0xff]
    %v130 = vld [vmem:[%s0 + $0x138] sm:$0xff]
    %v131 = vld [vmem:[%s0 + $0x140] sm:$0xff]
    %v132 = vld [vmem:[%s0 + $0x148] sm:$0xff]
    %v133 = vld [vmem:[%s0 + $0x150] sm:$0xff]
    %v134 = vld [vmem:[%s0 + $0x158] sm:$0xff]
    %v135 = vld [vmem:[%s0 + $0x160] sm:$0xff]
    %v136 = vld [vmem:[%s0 + $0x168] sm:$0xff]
    %v137 = vld [vmem:[%s0 + $0x170] sm:$0xff]
    %v138 = vld [vmem:[%s0 + $0x178] sm:$0xff]
    %v139 = vld [vmem:[%s0 + $0x180] sm:$0xff]
    %v140 = vld [vmem:[%s0 + $0x188] sm:$0xff]
    %v141 = vld [vmem:[%s0 + $0x190] sm:$0xff]
    %v142 = vld [vmem:[%s0 + $0x198] sm:$0xff]
    %v143 = vld [vmem:[%s0 + $0x1a0] sm:$0xff]
    %v144 = vld [vmem:[%s0 + $0x1a8] sm:$0xff]
    %v145 = vld [vmem:[%s0 + $0x1b0] sm:$0xff]
    %v146 = vld [vmem:[%s0 + $0x1b8] sm:$0xff]
    %v147 = vld [vmem:[%s0 + $0x1c0] sm:$0xff]
    %v148 = vld [vmem:[%s0 + $0x1c8] sm:$0xff]
    %v149 = vld [vmem:[%s0 + $0x1d0] sm:$0xff]
    %v150 = vld [vmem:[%s0 + $0x1d8] sm:$0xff]
    %v151 = vld [vmem:[%s0 + $0x1e0] sm:$0xff]
    %v152 = vld [vmem:[%s0 + $0x1e8] sm:$0xff]
    %v153 = vld [vmem:[%s0 + $0x1f0] sm:$0xff]
    %v154 = vld [vmem:[%s0 + $0x1f8] sm:$0xff]
    %v155 = vld [vmem:[%s0 + $0x200] sm:$0xff]
    %v156 = vld [vmem:[%s0 + $0x208] sm:$0xff]
    %v157 = vld [vmem:[%s0 + $0x210] sm:$0xff]
    %v158 = vld [vmem:[%s0 + $0x218] sm:$0xff]
    %v159 = vld [vmem:[%s0 + $0x220] sm:$0xff]
    %v160 = vld [vmem:[%s0 + $0x228] sm:$0xff]
    %v161 = vld [vmem:[%s0 + $0x230] sm:$0xff]
    %v162 = vld [vmem:[%s0 + $0x238] sm:$0xff]
    %v163 = vld [vmem:[%s0 + $0x240] sm:$0xff]
    %v164 = vld [vmem:[%s0 + $0x248] sm:$0xff]
    %v165 = vld [vmem:[%s0 + $0x250] sm:$0xff]
    %v166 = vld [vmem:[%s0 + $0x258] sm:$0xff]
    %v167 = vld [vmem:[%s0 + $0x260] sm:$0xff]
    %v168 = vld [vmem:[%s0 + $0x268] sm:$0xff]
    %v169 = vld [vmem:[%s0 + $0x270] sm:$0xff]
    %v170 = vld [vmem:[%s0 + $0x278] sm:$0xff]
    %v171 = vld [vmem:[%s0 + $0x280] sm:$0xff]
    %v172 = vld [vmem:[%s0 + $0x288] sm:$0xff]
    %v173 = vld [vmem:[%s0 + $0x290] sm:$0xff]
    %v174 = vld [vmem:[%s0 + $0x298] sm:$0xff]
    %v175 = vld [vmem:[%s0 + $0x2a0] sm:$0xff]
    %v176 = vld [vmem:[%s0 + $0x2a8] sm:$0xff]
    %v177 = vld [vmem:[%s0 + $0x2b0] sm:$0xff]
    %v178 = vld [vmem:[%s0 + $0x2b8] sm:$0xff]
    %v179 = vld [vmem:[%s0 + $0x2c0] sm:$0xff]
    %v180 = vld [vmem:[%s0 + $0x2c8] sm:$0xff]
    %v181 = vld [vmem:[%s0 + $0x2d0] sm:$0xff]
    %v182 = vld [vmem:[%s0 + $0x2d8] sm:$0xff]
    %v183 = vld [vmem:[%s0 + $0x2e0] sm:$0xff]
    %v184 = vld [vmem:[%s0 + $0x2e8] sm:$0xff]
    %v185 = vld [vmem:[%s0 + $0x2f0] sm:$0xff]
    %v186 = vld [vmem:[%s0 + $0x2f8] sm:$0xff]
    %v187 = vld [vmem:[%s0 + $0x300] sm:$0xff]
    %v188 = vld [vmem:[%s0 + $0x308] sm:$0xff]
    %v189 = vld [vmem:[%s0 + $0x310] sm:$0xff]
    %v190 = vld [vmem:[%s0 + $0x318] sm:$0xff]
    %v191 = vld [vmem:[%s0 + $0x320] sm:$0xff]
    %v192 = vld [vmem:[%s0 + $0x328] sm:$0xff]
    %v193 = vld [vmem:[%s0 + $0x330] sm:$0xff]
    %v194 = vld [vmem:[%s0 + $0x338] sm:$0xff]
    %v195 = vld [vmem:[%s0 + $0x340] sm:$0xff]
    %v196 = vld [vmem:[%s0 + $0x348] sm:$0xff]
    %v197 = vld [vmem:[%s0 + $0x350] sm:$0xff]
    %v198 = vld [vmem:[%s0 + $0x358] sm:$0xff]
    %v199 = vld [vmem:[%s0 + $0x360] sm:$0xff]
    %v200 = vld [vmem:[%s0 + $0x368] sm:$0xff]
    %v201 = vld [vmem:[%s0 + $0x370] sm:$0xff]
    %v202 = vld [vmem:[%s0 + $0x378] sm:$0xff]
    %v203 = vld [vmem:[%s0 + $0x380] sm:$0xff]
    %v204 = vld [vmem:[%s0 + $0x388] sm:$0xff]
    %v205 = vld [vmem:[%s0 + $0x390] sm:$0xff]
    %v206 = vld [vmem:[%s0 + $0x398] sm:$0xff]
    %v207 = vld [vmem:[%s0 + $0x3a0] sm:$0xff]
    %v208 = vld [vmem:[%s0 + $0x3a8] sm:$0xff]
    %v209 = vld [vmem:[%s0 + $0x3b0] sm:$0xff]
    %v210 = vld [vmem:[%s0 + $0x3b8] sm:$0xff]
    %v211 = vld [vmem:[%s0 + $0x3c0] sm:$0xff]
    %v212 = vld [vmem:[%s0 + $0x3c8] sm:$0xff]
    %v213 = vld [vmem:[%s0 + $0x3d0] sm:$0xff]
    %v214 = vld [vmem:[%s0 + $0x3d8] sm:$0xff]
    %v215 = vld [vmem:[%s0 + $0x3e0] sm:$0xff]
    %v216 = vpack.c.bf16 %v92, %v91
    %v217 = vpack.c.bf16 %v94, %v93
    %v218 = vpack.c.bf16 %v96, %v95
    %v219 = vpack.c.bf16 %v98, %v97
    %v220 = vpack.c.bf16 %v100, %v99
    %v221 = vpack.c.bf16 %v102, %v101
    %v222 = vpack.c.bf16 %v104, %v103
    %v223 = vpack.c.bf16 %v106, %v105
    %v224 = vpack.c.bf16 %v108, %v107
    %v225 = vpack.c.bf16 %v110, %v109
    %v226 = vpack.c.bf16 %v112, %v111
    %v227 = vpack.c.bf16 %v114, %v113
    %v228 = vpack.c.bf16 %v116, %v115
    %v229 = vpack.c.bf16 %v118, %v117
    %v230 = vpack.c.bf16 %v120, %v119
    %v231 = vpack.c.bf16 %v122, %v121
    %v232 = vpack.c.bf16 %v124, %v123
    %v233 = vpack.c.bf16 %v126, %v125
    %v234 = vpack.c.bf16 %v128, %v127
    %v235 = vpack.c.bf16 %v130, %v129
    %v236 = vpack.c.bf16 %v132, %v131
    %v237 = vpack.c.bf16 %v134, %v133
    %v238 = vpack.c.bf16 %v136, %v135
    %v239 = vpack.c.bf16 %v138, %v137
    %v240 = vpack.c.bf16 %v140, %v139
    %v241 = vpack.c.bf16 %v142, %v141
    %v242 = vpack.c.bf16 %v144, %v143
    %v243 = vpack.c.bf16 %v146, %v145
    %v244 = vpack.c.bf16 %v148, %v147
    %v245 = vpack.c.bf16 %v150, %v149
    %v246 = vpack.c.bf16 %v152, %v151
    %v247 = vpack.c.bf16 %v154, %v153
    %v248 = vpack.c.bf16 %v156, %v155
    %v249 = vpack.c.bf16 %v158, %v157
    %v250 = vpack.c.bf16 %v160, %v159
    %v251 = vpack.c.bf16 %v162, %v161
    %v252 = vpack.c.bf16 %v164, %v163
    %v253 = vpack.c.bf16 %v166, %v165
    %v254 = vpack.c.bf16 %v168, %v167
    %v255 = vpack.c.bf16 %v170, %v169
    %v256 = vpack.c.bf16 %v172, %v171
    %v257 = vpack.c.bf16 %v174, %v173
    %v258 = vpack.c.bf16 %v176, %v175
    %v259 = vpack.c.bf16 %v178, %v177
    %v260 = vpack.c.bf16 %v180, %v179
    %v261 = vpack.c.bf16 %v182, %v181
    %v262 = vpack.c.bf16 %v184, %v183
    %v263 = vpack.c.bf16 %v186, %v185
    %v264 = vpack.c.bf16 %v188, %v187
    %v265 = vpack.c.bf16 %v190, %v189
    %v266 = vpack.c.bf16 %v192, %v191
    %v267 = vpack.c.bf16 %v194, %v193
    %v268 = vpack.c.bf16 %v196, %v195
    %v269 = vpack.c.bf16 %v198, %v197
    %v270 = vpack.c.bf16 %v200, %v199
    %v271 = vpack.c.bf16 %v202, %v201
    %v272 = vpack.c.bf16 %v204, %v203
    %v273 = vpack.c.bf16 %v206, %v205
    %v274 = vpack.c.bf16 %v208, %v207
    %v275 = vpack.c.bf16 %v210, %v209
    %v276 = vpack.c.bf16 %v212, %v211
    %v277 = vpack.c.bf16 %v214, %v213
    %v278 = vpack.c.bf16 %v215, %v215
    %v279 = vld [vmem:[%s1] sm:$0xf]
    %v280 = vld [vmem:[%s1 + $0x4] sm:$0xf]
    %s281 = scalar_lea.vmem %s1, 8
    %v282 = vld [vmem:[%s281] sm:$0xf]
    %v283 = vld [vmem:[%s281 + $0x4] sm:$0xf]
    %vm284 = vsmask.f32 7424
    %v286 = vshrl.u32 %v216, 16
    %v288 = vshll.u32 %v216, 16
    %v290 = vrot.slane %v288, 1
    %v291 = vor.u32 %v286, %v290
    %v293 = vshll.u32 %v217, 16
    %v295 = vrot.slane %v293, 1
    %v296 = vsel %vm284, %v291, %v295
    %v297 = vshrl.u32 %v217, 16
    %v299 = vor.u32 %v297, %v295
    %v301 = vshll.u32 %v218, 16
    %v303 = vrot.slane %v301, 1
    %v304 = vsel %vm284, %v299, %v303
    %v305 = vshrl.u32 %v218, 16
    %v307 = vor.u32 %v305, %v303
    %v309 = vshll.u32 %v219, 16
    %v311 = vrot.slane %v309, 1
    %v312 = vsel %vm284, %v307, %v311
    %v313 = vshrl.u32 %v219, 16
    %v315 = vor.u32 %v313, %v311
    %v317 = vshll.u32 %v220, 16
    %v319 = vrot.slane %v317, 1
    %v320 = vsel %vm284, %v315, %v319
    %v321 = vshrl.u32 %v220, 16
    %v323 = vor.u32 %v321, %v319
    %v325 = vshll.u32 %v221, 16
    %v327 = vrot.slane %v325, 1
    %v328 = vsel %vm284, %v323, %v327
    %v329 = vshrl.u32 %v221, 16
    %v331 = vor.u32 %v329, %v327
    %v333 = vshll.u32 %v222, 16
    %v335 = vrot.slane %v333, 1
    %v336 = vsel %vm284, %v331, %v335
    %v337 = vshrl.u32 %v222, 16
    %v339 = vor.u32 %v337, %v335
    %v341 = vshll.u32 %v223, 16
    %v343 = vrot.slane %v341, 1
    %v344 = vsel %vm284, %v339, %v343
    %v345 = vshrl.u32 %v223, 16
    %v347 = vor.u32 %v345, %v343
    %v349 = vshll.u32 %v224, 16
    %v351 = vrot.slane %v349, 1
    %v352 = vsel %vm284, %v347, %v351
    %v353 = vshrl.u32 %v224, 16
    %v355 = vor.u32 %v353, %v351
    %v357 = vshll.u32 %v225, 16
    %v359 = vrot.slane %v357, 1
    %v360 = vsel %vm284, %v355, %v359
    %v361 = vshrl.u32 %v225, 16
    %v363 = vor.u32 %v361, %v359
    %v365 = vshll.u32 %v226, 16
    %v367 = vrot.slane %v365, 1
    %v368 = vsel %vm284, %v363, %v367
    %v369 = vshrl.u32 %v226, 16
    %v371 = vor.u32 %v369, %v367
    %v373 = vshll.u32 %v227, 16
    %v375 = vrot.slane %v373, 1
    %v376 = vsel %vm284, %v371, %v375
    %v377 = vshrl.u32 %v227, 16
    %v379 = vor.u32 %v377, %v375
    %v381 = vshll.u32 %v228, 16
    %v383 = vrot.slane %v381, 1
    %v384 = vsel %vm284, %v379, %v383
    %v385 = vshrl.u32 %v228, 16
    %v387 = vor.u32 %v385, %v383
    %v389 = vshll.u32 %v229, 16
    %v391 = vrot.slane %v389, 1
    %v392 = vsel %vm284, %v387, %v391
    %v393 = vshrl.u32 %v229, 16
    %v395 = vor.u32 %v393, %v391
    %v397 = vshll.u32 %v230, 16
    %v399 = vrot.slane %v397, 1
    %v400 = vsel %vm284, %v395, %v399
    %v401 = vshrl.u32 %v230, 16
    %v403 = vor.u32 %v401, %v399
    %v405 = vshll.u32 %v231, 16
    %v407 = vrot.slane %v405, 1
    %v408 = vsel %vm284, %v403, %v407
    %v409 = vshrl.u32 %v231, 16
    %v411 = vor.u32 %v409, %v407
    %v413 = vshll.u32 %v232, 16
    %v415 = vrot.slane %v413, 1
    %v416 = vsel %vm284, %v411, %v415
    %v417 = vshrl.u32 %v232, 16
    %v419 = vor.u32 %v417, %v415
    %v421 = vshll.u32 %v233, 16
    %v423 = vrot.slane %v421, 1
    %v424 = vsel %vm284, %v419, %v423
    %v425 = vshrl.u32 %v233, 16
    %v427 = vor.u32 %v425, %v423
    %v429 = vshll.u32 %v234, 16
    %v431 = vrot.slane %v429, 1
    %v432 = vsel %vm284, %v427, %v431
    %v433 = vshrl.u32 %v234, 16
    %v435 = vor.u32 %v433, %v431
    %v437 = vshll.u32 %v235, 16
    %v439 = vrot.slane %v437, 1
    %v440 = vsel %vm284, %v435, %v439
    %v441 = vshrl.u32 %v235, 16
    %v443 = vor.u32 %v441, %v439
    %v445 = vshll.u32 %v236, 16
    %v447 = vrot.slane %v445, 1
    %v448 = vsel %vm284, %v443, %v447
    %v449 = vshrl.u32 %v236, 16
    %v451 = vor.u32 %v449, %v447
    %v453 = vshll.u32 %v237, 16
    %v455 = vrot.slane %v453, 1
    %v456 = vsel %vm284, %v451, %v455
    %v457 = vshrl.u32 %v237, 16
    %v459 = vor.u32 %v457, %v455
    %v461 = vshll.u32 %v238, 16
    %v463 = vrot.slane %v461, 1
    %v464 = vsel %vm284, %v459, %v463
    %v465 = vshrl.u32 %v238, 16
    %v467 = vor.u32 %v465, %v463
    %v469 = vshll.u32 %v239, 16
    %v471 = vrot.slane %v469, 1
    %v472 = vsel %vm284, %v467, %v471
    %v473 = vshrl.u32 %v239, 16
    %v475 = vor.u32 %v473, %v471
    %v477 = vshll.u32 %v240, 16
    %v479 = vrot.slane %v477, 1
    %v480 = vsel %vm284, %v475, %v479
    %v481 = vshrl.u32 %v240, 16
    %v483 = vor.u32 %v481, %v479
    %v485 = vshll.u32 %v241, 16
    %v487 = vrot.slane %v485, 1
    %v488 = vsel %vm284, %v483, %v487
    %v489 = vshrl.u32 %v241, 16
    %v491 = vor.u32 %v489, %v487
    %v493 = vshll.u32 %v242, 16
    %v495 = vrot.slane %v493, 1
    %v496 = vsel %vm284, %v491, %v495
    %v497 = vshrl.u32 %v242, 16
    %v499 = vor.u32 %v497, %v495
    %v501 = vshll.u32 %v243, 16
    %v503 = vrot.slane %v501, 1
    %v504 = vsel %vm284, %v499, %v503
    %v505 = vshrl.u32 %v243, 16
    %v507 = vor.u32 %v505, %v503
    %v509 = vshll.u32 %v244, 16
    %v511 = vrot.slane %v509, 1
    %v512 = vsel %vm284, %v507, %v511
    %v513 = vshrl.u32 %v244, 16
    %v515 = vor.u32 %v513, %v511
    %v517 = vshll.u32 %v245, 16
    %v519 = vrot.slane %v517, 1
    %v520 = vsel %vm284, %v515, %v519
    %v521 = vshrl.u32 %v245, 16
    %v523 = vor.u32 %v521, %v519
    %v525 = vshll.u32 %v246, 16
    %v527 = vrot.slane %v525, 1
    %v528 = vsel %vm284, %v523, %v527
    %v529 = vshrl.u32 %v246, 16
    %v531 = vor.u32 %v529, %v527
    %v533 = vshll.u32 %v247, 16
    %v535 = vrot.slane %v533, 1
    %v536 = vsel %vm284, %v531, %v535
    %v537 = vshrl.u32 %v247, 16
    %v539 = vor.u32 %v537, %v535
    %v541 = vshll.u32 %v248, 16
    %v543 = vrot.slane %v541, 1
    %v544 = vsel %vm284, %v539, %v543
    %v545 = vshrl.u32 %v248, 16
    %v547 = vor.u32 %v545, %v543
    %v549 = vshll.u32 %v249, 16
    %v551 = vrot.slane %v549, 1
    %v552 = vsel %vm284, %v547, %v551
    %v553 = vshrl.u32 %v249, 16
    %v555 = vor.u32 %v553, %v551
    %v557 = vshll.u32 %v250, 16
    %v559 = vrot.slane %v557, 1
    %v560 = vsel %vm284, %v555, %v559
    %v561 = vshrl.u32 %v250, 16
    %v563 = vor.u32 %v561, %v559
    %v565 = vshll.u32 %v251, 16
    %v567 = vrot.slane %v565, 1
    %v568 = vsel %vm284, %v563, %v567
    %v569 = vshrl.u32 %v251, 16
    %v571 = vor.u32 %v569, %v567
    %v573 = vshll.u32 %v252, 16
    %v575 = vrot.slane %v573, 1
    %v576 = vsel %vm284, %v571, %v575
    %v577 = vshrl.u32 %v252, 16
    %v579 = vor.u32 %v577, %v575
    %v581 = vshll.u32 %v253, 16
    %v583 = vrot.slane %v581, 1
    %v584 = vsel %vm284, %v579, %v583
    %v585 = vshrl.u32 %v253, 16
    %v587 = vor.u32 %v585, %v583
    %v589 = vshll.u32 %v254, 16
    %v591 = vrot.slane %v589, 1
    %v592 = vsel %vm284, %v587, %v591
    %v593 = vshrl.u32 %v254, 16
    %v595 = vor.u32 %v593, %v591
    %v597 = vshll.u32 %v255, 16
    %v599 = vrot.slane %v597, 1
    %v600 = vsel %vm284, %v595, %v599
    %v601 = vshrl.u32 %v255, 16
    %v603 = vor.u32 %v601, %v599
    %v605 = vshll.u32 %v256, 16
    %v607 = vrot.slane %v605, 1
    %v608 = vsel %vm284, %v603, %v607
    %v609 = vshrl.u32 %v256, 16
    %v611 = vor.u32 %v609, %v607
    %v613 = vshll.u32 %v257, 16
    %v615 = vrot.slane %v613, 1
    %v616 = vsel %vm284, %v611, %v615
    %v617 = vshrl.u32 %v257, 16
    %v619 = vor.u32 %v617, %v615
    %v621 = vshll.u32 %v258, 16
    %v623 = vrot.slane %v621, 1
    %v624 = vsel %vm284, %v619, %v623
    %v625 = vshrl.u32 %v258, 16
    %v627 = vor.u32 %v625, %v623
    %v629 = vshll.u32 %v259, 16
    %v631 = vrot.slane %v629, 1
    %v632 = vsel %vm284, %v627, %v631
    %v633 = vshrl.u32 %v259, 16
    %v635 = vor.u32 %v633, %v631
    %v637 = vshll.u32 %v260, 16
    %v639 = vrot.slane %v637, 1
    %v640 = vsel %vm284, %v635, %v639
    %v641 = vshrl.u32 %v260, 16
    %v643 = vor.u32 %v641, %v639
    %v645 = vshll.u32 %v261, 16
    %v647 = vrot.slane %v645, 1
    %v648 = vsel %vm284, %v643, %v647
    %v649 = vshrl.u32 %v261, 16
    %v651 = vor.u32 %v649, %v647
    %v653 = vshll.u32 %v262, 16
    %v655 = vrot.slane %v653, 1
    %v656 = vsel %vm284, %v651, %v655
    %v657 = vshrl.u32 %v262, 16
    %v659 = vor.u32 %v657, %v655
    %v661 = vshll.u32 %v263, 16
    %v663 = vrot.slane %v661, 1
    %v664 = vsel %vm284, %v659, %v663
    %v665 = vshrl.u32 %v263, 16
    %v667 = vor.u32 %v665, %v663
    %v669 = vshll.u32 %v264, 16
    %v671 = vrot.slane %v669, 1
    %v672 = vsel %vm284, %v667, %v671
    %v673 = vshrl.u32 %v264, 16
    %v675 = vor.u32 %v673, %v671
    %v677 = vshll.u32 %v265, 16
    %v679 = vrot.slane %v677, 1
    %v680 = vsel %vm284, %v675, %v679
    %v681 = vshrl.u32 %v265, 16
    %v683 = vor.u32 %v681, %v679
    %v685 = vshll.u32 %v266, 16
    %v687 = vrot.slane %v685, 1
    %v688 = vsel %vm284, %v683, %v687
    %v689 = vshrl.u32 %v266, 16
    %v691 = vor.u32 %v689, %v687
    %v693 = vshll.u32 %v267, 16
    %v695 = vrot.slane %v693, 1
    %v696 = vsel %vm284, %v691, %v695
    %v697 = vshrl.u32 %v267, 16
    %v699 = vor.u32 %v697, %v695
    %v701 = vshll.u32 %v268, 16
    %v703 = vrot.slane %v701, 1
    %v704 = vsel %vm284, %v699, %v703
    %v705 = vshrl.u32 %v268, 16
    %v707 = vor.u32 %v705, %v703
    %v709 = vshll.u32 %v269, 16
    %v711 = vrot.slane %v709, 1
    %v712 = vsel %vm284, %v707, %v711
    %v713 = vshrl.u32 %v269, 16
    %v715 = vor.u32 %v713, %v711
    %v717 = vshll.u32 %v270, 16
    %v719 = vrot.slane %v717, 1
    %v720 = vsel %vm284, %v715, %v719
    %v721 = vshrl.u32 %v270, 16
    %v723 = vor.u32 %v721, %v719
    %v725 = vshll.u32 %v271, 16
    %v727 = vrot.slane %v725, 1
    %v728 = vsel %vm284, %v723, %v727
    %v729 = vshrl.u32 %v271, 16
    %v731 = vor.u32 %v729, %v727
    %v733 = vshll.u32 %v272, 16
    %v735 = vrot.slane %v733, 1
    %v736 = vsel %vm284, %v731, %v735
    %v737 = vshrl.u32 %v272, 16
    %v739 = vor.u32 %v737, %v735
    %v741 = vshll.u32 %v273, 16
    %v743 = vrot.slane %v741, 1
    %v744 = vsel %vm284, %v739, %v743
    %v745 = vshrl.u32 %v273, 16
    %v747 = vor.u32 %v745, %v743
    %v749 = vshll.u32 %v274, 16
    %v751 = vrot.slane %v749, 1
    %v752 = vsel %vm284, %v747, %v751
    %v753 = vshrl.u32 %v274, 16
    %v755 = vor.u32 %v753, %v751
    %v757 = vshll.u32 %v275, 16
    %v759 = vrot.slane %v757, 1
    %v760 = vsel %vm284, %v755, %v759
    %v761 = vshrl.u32 %v275, 16
    %v763 = vor.u32 %v761, %v759
    %v765 = vshll.u32 %v276, 16
    %v767 = vrot.slane %v765, 1
    %v768 = vsel %vm284, %v763, %v767
    %v769 = vshrl.u32 %v276, 16
    %v771 = vor.u32 %v769, %v767
    %v773 = vshll.u32 %v277, 16
    %v775 = vrot.slane %v773, 1
    %v776 = vsel %vm284, %v771, %v775
    %v777 = vshrl.u32 %v277, 16
    %v779 = vor.u32 %v777, %v775
    %v781 = vshll.u32 %v278, 16
    %v783 = vrot.slane %v781, 1
    %v784 = vsel %vm284, %v779, %v783
    %v785 = vshrl.u32 %v278, 16
    %v787 = vor.u32 %v785, %v783
    %v790 = vunpack.c.l.b16 %v282
    %v791 = vunpack.c.l.b16 %v283
    %v792 = vpack.c.b16 %v791, %v790
    %vm794 = vcmask 130048
    %v796 = vsel %vm794, %v296, 0
    %v799 = vsel %vm794, %v304, 0
    %v802 = vsel %vm794, %v312, 0
    %v805 = vsel %vm794, %v320, 0
    %v808 = vsel %vm794, %v328, 0
    %v811 = vsel %vm794, %v336, 0
    %v814 = vsel %vm794, %v344, 0
    %v817 = vsel %vm794, %v352, 0
    %v820 = vsel %vm794, %v360, 0
    %v823 = vsel %vm794, %v368, 0
    %v826 = vsel %vm794, %v376, 0
    %v829 = vsel %vm794, %v384, 0
    %v832 = vsel %vm794, %v392, 0
    %v835 = vsel %vm794, %v400, 0
    %v838 = vsel %vm794, %v408, 0
    %v841 = vsel %vm794, %v416, 0
    %v844 = vsel %vm794, %v424, 0
    %v847 = vsel %vm794, %v432, 0
    %v850 = vsel %vm794, %v440, 0
    %v853 = vsel %vm794, %v448, 0
    %v856 = vsel %vm794, %v456, 0
    %v859 = vsel %vm794, %v464, 0
    %v862 = vsel %vm794, %v472, 0
    %v865 = vsel %vm794, %v480, 0
    %v868 = vsel %vm794, %v488, 0
    %v871 = vsel %vm794, %v496, 0
    %v874 = vsel %vm794, %v504, 0
    %v877 = vsel %vm794, %v512, 0
    %v880 = vsel %vm794, %v520, 0
    %v883 = vsel %vm794, %v528, 0
    %v886 = vsel %vm794, %v536, 0
    %v889 = vsel %vm794, %v544, 0
    %v892 = vsel %vm794, %v552, 0
    %v895 = vsel %vm794, %v560, 0
    %v898 = vsel %vm794, %v568, 0
    %v901 = vsel %vm794, %v576, 0
    %v904 = vsel %vm794, %v584, 0
    %v907 = vsel %vm794, %v592, 0
    %v910 = vsel %vm794, %v600, 0
    %v913 = vsel %vm794, %v608, 0
    %v916 = vsel %vm794, %v616, 0
    %v919 = vsel %vm794, %v624, 0
    %v922 = vsel %vm794, %v632, 0
    %v925 = vsel %vm794, %v640, 0
    %v928 = vsel %vm794, %v648, 0
    %v931 = vsel %vm794, %v656, 0
    %v934 = vsel %vm794, %v664, 0
    %v937 = vsel %vm794, %v672, 0
    %v940 = vsel %vm794, %v680, 0
    %v943 = vsel %vm794, %v688, 0
    %v946 = vsel %vm794, %v696, 0
    %v949 = vsel %vm794, %v704, 0
    %v952 = vsel %vm794, %v712, 0
    %v955 = vsel %vm794, %v720, 0
    %v958 = vsel %vm794, %v728, 0
    %v961 = vsel %vm794, %v736, 0
    %v964 = vsel %vm794, %v744, 0
    %v967 = vsel %vm794, %v752, 0
    %v970 = vsel %vm794, %v760, 0
    %v973 = vsel %vm794, %v768, 0
    %v976 = vsel %vm794, %v776, 0
    %v979 = vsel %vm794, %v784, 0
    %v982 = vsel %vm794, %v787, 0
    %984 = vmatpush.bf16.msra.mxu0 0
    %985 = vmatpush.bf16.msra.mxu0 0
    %986 = vmatpush.bf16.msra.mxu0 0
    %987 = vmatpush.bf16.msra.mxu0 0
    %988 = vmatpush.bf16.msra.mxu0 0
    %989 = vmatpush.bf16.msra.mxu0 0
    %990 = vmatpush.bf16.msra.mxu0 0
    %991 = vmatpush.bf16.msra.mxu0 %v792
    %992 = vmatmul.bf16.gmra.mxu0 %v796
    %v993 = vpop.f32.mrf.mxu0
    %v994 = vadd.f32 0.0, %v993
    %v995 = vpop.f32.mrf.mxu0
    %v996 = vadd.f32 0.0, %v995
    %997 = vmatmul.bf16.gmra.mxu0 %v799
    %v998 = vpop.f32.mrf.mxu0
    %v999 = vadd.f32 0.0, %v998
    %v1000 = vpop.f32.mrf.mxu0
    %v1001 = vadd.f32 0.0, %v1000
    %1002 = vmatmul.bf16.gmra.mxu0 %v802
    %v1003 = vpop.f32.mrf.mxu0
    %v1004 = vadd.f32 0.0, %v1003
    %v1005 = vpop.f32.mrf.mxu0
    %v1006 = vadd.f32 0.0, %v1005
    %1007 = vmatmul.bf16.gmra.mxu0 %v805
    %v1008 = vpop.f32.mrf.mxu0
    %v1009 = vadd.f32 0.0, %v1008
    %v1010 = vpop.f32.mrf.mxu0
    %v1011 = vadd.f32 0.0, %v1010
    %1012 = vmatmul.bf16.gmra.mxu0 %v808
    %v1013 = vpop.f32.mrf.mxu0
    %v1014 = vadd.f32 0.0, %v1013
    %v1015 = vpop.f32.mrf.mxu0
    %v1016 = vadd.f32 0.0, %v1015
    %1017 = vmatmul.bf16.gmra.mxu0 %v811
    %v1018 = vpop.f32.mrf.mxu0
    %v1019 = vadd.f32 0.0, %v1018
    %v1020 = vpop.f32.mrf.mxu0
    %v1021 = vadd.f32 0.0, %v1020
    %1022 = vmatmul.bf16.gmra.mxu0 %v814
    %v1023 = vpop.f32.mrf.mxu0
    %v1024 = vadd.f32 0.0, %v1023
    %v1025 = vpop.f32.mrf.mxu0
    %v1026 = vadd.f32 0.0, %v1025
    %1027 = vmatmul.bf16.gmra.mxu0 %v817
    %v1028 = vpop.f32.mrf.mxu0
    %v1029 = vadd.f32 0.0, %v1028
    %v1030 = vpop.f32.mrf.mxu0
    %v1031 = vadd.f32 0.0, %v1030
    %1032 = vmatmul.bf16.gmra.mxu0 %v820
    %v1033 = vpop.f32.mrf.mxu0
    %v1034 = vadd.f32 0.0, %v1033
    %v1035 = vpop.f32.mrf.mxu0
    %v1036 = vadd.f32 0.0, %v1035
    %1037 = vmatmul.bf16.gmra.mxu0 %v823
    %v1038 = vpop.f32.mrf.mxu0
    %v1039 = vadd.f32 0.0, %v1038
    %v1040 = vpop.f32.mrf.mxu0
    %v1041 = vadd.f32 0.0, %v1040
    %1042 = vmatmul.bf16.gmra.mxu0 %v826
    %v1043 = vpop.f32.mrf.mxu0
    %v1044 = vadd.f32 0.0, %v1043
    %v1045 = vpop.f32.mrf.mxu0
    %v1046 = vadd.f32 0.0, %v1045
    %1047 = vmatmul.bf16.gmra.mxu0 %v829
    %v1048 = vpop.f32.mrf.mxu0
    %v1049 = vadd.f32 0.0, %v1048
    %v1050 = vpop.f32.mrf.mxu0
    %v1051 = vadd.f32 0.0, %v1050
    %1052 = vmatmul.bf16.gmra.mxu0 %v832
    %v1053 = vpop.f32.mrf.mxu0
    %v1054 = vadd.f32 0.0, %v1053
    %v1055 = vpop.f32.mrf.mxu0
    %v1056 = vadd.f32 0.0, %v1055
    %1057 = vmatmul.bf16.gmra.mxu0 %v835
    %v1058 = vpop.f32.mrf.mxu0
    %v1059 = vadd.f32 0.0, %v1058
    %v1060 = vpop.f32.mrf.mxu0
    %v1061 = vadd.f32 0.0, %v1060
    %1062 = vmatmul.bf16.gmra.mxu0 %v838
    %v1063 = vpop.f32.mrf.mxu0
    %v1064 = vadd.f32 0.0, %v1063
    %v1065 = vpop.f32.mrf.mxu0
    %v1066 = vadd.f32 0.0, %v1065
    %1067 = vmatmul.bf16.gmra.mxu0 %v841
    %v1068 = vpop.f32.mrf.mxu0
    %v1069 = vadd.f32 0.0, %v1068
    %v1070 = vpop.f32.mrf.mxu0
    %v1071 = vadd.f32 0.0, %v1070
    %1072 = vmatmul.bf16.gmra.mxu0 %v844
    %v1073 = vpop.f32.mrf.mxu0
    %v1074 = vadd.f32 0.0, %v1073
    %v1075 = vpop.f32.mrf.mxu0
    %v1076 = vadd.f32 0.0, %v1075
    %1077 = vmatmul.bf16.gmra.mxu0 %v847
    %v1078 = vpop.f32.mrf.mxu0
    %v1079 = vadd.f32 0.0, %v1078
    %v1080 = vpop.f32.mrf.mxu0
    %v1081 = vadd.f32 0.0, %v1080
    %1082 = vmatmul.bf16.gmra.mxu0 %v850
    %v1083 = vpop.f32.mrf.mxu0
    %v1084 = vadd.f32 0.0, %v1083
    %v1085 = vpop.f32.mrf.mxu0
    %v1086 = vadd.f32 0.0, %v1085
    %1087 = vmatmul.bf16.gmra.mxu0 %v853
    %v1088 = vpop.f32.mrf.mxu0
    %v1089 = vadd.f32 0.0, %v1088
    %v1090 = vpop.f32.mrf.mxu0
    %v1091 = vadd.f32 0.0, %v1090
    %1092 = vmatmul.bf16.gmra.mxu0 %v856
    %v1093 = vpop.f32.mrf.mxu0
    %v1094 = vadd.f32 0.0, %v1093
    %v1095 = vpop.f32.mrf.mxu0
    %v1096 = vadd.f32 0.0, %v1095
    %1097 = vmatmul.bf16.gmra.mxu0 %v859
    %v1098 = vpop.f32.mrf.mxu0
    %v1099 = vadd.f32 0.0, %v1098
    %v1100 = vpop.f32.mrf.mxu0
    %v1101 = vadd.f32 0.0, %v1100
    %1102 = vmatmul.bf16.gmra.mxu0 %v862
    %v1103 = vpop.f32.mrf.mxu0
    %v1104 = vadd.f32 0.0, %v1103
    %v1105 = vpop.f32.mrf.mxu0
    %v1106 = vadd.f32 0.0, %v1105
    %1107 = vmatmul.bf16.gmra.mxu0 %v865
    %v1108 = vpop.f32.mrf.mxu0
    %v1109 = vadd.f32 0.0, %v1108
    %v1110 = vpop.f32.mrf.mxu0
    %v1111 = vadd.f32 0.0, %v1110
    %1112 = vmatmul.bf16.gmra.mxu0 %v868
    %v1113 = vpop.f32.mrf.mxu0
    %v1114 = vadd.f32 0.0, %v1113
    %v1115 = vpop.f32.mrf.mxu0
    %v1116 = vadd.f32 0.0, %v1115
    %1117 = vmatmul.bf16.gmra.mxu0 %v871
    %v1118 = vpop.f32.mrf.mxu0
    %v1119 = vadd.f32 0.0, %v1118
    %v1120 = vpop.f32.mrf.mxu0
    %v1121 = vadd.f32 0.0, %v1120
    %1122 = vmatmul.bf16.gmra.mxu0 %v874
    %v1123 = vpop.f32.mrf.mxu0
    %v1124 = vadd.f32 0.0, %v1123
    %v1125 = vpop.f32.mrf.mxu0
    %v1126 = vadd.f32 0.0, %v1125
    %1127 = vmatmul.bf16.gmra.mxu0 %v877
    %v1128 = vpop.f32.mrf.mxu0
    %v1129 = vadd.f32 0.0, %v1128
    %v1130 = vpop.f32.mrf.mxu0
    %v1131 = vadd.f32 0.0, %v1130
    %1132 = vmatmul.bf16.gmra.mxu0 %v880
    %v1133 = vpop.f32.mrf.mxu0
    %v1134 = vadd.f32 0.0, %v1133
    %v1135 = vpop.f32.mrf.mxu0
    %v1136 = vadd.f32 0.0, %v1135
    %1137 = vmatmul.bf16.gmra.mxu0 %v883
    %v1138 = vpop.f32.mrf.mxu0
    %v1139 = vadd.f32 0.0, %v1138
    %v1140 = vpop.f32.mrf.mxu0
    %v1141 = vadd.f32 0.0, %v1140
    %1142 = vmatmul.bf16.gmra.mxu0 %v886
    %v1143 = vpop.f32.mrf.mxu0
    %v1144 = vadd.f32 0.0, %v1143
    %v1145 = vpop.f32.mrf.mxu0
    %v1146 = vadd.f32 0.0, %v1145
    %1147 = vmatmul.bf16.gmra.mxu0 %v889
    %v1148 = vpop.f32.mrf.mxu0
    %v1149 = vadd.f32 0.0, %v1148
    %v1150 = vpop.f32.mrf.mxu0
    %v1151 = vadd.f32 0.0, %v1150
    %1152 = vmatmul.bf16.gmra.mxu0 %v892
    %v1153 = vpop.f32.mrf.mxu0
    %v1154 = vadd.f32 0.0, %v1153
    %v1155 = vpop.f32.mrf.mxu0
    %v1156 = vadd.f32 0.0, %v1155
    %1157 = vmatmul.bf16.gmra.mxu0 %v895
    %v1158 = vpop.f32.mrf.mxu0
    %v1159 = vadd.f32 0.0, %v1158
    %v1160 = vpop.f32.mrf.mxu0
    %v1161 = vadd.f32 0.0, %v1160
    %1162 = vmatmul.bf16.gmra.mxu0 %v898
    %v1163 = vpop.f32.mrf.mxu0
    %v1164 = vadd.f32 0.0, %v1163
    %v1165 = vpop.f32.mrf.mxu0
    %v1166 = vadd.f32 0.0, %v1165
    %1167 = vmatmul.bf16.gmra.mxu0 %v901
    %v1168 = vpop.f32.mrf.mxu0
    %v1169 = vadd.f32 0.0, %v1168
    %v1170 = vpop.f32.mrf.mxu0
    %v1171 = vadd.f32 0.0, %v1170
    %1172 = vmatmul.bf16.gmra.mxu0 %v904
    %v1173 = vpop.f32.mrf.mxu0
    %v1174 = vadd.f32 0.0, %v1173
    %v1175 = vpop.f32.mrf.mxu0
    %v1176 = vadd.f32 0.0, %v1175
    %1177 = vmatmul.bf16.gmra.mxu0 %v907
    %v1178 = vpop.f32.mrf.mxu0
    %v1179 = vadd.f32 0.0, %v1178
    %v1180 = vpop.f32.mrf.mxu0
    %v1181 = vadd.f32 0.0, %v1180
    %1182 = vmatmul.bf16.gmra.mxu0 %v910
    %v1183 = vpop.f32.mrf.mxu0
    %v1184 = vadd.f32 0.0, %v1183
    %v1185 = vpop.f32.mrf.mxu0
    %v1186 = vadd.f32 0.0, %v1185
    %1187 = vmatmul.bf16.gmra.mxu0 %v913
    %v1188 = vpop.f32.mrf.mxu0
    %v1189 = vadd.f32 0.0, %v1188
    %v1190 = vpop.f32.mrf.mxu0
    %v1191 = vadd.f32 0.0, %v1190
    %1192 = vmatmul.bf16.gmra.mxu0 %v916
    %v1193 = vpop.f32.mrf.mxu0
    %v1194 = vadd.f32 0.0, %v1193
    %v1195 = vpop.f32.mrf.mxu0
    %v1196 = vadd.f32 0.0, %v1195
    %1197 = vmatmul.bf16.gmra.mxu0 %v919
    %v1198 = vpop.f32.mrf.mxu0
    %v1199 = vadd.f32 0.0, %v1198
    %v1200 = vpop.f32.mrf.mxu0
    %v1201 = vadd.f32 0.0, %v1200
    %1202 = vmatmul.bf16.gmra.mxu0 %v922
    %v1203 = vpop.f32.mrf.mxu0
    %v1204 = vadd.f32 0.0, %v1203
    %v1205 = vpop.f32.mrf.mxu0
    %v1206 = vadd.f32 0.0, %v1205
    %1207 = vmatmul.bf16.gmra.mxu0 %v925
    %v1208 = vpop.f32.mrf.mxu0
    %v1209 = vadd.f32 0.0, %v1208
    %v1210 = vpop.f32.mrf.mxu0
    %v1211 = vadd.f32 0.0, %v1210
    %1212 = vmatmul.bf16.gmra.mxu0 %v928
    %v1213 = vpop.f32.mrf.mxu0
    %v1214 = vadd.f32 0.0, %v1213
    %v1215 = vpop.f32.mrf.mxu0
    %v1216 = vadd.f32 0.0, %v1215
    %1217 = vmatmul.bf16.gmra.mxu0 %v931
    %v1218 = vpop.f32.mrf.mxu0
    %v1219 = vadd.f32 0.0, %v1218
    %v1220 = vpop.f32.mrf.mxu0
    %v1221 = vadd.f32 0.0, %v1220
    %1222 = vmatmul.bf16.gmra.mxu0 %v934
    %v1223 = vpop.f32.mrf.mxu0
    %v1224 = vadd.f32 0.0, %v1223
    %v1225 = vpop.f32.mrf.mxu0
    %v1226 = vadd.f32 0.0, %v1225
    %1227 = vmatmul.bf16.gmra.mxu0 %v937
    %v1228 = vpop.f32.mrf.mxu0
    %v1229 = vadd.f32 0.0, %v1228
    %v1230 = vpop.f32.mrf.mxu0
    %v1231 = vadd.f32 0.0, %v1230
    %1232 = vmatmul.bf16.gmra.mxu0 %v940
    %v1233 = vpop.f32.mrf.mxu0
    %v1234 = vadd.f32 0.0, %v1233
    %v1235 = vpop.f32.mrf.mxu0
    %v1236 = vadd.f32 0.0, %v1235
    %1237 = vmatmul.bf16.gmra.mxu0 %v943
    %v1238 = vpop.f32.mrf.mxu0
    %v1239 = vadd.f32 0.0, %v1238
    %v1240 = vpop.f32.mrf.mxu0
    %v1241 = vadd.f32 0.0, %v1240
    %1242 = vmatmul.bf16.gmra.mxu0 %v946
    %v1243 = vpop.f32.mrf.mxu0
    %v1244 = vadd.f32 0.0, %v1243
    %v1245 = vpop.f32.mrf.mxu0
    %v1246 = vadd.f32 0.0, %v1245
    %1247 = vmatmul.bf16.gmra.mxu0 %v949
    %v1248 = vpop.f32.mrf.mxu0
    %v1249 = vadd.f32 0.0, %v1248
    %v1250 = vpop.f32.mrf.mxu0
    %v1251 = vadd.f32 0.0, %v1250
    %1252 = vmatmul.bf16.gmra.mxu0 %v952
    %v1253 = vpop.f32.mrf.mxu0
    %v1254 = vadd.f32 0.0, %v1253
    %v1255 = vpop.f32.mrf.mxu0
    %v1256 = vadd.f32 0.0, %v1255
    %1257 = vmatmul.bf16.gmra.mxu0 %v955
    %v1258 = vpop.f32.mrf.mxu0
    %v1259 = vadd.f32 0.0, %v1258
    %v1260 = vpop.f32.mrf.mxu0
    %v1261 = vadd.f32 0.0, %v1260
    %1262 = vmatmul.bf16.gmra.mxu0 %v958
    %v1263 = vpop.f32.mrf.mxu0
    %v1264 = vadd.f32 0.0, %v1263
    %v1265 = vpop.f32.mrf.mxu0
    %v1266 = vadd.f32 0.0, %v1265
    %1267 = vmatmul.bf16.gmra.mxu0 %v961
    %v1268 = vpop.f32.mrf.mxu0
    %v1269 = vadd.f32 0.0, %v1268
    %v1270 = vpop.f32.mrf.mxu0
    %v1271 = vadd.f32 0.0, %v1270
    %1272 = vmatmul.bf16.gmra.mxu0 %v964
    %v1273 = vpop.f32.mrf.mxu0
    %v1274 = vadd.f32 0.0, %v1273
    %v1275 = vpop.f32.mrf.mxu0
    %v1276 = vadd.f32 0.0, %v1275
    %1277 = vmatmul.bf16.gmra.mxu0 %v967
    %v1278 = vpop.f32.mrf.mxu0
    %v1279 = vadd.f32 0.0, %v1278
    %v1280 = vpop.f32.mrf.mxu0
    %v1281 = vadd.f32 0.0, %v1280
    %1282 = vmatmul.bf16.gmra.mxu0 %v970
    %v1283 = vpop.f32.mrf.mxu0
    %v1284 = vadd.f32 0.0, %v1283
    %v1285 = vpop.f32.mrf.mxu0
    %v1286 = vadd.f32 0.0, %v1285
    %1287 = vmatmul.bf16.gmra.mxu0 %v973
    %v1288 = vpop.f32.mrf.mxu0
    %v1289 = vadd.f32 0.0, %v1288
    %v1290 = vpop.f32.mrf.mxu0
    %v1291 = vadd.f32 0.0, %v1290
    %1292 = vmatmul.bf16.gmra.mxu0 %v976
    %v1293 = vpop.f32.mrf.mxu0
    %v1294 = vadd.f32 0.0, %v1293
    %v1295 = vpop.f32.mrf.mxu0
    %v1296 = vadd.f32 0.0, %v1295
    %1297 = vmatmul.bf16.gmra.mxu0 %v979
    %v1298 = vpop.f32.mrf.mxu0
    %v1299 = vadd.f32 0.0, %v1298
    %v1300 = vpop.f32.mrf.mxu0
    %v1301 = vadd.f32 0.0, %v1300
    %1302 = vmatmul.bf16.gmra.mxu0 %v982
    %v1303 = vpop.f32.mrf.mxu0
    %v1304 = vadd.f32 0.0, %v1303
    %v1305 = vpop.f32.mrf.mxu0
    %1306 = vdwg.mxu0
    %v1309 = vunpack.c.l.b16 %v279
    %v1310 = vunpack.c.l.b16 %v280
    %v1311 = vpack.c.b16 %v1310, %v1309
    %v1313 = vsel %vm794, %v216, 0
    %v1315 = vsel %vm794, %v217, 0
    %v1317 = vsel %vm794, %v218, 0
    %v1319 = vsel %vm794, %v219, 0
    %v1321 = vsel %vm794, %v220, 0
    %v1323 = vsel %vm794, %v221, 0
    %v1325 = vsel %vm794, %v222, 0
    %v1327 = vsel %vm794, %v223, 0
    %v1329 = vsel %vm794, %v224, 0
    %v1331 = vsel %vm794, %v225, 0
    %v1333 = vsel %vm794, %v226, 0
    %v1335 = vsel %vm794, %v227, 0
    %v1337 = vsel %vm794, %v228, 0
    %v1339 = vsel %vm794, %v229, 0
    %v1341 = vsel %vm794, %v230, 0
    %v1343 = vsel %vm794, %v231, 0
    %v1345 = vsel %vm794, %v232, 0
    %v1347 = vsel %vm794, %v233, 0
    %v1349 = vsel %vm794, %v234, 0
    %v1351 = vsel %vm794, %v235, 0
    %v1353 = vsel %vm794, %v236, 0
    %v1355 = vsel %vm794, %v237, 0
    %v1357 = vsel %vm794, %v238, 0
    %v1359 = vsel %vm794, %v239, 0
    %v1361 = vsel %vm794, %v240, 0
    %v1363 = vsel %vm794, %v241, 0
    %v1365 = vsel %vm794, %v242, 0
    %v1367 = vsel %vm794, %v243, 0
    %v1369 = vsel %vm794, %v244, 0
    %v1371 = vsel %vm794, %v245, 0
    %v1373 = vsel %vm794, %v246, 0
    %v1375 = vsel %vm794, %v247, 0
    %v1377 = vsel %vm794, %v248, 0
    %v1379 = vsel %vm794, %v249, 0
    %v1381 = vsel %vm794, %v250, 0
    %v1383 = vsel %vm794, %v251, 0
    %v1385 = vsel %vm794, %v252, 0
    %v1387 = vsel %vm794, %v253, 0
    %v1389 = vsel %vm794, %v254, 0
    %v1391 = vsel %vm794, %v255, 0
    %v1393 = vsel %vm794, %v256, 0
    %v1395 = vsel %vm794, %v257, 0
    %v1397 = vsel %vm794, %v258, 0
    %v1399 = vsel %vm794, %v259, 0
    %v1401 = vsel %vm794, %v260, 0
    %v1403 = vsel %vm794, %v261, 0
    %v1405 = vsel %vm794, %v262, 0
    %v1407 = vsel %vm794, %v263, 0
    %v1409 = vsel %vm794, %v264, 0
    %v1411 = vsel %vm794, %v265, 0
    %v1413 = vsel %vm794, %v266, 0
    %v1415 = vsel %vm794, %v267, 0
    %v1417 = vsel %vm794, %v268, 0
    %v1419 = vsel %vm794, %v269, 0
    %v1421 = vsel %vm794, %v270, 0
    %v1423 = vsel %vm794, %v271, 0
    %v1425 = vsel %vm794, %v272, 0
    %v1427 = vsel %vm794, %v273, 0
    %v1429 = vsel %vm794, %v274, 0
    %v1431 = vsel %vm794, %v275, 0
    %v1433 = vsel %vm794, %v276, 0
    %v1435 = vsel %vm794, %v277, 0
    %v1437 = vsel %vm794, %v278, 0
    %1439 = vmatpush.bf16.msra.mxu0 0
    %1440 = vmatpush.bf16.msra.mxu0 0
    %1441 = vmatpush.bf16.msra.mxu0 0
    %1442 = vmatpush.bf16.msra.mxu0 0
    %1443 = vmatpush.bf16.msra.mxu0 0
    %1444 = vmatpush.bf16.msra.mxu0 0
    %1445 = vmatpush.bf16.msra.mxu0 0
    %1446 = vmatpush.bf16.msra.mxu0 %v1311
    %1447 = vmatmul.bf16.gmra.mxu0 %v1313
    %v1448 = vpop.f32.mrf.mxu0
    %v1449 = vadd.f32 %v994, %v1448
    %v1450 = vpop.f32.mrf.mxu0
    %v1451 = vadd.f32 %v996, %v1450
    %1452 = vmatmul.bf16.gmra.mxu0 %v1315
    %v1453 = vpop.f32.mrf.mxu0
    %v1454 = vadd.f32 %v999, %v1453
    %v1455 = vpop.f32.mrf.mxu0
    %v1456 = vadd.f32 %v1001, %v1455
    %1457 = vmatmul.bf16.gmra.mxu0 %v1317
    %v1458 = vpop.f32.mrf.mxu0
    %v1459 = vadd.f32 %v1004, %v1458
    %v1460 = vpop.f32.mrf.mxu0
    %v1461 = vadd.f32 %v1006, %v1460
    %1462 = vmatmul.bf16.gmra.mxu0 %v1319
    %v1463 = vpop.f32.mrf.mxu0
    %v1464 = vadd.f32 %v1009, %v1463
    %v1465 = vpop.f32.mrf.mxu0
    %v1466 = vadd.f32 %v1011, %v1465
    %1467 = vmatmul.bf16.gmra.mxu0 %v1321
    %v1468 = vpop.f32.mrf.mxu0
    %v1469 = vadd.f32 %v1014, %v1468
    %v1470 = vpop.f32.mrf.mxu0
    %v1471 = vadd.f32 %v1016, %v1470
    %1472 = vmatmul.bf16.gmra.mxu0 %v1323
    %v1473 = vpop.f32.mrf.mxu0
    %v1474 = vadd.f32 %v1019, %v1473
    %v1475 = vpop.f32.mrf.mxu0
    %v1476 = vadd.f32 %v1021, %v1475
    %1477 = vmatmul.bf16.gmra.mxu0 %v1325
    %v1478 = vpop.f32.mrf.mxu0
    %v1479 = vadd.f32 %v1024, %v1478
    %v1480 = vpop.f32.mrf.mxu0
    %v1481 = vadd.f32 %v1026, %v1480
    %1482 = vmatmul.bf16.gmra.mxu0 %v1327
    %v1483 = vpop.f32.mrf.mxu0
    %v1484 = vadd.f32 %v1029, %v1483
    %v1485 = vpop.f32.mrf.mxu0
    %v1486 = vadd.f32 %v1031, %v1485
    %1487 = vmatmul.bf16.gmra.mxu0 %v1329
    %v1488 = vpop.f32.mrf.mxu0
    %v1489 = vadd.f32 %v1034, %v1488
    %v1490 = vpop.f32.mrf.mxu0
    %v1491 = vadd.f32 %v1036, %v1490
    %1492 = vmatmul.bf16.gmra.mxu0 %v1331
    %v1493 = vpop.f32.mrf.mxu0
    %v1494 = vadd.f32 %v1039, %v1493
    %v1495 = vpop.f32.mrf.mxu0
    %v1496 = vadd.f32 %v1041, %v1495
    %1497 = vmatmul.bf16.gmra.mxu0 %v1333
    %v1498 = vpop.f32.mrf.mxu0
    %v1499 = vadd.f32 %v1044, %v1498
    %v1500 = vpop.f32.mrf.mxu0
    %v1501 = vadd.f32 %v1046, %v1500
    %1502 = vmatmul.bf16.gmra.mxu0 %v1335
    %v1503 = vpop.f32.mrf.mxu0
    %v1504 = vadd.f32 %v1049, %v1503
    %v1505 = vpop.f32.mrf.mxu0
    %v1506 = vadd.f32 %v1051, %v1505
    %1507 = vmatmul.bf16.gmra.mxu0 %v1337
    %v1508 = vpop.f32.mrf.mxu0
    %v1509 = vadd.f32 %v1054, %v1508
    %v1510 = vpop.f32.mrf.mxu0
    %v1511 = vadd.f32 %v1056, %v1510
    %1512 = vmatmul.bf16.gmra.mxu0 %v1339
    %v1513 = vpop.f32.mrf.mxu0
    %v1514 = vadd.f32 %v1059, %v1513
    %v1515 = vpop.f32.mrf.mxu0
    %v1516 = vadd.f32 %v1061, %v1515
    %1517 = vmatmul.bf16.gmra.mxu0 %v1341
    %v1518 = vpop.f32.mrf.mxu0
    %v1519 = vadd.f32 %v1064, %v1518
    %v1520 = vpop.f32.mrf.mxu0
    %v1521 = vadd.f32 %v1066, %v1520
    %1522 = vmatmul.bf16.gmra.mxu0 %v1343
    %v1523 = vpop.f32.mrf.mxu0
    %v1524 = vadd.f32 %v1069, %v1523
    %v1525 = vpop.f32.mrf.mxu0
    %v1526 = vadd.f32 %v1071, %v1525
    %1527 = vmatmul.bf16.gmra.mxu0 %v1345
    %v1528 = vpop.f32.mrf.mxu0
    %v1529 = vadd.f32 %v1074, %v1528
    %v1530 = vpop.f32.mrf.mxu0
    %v1531 = vadd.f32 %v1076, %v1530
    %1532 = vmatmul.bf16.gmra.mxu0 %v1347
    %v1533 = vpop.f32.mrf.mxu0
    %v1534 = vadd.f32 %v1079, %v1533
    %v1535 = vpop.f32.mrf.mxu0
    %v1536 = vadd.f32 %v1081, %v1535
    %1537 = vmatmul.bf16.gmra.mxu0 %v1349
    %v1538 = vpop.f32.mrf.mxu0
    %v1539 = vadd.f32 %v1084, %v1538
    %v1540 = vpop.f32.mrf.mxu0
    %v1541 = vadd.f32 %v1086, %v1540
    %1542 = vmatmul.bf16.gmra.mxu0 %v1351
    %v1543 = vpop.f32.mrf.mxu0
    %v1544 = vadd.f32 %v1089, %v1543
    %v1545 = vpop.f32.mrf.mxu0
    %v1546 = vadd.f32 %v1091, %v1545
    %1547 = vmatmul.bf16.gmra.mxu0 %v1353
    %v1548 = vpop.f32.mrf.mxu0
    %v1549 = vadd.f32 %v1094, %v1548
    %v1550 = vpop.f32.mrf.mxu0
    %v1551 = vadd.f32 %v1096, %v1550
    %1552 = vmatmul.bf16.gmra.mxu0 %v1355
    %v1553 = vpop.f32.mrf.mxu0
    %v1554 = vadd.f32 %v1099, %v1553
    %v1555 = vpop.f32.mrf.mxu0
    %v1556 = vadd.f32 %v1101, %v1555
    %1557 = vmatmul.bf16.gmra.mxu0 %v1357
    %v1558 = vpop.f32.mrf.mxu0
    %v1559 = vadd.f32 %v1104, %v1558
    %v1560 = vpop.f32.mrf.mxu0
    %v1561 = vadd.f32 %v1106, %v1560
    %1562 = vmatmul.bf16.gmra.mxu0 %v1359
    %v1563 = vpop.f32.mrf.mxu0
    %v1564 = vadd.f32 %v1109, %v1563
    %v1565 = vpop.f32.mrf.mxu0
    %v1566 = vadd.f32 %v1111, %v1565
    %1567 = vmatmul.bf16.gmra.mxu0 %v1361
    %v1568 = vpop.f32.mrf.mxu0
    %v1569 = vadd.f32 %v1114, %v1568
    %v1570 = vpop.f32.mrf.mxu0
    %v1571 = vadd.f32 %v1116, %v1570
    %1572 = vmatmul.bf16.gmra.mxu0 %v1363
    %v1573 = vpop.f32.mrf.mxu0
    %v1574 = vadd.f32 %v1119, %v1573
    %v1575 = vpop.f32.mrf.mxu0
    %v1576 = vadd.f32 %v1121, %v1575
    %1577 = vmatmul.bf16.gmra.mxu0 %v1365
    %v1578 = vpop.f32.mrf.mxu0
    %v1579 = vadd.f32 %v1124, %v1578
    %v1580 = vpop.f32.mrf.mxu0
    %v1581 = vadd.f32 %v1126, %v1580
    %1582 = vmatmul.bf16.gmra.mxu0 %v1367
    %v1583 = vpop.f32.mrf.mxu0
    %v1584 = vadd.f32 %v1129, %v1583
    %v1585 = vpop.f32.mrf.mxu0
    %v1586 = vadd.f32 %v1131, %v1585
    %1587 = vmatmul.bf16.gmra.mxu0 %v1369
    %v1588 = vpop.f32.mrf.mxu0
    %v1589 = vadd.f32 %v1134, %v1588
    %v1590 = vpop.f32.mrf.mxu0
    %v1591 = vadd.f32 %v1136, %v1590
    %1592 = vmatmul.bf16.gmra.mxu0 %v1371
    %v1593 = vpop.f32.mrf.mxu0
    %v1594 = vadd.f32 %v1139, %v1593
    %v1595 = vpop.f32.mrf.mxu0
    %v1596 = vadd.f32 %v1141, %v1595
    %1597 = vmatmul.bf16.gmra.mxu0 %v1373
    %v1598 = vpop.f32.mrf.mxu0
    %v1599 = vadd.f32 %v1144, %v1598
    %v1600 = vpop.f32.mrf.mxu0
    %v1601 = vadd.f32 %v1146, %v1600
    %1602 = vmatmul.bf16.gmra.mxu0 %v1375
    %v1603 = vpop.f32.mrf.mxu0
    %v1604 = vadd.f32 %v1149, %v1603
    %v1605 = vpop.f32.mrf.mxu0
    %v1606 = vadd.f32 %v1151, %v1605
    %1607 = vmatmul.bf16.gmra.mxu0 %v1377
    %v1608 = vpop.f32.mrf.mxu0
    %v1609 = vadd.f32 %v1154, %v1608
    %v1610 = vpop.f32.mrf.mxu0
    %v1611 = vadd.f32 %v1156, %v1610
    %1612 = vmatmul.bf16.gmra.mxu0 %v1379
    %v1613 = vpop.f32.mrf.mxu0
    %v1614 = vadd.f32 %v1159, %v1613
    %v1615 = vpop.f32.mrf.mxu0
    %v1616 = vadd.f32 %v1161, %v1615
    %1617 = vmatmul.bf16.gmra.mxu0 %v1381
    %v1618 = vpop.f32.mrf.mxu0
    %v1619 = vadd.f32 %v1164, %v1618
    %v1620 = vpop.f32.mrf.mxu0
    %v1621 = vadd.f32 %v1166, %v1620
    %1622 = vmatmul.bf16.gmra.mxu0 %v1383
    %v1623 = vpop.f32.mrf.mxu0
    %v1624 = vadd.f32 %v1169, %v1623
    %v1625 = vpop.f32.mrf.mxu0
    %v1626 = vadd.f32 %v1171, %v1625
    %1627 = vmatmul.bf16.gmra.mxu0 %v1385
    %v1628 = vpop.f32.mrf.mxu0
    %v1629 = vadd.f32 %v1174, %v1628
    %v1630 = vpop.f32.mrf.mxu0
    %v1631 = vadd.f32 %v1176, %v1630
    %1632 = vmatmul.bf16.gmra.mxu0 %v1387
    %v1633 = vpop.f32.mrf.mxu0
    %v1634 = vadd.f32 %v1179, %v1633
    %v1635 = vpop.f32.mrf.mxu0
    %v1636 = vadd.f32 %v1181, %v1635
    %1637 = vmatmul.bf16.gmra.mxu0 %v1389
    %v1638 = vpop.f32.mrf.mxu0
    %v1639 = vadd.f32 %v1184, %v1638
    %v1640 = vpop.f32.mrf.mxu0
    %v1641 = vadd.f32 %v1186, %v1640
    %1642 = vmatmul.bf16.gmra.mxu0 %v1391
    %v1643 = vpop.f32.mrf.mxu0
    %v1644 = vadd.f32 %v1189, %v1643
    %v1645 = vpop.f32.mrf.mxu0
    %v1646 = vadd.f32 %v1191, %v1645
    %1647 = vmatmul.bf16.gmra.mxu0 %v1393
    %v1648 = vpop.f32.mrf.mxu0
    %v1649 = vadd.f32 %v1194, %v1648
    %v1650 = vpop.f32.mrf.mxu0
    %v1651 = vadd.f32 %v1196, %v1650
    %1652 = vmatmul.bf16.gmra.mxu0 %v1395
    %v1653 = vpop.f32.mrf.mxu0
    %v1654 = vadd.f32 %v1199, %v1653
    %v1655 = vpop.f32.mrf.mxu0
    %v1656 = vadd.f32 %v1201, %v1655
    %1657 = vmatmul.bf16.gmra.mxu0 %v1397
    %v1658 = vpop.f32.mrf.mxu0
    %v1659 = vadd.f32 %v1204, %v1658
    %v1660 = vpop.f32.mrf.mxu0
    %v1661 = vadd.f32 %v1206, %v1660
    %1662 = vmatmul.bf16.gmra.mxu0 %v1399
    %v1663 = vpop.f32.mrf.mxu0
    %v1664 = vadd.f32 %v1209, %v1663
    %v1665 = vpop.f32.mrf.mxu0
    %v1666 = vadd.f32 %v1211, %v1665
    %1667 = vmatmul.bf16.gmra.mxu0 %v1401
    %v1668 = vpop.f32.mrf.mxu0
    %v1669 = vadd.f32 %v1214, %v1668
    %v1670 = vpop.f32.mrf.mxu0
    %v1671 = vadd.f32 %v1216, %v1670
    %1672 = vmatmul.bf16.gmra.mxu0 %v1403
    %v1673 = vpop.f32.mrf.mxu0
    %v1674 = vadd.f32 %v1219, %v1673
    %v1675 = vpop.f32.mrf.mxu0
    %v1676 = vadd.f32 %v1221, %v1675
    %1677 = vmatmul.bf16.gmra.mxu0 %v1405
    %v1678 = vpop.f32.mrf.mxu0
    %v1679 = vadd.f32 %v1224, %v1678
    %v1680 = vpop.f32.mrf.mxu0
    %v1681 = vadd.f32 %v1226, %v1680
    %1682 = vmatmul.bf16.gmra.mxu0 %v1407
    %v1683 = vpop.f32.mrf.mxu0
    %v1684 = vadd.f32 %v1229, %v1683
    %v1685 = vpop.f32.mrf.mxu0
    %v1686 = vadd.f32 %v1231, %v1685
    %1687 = vmatmul.bf16.gmra.mxu0 %v1409
    %v1688 = vpop.f32.mrf.mxu0
    %v1689 = vadd.f32 %v1234, %v1688
    %v1690 = vpop.f32.mrf.mxu0
    %v1691 = vadd.f32 %v1236, %v1690
    %1692 = vmatmul.bf16.gmra.mxu0 %v1411
    %v1693 = vpop.f32.mrf.mxu0
    %v1694 = vadd.f32 %v1239, %v1693
    %v1695 = vpop.f32.mrf.mxu0
    %v1696 = vadd.f32 %v1241, %v1695
    %1697 = vmatmul.bf16.gmra.mxu0 %v1413
    %v1698 = vpop.f32.mrf.mxu0
    %v1699 = vadd.f32 %v1244, %v1698
    %v1700 = vpop.f32.mrf.mxu0
    %v1701 = vadd.f32 %v1246, %v1700
    %1702 = vmatmul.bf16.gmra.mxu0 %v1415
    %v1703 = vpop.f32.mrf.mxu0
    %v1704 = vadd.f32 %v1249, %v1703
    %v1705 = vpop.f32.mrf.mxu0
    %v1706 = vadd.f32 %v1251, %v1705
    %1707 = vmatmul.bf16.gmra.mxu0 %v1417
    %v1708 = vpop.f32.mrf.mxu0
    %v1709 = vadd.f32 %v1254, %v1708
    %v1710 = vpop.f32.mrf.mxu0
    %v1711 = vadd.f32 %v1256, %v1710
    %1712 = vmatmul.bf16.gmra.mxu0 %v1419
    %v1713 = vpop.f32.mrf.mxu0
    %v1714 = vadd.f32 %v1259, %v1713
    %v1715 = vpop.f32.mrf.mxu0
    %v1716 = vadd.f32 %v1261, %v1715
    %1717 = vmatmul.bf16.gmra.mxu0 %v1421
    %v1718 = vpop.f32.mrf.mxu0
    %v1719 = vadd.f32 %v1264, %v1718
    %v1720 = vpop.f32.mrf.mxu0
    %v1721 = vadd.f32 %v1266, %v1720
    %1722 = vmatmul.bf16.gmra.mxu0 %v1423
    %v1723 = vpop.f32.mrf.mxu0
    %v1724 = vadd.f32 %v1269, %v1723
    %v1725 = vpop.f32.mrf.mxu0
    %v1726 = vadd.f32 %v1271, %v1725
    %1727 = vmatmul.bf16.gmra.mxu0 %v1425
    %v1728 = vpop.f32.mrf.mxu0
    %v1729 = vadd.f32 %v1274, %v1728
    %v1730 = vpop.f32.mrf.mxu0
    %v1731 = vadd.f32 %v1276, %v1730
    %1732 = vmatmul.bf16.gmra.mxu0 %v1427
    %v1733 = vpop.f32.mrf.mxu0
    %v1734 = vadd.f32 %v1279, %v1733
    %v1735 = vpop.f32.mrf.mxu0
    %v1736 = vadd.f32 %v1281, %v1735
    %1737 = vmatmul.bf16.gmra.mxu0 %v1429
    %v1738 = vpop.f32.mrf.mxu0
    %v1739 = vadd.f32 %v1284, %v1738
    %v1740 = vpop.f32.mrf.mxu0
    %v1741 = vadd.f32 %v1286, %v1740
    %1742 = vmatmul.bf16.gmra.mxu0 %v1431
    %v1743 = vpop.f32.mrf.mxu0
    %v1744 = vadd.f32 %v1289, %v1743
    %v1745 = vpop.f32.mrf.mxu0
    %v1746 = vadd.f32 %v1291, %v1745
    %1747 = vmatmul.bf16.gmra.mxu0 %v1433
    %v1748 = vpop.f32.mrf.mxu0
    %v1749 = vadd.f32 %v1294, %v1748
    %v1750 = vpop.f32.mrf.mxu0
    %v1751 = vadd.f32 %v1296, %v1750
    %1752 = vmatmul.bf16.gmra.mxu0 %v1435
    %v1753 = vpop.f32.mrf.mxu0
    %v1754 = vadd.f32 %v1299, %v1753
    %v1755 = vpop.f32.mrf.mxu0
    %v1756 = vadd.f32 %v1301, %v1755
    %1757 = vmatmul.bf16.gmra.mxu0 %v1437
    %v1758 = vpop.f32.mrf.mxu0
    %v1759 = vadd.f32 %v1304, %v1758
    %v1760 = vpop.f32.mrf.mxu0
    %1761 = vdwg.mxu0
    %s1762 = scalar_lea.vmem %s1, 16
    %v1763 = vld [vmem:[%s1762] sm:$0xf]
    %v1764 = vld [vmem:[%s1762 + $0x4] sm:$0xf]
    %vm1828 = vcmask 1046528
    %v1829 = vrot.slane %v216, 1
    %v1830 = vrot.slane %v217, 1
    %v1831 = vsel %vm1828, %v1829, %v1830
    %v1832 = vrot.slane %v218, 1
    %v1833 = vsel %vm1828, %v1830, %v1832
    %v1834 = vrot.slane %v219, 1
    %v1835 = vsel %vm1828, %v1832, %v1834
    %v1836 = vrot.slane %v220, 1
    %v1837 = vsel %vm1828, %v1834, %v1836
    %v1838 = vrot.slane %v221, 1
    %v1839 = vsel %vm1828, %v1836, %v1838
    %v1840 = vrot.slane %v222, 1
    %v1841 = vsel %vm1828, %v1838, %v1840
    %v1842 = vrot.slane %v223, 1
    %v1843 = vsel %vm1828, %v1840, %v1842
    %v1844 = vrot.slane %v224, 1
    %v1845 = vsel %vm1828, %v1842, %v1844
    %v1846 = vrot.slane %v225, 1
    %v1847 = vsel %vm1828, %v1844, %v1846
    %v1848 = vrot.slane %v226, 1
    %v1849 = vsel %vm1828, %v1846, %v1848
    %v1850 = vrot.slane %v227, 1
    %v1851 = vsel %vm1828, %v1848, %v1850
    %v1852 = vrot.slane %v228, 1
    %v1853 = vsel %vm1828, %v1850, %v1852
    %v1854 = vrot.slane %v229, 1
    %v1855 = vsel %vm1828, %v1852, %v1854
    %v1856 = vrot.slane %v230, 1
    %v1857 = vsel %vm1828, %v1854, %v1856
    %v1858 = vrot.slane %v231, 1
    %v1859 = vsel %vm1828, %v1856, %v1858
    %v1860 = vrot.slane %v232, 1
    %v1861 = vsel %vm1828, %v1858, %v1860
    %v1862 = vrot.slane %v233, 1
    %v1863 = vsel %vm1828, %v1860, %v1862
    %v1864 = vrot.slane %v234, 1
    %v1865 = vsel %vm1828, %v1862, %v1864
    %v1866 = vrot.slane %v235, 1
    %v1867 = vsel %vm1828, %v1864, %v1866
    %v1868 = vrot.slane %v236, 1
    %v1869 = vsel %vm1828, %v1866, %v1868
    %v1870 = vrot.slane %v237, 1
    %v1871 = vsel %vm1828, %v1868, %v1870
    %v1872 = vrot.slane %v238, 1
    %v1873 = vsel %vm1828, %v1870, %v1872
    %v1874 = vrot.slane %v239, 1
    %v1875 = vsel %vm1828, %v1872, %v1874
    %v1876 = vrot.slane %v240, 1
    %v1877 = vsel %vm1828, %v1874, %v1876
    %v1878 = vrot.slane %v241, 1
    %v1879 = vsel %vm1828, %v1876, %v1878
    %v1880 = vrot.slane %v242, 1
    %v1881 = vsel %vm1828, %v1878, %v1880
    %v1882 = vrot.slane %v243, 1
    %v1883 = vsel %vm1828, %v1880, %v1882
    %v1884 = vrot.slane %v244, 1
    %v1885 = vsel %vm1828, %v1882, %v1884
    %v1886 = vrot.slane %v245, 1
    %v1887 = vsel %vm1828, %v1884, %v1886
    %v1888 = vrot.slane %v246, 1
    %v1889 = vsel %vm1828, %v1886, %v1888
    %v1890 = vrot.slane %v247, 1
    %v1891 = vsel %vm1828, %v1888, %v1890
    %v1892 = vrot.slane %v248, 1
    %v1893 = vsel %vm1828, %v1890, %v1892
    %v1894 = vrot.slane %v249, 1
    %v1895 = vsel %vm1828, %v1892, %v1894
    %v1896 = vrot.slane %v250, 1
    %v1897 = vsel %vm1828, %v1894, %v1896
    %v1898 = vrot.slane %v251, 1
    %v1899 = vsel %vm1828, %v1896, %v1898
    %v1900 = vrot.slane %v252, 1
    %v1901 = vsel %vm1828, %v1898, %v1900
    %v1902 = vrot.slane %v253, 1
    %v1903 = vsel %vm1828, %v1900, %v1902
    %v1904 = vrot.slane %v254, 1
    %v1905 = vsel %vm1828, %v1902, %v1904
    %v1906 = vrot.slane %v255, 1
    %v1907 = vsel %vm1828, %v1904, %v1906
    %v1908 = vrot.slane %v256, 1
    %v1909 = vsel %vm1828, %v1906, %v1908
    %v1910 = vrot.slane %v257, 1
    %v1911 = vsel %vm1828, %v1908, %v1910
    %v1912 = vrot.slane %v258, 1
    %v1913 = vsel %vm1828, %v1910, %v1912
    %v1914 = vrot.slane %v259, 1
    %v1915 = vsel %vm1828, %v1912, %v1914
    %v1916 = vrot.slane %v260, 1
    %v1917 = vsel %vm1828, %v1914, %v1916
    %v1918 = vrot.slane %v261, 1
    %v1919 = vsel %vm1828, %v1916, %v1918
    %v1920 = vrot.slane %v262, 1
    %v1921 = vsel %vm1828, %v1918, %v1920
    %v1922 = vrot.slane %v263, 1
    %v1923 = vsel %vm1828, %v1920, %v1922
    %v1924 = vrot.slane %v264, 1
    %v1925 = vsel %vm1828, %v1922, %v1924
    %v1926 = vrot.slane %v265, 1
    %v1927 = vsel %vm1828, %v1924, %v1926
    %v1928 = vrot.slane %v266, 1
    %v1929 = vsel %vm1828, %v1926, %v1928
    %v1930 = vrot.slane %v267, 1
    %v1931 = vsel %vm1828, %v1928, %v1930
    %v1932 = vrot.slane %v268, 1
    %v1933 = vsel %vm1828, %v1930, %v1932
    %v1934 = vrot.slane %v269, 1
    %v1935 = vsel %vm1828, %v1932, %v1934
    %v1936 = vrot.slane %v270, 1
    %v1937 = vsel %vm1828, %v1934, %v1936
    %v1938 = vrot.slane %v271, 1
    %v1939 = vsel %vm1828, %v1936, %v1938
    %v1940 = vrot.slane %v272, 1
    %v1941 = vsel %vm1828, %v1938, %v1940
    %v1942 = vrot.slane %v273, 1
    %v1943 = vsel %vm1828, %v1940, %v1942
    %v1944 = vrot.slane %v274, 1
    %v1945 = vsel %vm1828, %v1942, %v1944
    %v1946 = vrot.slane %v275, 1
    %v1947 = vsel %vm1828, %v1944, %v1946
    %v1948 = vrot.slane %v276, 1
    %v1949 = vsel %vm1828, %v1946, %v1948
    %v1950 = vrot.slane %v277, 1
    %v1951 = vsel %vm1828, %v1948, %v1950
    %v1952 = vrot.slane %v278, 1
    %v1953 = vsel %vm1828, %v1950, %v1952
    %v1956 = vunpack.c.l.b16 %v1763
    %v1957 = vunpack.c.l.b16 %v1764
    %v1958 = vpack.c.b16 %v1957, %v1956
    %v1961 = vsel %vm794, %v1831, 0
    %v1964 = vsel %vm794, %v1833, 0
    %v1967 = vsel %vm794, %v1835, 0
    %v1970 = vsel %vm794, %v1837, 0
    %v1973 = vsel %vm794, %v1839, 0
    %v1976 = vsel %vm794, %v1841, 0
    %v1979 = vsel %vm794, %v1843, 0
    %v1982 = vsel %vm794, %v1845, 0
    %v1985 = vsel %vm794, %v1847, 0
    %v1988 = vsel %vm794, %v1849, 0
    %v1991 = vsel %vm794, %v1851, 0
    %v1994 = vsel %vm794, %v1853, 0
    %v1997 = vsel %vm794, %v1855, 0
    %v2000 = vsel %vm794, %v1857, 0
    %v2003 = vsel %vm794, %v1859, 0
    %v2006 = vsel %vm794, %v1861, 0
    %v2009 = vsel %vm794, %v1863, 0
    %v2012 = vsel %vm794, %v1865, 0
    %v2015 = vsel %vm794, %v1867, 0
    %v2018 = vsel %vm794, %v1869, 0
    %v2021 = vsel %vm794, %v1871, 0
    %v2024 = vsel %vm794, %v1873, 0
    %v2027 = vsel %vm794, %v1875, 0
    %v2030 = vsel %vm794, %v1877, 0
    %v2033 = vsel %vm794, %v1879, 0
    %v2036 = vsel %vm794, %v1881, 0
    %v2039 = vsel %vm794, %v1883, 0
    %v2042 = vsel %vm794, %v1885, 0
    %v2045 = vsel %vm794, %v1887, 0
    %v2048 = vsel %vm794, %v1889, 0
    %v2051 = vsel %vm794, %v1891, 0
    %v2054 = vsel %vm794, %v1893, 0
    %v2057 = vsel %vm794, %v1895, 0
    %v2060 = vsel %vm794, %v1897, 0
    %v2063 = vsel %vm794, %v1899, 0
    %v2066 = vsel %vm794, %v1901, 0
    %v2069 = vsel %vm794, %v1903, 0
    %v2072 = vsel %vm794, %v1905, 0
    %v2075 = vsel %vm794, %v1907, 0
    %v2078 = vsel %vm794, %v1909, 0
    %v2081 = vsel %vm794, %v1911, 0
    %v2084 = vsel %vm794, %v1913, 0
    %v2087 = vsel %vm794, %v1915, 0
    %v2090 = vsel %vm794, %v1917, 0
    %v2093 = vsel %vm794, %v1919, 0
    %v2096 = vsel %vm794, %v1921, 0
    %v2099 = vsel %vm794, %v1923, 0
    %v2102 = vsel %vm794, %v1925, 0
    %v2105 = vsel %vm794, %v1927, 0
    %v2108 = vsel %vm794, %v1929, 0
    %v2111 = vsel %vm794, %v1931, 0
    %v2114 = vsel %vm794, %v1933, 0
    %v2117 = vsel %vm794, %v1935, 0
    %v2120 = vsel %vm794, %v1937, 0
    %v2123 = vsel %vm794, %v1939, 0
    %v2126 = vsel %vm794, %v1941, 0
    %v2129 = vsel %vm794, %v1943, 0
    %v2132 = vsel %vm794, %v1945, 0
    %v2135 = vsel %vm794, %v1947, 0
    %v2138 = vsel %vm794, %v1949, 0
    %v2141 = vsel %vm794, %v1951, 0
    %v2144 = vsel %vm794, %v1953, 0
    %v2147 = vsel %vm794, %v1952, 0
    %2149 = vmatpush.bf16.msra.mxu0 0
    %2150 = vmatpush.bf16.msra.mxu0 0
    %2151 = vmatpush.bf16.msra.mxu0 0
    %2152 = vmatpush.bf16.msra.mxu0 0
    %2153 = vmatpush.bf16.msra.mxu0 0
    %2154 = vmatpush.bf16.msra.mxu0 0
    %2155 = vmatpush.bf16.msra.mxu0 0
    %2156 = vmatpush.bf16.msra.mxu0 %v1958
    %2157 = vmatmul.bf16.gmra.mxu0 %v1961
    %v2158 = vpop.f32.mrf.mxu0
    %v2159 = vadd.f32 0.0, %v2158
    %v2160 = vpop.f32.mrf.mxu0
    %v2161 = vadd.f32 0.0, %v2160
    %2162 = vmatmul.bf16.gmra.mxu0 %v1964
    %v2163 = vpop.f32.mrf.mxu0
    %v2164 = vadd.f32 0.0, %v2163
    %v2165 = vpop.f32.mrf.mxu0
    %v2166 = vadd.f32 0.0, %v2165
    %2167 = vmatmul.bf16.gmra.mxu0 %v1967
    %v2168 = vpop.f32.mrf.mxu0
    %v2169 = vadd.f32 0.0, %v2168
    %v2170 = vpop.f32.mrf.mxu0
    %v2171 = vadd.f32 0.0, %v2170
    %2172 = vmatmul.bf16.gmra.mxu0 %v1970
    %v2173 = vpop.f32.mrf.mxu0
    %v2174 = vadd.f32 0.0, %v2173
    %v2175 = vpop.f32.mrf.mxu0
    %v2176 = vadd.f32 0.0, %v2175
    %2177 = vmatmul.bf16.gmra.mxu0 %v1973
    %v2178 = vpop.f32.mrf.mxu0
    %v2179 = vadd.f32 0.0, %v2178
    %v2180 = vpop.f32.mrf.mxu0
    %v2181 = vadd.f32 0.0, %v2180
    %2182 = vmatmul.bf16.gmra.mxu0 %v1976
    %v2183 = vpop.f32.mrf.mxu0
    %v2184 = vadd.f32 0.0, %v2183
    %v2185 = vpop.f32.mrf.mxu0
    %v2186 = vadd.f32 0.0, %v2185
    %2187 = vmatmul.bf16.gmra.mxu0 %v1979
    %v2188 = vpop.f32.mrf.mxu0
    %v2189 = vadd.f32 0.0, %v2188
    %v2190 = vpop.f32.mrf.mxu0
    %v2191 = vadd.f32 0.0, %v2190
    %2192 = vmatmul.bf16.gmra.mxu0 %v1982
    %v2193 = vpop.f32.mrf.mxu0
    %v2194 = vadd.f32 0.0, %v2193
    %v2195 = vpop.f32.mrf.mxu0
    %v2196 = vadd.f32 0.0, %v2195
    %2197 = vmatmul.bf16.gmra.mxu0 %v1985
    %v2198 = vpop.f32.mrf.mxu0
    %v2199 = vadd.f32 0.0, %v2198
    %v2200 = vpop.f32.mrf.mxu0
    %v2201 = vadd.f32 0.0, %v2200
    %2202 = vmatmul.bf16.gmra.mxu0 %v1988
    %v2203 = vpop.f32.mrf.mxu0
    %v2204 = vadd.f32 0.0, %v2203
    %v2205 = vpop.f32.mrf.mxu0
    %v2206 = vadd.f32 0.0, %v2205
    %2207 = vmatmul.bf16.gmra.mxu0 %v1991
    %v2208 = vpop.f32.mrf.mxu0
    %v2209 = vadd.f32 0.0, %v2208
    %v2210 = vpop.f32.mrf.mxu0
    %v2211 = vadd.f32 0.0, %v2210
    %2212 = vmatmul.bf16.gmra.mxu0 %v1994
    %v2213 = vpop.f32.mrf.mxu0
    %v2214 = vadd.f32 0.0, %v2213
    %v2215 = vpop.f32.mrf.mxu0
    %v2216 = vadd.f32 0.0, %v2215
    %2217 = vmatmul.bf16.gmra.mxu0 %v1997
    %v2218 = vpop.f32.mrf.mxu0
    %v2219 = vadd.f32 0.0, %v2218
    %v2220 = vpop.f32.mrf.mxu0
    %v2221 = vadd.f32 0.0, %v2220
    %2222 = vmatmul.bf16.gmra.mxu0 %v2000
    %v2223 = vpop.f32.mrf.mxu0
    %v2224 = vadd.f32 0.0, %v2223
    %v2225 = vpop.f32.mrf.mxu0
    %v2226 = vadd.f32 0.0, %v2225
    %2227 = vmatmul.bf16.gmra.mxu0 %v2003
    %v2228 = vpop.f32.mrf.mxu0
    %v2229 = vadd.f32 0.0, %v2228
    %v2230 = vpop.f32.mrf.mxu0
    %v2231 = vadd.f32 0.0, %v2230
    %2232 = vmatmul.bf16.gmra.mxu0 %v2006
    %v2233 = vpop.f32.mrf.mxu0
    %v2234 = vadd.f32 0.0, %v2233
    %v2235 = vpop.f32.mrf.mxu0
    %v2236 = vadd.f32 0.0, %v2235
    %2237 = vmatmul.bf16.gmra.mxu0 %v2009
    %v2238 = vpop.f32.mrf.mxu0
    %v2239 = vadd.f32 0.0, %v2238
    %v2240 = vpop.f32.mrf.mxu0
    %v2241 = vadd.f32 0.0, %v2240
    %2242 = vmatmul.bf16.gmra.mxu0 %v2012
    %v2243 = vpop.f32.mrf.mxu0
    %v2244 = vadd.f32 0.0, %v2243
    %v2245 = vpop.f32.mrf.mxu0
    %v2246 = vadd.f32 0.0, %v2245
    %2247 = vmatmul.bf16.gmra.mxu0 %v2015
    %v2248 = vpop.f32.mrf.mxu0
    %v2249 = vadd.f32 0.0, %v2248
    %v2250 = vpop.f32.mrf.mxu0
    %v2251 = vadd.f32 0.0, %v2250
    %2252 = vmatmul.bf16.gmra.mxu0 %v2018
    %v2253 = vpop.f32.mrf.mxu0
    %v2254 = vadd.f32 0.0, %v2253
    %v2255 = vpop.f32.mrf.mxu0
    %v2256 = vadd.f32 0.0, %v2255
    %2257 = vmatmul.bf16.gmra.mxu0 %v2021
    %v2258 = vpop.f32.mrf.mxu0
    %v2259 = vadd.f32 0.0, %v2258
    %v2260 = vpop.f32.mrf.mxu0
    %v2261 = vadd.f32 0.0, %v2260
    %2262 = vmatmul.bf16.gmra.mxu0 %v2024
    %v2263 = vpop.f32.mrf.mxu0
    %v2264 = vadd.f32 0.0, %v2263
    %v2265 = vpop.f32.mrf.mxu0
    %v2266 = vadd.f32 0.0, %v2265
    %2267 = vmatmul.bf16.gmra.mxu0 %v2027
    %v2268 = vpop.f32.mrf.mxu0
    %v2269 = vadd.f32 0.0, %v2268
    %v2270 = vpop.f32.mrf.mxu0
    %v2271 = vadd.f32 0.0, %v2270
    %2272 = vmatmul.bf16.gmra.mxu0 %v2030
    %v2273 = vpop.f32.mrf.mxu0
    %v2274 = vadd.f32 0.0, %v2273
    %v2275 = vpop.f32.mrf.mxu0
    %v2276 = vadd.f32 0.0, %v2275
    %2277 = vmatmul.bf16.gmra.mxu0 %v2033
    %v2278 = vpop.f32.mrf.mxu0
    %v2279 = vadd.f32 0.0, %v2278
    %v2280 = vpop.f32.mrf.mxu0
    %v2281 = vadd.f32 0.0, %v2280
    %2282 = vmatmul.bf16.gmra.mxu0 %v2036
    %v2283 = vpop.f32.mrf.mxu0
    %v2284 = vadd.f32 0.0, %v2283
    %v2285 = vpop.f32.mrf.mxu0
    %v2286 = vadd.f32 0.0, %v2285
    %2287 = vmatmul.bf16.gmra.mxu0 %v2039
    %v2288 = vpop.f32.mrf.mxu0
    %v2289 = vadd.f32 0.0, %v2288
    %v2290 = vpop.f32.mrf.mxu0
    %v2291 = vadd.f32 0.0, %v2290
    %2292 = vmatmul.bf16.gmra.mxu0 %v2042
    %v2293 = vpop.f32.mrf.mxu0
    %v2294 = vadd.f32 0.0, %v2293
    %v2295 = vpop.f32.mrf.mxu0
    %v2296 = vadd.f32 0.0, %v2295
    %2297 = vmatmul.bf16.gmra.mxu0 %v2045
    %v2298 = vpop.f32.mrf.mxu0
    %v2299 = vadd.f32 0.0, %v2298
    %v2300 = vpop.f32.mrf.mxu0
    %v2301 = vadd.f32 0.0, %v2300
    %2302 = vmatmul.bf16.gmra.mxu0 %v2048
    %v2303 = vpop.f32.mrf.mxu0
    %v2304 = vadd.f32 0.0, %v2303
    %v2305 = vpop.f32.mrf.mxu0
    %v2306 = vadd.f32 0.0, %v2305
    %2307 = vmatmul.bf16.gmra.mxu0 %v2051
    %v2308 = vpop.f32.mrf.mxu0
    %v2309 = vadd.f32 0.0, %v2308
    %v2310 = vpop.f32.mrf.mxu0
    %v2311 = vadd.f32 0.0, %v2310
    %2312 = vmatmul.bf16.gmra.mxu0 %v2054
    %v2313 = vpop.f32.mrf.mxu0
    %v2314 = vadd.f32 0.0, %v2313
    %v2315 = vpop.f32.mrf.mxu0
    %v2316 = vadd.f32 0.0, %v2315
    %2317 = vmatmul.bf16.gmra.mxu0 %v2057
    %v2318 = vpop.f32.mrf.mxu0
    %v2319 = vadd.f32 0.0, %v2318
    %v2320 = vpop.f32.mrf.mxu0
    %v2321 = vadd.f32 0.0, %v2320
    %2322 = vmatmul.bf16.gmra.mxu0 %v2060
    %v2323 = vpop.f32.mrf.mxu0
    %v2324 = vadd.f32 0.0, %v2323
    %v2325 = vpop.f32.mrf.mxu0
    %v2326 = vadd.f32 0.0, %v2325
    %2327 = vmatmul.bf16.gmra.mxu0 %v2063
    %v2328 = vpop.f32.mrf.mxu0
    %v2329 = vadd.f32 0.0, %v2328
    %v2330 = vpop.f32.mrf.mxu0
    %v2331 = vadd.f32 0.0, %v2330
    %2332 = vmatmul.bf16.gmra.mxu0 %v2066
    %v2333 = vpop.f32.mrf.mxu0
    %v2334 = vadd.f32 0.0, %v2333
    %v2335 = vpop.f32.mrf.mxu0
    %v2336 = vadd.f32 0.0, %v2335
    %2337 = vmatmul.bf16.gmra.mxu0 %v2069
    %v2338 = vpop.f32.mrf.mxu0
    %v2339 = vadd.f32 0.0, %v2338
    %v2340 = vpop.f32.mrf.mxu0
    %v2341 = vadd.f32 0.0, %v2340
    %2342 = vmatmul.bf16.gmra.mxu0 %v2072
    %v2343 = vpop.f32.mrf.mxu0
    %v2344 = vadd.f32 0.0, %v2343
    %v2345 = vpop.f32.mrf.mxu0
    %v2346 = vadd.f32 0.0, %v2345
    %2347 = vmatmul.bf16.gmra.mxu0 %v2075
    %v2348 = vpop.f32.mrf.mxu0
    %v2349 = vadd.f32 0.0, %v2348
    %v2350 = vpop.f32.mrf.mxu0
    %v2351 = vadd.f32 0.0, %v2350
    %2352 = vmatmul.bf16.gmra.mxu0 %v2078
    %v2353 = vpop.f32.mrf.mxu0
    %v2354 = vadd.f32 0.0, %v2353
    %v2355 = vpop.f32.mrf.mxu0
    %v2356 = vadd.f32 0.0, %v2355
    %2357 = vmatmul.bf16.gmra.mxu0 %v2081
    %v2358 = vpop.f32.mrf.mxu0
    %v2359 = vadd.f32 0.0, %v2358
    %v2360 = vpop.f32.mrf.mxu0
    %v2361 = vadd.f32 0.0, %v2360
    %2362 = vmatmul.bf16.gmra.mxu0 %v2084
    %v2363 = vpop.f32.mrf.mxu0
    %v2364 = vadd.f32 0.0, %v2363
    %v2365 = vpop.f32.mrf.mxu0
    %v2366 = vadd.f32 0.0, %v2365
    %2367 = vmatmul.bf16.gmra.mxu0 %v2087
    %v2368 = vpop.f32.mrf.mxu0
    %v2369 = vadd.f32 0.0, %v2368
    %v2370 = vpop.f32.mrf.mxu0
    %v2371 = vadd.f32 0.0, %v2370
    %2372 = vmatmul.bf16.gmra.mxu0 %v2090
    %v2373 = vpop.f32.mrf.mxu0
    %v2374 = vadd.f32 0.0, %v2373
    %v2375 = vpop.f32.mrf.mxu0
    %v2376 = vadd.f32 0.0, %v2375
    %2377 = vmatmul.bf16.gmra.mxu0 %v2093
    %v2378 = vpop.f32.mrf.mxu0
    %v2379 = vadd.f32 0.0, %v2378
    %v2380 = vpop.f32.mrf.mxu0
    %v2381 = vadd.f32 0.0, %v2380
    %2382 = vmatmul.bf16.gmra.mxu0 %v2096
    %v2383 = vpop.f32.mrf.mxu0
    %v2384 = vadd.f32 0.0, %v2383
    %v2385 = vpop.f32.mrf.mxu0
    %v2386 = vadd.f32 0.0, %v2385
    %2387 = vmatmul.bf16.gmra.mxu0 %v2099
    %v2388 = vpop.f32.mrf.mxu0
    %v2389 = vadd.f32 0.0, %v2388
    %v2390 = vpop.f32.mrf.mxu0
    %v2391 = vadd.f32 0.0, %v2390
    %2392 = vmatmul.bf16.gmra.mxu0 %v2102
    %v2393 = vpop.f32.mrf.mxu0
    %v2394 = vadd.f32 0.0, %v2393
    %v2395 = vpop.f32.mrf.mxu0
    %v2396 = vadd.f32 0.0, %v2395
    %2397 = vmatmul.bf16.gmra.mxu0 %v2105
    %v2398 = vpop.f32.mrf.mxu0
    %v2399 = vadd.f32 0.0, %v2398
    %v2400 = vpop.f32.mrf.mxu0
    %v2401 = vadd.f32 0.0, %v2400
    %2402 = vmatmul.bf16.gmra.mxu0 %v2108
    %v2403 = vpop.f32.mrf.mxu0
    %v2404 = vadd.f32 0.0, %v2403
    %v2405 = vpop.f32.mrf.mxu0
    %v2406 = vadd.f32 0.0, %v2405
    %2407 = vmatmul.bf16.gmra.mxu0 %v2111
    %v2408 = vpop.f32.mrf.mxu0
    %v2409 = vadd.f32 0.0, %v2408
    %v2410 = vpop.f32.mrf.mxu0
    %v2411 = vadd.f32 0.0, %v2410
    %2412 = vmatmul.bf16.gmra.mxu0 %v2114
    %v2413 = vpop.f32.mrf.mxu0
    %v2414 = vadd.f32 0.0, %v2413
    %v2415 = vpop.f32.mrf.mxu0
    %v2416 = vadd.f32 0.0, %v2415
    %2417 = vmatmul.bf16.gmra.mxu0 %v2117
    %v2418 = vpop.f32.mrf.mxu0
    %v2419 = vadd.f32 0.0, %v2418
    %v2420 = vpop.f32.mrf.mxu0
    %v2421 = vadd.f32 0.0, %v2420
    %2422 = vmatmul.bf16.gmra.mxu0 %v2120
    %v2423 = vpop.f32.mrf.mxu0
    %v2424 = vadd.f32 0.0, %v2423
    %v2425 = vpop.f32.mrf.mxu0
    %v2426 = vadd.f32 0.0, %v2425
    %2427 = vmatmul.bf16.gmra.mxu0 %v2123
    %v2428 = vpop.f32.mrf.mxu0
    %v2429 = vadd.f32 0.0, %v2428
    %v2430 = vpop.f32.mrf.mxu0
    %v2431 = vadd.f32 0.0, %v2430
    %2432 = vmatmul.bf16.gmra.mxu0 %v2126
    %v2433 = vpop.f32.mrf.mxu0
    %v2434 = vadd.f32 0.0, %v2433
    %v2435 = vpop.f32.mrf.mxu0
    %v2436 = vadd.f32 0.0, %v2435
    %2437 = vmatmul.bf16.gmra.mxu0 %v2129
    %v2438 = vpop.f32.mrf.mxu0
    %v2439 = vadd.f32 0.0, %v2438
    %v2440 = vpop.f32.mrf.mxu0
    %v2441 = vadd.f32 0.0, %v2440
    %2442 = vmatmul.bf16.gmra.mxu0 %v2132
    %v2443 = vpop.f32.mrf.mxu0
    %v2444 = vadd.f32 0.0, %v2443
    %v2445 = vpop.f32.mrf.mxu0
    %v2446 = vadd.f32 0.0, %v2445
    %2447 = vmatmul.bf16.gmra.mxu0 %v2135
    %v2448 = vpop.f32.mrf.mxu0
    %v2449 = vadd.f32 0.0, %v2448
    %v2450 = vpop.f32.mrf.mxu0
    %v2451 = vadd.f32 0.0, %v2450
    %2452 = vmatmul.bf16.gmra.mxu0 %v2138
    %v2453 = vpop.f32.mrf.mxu0
    %v2454 = vadd.f32 0.0, %v2453
    %v2455 = vpop.f32.mrf.mxu0
    %v2456 = vadd.f32 0.0, %v2455
    %2457 = vmatmul.bf16.gmra.mxu0 %v2141
    %v2458 = vpop.f32.mrf.mxu0
    %v2459 = vadd.f32 0.0, %v2458
    %v2460 = vpop.f32.mrf.mxu0
    %v2461 = vadd.f32 0.0, %v2460
    %2462 = vmatmul.bf16.gmra.mxu0 %v2144
    %v2463 = vpop.f32.mrf.mxu0
    %v2464 = vadd.f32 0.0, %v2463
    %v2465 = vpop.f32.mrf.mxu0
    %v2466 = vadd.f32 0.0, %v2465
    %2467 = vmatmul.bf16.gmra.mxu0 %v2147
    %v2468 = vpop.f32.mrf.mxu0
    %v2469 = vadd.f32 0.0, %v2468
    %v2470 = vpop.f32.mrf.mxu0
    %2471 = vdwg.mxu0
    %v2472 = vadd.f32 %v1449, %v2159
    %v2473 = vadd.f32 %v1451, %v2161
    %v2474 = vadd.f32 %v1454, %v2164
    %v2475 = vadd.f32 %v1456, %v2166
    %v2476 = vadd.f32 %v1459, %v2169
    %v2477 = vadd.f32 %v1461, %v2171
    %v2478 = vadd.f32 %v1464, %v2174
    %v2479 = vadd.f32 %v1466, %v2176
    %v2480 = vadd.f32 %v1469, %v2179
    %v2481 = vadd.f32 %v1471, %v2181
    %v2482 = vadd.f32 %v1474, %v2184
    %v2483 = vadd.f32 %v1476, %v2186
    %v2484 = vadd.f32 %v1479, %v2189
    %v2485 = vadd.f32 %v1481, %v2191
    %v2486 = vadd.f32 %v1484, %v2194
    %v2487 = vadd.f32 %v1486, %v2196
    %v2488 = vadd.f32 %v1489, %v2199
    %v2489 = vadd.f32 %v1491, %v2201
    %v2490 = vadd.f32 %v1494, %v2204
    %v2491 = vadd.f32 %v1496, %v2206
    %v2492 = vadd.f32 %v1499, %v2209
    %v2493 = vadd.f32 %v1501, %v2211
    %v2494 = vadd.f32 %v1504, %v2214
    %v2495 = vadd.f32 %v1506, %v2216
    %v2496 = vadd.f32 %v1509, %v2219
    %v2497 = vadd.f32 %v1511, %v2221
    %v2498 = vadd.f32 %v1514, %v2224
    %v2499 = vadd.f32 %v1516, %v2226
    %v2500 = vadd.f32 %v1519, %v2229
    %v2501 = vadd.f32 %v1521, %v2231
    %v2502 = vadd.f32 %v1524, %v2234
    %v2503 = vadd.f32 %v1526, %v2236
    %v2504 = vadd.f32 %v1529, %v2239
    %v2505 = vadd.f32 %v1531, %v2241
    %v2506 = vadd.f32 %v1534, %v2244
    %v2507 = vadd.f32 %v1536, %v2246
    %v2508 = vadd.f32 %v1539, %v2249
    %v2509 = vadd.f32 %v1541, %v2251
    %v2510 = vadd.f32 %v1544, %v2254
    %v2511 = vadd.f32 %v1546, %v2256
    %v2512 = vadd.f32 %v1549, %v2259
    %v2513 = vadd.f32 %v1551, %v2261
    %v2514 = vadd.f32 %v1554, %v2264
    %v2515 = vadd.f32 %v1556, %v2266
    %v2516 = vadd.f32 %v1559, %v2269
    %v2517 = vadd.f32 %v1561, %v2271
    %v2518 = vadd.f32 %v1564, %v2274
    %v2519 = vadd.f32 %v1566, %v2276
    %v2520 = vadd.f32 %v1569, %v2279
    %v2521 = vadd.f32 %v1571, %v2281
    %v2522 = vadd.f32 %v1574, %v2284
    %v2523 = vadd.f32 %v1576, %v2286
    %v2524 = vadd.f32 %v1579, %v2289
    %v2525 = vadd.f32 %v1581, %v2291
    %v2526 = vadd.f32 %v1584, %v2294
    %v2527 = vadd.f32 %v1586, %v2296
    %v2528 = vadd.f32 %v1589, %v2299
    %v2529 = vadd.f32 %v1591, %v2301
    %v2530 = vadd.f32 %v1594, %v2304
    %v2531 = vadd.f32 %v1596, %v2306
    %v2532 = vadd.f32 %v1599, %v2309
    %v2533 = vadd.f32 %v1601, %v2311
    %v2534 = vadd.f32 %v1604, %v2314
    %v2535 = vadd.f32 %v1606, %v2316
    %v2536 = vadd.f32 %v1609, %v2319
    %v2537 = vadd.f32 %v1611, %v2321
    %v2538 = vadd.f32 %v1614, %v2324
    %v2539 = vadd.f32 %v1616, %v2326
    %v2540 = vadd.f32 %v1619, %v2329
    %v2541 = vadd.f32 %v1621, %v2331
    %v2542 = vadd.f32 %v1624, %v2334
    %v2543 = vadd.f32 %v1626, %v2336
    %v2544 = vadd.f32 %v1629, %v2339
    %v2545 = vadd.f32 %v1631, %v2341
    %v2546 = vadd.f32 %v1634, %v2344
    %v2547 = vadd.f32 %v1636, %v2346
    %v2548 = vadd.f32 %v1639, %v2349
    %v2549 = vadd.f32 %v1641, %v2351
    %v2550 = vadd.f32 %v1644, %v2354
    %v2551 = vadd.f32 %v1646, %v2356
    %v2552 = vadd.f32 %v1649, %v2359
    %v2553 = vadd.f32 %v1651, %v2361
    %v2554 = vadd.f32 %v1654, %v2364
    %v2555 = vadd.f32 %v1656, %v2366
    %v2556 = vadd.f32 %v1659, %v2369
    %v2557 = vadd.f32 %v1661, %v2371
    %v2558 = vadd.f32 %v1664, %v2374
    %v2559 = vadd.f32 %v1666, %v2376
    %v2560 = vadd.f32 %v1669, %v2379
    %v2561 = vadd.f32 %v1671, %v2381
    %v2562 = vadd.f32 %v1674, %v2384
    %v2563 = vadd.f32 %v1676, %v2386
    %v2564 = vadd.f32 %v1679, %v2389
    %v2565 = vadd.f32 %v1681, %v2391
    %v2566 = vadd.f32 %v1684, %v2394
    %v2567 = vadd.f32 %v1686, %v2396
    %v2568 = vadd.f32 %v1689, %v2399
    %v2569 = vadd.f32 %v1691, %v2401
    %v2570 = vadd.f32 %v1694, %v2404
    %v2571 = vadd.f32 %v1696, %v2406
    %v2572 = vadd.f32 %v1699, %v2409
    %v2573 = vadd.f32 %v1701, %v2411
    %v2574 = vadd.f32 %v1704, %v2414
    %v2575 = vadd.f32 %v1706, %v2416
    %v2576 = vadd.f32 %v1709, %v2419
    %v2577 = vadd.f32 %v1711, %v2421
    %v2578 = vadd.f32 %v1714, %v2424
    %v2579 = vadd.f32 %v1716, %v2426
    %v2580 = vadd.f32 %v1719, %v2429
    %v2581 = vadd.f32 %v1721, %v2431
    %v2582 = vadd.f32 %v1724, %v2434
    %v2583 = vadd.f32 %v1726, %v2436
    %v2584 = vadd.f32 %v1729, %v2439
    %v2585 = vadd.f32 %v1731, %v2441
    %v2586 = vadd.f32 %v1734, %v2444
    %v2587 = vadd.f32 %v1736, %v2446
    %v2588 = vadd.f32 %v1739, %v2449
    %v2589 = vadd.f32 %v1741, %v2451
    %v2590 = vadd.f32 %v1744, %v2454
    %v2591 = vadd.f32 %v1746, %v2456
    %v2592 = vadd.f32 %v1749, %v2459
    %v2593 = vadd.f32 %v1751, %v2461
    %v2594 = vadd.f32 %v1754, %v2464
    %v2595 = vadd.f32 %v1756, %v2466
    %v2596 = vadd.f32 %v1759, %v2469
    %s2597 = scalar_lea.vmem %s1, 24
    %v2598 = vld [vmem:[%s2597] sm:$0xf]
    %v2599 = vld [vmem:[%s2597 + $0x4] sm:$0xf]
    %vm2600 = vsmask.f32 6400
    %v2601 = vrot.slane %v286, 1
    %v2602 = vrot.slane %v288, 2
    %v2603 = vor.u32 %v2601, %v2602
    %v2604 = vrot.slane %v297, 1
    %v2605 = vrot.slane %v293, 2
    %v2606 = vor.u32 %v2604, %v2605
    %v2607 = vsel %vm2600, %v2603, %v2606
    %v2608 = vrot.slane %v305, 1
    %v2609 = vrot.slane %v301, 2
    %v2610 = vor.u32 %v2608, %v2609
    %v2611 = vsel %vm2600, %v2606, %v2610
    %v2612 = vrot.slane %v313, 1
    %v2613 = vrot.slane %v309, 2
    %v2614 = vor.u32 %v2612, %v2613
    %v2615 = vsel %vm2600, %v2610, %v2614
    %v2616 = vrot.slane %v321, 1
    %v2617 = vrot.slane %v317, 2
    %v2618 = vor.u32 %v2616, %v2617
    %v2619 = vsel %vm2600, %v2614, %v2618
    %v2620 = vrot.slane %v329, 1
    %v2621 = vrot.slane %v325, 2
    %v2622 = vor.u32 %v2620, %v2621
    %v2623 = vsel %vm2600, %v2618, %v2622
    %v2624 = vrot.slane %v337, 1
    %v2625 = vrot.slane %v333, 2
    %v2626 = vor.u32 %v2624, %v2625
    %v2627 = vsel %vm2600, %v2622, %v2626
    %v2628 = vrot.slane %v345, 1
    %v2629 = vrot.slane %v341, 2
    %v2630 = vor.u32 %v2628, %v2629
    %v2631 = vsel %vm2600, %v2626, %v2630
    %v2632 = vrot.slane %v353, 1
    %v2633 = vrot.slane %v349, 2
    %v2634 = vor.u32 %v2632, %v2633
    %v2635 = vsel %vm2600, %v2630, %v2634
    %v2636 = vrot.slane %v361, 1
    %v2637 = vrot.slane %v357, 2
    %v2638 = vor.u32 %v2636, %v2637
    %v2639 = vsel %vm2600, %v2634, %v2638
    %v2640 = vrot.slane %v369, 1
    %v2641 = vrot.slane %v365, 2
    %v2642 = vor.u32 %v2640, %v2641
    %v2643 = vsel %vm2600, %v2638, %v2642
    %v2644 = vrot.slane %v377, 1
    %v2645 = vrot.slane %v373, 2
    %v2646 = vor.u32 %v2644, %v2645
    %v2647 = vsel %vm2600, %v2642, %v2646
    %v2648 = vrot.slane %v385, 1
    %v2649 = vrot.slane %v381, 2
    %v2650 = vor.u32 %v2648, %v2649
    %v2651 = vsel %vm2600, %v2646, %v2650
    %v2652 = vrot.slane %v393, 1
    %v2653 = vrot.slane %v389, 2
    %v2654 = vor.u32 %v2652, %v2653
    %v2655 = vsel %vm2600, %v2650, %v2654
    %v2656 = vrot.slane %v401, 1
    %v2657 = vrot.slane %v397, 2
    %v2658 = vor.u32 %v2656, %v2657
    %v2659 = vsel %vm2600, %v2654, %v2658
    %v2660 = vrot.slane %v409, 1
    %v2661 = vrot.slane %v405, 2
    %v2662 = vor.u32 %v2660, %v2661
    %v2663 = vsel %vm2600, %v2658, %v2662
    %v2664 = vrot.slane %v417, 1
    %v2665 = vrot.slane %v413, 2
    %v2666 = vor.u32 %v2664, %v2665
    %v2667 = vsel %vm2600, %v2662, %v2666
    %v2668 = vrot.slane %v425, 1
    %v2669 = vrot.slane %v421, 2
    %v2670 = vor.u32 %v2668, %v2669
    %v2671 = vsel %vm2600, %v2666, %v2670
    %v2672 = vrot.slane %v433, 1
    %v2673 = vrot.slane %v429, 2
    %v2674 = vor.u32 %v2672, %v2673
    %v2675 = vsel %vm2600, %v2670, %v2674
    %v2676 = vrot.slane %v441, 1
    %v2677 = vrot.slane %v437, 2
    %v2678 = vor.u32 %v2676, %v2677
    %v2679 = vsel %vm2600, %v2674, %v2678
    %v2680 = vrot.slane %v449, 1
    %v2681 = vrot.slane %v445, 2
    %v2682 = vor.u32 %v2680, %v2681
    %v2683 = vsel %vm2600, %v2678, %v2682
    %v2684 = vrot.slane %v457, 1
    %v2685 = vrot.slane %v453, 2
    %v2686 = vor.u32 %v2684, %v2685
    %v2687 = vsel %vm2600, %v2682, %v2686
    %v2688 = vrot.slane %v465, 1
    %v2689 = vrot.slane %v461, 2
    %v2690 = vor.u32 %v2688, %v2689
    %v2691 = vsel %vm2600, %v2686, %v2690
    %v2692 = vrot.slane %v473, 1
    %v2693 = vrot.slane %v469, 2
    %v2694 = vor.u32 %v2692, %v2693
    %v2695 = vsel %vm2600, %v2690, %v2694
    %v2696 = vrot.slane %v481, 1
    %v2697 = vrot.slane %v477, 2
    %v2698 = vor.u32 %v2696, %v2697
    %v2699 = vsel %vm2600, %v2694, %v2698
    %v2700 = vrot.slane %v489, 1
    %v2701 = vrot.slane %v485, 2
    %v2702 = vor.u32 %v2700, %v2701
    %v2703 = vsel %vm2600, %v2698, %v2702
    %v2704 = vrot.slane %v497, 1
    %v2705 = vrot.slane %v493, 2
    %v2706 = vor.u32 %v2704, %v2705
    %v2707 = vsel %vm2600, %v2702, %v2706
    %v2708 = vrot.slane %v505, 1
    %v2709 = vrot.slane %v501, 2
    %v2710 = vor.u32 %v2708, %v2709
    %v2711 = vsel %vm2600, %v2706, %v2710
    %v2712 = vrot.slane %v513, 1
    %v2713 = vrot.slane %v509, 2
    %v2714 = vor.u32 %v2712, %v2713
    %v2715 = vsel %vm2600, %v2710, %v2714
    %v2716 = vrot.slane %v521, 1
    %v2717 = vrot.slane %v517, 2
    %v2718 = vor.u32 %v2716, %v2717
    %v2719 = vsel %vm2600, %v2714, %v2718
    %v2720 = vrot.slane %v529, 1
    %v2721 = vrot.slane %v525, 2
    %v2722 = vor.u32 %v2720, %v2721
    %v2723 = vsel %vm2600, %v2718, %v2722
    %v2724 = vrot.slane %v537, 1
    %v2725 = vrot.slane %v533, 2
    %v2726 = vor.u32 %v2724, %v2725
    %v2727 = vsel %vm2600, %v2722, %v2726
    %v2728 = vrot.slane %v545, 1
    %v2729 = vrot.slane %v541, 2
    %v2730 = vor.u32 %v2728, %v2729
    %v2731 = vsel %vm2600, %v2726, %v2730
    %v2732 = vrot.slane %v553, 1
    %v2733 = vrot.slane %v549, 2
    %v2734 = vor.u32 %v2732, %v2733
    %v2735 = vsel %vm2600, %v2730, %v2734
    %v2736 = vrot.slane %v561, 1
    %v2737 = vrot.slane %v557, 2
    %v2738 = vor.u32 %v2736, %v2737
    %v2739 = vsel %vm2600, %v2734, %v2738
    %v2740 = vrot.slane %v569, 1
    %v2741 = vrot.slane %v565, 2
    %v2742 = vor.u32 %v2740, %v2741
    %v2743 = vsel %vm2600, %v2738, %v2742
    %v2744 = vrot.slane %v577, 1
    %v2745 = vrot.slane %v573, 2
    %v2746 = vor.u32 %v2744, %v2745
    %v2747 = vsel %vm2600, %v2742, %v2746
    %v2748 = vrot.slane %v585, 1
    %v2749 = vrot.slane %v581, 2
    %v2750 = vor.u32 %v2748, %v2749
    %v2751 = vsel %vm2600, %v2746, %v2750
    %v2752 = vrot.slane %v593, 1
    %v2753 = vrot.slane %v589, 2
    %v2754 = vor.u32 %v2752, %v2753
    %v2755 = vsel %vm2600, %v2750, %v2754
    %v2756 = vrot.slane %v601, 1
    %v2757 = vrot.slane %v597, 2
    %v2758 = vor.u32 %v2756, %v2757
    %v2759 = vsel %vm2600, %v2754, %v2758
    %v2760 = vrot.slane %v609, 1
    %v2761 = vrot.slane %v605, 2
    %v2762 = vor.u32 %v2760, %v2761
    %v2763 = vsel %vm2600, %v2758, %v2762
    %v2764 = vrot.slane %v617, 1
    %v2765 = vrot.slane %v613, 2
    %v2766 = vor.u32 %v2764, %v2765
    %v2767 = vsel %vm2600, %v2762, %v2766
    %v2768 = vrot.slane %v625, 1
    %v2769 = vrot.slane %v621, 2
    %v2770 = vor.u32 %v2768, %v2769
    %v2771 = vsel %vm2600, %v2766, %v2770
    %v2772 = vrot.slane %v633, 1
    %v2773 = vrot.slane %v629, 2
    %v2774 = vor.u32 %v2772, %v2773
    %v2775 = vsel %vm2600, %v2770, %v2774
    %v2776 = vrot.slane %v641, 1
    %v2777 = vrot.slane %v637, 2
    %v2778 = vor.u32 %v2776, %v2777
    %v2779 = vsel %vm2600, %v2774, %v2778
    %v2780 = vrot.slane %v649, 1
    %v2781 = vrot.slane %v645, 2
    %v2782 = vor.u32 %v2780, %v2781
    %v2783 = vsel %vm2600, %v2778, %v2782
    %v2784 = vrot.slane %v657, 1
    %v2785 = vrot.slane %v653, 2
    %v2786 = vor.u32 %v2784, %v2785
    %v2787 = vsel %vm2600, %v2782, %v2786
    %v2788 = vrot.slane %v665, 1
    %v2789 = vrot.slane %v661, 2
    %v2790 = vor.u32 %v2788, %v2789
    %v2791 = vsel %vm2600, %v2786, %v2790
    %v2792 = vrot.slane %v673, 1
    %v2793 = vrot.slane %v669, 2
    %v2794 = vor.u32 %v2792, %v2793
    %v2795 = vsel %vm2600, %v2790, %v2794
    %v2796 = vrot.slane %v681, 1
    %v2797 = vrot.slane %v677, 2
    %v2798 = vor.u32 %v2796, %v2797
    %v2799 = vsel %vm2600, %v2794, %v2798
    %v2800 = vrot.slane %v689, 1
    %v2801 = vrot.slane %v685, 2
    %v2802 = vor.u32 %v2800, %v2801
    %v2803 = vsel %vm2600, %v2798, %v2802
    %v2804 = vrot.slane %v697, 1
    %v2805 = vrot.slane %v693, 2
    %v2806 = vor.u32 %v2804, %v2805
    %v2807 = vsel %vm2600, %v2802, %v2806
    %v2808 = vrot.slane %v705, 1
    %v2809 = vrot.slane %v701, 2
    %v2810 = vor.u32 %v2808, %v2809
    %v2811 = vsel %vm2600, %v2806, %v2810
    %v2812 = vrot.slane %v713, 1
    %v2813 = vrot.slane %v709, 2
    %v2814 = vor.u32 %v2812, %v2813
    %v2815 = vsel %vm2600, %v2810, %v2814
    %v2816 = vrot.slane %v721, 1
    %v2817 = vrot.slane %v717, 2
    %v2818 = vor.u32 %v2816, %v2817
    %v2819 = vsel %vm2600, %v2814, %v2818
    %v2820 = vrot.slane %v729, 1
    %v2821 = vrot.slane %v725, 2
    %v2822 = vor.u32 %v2820, %v2821
    %v2823 = vsel %vm2600, %v2818, %v2822
    %v2824 = vrot.slane %v737, 1
    %v2825 = vrot.slane %v733, 2
    %v2826 = vor.u32 %v2824, %v2825
    %v2827 = vsel %vm2600, %v2822, %v2826
    %v2828 = vrot.slane %v745, 1
    %v2829 = vrot.slane %v741, 2
    %v2830 = vor.u32 %v2828, %v2829
    %v2831 = vsel %vm2600, %v2826, %v2830
    %v2832 = vrot.slane %v753, 1
    %v2833 = vrot.slane %v749, 2
    %v2834 = vor.u32 %v2832, %v2833
    %v2835 = vsel %vm2600, %v2830, %v2834
    %v2836 = vrot.slane %v761, 1
    %v2837 = vrot.slane %v757, 2
    %v2838 = vor.u32 %v2836, %v2837
    %v2839 = vsel %vm2600, %v2834, %v2838
    %v2840 = vrot.slane %v769, 1
    %v2841 = vrot.slane %v765, 2
    %v2842 = vor.u32 %v2840, %v2841
    %v2843 = vsel %vm2600, %v2838, %v2842
    %v2844 = vrot.slane %v777, 1
    %v2845 = vrot.slane %v773, 2
    %v2846 = vor.u32 %v2844, %v2845
    %v2847 = vsel %vm2600, %v2842, %v2846
    %v2848 = vrot.slane %v785, 1
    %v2849 = vrot.slane %v781, 2
    %v2850 = vor.u32 %v2848, %v2849
    %v2851 = vsel %vm2600, %v2846, %v2850
    %v2854 = vunpack.c.l.b16 %v2598
    %v2855 = vunpack.c.l.b16 %v2599
    %v2856 = vpack.c.b16 %v2855, %v2854
    %v2859 = vsel %vm794, %v2607, 0
    %v2862 = vsel %vm794, %v2611, 0
    %v2865 = vsel %vm794, %v2615, 0
    %v2868 = vsel %vm794, %v2619, 0
    %v2871 = vsel %vm794, %v2623, 0
    %v2874 = vsel %vm794, %v2627, 0
    %v2877 = vsel %vm794, %v2631, 0
    %v2880 = vsel %vm794, %v2635, 0
    %v2883 = vsel %vm794, %v2639, 0
    %v2886 = vsel %vm794, %v2643, 0
    %v2889 = vsel %vm794, %v2647, 0
    %v2892 = vsel %vm794, %v2651, 0
    %v2895 = vsel %vm794, %v2655, 0
    %v2898 = vsel %vm794, %v2659, 0
    %v2901 = vsel %vm794, %v2663, 0
    %v2904 = vsel %vm794, %v2667, 0
    %v2907 = vsel %vm794, %v2671, 0
    %v2910 = vsel %vm794, %v2675, 0
    %v2913 = vsel %vm794, %v2679, 0
    %v2916 = vsel %vm794, %v2683, 0
    %v2919 = vsel %vm794, %v2687, 0
    %v2922 = vsel %vm794, %v2691, 0
    %v2925 = vsel %vm794, %v2695, 0
    %v2928 = vsel %vm794, %v2699, 0
    %v2931 = vsel %vm794, %v2703, 0
    %v2934 = vsel %vm794, %v2707, 0
    %v2937 = vsel %vm794, %v2711, 0
    %v2940 = vsel %vm794, %v2715, 0
    %v2943 = vsel %vm794, %v2719, 0
    %v2946 = vsel %vm794, %v2723, 0
    %v2949 = vsel %vm794, %v2727, 0
    %v2952 = vsel %vm794, %v2731, 0
    %v2955 = vsel %vm794, %v2735, 0
    %v2958 = vsel %vm794, %v2739, 0
    %v2961 = vsel %vm794, %v2743, 0
    %v2964 = vsel %vm794, %v2747, 0
    %v2967 = vsel %vm794, %v2751, 0
    %v2970 = vsel %vm794, %v2755, 0
    %v2973 = vsel %vm794, %v2759, 0
    %v2976 = vsel %vm794, %v2763, 0
    %v2979 = vsel %vm794, %v2767, 0
    %v2982 = vsel %vm794, %v2771, 0
    %v2985 = vsel %vm794, %v2775, 0
    %v2988 = vsel %vm794, %v2779, 0
    %v2991 = vsel %vm794, %v2783, 0
    %v2994 = vsel %vm794, %v2787, 0
    %v2997 = vsel %vm794, %v2791, 0
    %v3000 = vsel %vm794, %v2795, 0
    %v3003 = vsel %vm794, %v2799, 0
    %v3006 = vsel %vm794, %v2803, 0
    %v3009 = vsel %vm794, %v2807, 0
    %v3012 = vsel %vm794, %v2811, 0
    %v3015 = vsel %vm794, %v2815, 0
    %v3018 = vsel %vm794, %v2819, 0
    %v3021 = vsel %vm794, %v2823, 0
    %v3024 = vsel %vm794, %v2827, 0
    %v3027 = vsel %vm794, %v2831, 0
    %v3030 = vsel %vm794, %v2835, 0
    %v3033 = vsel %vm794, %v2839, 0
    %v3036 = vsel %vm794, %v2843, 0
    %v3039 = vsel %vm794, %v2847, 0
    %v3042 = vsel %vm794, %v2851, 0
    %v3045 = vsel %vm794, %v2850, 0
    %3047 = vmatpush.bf16.msra.mxu0 0
    %3048 = vmatpush.bf16.msra.mxu0 0
    %3049 = vmatpush.bf16.msra.mxu0 0
    %3050 = vmatpush.bf16.msra.mxu0 0
    %3051 = vmatpush.bf16.msra.mxu0 0
    %3052 = vmatpush.bf16.msra.mxu0 0
    %3053 = vmatpush.bf16.msra.mxu0 0
    %3054 = vmatpush.bf16.msra.mxu0 %v2856
    %3055 = vmatmul.bf16.gmra.mxu0 %v2859
    %v3056 = vpop.f32.mrf.mxu0
    %v3057 = vadd.f32 0.0, %v3056
    %v3058 = vpop.f32.mrf.mxu0
    %v3059 = vadd.f32 0.0, %v3058
    %3060 = vmatmul.bf16.gmra.mxu0 %v2862
    %v3061 = vpop.f32.mrf.mxu0
    %v3062 = vadd.f32 0.0, %v3061
    %v3063 = vpop.f32.mrf.mxu0
    %v3064 = vadd.f32 0.0, %v3063
    %3065 = vmatmul.bf16.gmra.mxu0 %v2865
    %v3066 = vpop.f32.mrf.mxu0
    %v3067 = vadd.f32 0.0, %v3066
    %v3068 = vpop.f32.mrf.mxu0
    %v3069 = vadd.f32 0.0, %v3068
    %3070 = vmatmul.bf16.gmra.mxu0 %v2868
    %v3071 = vpop.f32.mrf.mxu0
    %v3072 = vadd.f32 0.0, %v3071
    %v3073 = vpop.f32.mrf.mxu0
    %v3074 = vadd.f32 0.0, %v3073
    %3075 = vmatmul.bf16.gmra.mxu0 %v2871
    %v3076 = vpop.f32.mrf.mxu0
    %v3077 = vadd.f32 0.0, %v3076
    %v3078 = vpop.f32.mrf.mxu0
    %v3079 = vadd.f32 0.0, %v3078
    %3080 = vmatmul.bf16.gmra.mxu0 %v2874
    %v3081 = vpop.f32.mrf.mxu0
    %v3082 = vadd.f32 0.0, %v3081
    %v3083 = vpop.f32.mrf.mxu0
    %v3084 = vadd.f32 0.0, %v3083
    %3085 = vmatmul.bf16.gmra.mxu0 %v2877
    %v3086 = vpop.f32.mrf.mxu0
    %v3087 = vadd.f32 0.0, %v3086
    %v3088 = vpop.f32.mrf.mxu0
    %v3089 = vadd.f32 0.0, %v3088
    %3090 = vmatmul.bf16.gmra.mxu0 %v2880
    %v3091 = vpop.f32.mrf.mxu0
    %v3092 = vadd.f32 0.0, %v3091
    %v3093 = vpop.f32.mrf.mxu0
    %v3094 = vadd.f32 0.0, %v3093
    %3095 = vmatmul.bf16.gmra.mxu0 %v2883
    %v3096 = vpop.f32.mrf.mxu0
    %v3097 = vadd.f32 0.0, %v3096
    %v3098 = vpop.f32.mrf.mxu0
    %v3099 = vadd.f32 0.0, %v3098
    %3100 = vmatmul.bf16.gmra.mxu0 %v2886
    %v3101 = vpop.f32.mrf.mxu0
    %v3102 = vadd.f32 0.0, %v3101
    %v3103 = vpop.f32.mrf.mxu0
    %v3104 = vadd.f32 0.0, %v3103
    %3105 = vmatmul.bf16.gmra.mxu0 %v2889
    %v3106 = vpop.f32.mrf.mxu0
    %v3107 = vadd.f32 0.0, %v3106
    %v3108 = vpop.f32.mrf.mxu0
    %v3109 = vadd.f32 0.0, %v3108
    %3110 = vmatmul.bf16.gmra.mxu0 %v2892
    %v3111 = vpop.f32.mrf.mxu0
    %v3112 = vadd.f32 0.0, %v3111
    %v3113 = vpop.f32.mrf.mxu0
    %v3114 = vadd.f32 0.0, %v3113
    %3115 = vmatmul.bf16.gmra.mxu0 %v2895
    %v3116 = vpop.f32.mrf.mxu0
    %v3117 = vadd.f32 0.0, %v3116
    %v3118 = vpop.f32.mrf.mxu0
    %v3119 = vadd.f32 0.0, %v3118
    %3120 = vmatmul.bf16.gmra.mxu0 %v2898
    %v3121 = vpop.f32.mrf.mxu0
    %v3122 = vadd.f32 0.0, %v3121
    %v3123 = vpop.f32.mrf.mxu0
    %v3124 = vadd.f32 0.0, %v3123
    %3125 = vmatmul.bf16.gmra.mxu0 %v2901
    %v3126 = vpop.f32.mrf.mxu0
    %v3127 = vadd.f32 0.0, %v3126
    %v3128 = vpop.f32.mrf.mxu0
    %v3129 = vadd.f32 0.0, %v3128
    %3130 = vmatmul.bf16.gmra.mxu0 %v2904
    %v3131 = vpop.f32.mrf.mxu0
    %v3132 = vadd.f32 0.0, %v3131
    %v3133 = vpop.f32.mrf.mxu0
    %v3134 = vadd.f32 0.0, %v3133
    %3135 = vmatmul.bf16.gmra.mxu0 %v2907
    %v3136 = vpop.f32.mrf.mxu0
    %v3137 = vadd.f32 0.0, %v3136
    %v3138 = vpop.f32.mrf.mxu0
    %v3139 = vadd.f32 0.0, %v3138
    %3140 = vmatmul.bf16.gmra.mxu0 %v2910
    %v3141 = vpop.f32.mrf.mxu0
    %v3142 = vadd.f32 0.0, %v3141
    %v3143 = vpop.f32.mrf.mxu0
    %v3144 = vadd.f32 0.0, %v3143
    %3145 = vmatmul.bf16.gmra.mxu0 %v2913
    %v3146 = vpop.f32.mrf.mxu0
    %v3147 = vadd.f32 0.0, %v3146
    %v3148 = vpop.f32.mrf.mxu0
    %v3149 = vadd.f32 0.0, %v3148
    %3150 = vmatmul.bf16.gmra.mxu0 %v2916
    %v3151 = vpop.f32.mrf.mxu0
    %v3152 = vadd.f32 0.0, %v3151
    %v3153 = vpop.f32.mrf.mxu0
    %v3154 = vadd.f32 0.0, %v3153
    %3155 = vmatmul.bf16.gmra.mxu0 %v2919
    %v3156 = vpop.f32.mrf.mxu0
    %v3157 = vadd.f32 0.0, %v3156
    %v3158 = vpop.f32.mrf.mxu0
    %v3159 = vadd.f32 0.0, %v3158
    %3160 = vmatmul.bf16.gmra.mxu0 %v2922
    %v3161 = vpop.f32.mrf.mxu0
    %v3162 = vadd.f32 0.0, %v3161
    %v3163 = vpop.f32.mrf.mxu0
    %v3164 = vadd.f32 0.0, %v3163
    %3165 = vmatmul.bf16.gmra.mxu0 %v2925
    %v3166 = vpop.f32.mrf.mxu0
    %v3167 = vadd.f32 0.0, %v3166
    %v3168 = vpop.f32.mrf.mxu0
    %v3169 = vadd.f32 0.0, %v3168
    %3170 = vmatmul.bf16.gmra.mxu0 %v2928
    %v3171 = vpop.f32.mrf.mxu0
    %v3172 = vadd.f32 0.0, %v3171
    %v3173 = vpop.f32.mrf.mxu0
    %v3174 = vadd.f32 0.0, %v3173
    %3175 = vmatmul.bf16.gmra.mxu0 %v2931
    %v3176 = vpop.f32.mrf.mxu0
    %v3177 = vadd.f32 0.0, %v3176
    %v3178 = vpop.f32.mrf.mxu0
    %v3179 = vadd.f32 0.0, %v3178
    %3180 = vmatmul.bf16.gmra.mxu0 %v2934
    %v3181 = vpop.f32.mrf.mxu0
    %v3182 = vadd.f32 0.0, %v3181
    %v3183 = vpop.f32.mrf.mxu0
    %v3184 = vadd.f32 0.0, %v3183
    %3185 = vmatmul.bf16.gmra.mxu0 %v2937
    %v3186 = vpop.f32.mrf.mxu0
    %v3187 = vadd.f32 0.0, %v3186
    %v3188 = vpop.f32.mrf.mxu0
    %v3189 = vadd.f32 0.0, %v3188
    %3190 = vmatmul.bf16.gmra.mxu0 %v2940
    %v3191 = vpop.f32.mrf.mxu0
    %v3192 = vadd.f32 0.0, %v3191
    %v3193 = vpop.f32.mrf.mxu0
    %v3194 = vadd.f32 0.0, %v3193
    %3195 = vmatmul.bf16.gmra.mxu0 %v2943
    %v3196 = vpop.f32.mrf.mxu0
    %v3197 = vadd.f32 0.0, %v3196
    %v3198 = vpop.f32.mrf.mxu0
    %v3199 = vadd.f32 0.0, %v3198
    %3200 = vmatmul.bf16.gmra.mxu0 %v2946
    %v3201 = vpop.f32.mrf.mxu0
    %v3202 = vadd.f32 0.0, %v3201
    %v3203 = vpop.f32.mrf.mxu0
    %v3204 = vadd.f32 0.0, %v3203
    %3205 = vmatmul.bf16.gmra.mxu0 %v2949
    %v3206 = vpop.f32.mrf.mxu0
    %v3207 = vadd.f32 0.0, %v3206
    %v3208 = vpop.f32.mrf.mxu0
    %v3209 = vadd.f32 0.0, %v3208
    %3210 = vmatmul.bf16.gmra.mxu0 %v2952
    %v3211 = vpop.f32.mrf.mxu0
    %v3212 = vadd.f32 0.0, %v3211
    %v3213 = vpop.f32.mrf.mxu0
    %v3214 = vadd.f32 0.0, %v3213
    %3215 = vmatmul.bf16.gmra.mxu0 %v2955
    %v3216 = vpop.f32.mrf.mxu0
    %v3217 = vadd.f32 0.0, %v3216
    %v3218 = vpop.f32.mrf.mxu0
    %v3219 = vadd.f32 0.0, %v3218
    %3220 = vmatmul.bf16.gmra.mxu0 %v2958
    %v3221 = vpop.f32.mrf.mxu0
    %v3222 = vadd.f32 0.0, %v3221
    %v3223 = vpop.f32.mrf.mxu0
    %v3224 = vadd.f32 0.0, %v3223
    %3225 = vmatmul.bf16.gmra.mxu0 %v2961
    %v3226 = vpop.f32.mrf.mxu0
    %v3227 = vadd.f32 0.0, %v3226
    %v3228 = vpop.f32.mrf.mxu0
    %v3229 = vadd.f32 0.0, %v3228
    %3230 = vmatmul.bf16.gmra.mxu0 %v2964
    %v3231 = vpop.f32.mrf.mxu0
    %v3232 = vadd.f32 0.0, %v3231
    %v3233 = vpop.f32.mrf.mxu0
    %v3234 = vadd.f32 0.0, %v3233
    %3235 = vmatmul.bf16.gmra.mxu0 %v2967
    %v3236 = vpop.f32.mrf.mxu0
    %v3237 = vadd.f32 0.0, %v3236
    %v3238 = vpop.f32.mrf.mxu0
    %v3239 = vadd.f32 0.0, %v3238
    %3240 = vmatmul.bf16.gmra.mxu0 %v2970
    %v3241 = vpop.f32.mrf.mxu0
    %v3242 = vadd.f32 0.0, %v3241
    %v3243 = vpop.f32.mrf.mxu0
    %v3244 = vadd.f32 0.0, %v3243
    %3245 = vmatmul.bf16.gmra.mxu0 %v2973
    %v3246 = vpop.f32.mrf.mxu0
    %v3247 = vadd.f32 0.0, %v3246
    %v3248 = vpop.f32.mrf.mxu0
    %v3249 = vadd.f32 0.0, %v3248
    %3250 = vmatmul.bf16.gmra.mxu0 %v2976
    %v3251 = vpop.f32.mrf.mxu0
    %v3252 = vadd.f32 0.0, %v3251
    %v3253 = vpop.f32.mrf.mxu0
    %v3254 = vadd.f32 0.0, %v3253
    %3255 = vmatmul.bf16.gmra.mxu0 %v2979
    %v3256 = vpop.f32.mrf.mxu0
    %v3257 = vadd.f32 0.0, %v3256
    %v3258 = vpop.f32.mrf.mxu0
    %v3259 = vadd.f32 0.0, %v3258
    %3260 = vmatmul.bf16.gmra.mxu0 %v2982
    %v3261 = vpop.f32.mrf.mxu0
    %v3262 = vadd.f32 0.0, %v3261
    %v3263 = vpop.f32.mrf.mxu0
    %v3264 = vadd.f32 0.0, %v3263
    %3265 = vmatmul.bf16.gmra.mxu0 %v2985
    %v3266 = vpop.f32.mrf.mxu0
    %v3267 = vadd.f32 0.0, %v3266
    %v3268 = vpop.f32.mrf.mxu0
    %v3269 = vadd.f32 0.0, %v3268
    %3270 = vmatmul.bf16.gmra.mxu0 %v2988
    %v3271 = vpop.f32.mrf.mxu0
    %v3272 = vadd.f32 0.0, %v3271
    %v3273 = vpop.f32.mrf.mxu0
    %v3274 = vadd.f32 0.0, %v3273
    %3275 = vmatmul.bf16.gmra.mxu0 %v2991
    %v3276 = vpop.f32.mrf.mxu0
    %v3277 = vadd.f32 0.0, %v3276
    %v3278 = vpop.f32.mrf.mxu0
    %v3279 = vadd.f32 0.0, %v3278
    %3280 = vmatmul.bf16.gmra.mxu0 %v2994
    %v3281 = vpop.f32.mrf.mxu0
    %v3282 = vadd.f32 0.0, %v3281
    %v3283 = vpop.f32.mrf.mxu0
    %v3284 = vadd.f32 0.0, %v3283
    %3285 = vmatmul.bf16.gmra.mxu0 %v2997
    %v3286 = vpop.f32.mrf.mxu0
    %v3287 = vadd.f32 0.0, %v3286
    %v3288 = vpop.f32.mrf.mxu0
    %v3289 = vadd.f32 0.0, %v3288
    %3290 = vmatmul.bf16.gmra.mxu0 %v3000
    %v3291 = vpop.f32.mrf.mxu0
    %v3292 = vadd.f32 0.0, %v3291
    %v3293 = vpop.f32.mrf.mxu0
    %v3294 = vadd.f32 0.0, %v3293
    %3295 = vmatmul.bf16.gmra.mxu0 %v3003
    %v3296 = vpop.f32.mrf.mxu0
    %v3297 = vadd.f32 0.0, %v3296
    %v3298 = vpop.f32.mrf.mxu0
    %v3299 = vadd.f32 0.0, %v3298
    %3300 = vmatmul.bf16.gmra.mxu0 %v3006
    %v3301 = vpop.f32.mrf.mxu0
    %v3302 = vadd.f32 0.0, %v3301
    %v3303 = vpop.f32.mrf.mxu0
    %v3304 = vadd.f32 0.0, %v3303
    %3305 = vmatmul.bf16.gmra.mxu0 %v3009
    %v3306 = vpop.f32.mrf.mxu0
    %v3307 = vadd.f32 0.0, %v3306
    %v3308 = vpop.f32.mrf.mxu0
    %v3309 = vadd.f32 0.0, %v3308
    %3310 = vmatmul.bf16.gmra.mxu0 %v3012
    %v3311 = vpop.f32.mrf.mxu0
    %v3312 = vadd.f32 0.0, %v3311
    %v3313 = vpop.f32.mrf.mxu0
    %v3314 = vadd.f32 0.0, %v3313
    %3315 = vmatmul.bf16.gmra.mxu0 %v3015
    %v3316 = vpop.f32.mrf.mxu0
    %v3317 = vadd.f32 0.0, %v3316
    %v3318 = vpop.f32.mrf.mxu0
    %v3319 = vadd.f32 0.0, %v3318
    %3320 = vmatmul.bf16.gmra.mxu0 %v3018
    %v3321 = vpop.f32.mrf.mxu0
    %v3322 = vadd.f32 0.0, %v3321
    %v3323 = vpop.f32.mrf.mxu0
    %v3324 = vadd.f32 0.0, %v3323
    %3325 = vmatmul.bf16.gmra.mxu0 %v3021
    %v3326 = vpop.f32.mrf.mxu0
    %v3327 = vadd.f32 0.0, %v3326
    %v3328 = vpop.f32.mrf.mxu0
    %v3329 = vadd.f32 0.0, %v3328
    %3330 = vmatmul.bf16.gmra.mxu0 %v3024
    %v3331 = vpop.f32.mrf.mxu0
    %v3332 = vadd.f32 0.0, %v3331
    %v3333 = vpop.f32.mrf.mxu0
    %v3334 = vadd.f32 0.0, %v3333
    %3335 = vmatmul.bf16.gmra.mxu0 %v3027
    %v3336 = vpop.f32.mrf.mxu0
    %v3337 = vadd.f32 0.0, %v3336
    %v3338 = vpop.f32.mrf.mxu0
    %v3339 = vadd.f32 0.0, %v3338
    %3340 = vmatmul.bf16.gmra.mxu0 %v3030
    %v3341 = vpop.f32.mrf.mxu0
    %v3342 = vadd.f32 0.0, %v3341
    %v3343 = vpop.f32.mrf.mxu0
    %v3344 = vadd.f32 0.0, %v3343
    %3345 = vmatmul.bf16.gmra.mxu0 %v3033
    %v3346 = vpop.f32.mrf.mxu0
    %v3347 = vadd.f32 0.0, %v3346
    %v3348 = vpop.f32.mrf.mxu0
    %v3349 = vadd.f32 0.0, %v3348
    %3350 = vmatmul.bf16.gmra.mxu0 %v3036
    %v3351 = vpop.f32.mrf.mxu0
    %v3352 = vadd.f32 0.0, %v3351
    %v3353 = vpop.f32.mrf.mxu0
    %v3354 = vadd.f32 0.0, %v3353
    %3355 = vmatmul.bf16.gmra.mxu0 %v3039
    %v3356 = vpop.f32.mrf.mxu0
    %v3357 = vadd.f32 0.0, %v3356
    %v3358 = vpop.f32.mrf.mxu0
    %v3359 = vadd.f32 0.0, %v3358
    %3360 = vmatmul.bf16.gmra.mxu0 %v3042
    %v3361 = vpop.f32.mrf.mxu0
    %v3362 = vadd.f32 0.0, %v3361
    %v3363 = vpop.f32.mrf.mxu0
    %v3364 = vadd.f32 0.0, %v3363
    %3365 = vmatmul.bf16.gmra.mxu0 %v3045
    %v3366 = vpop.f32.mrf.mxu0
    %v3367 = vadd.f32 0.0, %v3366
    %v3368 = vpop.f32.mrf.mxu0
    %3369 = vdwg.mxu0
    %v3370 = vadd.f32 %v2472, %v3057
    %v3371 = vadd.f32 %v2473, %v3059
    %v3372 = vadd.f32 %v2474, %v3062
    %v3373 = vadd.f32 %v2475, %v3064
    %v3374 = vadd.f32 %v2476, %v3067
    %v3375 = vadd.f32 %v2477, %v3069
    %v3376 = vadd.f32 %v2478, %v3072
    %v3377 = vadd.f32 %v2479, %v3074
    %v3378 = vadd.f32 %v2480, %v3077
    %v3379 = vadd.f32 %v2481, %v3079
    %v3380 = vadd.f32 %v2482, %v3082
    %v3381 = vadd.f32 %v2483, %v3084
    %v3382 = vadd.f32 %v2484, %v3087
    %v3383 = vadd.f32 %v2485, %v3089
    %v3384 = vadd.f32 %v2486, %v3092
    %v3385 = vadd.f32 %v2487, %v3094
    %v3386 = vadd.f32 %v2488, %v3097
    %v3387 = vadd.f32 %v2489, %v3099
    %v3388 = vadd.f32 %v2490, %v3102
    %v3389 = vadd.f32 %v2491, %v3104
    %v3390 = vadd.f32 %v2492, %v3107
    %v3391 = vadd.f32 %v2493, %v3109
    %v3392 = vadd.f32 %v2494, %v3112
    %v3393 = vadd.f32 %v2495, %v3114
    %v3394 = vadd.f32 %v2496, %v3117
    %v3395 = vadd.f32 %v2497, %v3119
    %v3396 = vadd.f32 %v2498, %v3122
    %v3397 = vadd.f32 %v2499, %v3124
    %v3398 = vadd.f32 %v2500, %v3127
    %v3399 = vadd.f32 %v2501, %v3129
    %v3400 = vadd.f32 %v2502, %v3132
    %v3401 = vadd.f32 %v2503, %v3134
    %v3402 = vadd.f32 %v2504, %v3137
    %v3403 = vadd.f32 %v2505, %v3139
    %v3404 = vadd.f32 %v2506, %v3142
    %v3405 = vadd.f32 %v2507, %v3144
    %v3406 = vadd.f32 %v2508, %v3147
    %v3407 = vadd.f32 %v2509, %v3149
    %v3408 = vadd.f32 %v2510, %v3152
    %v3409 = vadd.f32 %v2511, %v3154
    %v3410 = vadd.f32 %v2512, %v3157
    %v3411 = vadd.f32 %v2513, %v3159
    %v3412 = vadd.f32 %v2514, %v3162
    %v3413 = vadd.f32 %v2515, %v3164
    %v3414 = vadd.f32 %v2516, %v3167
    %v3415 = vadd.f32 %v2517, %v3169
    %v3416 = vadd.f32 %v2518, %v3172
    %v3417 = vadd.f32 %v2519, %v3174
    %v3418 = vadd.f32 %v2520, %v3177
    %v3419 = vadd.f32 %v2521, %v3179
    %v3420 = vadd.f32 %v2522, %v3182
    %v3421 = vadd.f32 %v2523, %v3184
    %v3422 = vadd.f32 %v2524, %v3187
    %v3423 = vadd.f32 %v2525, %v3189
    %v3424 = vadd.f32 %v2526, %v3192
    %v3425 = vadd.f32 %v2527, %v3194
    %v3426 = vadd.f32 %v2528, %v3197
    %v3427 = vadd.f32 %v2529, %v3199
    %v3428 = vadd.f32 %v2530, %v3202
    %v3429 = vadd.f32 %v2531, %v3204
    %v3430 = vadd.f32 %v2532, %v3207
    %v3431 = vadd.f32 %v2533, %v3209
    %v3432 = vadd.f32 %v2534, %v3212
    %v3433 = vadd.f32 %v2535, %v3214
    %v3434 = vadd.f32 %v2536, %v3217
    %v3435 = vadd.f32 %v2537, %v3219
    %v3436 = vadd.f32 %v2538, %v3222
    %v3437 = vadd.f32 %v2539, %v3224
    %v3438 = vadd.f32 %v2540, %v3227
    %v3439 = vadd.f32 %v2541, %v3229
    %v3440 = vadd.f32 %v2542, %v3232
    %v3441 = vadd.f32 %v2543, %v3234
    %v3442 = vadd.f32 %v2544, %v3237
    %v3443 = vadd.f32 %v2545, %v3239
    %v3444 = vadd.f32 %v2546, %v3242
    %v3445 = vadd.f32 %v2547, %v3244
    %v3446 = vadd.f32 %v2548, %v3247
    %v3447 = vadd.f32 %v2549, %v3249
    %v3448 = vadd.f32 %v2550, %v3252
    %v3449 = vadd.f32 %v2551, %v3254
    %v3450 = vadd.f32 %v2552, %v3257
    %v3451 = vadd.f32 %v2553, %v3259
    %v3452 = vadd.f32 %v2554, %v3262
    %v3453 = vadd.f32 %v2555, %v3264
    %v3454 = vadd.f32 %v2556, %v3267
    %v3455 = vadd.f32 %v2557, %v3269
    %v3456 = vadd.f32 %v2558, %v3272
    %v3457 = vadd.f32 %v2559, %v3274
    %v3458 = vadd.f32 %v2560, %v3277
    %v3459 = vadd.f32 %v2561, %v3279
    %v3460 = vadd.f32 %v2562, %v3282
    %v3461 = vadd.f32 %v2563, %v3284
    %v3462 = vadd.f32 %v2564, %v3287
    %v3463 = vadd.f32 %v2565, %v3289
    %v3464 = vadd.f32 %v2566, %v3292
    %v3465 = vadd.f32 %v2567, %v3294
    %v3466 = vadd.f32 %v2568, %v3297
    %v3467 = vadd.f32 %v2569, %v3299
    %v3468 = vadd.f32 %v2570, %v3302
    %v3469 = vadd.f32 %v2571, %v3304
    %v3470 = vadd.f32 %v2572, %v3307
    %v3471 = vadd.f32 %v2573, %v3309
    %v3472 = vadd.f32 %v2574, %v3312
    %v3473 = vadd.f32 %v2575, %v3314
    %v3474 = vadd.f32 %v2576, %v3317
    %v3475 = vadd.f32 %v2577, %v3319
    %v3476 = vadd.f32 %v2578, %v3322
    %v3477 = vadd.f32 %v2579, %v3324
    %v3478 = vadd.f32 %v2580, %v3327
    %v3479 = vadd.f32 %v2581, %v3329
    %v3480 = vadd.f32 %v2582, %v3332
    %v3481 = vadd.f32 %v2583, %v3334
    %v3482 = vadd.f32 %v2584, %v3337
    %v3483 = vadd.f32 %v2585, %v3339
    %v3484 = vadd.f32 %v2586, %v3342
    %v3485 = vadd.f32 %v2587, %v3344
    %v3486 = vadd.f32 %v2588, %v3347
    %v3487 = vadd.f32 %v2589, %v3349
    %v3488 = vadd.f32 %v2590, %v3352
    %v3489 = vadd.f32 %v2591, %v3354
    %v3490 = vadd.f32 %v2592, %v3357
    %v3491 = vadd.f32 %v2593, %v3359
    %v3492 = vadd.f32 %v2594, %v3362
    %v3493 = vadd.f32 %v2595, %v3364
    %v3494 = vadd.f32 %v2596, %v3367
    %s3495 = scalar_lea.vmem %s1, 32
    %v3496 = vld [vmem:[%s3495] sm:$0xf]
    %v3497 = vld [vmem:[%s3495 + $0x4] sm:$0xf]
    %vm3498 = vcmask 1045504
    %v3499 = vrot.slane %v216, 2
    %v3500 = vrot.slane %v217, 2
    %v3501 = vsel %vm3498, %v3499, %v3500
    %v3502 = vrot.slane %v218, 2
    %v3503 = vsel %vm3498, %v3500, %v3502
    %v3504 = vrot.slane %v219, 2
    %v3505 = vsel %vm3498, %v3502, %v3504
    %v3506 = vrot.slane %v220, 2
    %v3507 = vsel %vm3498, %v3504, %v3506
    %v3508 = vrot.slane %v221, 2
    %v3509 = vsel %vm3498, %v3506, %v3508
    %v3510 = vrot.slane %v222, 2
    %v3511 = vsel %vm3498, %v3508, %v3510
    %v3512 = vrot.slane %v223, 2
    %v3513 = vsel %vm3498, %v3510, %v3512
    %v3514 = vrot.slane %v224, 2
    %v3515 = vsel %vm3498, %v3512, %v3514
    %v3516 = vrot.slane %v225, 2
    %v3517 = vsel %vm3498, %v3514, %v3516
    %v3518 = vrot.slane %v226, 2
    %v3519 = vsel %vm3498, %v3516, %v3518
    %v3520 = vrot.slane %v227, 2
    %v3521 = vsel %vm3498, %v3518, %v3520
    %v3522 = vrot.slane %v228, 2
    %v3523 = vsel %vm3498, %v3520, %v3522
    %v3524 = vrot.slane %v229, 2
    %v3525 = vsel %vm3498, %v3522, %v3524
    %v3526 = vrot.slane %v230, 2
    %v3527 = vsel %vm3498, %v3524, %v3526
    %v3528 = vrot.slane %v231, 2
    %v3529 = vsel %vm3498, %v3526, %v3528
    %v3530 = vrot.slane %v232, 2
    %v3531 = vsel %vm3498, %v3528, %v3530
    %v3532 = vrot.slane %v233, 2
    %v3533 = vsel %vm3498, %v3530, %v3532
    %v3534 = vrot.slane %v234, 2
    %v3535 = vsel %vm3498, %v3532, %v3534
    %v3536 = vrot.slane %v235, 2
    %v3537 = vsel %vm3498, %v3534, %v3536
    %v3538 = vrot.slane %v236, 2
    %v3539 = vsel %vm3498, %v3536, %v3538
    %v3540 = vrot.slane %v237, 2
    %v3541 = vsel %vm3498, %v3538, %v3540
    %v3542 = vrot.slane %v238, 2
    %v3543 = vsel %vm3498, %v3540, %v3542
    %v3544 = vrot.slane %v239, 2
    %v3545 = vsel %vm3498, %v3542, %v3544
    %v3546 = vrot.slane %v240, 2
    %v3547 = vsel %vm3498, %v3544, %v3546
    %v3548 = vrot.slane %v241, 2
    %v3549 = vsel %vm3498, %v3546, %v3548
    %v3550 = vrot.slane %v242, 2
    %v3551 = vsel %vm3498, %v3548, %v3550
    %v3552 = vrot.slane %v243, 2
    %v3553 = vsel %vm3498, %v3550, %v3552
    %v3554 = vrot.slane %v244, 2
    %v3555 = vsel %vm3498, %v3552, %v3554
    %v3556 = vrot.slane %v245, 2
    %v3557 = vsel %vm3498, %v3554, %v3556
    %v3558 = vrot.slane %v246, 2
    %v3559 = vsel %vm3498, %v3556, %v3558
    %v3560 = vrot.slane %v247, 2
    %v3561 = vsel %vm3498, %v3558, %v3560
    %v3562 = vrot.slane %v248, 2
    %v3563 = vsel %vm3498, %v3560, %v3562
    %v3564 = vrot.slane %v249, 2
    %v3565 = vsel %vm3498, %v3562, %v3564
    %v3566 = vrot.slane %v250, 2
    %v3567 = vsel %vm3498, %v3564, %v3566
    %v3568 = vrot.slane %v251, 2
    %v3569 = vsel %vm3498, %v3566, %v3568
    %v3570 = vrot.slane %v252, 2
    %v3571 = vsel %vm3498, %v3568, %v3570
    %v3572 = vrot.slane %v253, 2
    %v3573 = vsel %vm3498, %v3570, %v3572
    %v3574 = vrot.slane %v254, 2
    %v3575 = vsel %vm3498, %v3572, %v3574
    %v3576 = vrot.slane %v255, 2
    %v3577 = vsel %vm3498, %v3574, %v3576
    %v3578 = vrot.slane %v256, 2
    %v3579 = vsel %vm3498, %v3576, %v3578
    %v3580 = vrot.slane %v257, 2
    %v3581 = vsel %vm3498, %v3578, %v3580
    %v3582 = vrot.slane %v258, 2
    %v3583 = vsel %vm3498, %v3580, %v3582
    %v3584 = vrot.slane %v259, 2
    %v3585 = vsel %vm3498, %v3582, %v3584
    %v3586 = vrot.slane %v260, 2
    %v3587 = vsel %vm3498, %v3584, %v3586
    %v3588 = vrot.slane %v261, 2
    %v3589 = vsel %vm3498, %v3586, %v3588
    %v3590 = vrot.slane %v262, 2
    %v3591 = vsel %vm3498, %v3588, %v3590
    %v3592 = vrot.slane %v263, 2
    %v3593 = vsel %vm3498, %v3590, %v3592
    %v3594 = vrot.slane %v264, 2
    %v3595 = vsel %vm3498, %v3592, %v3594
    %v3596 = vrot.slane %v265, 2
    %v3597 = vsel %vm3498, %v3594, %v3596
    %v3598 = vrot.slane %v266, 2
    %v3599 = vsel %vm3498, %v3596, %v3598
    %v3600 = vrot.slane %v267, 2
    %v3601 = vsel %vm3498, %v3598, %v3600
    %v3602 = vrot.slane %v268, 2
    %v3603 = vsel %vm3498, %v3600, %v3602
    %v3604 = vrot.slane %v269, 2
    %v3605 = vsel %vm3498, %v3602, %v3604
    %v3606 = vrot.slane %v270, 2
    %v3607 = vsel %vm3498, %v3604, %v3606
    %v3608 = vrot.slane %v271, 2
    %v3609 = vsel %vm3498, %v3606, %v3608
    %v3610 = vrot.slane %v272, 2
    %v3611 = vsel %vm3498, %v3608, %v3610
    %v3612 = vrot.slane %v273, 2
    %v3613 = vsel %vm3498, %v3610, %v3612
    %v3614 = vrot.slane %v274, 2
    %v3615 = vsel %vm3498, %v3612, %v3614
    %v3616 = vrot.slane %v275, 2
    %v3617 = vsel %vm3498, %v3614, %v3616
    %v3618 = vrot.slane %v276, 2
    %v3619 = vsel %vm3498, %v3616, %v3618
    %v3620 = vrot.slane %v277, 2
    %v3621 = vsel %vm3498, %v3618, %v3620
    %v3622 = vrot.slane %v278, 2
    %v3623 = vsel %vm3498, %v3620, %v3622
    %v3626 = vunpack.c.l.b16 %v3496
    %v3627 = vunpack.c.l.b16 %v3497
    %v3628 = vpack.c.b16 %v3627, %v3626
    %v3631 = vsel %vm794, %v3501, 0
    %v3634 = vsel %vm794, %v3503, 0
    %v3637 = vsel %vm794, %v3505, 0
    %v3640 = vsel %vm794, %v3507, 0
    %v3643 = vsel %vm794, %v3509, 0
    %v3646 = vsel %vm794, %v3511, 0
    %v3649 = vsel %vm794, %v3513, 0
    %v3652 = vsel %vm794, %v3515, 0
    %v3655 = vsel %vm794, %v3517, 0
    %v3658 = vsel %vm794, %v3519, 0
    %v3661 = vsel %vm794, %v3521, 0
    %v3664 = vsel %vm794, %v3523, 0
    %v3667 = vsel %vm794, %v3525, 0
    %v3670 = vsel %vm794, %v3527, 0
    %v3673 = vsel %vm794, %v3529, 0
    %v3676 = vsel %vm794, %v3531, 0
    %v3679 = vsel %vm794, %v3533, 0
    %v3682 = vsel %vm794, %v3535, 0
    %v3685 = vsel %vm794, %v3537, 0
    %v3688 = vsel %vm794, %v3539, 0
    %v3691 = vsel %vm794, %v3541, 0
    %v3694 = vsel %vm794, %v3543, 0
    %v3697 = vsel %vm794, %v3545, 0
    %v3700 = vsel %vm794, %v3547, 0
    %v3703 = vsel %vm794, %v3549, 0
    %v3706 = vsel %vm794, %v3551, 0
    %v3709 = vsel %vm794, %v3553, 0
    %v3712 = vsel %vm794, %v3555, 0
    %v3715 = vsel %vm794, %v3557, 0
    %v3718 = vsel %vm794, %v3559, 0
    %v3721 = vsel %vm794, %v3561, 0
    %v3724 = vsel %vm794, %v3563, 0
    %v3727 = vsel %vm794, %v3565, 0
    %v3730 = vsel %vm794, %v3567, 0
    %v3733 = vsel %vm794, %v3569, 0
    %v3736 = vsel %vm794, %v3571, 0
    %v3739 = vsel %vm794, %v3573, 0
    %v3742 = vsel %vm794, %v3575, 0
    %v3745 = vsel %vm794, %v3577, 0
    %v3748 = vsel %vm794, %v3579, 0
    %v3751 = vsel %vm794, %v3581, 0
    %v3754 = vsel %vm794, %v3583, 0
    %v3757 = vsel %vm794, %v3585, 0
    %v3760 = vsel %vm794, %v3587, 0
    %v3763 = vsel %vm794, %v3589, 0
    %v3766 = vsel %vm794, %v3591, 0
    %v3769 = vsel %vm794, %v3593, 0
    %v3772 = vsel %vm794, %v3595, 0
    %v3775 = vsel %vm794, %v3597, 0
    %v3778 = vsel %vm794, %v3599, 0
    %v3781 = vsel %vm794, %v3601, 0
    %v3784 = vsel %vm794, %v3603, 0
    %v3787 = vsel %vm794, %v3605, 0
    %v3790 = vsel %vm794, %v3607, 0
    %v3793 = vsel %vm794, %v3609, 0
    %v3796 = vsel %vm794, %v3611, 0
    %v3799 = vsel %vm794, %v3613, 0
    %v3802 = vsel %vm794, %v3615, 0
    %v3805 = vsel %vm794, %v3617, 0
    %v3808 = vsel %vm794, %v3619, 0
    %v3811 = vsel %vm794, %v3621, 0
    %v3814 = vsel %vm794, %v3623, 0
    %v3817 = vsel %vm794, %v3622, 0
    %3819 = vmatpush.bf16.msra.mxu0 0
    %3820 = vmatpush.bf16.msra.mxu0 0
    %3821 = vmatpush.bf16.msra.mxu0 0
    %3822 = vmatpush.bf16.msra.mxu0 0
    %3823 = vmatpush.bf16.msra.mxu0 0
    %3824 = vmatpush.bf16.msra.mxu0 0
    %3825 = vmatpush.bf16.msra.mxu0 0
    %3826 = vmatpush.bf16.msra.mxu0 %v3628
    %3827 = vmatmul.bf16.gmra.mxu0 %v3631
    %v3828 = vpop.f32.mrf.mxu0
    %v3829 = vadd.f32 0.0, %v3828
    %v3830 = vpop.f32.mrf.mxu0
    %v3831 = vadd.f32 0.0, %v3830
    %3832 = vmatmul.bf16.gmra.mxu0 %v3634
    %v3833 = vpop.f32.mrf.mxu0
    %v3834 = vadd.f32 0.0, %v3833
    %v3835 = vpop.f32.mrf.mxu0
    %v3836 = vadd.f32 0.0, %v3835
    %3837 = vmatmul.bf16.gmra.mxu0 %v3637
    %v3838 = vpop.f32.mrf.mxu0
    %v3839 = vadd.f32 0.0, %v3838
    %v3840 = vpop.f32.mrf.mxu0
    %v3841 = vadd.f32 0.0, %v3840
    %3842 = vmatmul.bf16.gmra.mxu0 %v3640
    %v3843 = vpop.f32.mrf.mxu0
    %v3844 = vadd.f32 0.0, %v3843
    %v3845 = vpop.f32.mrf.mxu0
    %v3846 = vadd.f32 0.0, %v3845
    %3847 = vmatmul.bf16.gmra.mxu0 %v3643
    %v3848 = vpop.f32.mrf.mxu0
    %v3849 = vadd.f32 0.0, %v3848
    %v3850 = vpop.f32.mrf.mxu0
    %v3851 = vadd.f32 0.0, %v3850
    %3852 = vmatmul.bf16.gmra.mxu0 %v3646
    %v3853 = vpop.f32.mrf.mxu0
    %v3854 = vadd.f32 0.0, %v3853
    %v3855 = vpop.f32.mrf.mxu0
    %v3856 = vadd.f32 0.0, %v3855
    %3857 = vmatmul.bf16.gmra.mxu0 %v3649
    %v3858 = vpop.f32.mrf.mxu0
    %v3859 = vadd.f32 0.0, %v3858
    %v3860 = vpop.f32.mrf.mxu0
    %v3861 = vadd.f32 0.0, %v3860
    %3862 = vmatmul.bf16.gmra.mxu0 %v3652
    %v3863 = vpop.f32.mrf.mxu0
    %v3864 = vadd.f32 0.0, %v3863
    %v3865 = vpop.f32.mrf.mxu0
    %v3866 = vadd.f32 0.0, %v3865
    %3867 = vmatmul.bf16.gmra.mxu0 %v3655
    %v3868 = vpop.f32.mrf.mxu0
    %v3869 = vadd.f32 0.0, %v3868
    %v3870 = vpop.f32.mrf.mxu0
    %v3871 = vadd.f32 0.0, %v3870
    %3872 = vmatmul.bf16.gmra.mxu0 %v3658
    %v3873 = vpop.f32.mrf.mxu0
    %v3874 = vadd.f32 0.0, %v3873
    %v3875 = vpop.f32.mrf.mxu0
    %v3876 = vadd.f32 0.0, %v3875
    %3877 = vmatmul.bf16.gmra.mxu0 %v3661
    %v3878 = vpop.f32.mrf.mxu0
    %v3879 = vadd.f32 0.0, %v3878
    %v3880 = vpop.f32.mrf.mxu0
    %v3881 = vadd.f32 0.0, %v3880
    %3882 = vmatmul.bf16.gmra.mxu0 %v3664
    %v3883 = vpop.f32.mrf.mxu0
    %v3884 = vadd.f32 0.0, %v3883
    %v3885 = vpop.f32.mrf.mxu0
    %v3886 = vadd.f32 0.0, %v3885
    %3887 = vmatmul.bf16.gmra.mxu0 %v3667
    %v3888 = vpop.f32.mrf.mxu0
    %v3889 = vadd.f32 0.0, %v3888
    %v3890 = vpop.f32.mrf.mxu0
    %v3891 = vadd.f32 0.0, %v3890
    %3892 = vmatmul.bf16.gmra.mxu0 %v3670
    %v3893 = vpop.f32.mrf.mxu0
    %v3894 = vadd.f32 0.0, %v3893
    %v3895 = vpop.f32.mrf.mxu0
    %v3896 = vadd.f32 0.0, %v3895
    %3897 = vmatmul.bf16.gmra.mxu0 %v3673
    %v3898 = vpop.f32.mrf.mxu0
    %v3899 = vadd.f32 0.0, %v3898
    %v3900 = vpop.f32.mrf.mxu0
    %v3901 = vadd.f32 0.0, %v3900
    %3902 = vmatmul.bf16.gmra.mxu0 %v3676
    %v3903 = vpop.f32.mrf.mxu0
    %v3904 = vadd.f32 0.0, %v3903
    %v3905 = vpop.f32.mrf.mxu0
    %v3906 = vadd.f32 0.0, %v3905
    %3907 = vmatmul.bf16.gmra.mxu0 %v3679
    %v3908 = vpop.f32.mrf.mxu0
    %v3909 = vadd.f32 0.0, %v3908
    %v3910 = vpop.f32.mrf.mxu0
    %v3911 = vadd.f32 0.0, %v3910
    %3912 = vmatmul.bf16.gmra.mxu0 %v3682
    %v3913 = vpop.f32.mrf.mxu0
    %v3914 = vadd.f32 0.0, %v3913
    %v3915 = vpop.f32.mrf.mxu0
    %v3916 = vadd.f32 0.0, %v3915
    %3917 = vmatmul.bf16.gmra.mxu0 %v3685
    %v3918 = vpop.f32.mrf.mxu0
    %v3919 = vadd.f32 0.0, %v3918
    %v3920 = vpop.f32.mrf.mxu0
    %v3921 = vadd.f32 0.0, %v3920
    %3922 = vmatmul.bf16.gmra.mxu0 %v3688
    %v3923 = vpop.f32.mrf.mxu0
    %v3924 = vadd.f32 0.0, %v3923
    %v3925 = vpop.f32.mrf.mxu0
    %v3926 = vadd.f32 0.0, %v3925
    %3927 = vmatmul.bf16.gmra.mxu0 %v3691
    %v3928 = vpop.f32.mrf.mxu0
    %v3929 = vadd.f32 0.0, %v3928
    %v3930 = vpop.f32.mrf.mxu0
    %v3931 = vadd.f32 0.0, %v3930
    %3932 = vmatmul.bf16.gmra.mxu0 %v3694
    %v3933 = vpop.f32.mrf.mxu0
    %v3934 = vadd.f32 0.0, %v3933
    %v3935 = vpop.f32.mrf.mxu0
    %v3936 = vadd.f32 0.0, %v3935
    %3937 = vmatmul.bf16.gmra.mxu0 %v3697
    %v3938 = vpop.f32.mrf.mxu0
    %v3939 = vadd.f32 0.0, %v3938
    %v3940 = vpop.f32.mrf.mxu0
    %v3941 = vadd.f32 0.0, %v3940
    %3942 = vmatmul.bf16.gmra.mxu0 %v3700
    %v3943 = vpop.f32.mrf.mxu0
    %v3944 = vadd.f32 0.0, %v3943
    %v3945 = vpop.f32.mrf.mxu0
    %v3946 = vadd.f32 0.0, %v3945
    %3947 = vmatmul.bf16.gmra.mxu0 %v3703
    %v3948 = vpop.f32.mrf.mxu0
    %v3949 = vadd.f32 0.0, %v3948
    %v3950 = vpop.f32.mrf.mxu0
    %v3951 = vadd.f32 0.0, %v3950
    %3952 = vmatmul.bf16.gmra.mxu0 %v3706
    %v3953 = vpop.f32.mrf.mxu0
    %v3954 = vadd.f32 0.0, %v3953
    %v3955 = vpop.f32.mrf.mxu0
    %v3956 = vadd.f32 0.0, %v3955
    %3957 = vmatmul.bf16.gmra.mxu0 %v3709
    %v3958 = vpop.f32.mrf.mxu0
    %v3959 = vadd.f32 0.0, %v3958
    %v3960 = vpop.f32.mrf.mxu0
    %v3961 = vadd.f32 0.0, %v3960
    %3962 = vmatmul.bf16.gmra.mxu0 %v3712
    %v3963 = vpop.f32.mrf.mxu0
    %v3964 = vadd.f32 0.0, %v3963
    %v3965 = vpop.f32.mrf.mxu0
    %v3966 = vadd.f32 0.0, %v3965
    %3967 = vmatmul.bf16.gmra.mxu0 %v3715
    %v3968 = vpop.f32.mrf.mxu0
    %v3969 = vadd.f32 0.0, %v3968
    %v3970 = vpop.f32.mrf.mxu0
    %v3971 = vadd.f32 0.0, %v3970
    %3972 = vmatmul.bf16.gmra.mxu0 %v3718
    %v3973 = vpop.f32.mrf.mxu0
    %v3974 = vadd.f32 0.0, %v3973
    %v3975 = vpop.f32.mrf.mxu0
    %v3976 = vadd.f32 0.0, %v3975
    %3977 = vmatmul.bf16.gmra.mxu0 %v3721
    %v3978 = vpop.f32.mrf.mxu0
    %v3979 = vadd.f32 0.0, %v3978
    %v3980 = vpop.f32.mrf.mxu0
    %v3981 = vadd.f32 0.0, %v3980
    %3982 = vmatmul.bf16.gmra.mxu0 %v3724
    %v3983 = vpop.f32.mrf.mxu0
    %v3984 = vadd.f32 0.0, %v3983
    %v3985 = vpop.f32.mrf.mxu0
    %v3986 = vadd.f32 0.0, %v3985
    %3987 = vmatmul.bf16.gmra.mxu0 %v3727
    %v3988 = vpop.f32.mrf.mxu0
    %v3989 = vadd.f32 0.0, %v3988
    %v3990 = vpop.f32.mrf.mxu0
    %v3991 = vadd.f32 0.0, %v3990
    %3992 = vmatmul.bf16.gmra.mxu0 %v3730
    %v3993 = vpop.f32.mrf.mxu0
    %v3994 = vadd.f32 0.0, %v3993
    %v3995 = vpop.f32.mrf.mxu0
    %v3996 = vadd.f32 0.0, %v3995
    %3997 = vmatmul.bf16.gmra.mxu0 %v3733
    %v3998 = vpop.f32.mrf.mxu0
    %v3999 = vadd.f32 0.0, %v3998
    %v4000 = vpop.f32.mrf.mxu0
    %v4001 = vadd.f32 0.0, %v4000
    %4002 = vmatmul.bf16.gmra.mxu0 %v3736
    %v4003 = vpop.f32.mrf.mxu0
    %v4004 = vadd.f32 0.0, %v4003
    %v4005 = vpop.f32.mrf.mxu0
    %v4006 = vadd.f32 0.0, %v4005
    %4007 = vmatmul.bf16.gmra.mxu0 %v3739
    %v4008 = vpop.f32.mrf.mxu0
    %v4009 = vadd.f32 0.0, %v4008
    %v4010 = vpop.f32.mrf.mxu0
    %v4011 = vadd.f32 0.0, %v4010
    %4012 = vmatmul.bf16.gmra.mxu0 %v3742
    %v4013 = vpop.f32.mrf.mxu0
    %v4014 = vadd.f32 0.0, %v4013
    %v4015 = vpop.f32.mrf.mxu0
    %v4016 = vadd.f32 0.0, %v4015
    %4017 = vmatmul.bf16.gmra.mxu0 %v3745
    %v4018 = vpop.f32.mrf.mxu0
    %v4019 = vadd.f32 0.0, %v4018
    %v4020 = vpop.f32.mrf.mxu0
    %v4021 = vadd.f32 0.0, %v4020
    %4022 = vmatmul.bf16.gmra.mxu0 %v3748
    %v4023 = vpop.f32.mrf.mxu0
    %v4024 = vadd.f32 0.0, %v4023
    %v4025 = vpop.f32.mrf.mxu0
    %v4026 = vadd.f32 0.0, %v4025
    %4027 = vmatmul.bf16.gmra.mxu0 %v3751
    %v4028 = vpop.f32.mrf.mxu0
    %v4029 = vadd.f32 0.0, %v4028
    %v4030 = vpop.f32.mrf.mxu0
    %v4031 = vadd.f32 0.0, %v4030
    %4032 = vmatmul.bf16.gmra.mxu0 %v3754
    %v4033 = vpop.f32.mrf.mxu0
    %v4034 = vadd.f32 0.0, %v4033
    %v4035 = vpop.f32.mrf.mxu0
    %v4036 = vadd.f32 0.0, %v4035
    %4037 = vmatmul.bf16.gmra.mxu0 %v3757
    %v4038 = vpop.f32.mrf.mxu0
    %v4039 = vadd.f32 0.0, %v4038
    %v4040 = vpop.f32.mrf.mxu0
    %v4041 = vadd.f32 0.0, %v4040
    %4042 = vmatmul.bf16.gmra.mxu0 %v3760
    %v4043 = vpop.f32.mrf.mxu0
    %v4044 = vadd.f32 0.0, %v4043
    %v4045 = vpop.f32.mrf.mxu0
    %v4046 = vadd.f32 0.0, %v4045
    %4047 = vmatmul.bf16.gmra.mxu0 %v3763
    %v4048 = vpop.f32.mrf.mxu0
    %v4049 = vadd.f32 0.0, %v4048
    %v4050 = vpop.f32.mrf.mxu0
    %v4051 = vadd.f32 0.0, %v4050
    %4052 = vmatmul.bf16.gmra.mxu0 %v3766
    %v4053 = vpop.f32.mrf.mxu0
    %v4054 = vadd.f32 0.0, %v4053
    %v4055 = vpop.f32.mrf.mxu0
    %v4056 = vadd.f32 0.0, %v4055
    %4057 = vmatmul.bf16.gmra.mxu0 %v3769
    %v4058 = vpop.f32.mrf.mxu0
    %v4059 = vadd.f32 0.0, %v4058
    %v4060 = vpop.f32.mrf.mxu0
    %v4061 = vadd.f32 0.0, %v4060
    %4062 = vmatmul.bf16.gmra.mxu0 %v3772
    %v4063 = vpop.f32.mrf.mxu0
    %v4064 = vadd.f32 0.0, %v4063
    %v4065 = vpop.f32.mrf.mxu0
    %v4066 = vadd.f32 0.0, %v4065
    %4067 = vmatmul.bf16.gmra.mxu0 %v3775
    %v4068 = vpop.f32.mrf.mxu0
    %v4069 = vadd.f32 0.0, %v4068
    %v4070 = vpop.f32.mrf.mxu0
    %v4071 = vadd.f32 0.0, %v4070
    %4072 = vmatmul.bf16.gmra.mxu0 %v3778
    %v4073 = vpop.f32.mrf.mxu0
    %v4074 = vadd.f32 0.0, %v4073
    %v4075 = vpop.f32.mrf.mxu0
    %v4076 = vadd.f32 0.0, %v4075
    %4077 = vmatmul.bf16.gmra.mxu0 %v3781
    %v4078 = vpop.f32.mrf.mxu0
    %v4079 = vadd.f32 0.0, %v4078
    %v4080 = vpop.f32.mrf.mxu0
    %v4081 = vadd.f32 0.0, %v4080
    %4082 = vmatmul.bf16.gmra.mxu0 %v3784
    %v4083 = vpop.f32.mrf.mxu0
    %v4084 = vadd.f32 0.0, %v4083
    %v4085 = vpop.f32.mrf.mxu0
    %v4086 = vadd.f32 0.0, %v4085
    %4087 = vmatmul.bf16.gmra.mxu0 %v3787
    %v4088 = vpop.f32.mrf.mxu0
    %v4089 = vadd.f32 0.0, %v4088
    %v4090 = vpop.f32.mrf.mxu0
    %v4091 = vadd.f32 0.0, %v4090
    %4092 = vmatmul.bf16.gmra.mxu0 %v3790
    %v4093 = vpop.f32.mrf.mxu0
    %v4094 = vadd.f32 0.0, %v4093
    %v4095 = vpop.f32.mrf.mxu0
    %v4096 = vadd.f32 0.0, %v4095
    %4097 = vmatmul.bf16.gmra.mxu0 %v3793
    %v4098 = vpop.f32.mrf.mxu0
    %v4099 = vadd.f32 0.0, %v4098
    %v4100 = vpop.f32.mrf.mxu0
    %v4101 = vadd.f32 0.0, %v4100
    %4102 = vmatmul.bf16.gmra.mxu0 %v3796
    %v4103 = vpop.f32.mrf.mxu0
    %v4104 = vadd.f32 0.0, %v4103
    %v4105 = vpop.f32.mrf.mxu0
    %v4106 = vadd.f32 0.0, %v4105
    %4107 = vmatmul.bf16.gmra.mxu0 %v3799
    %v4108 = vpop.f32.mrf.mxu0
    %v4109 = vadd.f32 0.0, %v4108
    %v4110 = vpop.f32.mrf.mxu0
    %v4111 = vadd.f32 0.0, %v4110
    %4112 = vmatmul.bf16.gmra.mxu0 %v3802
    %v4113 = vpop.f32.mrf.mxu0
    %v4114 = vadd.f32 0.0, %v4113
    %v4115 = vpop.f32.mrf.mxu0
    %v4116 = vadd.f32 0.0, %v4115
    %4117 = vmatmul.bf16.gmra.mxu0 %v3805
    %v4118 = vpop.f32.mrf.mxu0
    %v4119 = vadd.f32 0.0, %v4118
    %v4120 = vpop.f32.mrf.mxu0
    %v4121 = vadd.f32 0.0, %v4120
    %4122 = vmatmul.bf16.gmra.mxu0 %v3808
    %v4123 = vpop.f32.mrf.mxu0
    %v4124 = vadd.f32 0.0, %v4123
    %v4125 = vpop.f32.mrf.mxu0
    %v4126 = vadd.f32 0.0, %v4125
    %4127 = vmatmul.bf16.gmra.mxu0 %v3811
    %v4128 = vpop.f32.mrf.mxu0
    %v4129 = vadd.f32 0.0, %v4128
    %v4130 = vpop.f32.mrf.mxu0
    %v4131 = vadd.f32 0.0, %v4130
    %4132 = vmatmul.bf16.gmra.mxu0 %v3814
    %v4133 = vpop.f32.mrf.mxu0
    %v4134 = vadd.f32 0.0, %v4133
    %v4135 = vpop.f32.mrf.mxu0
    %v4136 = vadd.f32 0.0, %v4135
    %4137 = vmatmul.bf16.gmra.mxu0 %v3817
    %v4138 = vpop.f32.mrf.mxu0
    %v4139 = vadd.f32 0.0, %v4138
    %v4140 = vpop.f32.mrf.mxu0
    %4141 = vdwg.mxu0
    %v4142 = vadd.f32 %v3370, %v3829
    %v4143 = vadd.f32 %v3371, %v3831
    %v4144 = vadd.f32 %v3372, %v3834
    %v4145 = vadd.f32 %v3373, %v3836
    %v4146 = vadd.f32 %v3374, %v3839
    %v4147 = vadd.f32 %v3375, %v3841
    %v4148 = vadd.f32 %v3376, %v3844
    %v4149 = vadd.f32 %v3377, %v3846
    %v4150 = vadd.f32 %v3378, %v3849
    %v4151 = vadd.f32 %v3379, %v3851
    %v4152 = vadd.f32 %v3380, %v3854
    %v4153 = vadd.f32 %v3381, %v3856
    %v4154 = vadd.f32 %v3382, %v3859
    %v4155 = vadd.f32 %v3383, %v3861
    %v4156 = vadd.f32 %v3384, %v3864
    %v4157 = vadd.f32 %v3385, %v3866
    %v4158 = vadd.f32 %v3386, %v3869
    %v4159 = vadd.f32 %v3387, %v3871
    %v4160 = vadd.f32 %v3388, %v3874
    %v4161 = vadd.f32 %v3389, %v3876
    %v4162 = vadd.f32 %v3390, %v3879
    %v4163 = vadd.f32 %v3391, %v3881
    %v4164 = vadd.f32 %v3392, %v3884
    %v4165 = vadd.f32 %v3393, %v3886
    %v4166 = vadd.f32 %v3394, %v3889
    %v4167 = vadd.f32 %v3395, %v3891
    %v4168 = vadd.f32 %v3396, %v3894
    %v4169 = vadd.f32 %v3397, %v3896
    %v4170 = vadd.f32 %v3398, %v3899
    %v4171 = vadd.f32 %v3399, %v3901
    %v4172 = vadd.f32 %v3400, %v3904
    %v4173 = vadd.f32 %v3401, %v3906
    %v4174 = vadd.f32 %v3402, %v3909
    %v4175 = vadd.f32 %v3403, %v3911
    %v4176 = vadd.f32 %v3404, %v3914
    %v4177 = vadd.f32 %v3405, %v3916
    %v4178 = vadd.f32 %v3406, %v3919
    %v4179 = vadd.f32 %v3407, %v3921
    %v4180 = vadd.f32 %v3408, %v3924
    %v4181 = vadd.f32 %v3409, %v3926
    %v4182 = vadd.f32 %v3410, %v3929
    %v4183 = vadd.f32 %v3411, %v3931
    %v4184 = vadd.f32 %v3412, %v3934
    %v4185 = vadd.f32 %v3413, %v3936
    %v4186 = vadd.f32 %v3414, %v3939
    %v4187 = vadd.f32 %v3415, %v3941
    %v4188 = vadd.f32 %v3416, %v3944
    %v4189 = vadd.f32 %v3417, %v3946
    %v4190 = vadd.f32 %v3418, %v3949
    %v4191 = vadd.f32 %v3419, %v3951
    %v4192 = vadd.f32 %v3420, %v3954
    %v4193 = vadd.f32 %v3421, %v3956
    %v4194 = vadd.f32 %v3422, %v3959
    %v4195 = vadd.f32 %v3423, %v3961
    %v4196 = vadd.f32 %v3424, %v3964
    %v4197 = vadd.f32 %v3425, %v3966
    %v4198 = vadd.f32 %v3426, %v3969
    %v4199 = vadd.f32 %v3427, %v3971
    %v4200 = vadd.f32 %v3428, %v3974
    %v4201 = vadd.f32 %v3429, %v3976
    %v4202 = vadd.f32 %v3430, %v3979
    %v4203 = vadd.f32 %v3431, %v3981
    %v4204 = vadd.f32 %v3432, %v3984
    %v4205 = vadd.f32 %v3433, %v3986
    %v4206 = vadd.f32 %v3434, %v3989
    %v4207 = vadd.f32 %v3435, %v3991
    %v4208 = vadd.f32 %v3436, %v3994
    %v4209 = vadd.f32 %v3437, %v3996
    %v4210 = vadd.f32 %v3438, %v3999
    %v4211 = vadd.f32 %v3439, %v4001
    %v4212 = vadd.f32 %v3440, %v4004
    %v4213 = vadd.f32 %v3441, %v4006
    %v4214 = vadd.f32 %v3442, %v4009
    %v4215 = vadd.f32 %v3443, %v4011
    %v4216 = vadd.f32 %v3444, %v4014
    %v4217 = vadd.f32 %v3445, %v4016
    %v4218 = vadd.f32 %v3446, %v4019
    %v4219 = vadd.f32 %v3447, %v4021
    %v4220 = vadd.f32 %v3448, %v4024
    %v4221 = vadd.f32 %v3449, %v4026
    %v4222 = vadd.f32 %v3450, %v4029
    %v4223 = vadd.f32 %v3451, %v4031
    %v4224 = vadd.f32 %v3452, %v4034
    %v4225 = vadd.f32 %v3453, %v4036
    %v4226 = vadd.f32 %v3454, %v4039
    %v4227 = vadd.f32 %v3455, %v4041
    %v4228 = vadd.f32 %v3456, %v4044
    %v4229 = vadd.f32 %v3457, %v4046
    %v4230 = vadd.f32 %v3458, %v4049
    %v4231 = vadd.f32 %v3459, %v4051
    %v4232 = vadd.f32 %v3460, %v4054
    %v4233 = vadd.f32 %v3461, %v4056
    %v4234 = vadd.f32 %v3462, %v4059
    %v4235 = vadd.f32 %v3463, %v4061
    %v4236 = vadd.f32 %v3464, %v4064
    %v4237 = vadd.f32 %v3465, %v4066
    %v4238 = vadd.f32 %v3466, %v4069
    %v4239 = vadd.f32 %v3467, %v4071
    %v4240 = vadd.f32 %v3468, %v4074
    %v4241 = vadd.f32 %v3469, %v4076
    %v4242 = vadd.f32 %v3470, %v4079
    %v4243 = vadd.f32 %v3471, %v4081
    %v4244 = vadd.f32 %v3472, %v4084
    %v4245 = vadd.f32 %v3473, %v4086
    %v4246 = vadd.f32 %v3474, %v4089
    %v4247 = vadd.f32 %v3475, %v4091
    %v4248 = vadd.f32 %v3476, %v4094
    %v4249 = vadd.f32 %v3477, %v4096
    %v4250 = vadd.f32 %v3478, %v4099
    %v4251 = vadd.f32 %v3479, %v4101
    %v4252 = vadd.f32 %v3480, %v4104
    %v4253 = vadd.f32 %v3481, %v4106
    %v4254 = vadd.f32 %v3482, %v4109
    %v4255 = vadd.f32 %v3483, %v4111
    %v4256 = vadd.f32 %v3484, %v4114
    %v4257 = vadd.f32 %v3485, %v4116
    %v4258 = vadd.f32 %v3486, %v4119
    %v4259 = vadd.f32 %v3487, %v4121
    %v4260 = vadd.f32 %v3488, %v4124
    %v4261 = vadd.f32 %v3489, %v4126
    %v4262 = vadd.f32 %v3490, %v4129
    %v4263 = vadd.f32 %v3491, %v4131
    %v4264 = vadd.f32 %v3492, %v4134
    %v4265 = vadd.f32 %v3493, %v4136
    %v4266 = vadd.f32 %v3494, %v4139
    %v4267 = vld [vmem:[%s2] sm:$0x1]
    %v4269 = vperm.slane %v4267, 0
    %v4271 = vadd.f32 %v4142, %v4269
    %v4272 = vadd.f32 %v4143, %v4269
    %v4273 = vadd.f32 %v4144, %v4269
    %v4274 = vadd.f32 %v4145, %v4269
    %v4275 = vadd.f32 %v4146, %v4269
    %v4276 = vadd.f32 %v4147, %v4269
    %v4277 = vadd.f32 %v4148, %v4269
    %v4278 = vadd.f32 %v4149, %v4269
    %v4279 = vadd.f32 %v4150, %v4269
    %v4280 = vadd.f32 %v4151, %v4269
    %v4281 = vadd.f32 %v4152, %v4269
    %v4282 = vadd.f32 %v4153, %v4269
    %v4283 = vadd.f32 %v4154, %v4269
    %v4284 = vadd.f32 %v4155, %v4269
    %v4285 = vadd.f32 %v4156, %v4269
    %v4286 = vadd.f32 %v4157, %v4269
    %v4287 = vadd.f32 %v4158, %v4269
    %v4288 = vadd.f32 %v4159, %v4269
    %v4289 = vadd.f32 %v4160, %v4269
    %v4290 = vadd.f32 %v4161, %v4269
    %v4291 = vadd.f32 %v4162, %v4269
    %v4292 = vadd.f32 %v4163, %v4269
    %v4293 = vadd.f32 %v4164, %v4269
    %v4294 = vadd.f32 %v4165, %v4269
    %v4295 = vadd.f32 %v4166, %v4269
    %v4296 = vadd.f32 %v4167, %v4269
    %v4297 = vadd.f32 %v4168, %v4269
    %v4298 = vadd.f32 %v4169, %v4269
    %v4299 = vadd.f32 %v4170, %v4269
    %v4300 = vadd.f32 %v4171, %v4269
    %v4301 = vadd.f32 %v4172, %v4269
    %v4302 = vadd.f32 %v4173, %v4269
    %v4303 = vadd.f32 %v4174, %v4269
    %v4304 = vadd.f32 %v4175, %v4269
    %v4305 = vadd.f32 %v4176, %v4269
    %v4306 = vadd.f32 %v4177, %v4269
    %v4307 = vadd.f32 %v4178, %v4269
    %v4308 = vadd.f32 %v4179, %v4269
    %v4309 = vadd.f32 %v4180, %v4269
    %v4310 = vadd.f32 %v4181, %v4269
    %v4311 = vadd.f32 %v4182, %v4269
    %v4312 = vadd.f32 %v4183, %v4269
    %v4313 = vadd.f32 %v4184, %v4269
    %v4314 = vadd.f32 %v4185, %v4269
    %v4315 = vadd.f32 %v4186, %v4269
    %v4316 = vadd.f32 %v4187, %v4269
    %v4317 = vadd.f32 %v4188, %v4269
    %v4318 = vadd.f32 %v4189, %v4269
    %v4319 = vadd.f32 %v4190, %v4269
    %v4320 = vadd.f32 %v4191, %v4269
    %v4321 = vadd.f32 %v4192, %v4269
    %v4322 = vadd.f32 %v4193, %v4269
    %v4323 = vadd.f32 %v4194, %v4269
    %v4324 = vadd.f32 %v4195, %v4269
    %v4325 = vadd.f32 %v4196, %v4269
    %v4326 = vadd.f32 %v4197, %v4269
    %v4327 = vadd.f32 %v4198, %v4269
    %v4328 = vadd.f32 %v4199, %v4269
    %v4329 = vadd.f32 %v4200, %v4269
    %v4330 = vadd.f32 %v4201, %v4269
    %v4331 = vadd.f32 %v4202, %v4269
    %v4332 = vadd.f32 %v4203, %v4269
    %v4333 = vadd.f32 %v4204, %v4269
    %v4334 = vadd.f32 %v4205, %v4269
    %v4335 = vadd.f32 %v4206, %v4269
    %v4336 = vadd.f32 %v4207, %v4269
    %v4337 = vadd.f32 %v4208, %v4269
    %v4338 = vadd.f32 %v4209, %v4269
    %v4339 = vadd.f32 %v4210, %v4269
    %v4340 = vadd.f32 %v4211, %v4269
    %v4341 = vadd.f32 %v4212, %v4269
    %v4342 = vadd.f32 %v4213, %v4269
    %v4343 = vadd.f32 %v4214, %v4269
    %v4344 = vadd.f32 %v4215, %v4269
    %v4345 = vadd.f32 %v4216, %v4269
    %v4346 = vadd.f32 %v4217, %v4269
    %v4347 = vadd.f32 %v4218, %v4269
    %v4348 = vadd.f32 %v4219, %v4269
    %v4349 = vadd.f32 %v4220, %v4269
    %v4350 = vadd.f32 %v4221, %v4269
    %v4351 = vadd.f32 %v4222, %v4269
    %v4352 = vadd.f32 %v4223, %v4269
    %v4353 = vadd.f32 %v4224, %v4269
    %v4354 = vadd.f32 %v4225, %v4269
    %v4355 = vadd.f32 %v4226, %v4269
    %v4356 = vadd.f32 %v4227, %v4269
    %v4357 = vadd.f32 %v4228, %v4269
    %v4358 = vadd.f32 %v4229, %v4269
    %v4359 = vadd.f32 %v4230, %v4269
    %v4360 = vadd.f32 %v4231, %v4269
    %v4361 = vadd.f32 %v4232, %v4269
    %v4362 = vadd.f32 %v4233, %v4269
    %v4363 = vadd.f32 %v4234, %v4269
    %v4364 = vadd.f32 %v4235, %v4269
    %v4365 = vadd.f32 %v4236, %v4269
    %v4366 = vadd.f32 %v4237, %v4269
    %v4367 = vadd.f32 %v4238, %v4269
    %v4368 = vadd.f32 %v4239, %v4269
    %v4369 = vadd.f32 %v4240, %v4269
    %v4370 = vadd.f32 %v4241, %v4269
    %v4371 = vadd.f32 %v4242, %v4269
    %v4372 = vadd.f32 %v4243, %v4269
    %v4373 = vadd.f32 %v4244, %v4269
    %v4374 = vadd.f32 %v4245, %v4269
    %v4375 = vadd.f32 %v4246, %v4269
    %v4376 = vadd.f32 %v4247, %v4269
    %v4377 = vadd.f32 %v4248, %v4269
    %v4378 = vadd.f32 %v4249, %v4269
    %v4379 = vadd.f32 %v4250, %v4269
    %v4380 = vadd.f32 %v4251, %v4269
    %v4381 = vadd.f32 %v4252, %v4269
    %v4382 = vadd.f32 %v4253, %v4269
    %v4383 = vadd.f32 %v4254, %v4269
    %v4384 = vadd.f32 %v4255, %v4269
    %v4385 = vadd.f32 %v4256, %v4269
    %v4386 = vadd.f32 %v4257, %v4269
    %v4387 = vadd.f32 %v4258, %v4269
    %v4388 = vadd.f32 %v4259, %v4269
    %v4389 = vadd.f32 %v4260, %v4269
    %v4390 = vadd.f32 %v4261, %v4269
    %v4391 = vadd.f32 %v4262, %v4269
    %v4392 = vadd.f32 %v4263, %v4269
    %v4393 = vadd.f32 %v4264, %v4269
    %v4394 = vadd.f32 %v4265, %v4269
    %v4395 = vadd.f32 %v4266, %v4269
    %v4396 = vld [vmem:[%s5] sm:$0xff]
    %v4397 = vld [vmem:[%s5 + $0x8] sm:$0xff]
    %v4398 = vld [vmem:[%s5 + $0x10] sm:$0xff]
    %v4399 = vld [vmem:[%s5 + $0x18] sm:$0xff]
    %v4400 = vld [vmem:[%s5 + $0x20] sm:$0xff]
    %v4401 = vld [vmem:[%s5 + $0x28] sm:$0xff]
    %v4402 = vld [vmem:[%s5 + $0x30] sm:$0xff]
    %v4403 = vld [vmem:[%s5 + $0x38] sm:$0xff]
    %v4404 = vld [vmem:[%s5 + $0x40] sm:$0xff]
    %v4405 = vld [vmem:[%s5 + $0x48] sm:$0xff]
    %v4406 = vld [vmem:[%s5 + $0x50] sm:$0xff]
    %v4407 = vld [vmem:[%s5 + $0x58] sm:$0xff]
    %v4408 = vld [vmem:[%s5 + $0x60] sm:$0xff]
    %v4409 = vld [vmem:[%s5 + $0x68] sm:$0xff]
    %v4410 = vld [vmem:[%s5 + $0x70] sm:$0xff]
    %v4411 = vld [vmem:[%s5 + $0x78] sm:$0xff]
    %v4412 = vld [vmem:[%s5 + $0x80] sm:$0xff]
    %v4413 = vld [vmem:[%s5 + $0x88] sm:$0xff]
    %v4414 = vld [vmem:[%s5 + $0x90] sm:$0xff]
    %v4415 = vld [vmem:[%s5 + $0x98] sm:$0xff]
    %v4416 = vld [vmem:[%s5 + $0xa0] sm:$0xff]
    %v4417 = vld [vmem:[%s5 + $0xa8] sm:$0xff]
    %v4418 = vld [vmem:[%s5 + $0xb0] sm:$0xff]
    %v4419 = vld [vmem:[%s5 + $0xb8] sm:$0xff]
    %v4420 = vld [vmem:[%s5 + $0xc0] sm:$0xff]
    %v4421 = vld [vmem:[%s5 + $0xc8] sm:$0xff]
    %v4422 = vld [vmem:[%s5 + $0xd0] sm:$0xff]
    %v4423 = vld [vmem:[%s5 + $0xd8] sm:$0xff]
    %v4424 = vld [vmem:[%s5 + $0xe0] sm:$0xff]
    %v4425 = vld [vmem:[%s5 + $0xe8] sm:$0xff]
    %v4426 = vld [vmem:[%s5 + $0xf0] sm:$0xff]
    %v4427 = vld [vmem:[%s5 + $0xf8] sm:$0xff]
    %v4428 = vld [vmem:[%s5 + $0x100] sm:$0xff]
    %v4429 = vld [vmem:[%s5 + $0x108] sm:$0xff]
    %v4430 = vld [vmem:[%s5 + $0x110] sm:$0xff]
    %v4431 = vld [vmem:[%s5 + $0x118] sm:$0xff]
    %v4432 = vld [vmem:[%s5 + $0x120] sm:$0xff]
    %v4433 = vld [vmem:[%s5 + $0x128] sm:$0xff]
    %v4434 = vld [vmem:[%s5 + $0x130] sm:$0xff]
    %v4435 = vld [vmem:[%s5 + $0x138] sm:$0xff]
    %v4436 = vld [vmem:[%s5 + $0x140] sm:$0xff]
    %v4437 = vld [vmem:[%s5 + $0x148] sm:$0xff]
    %v4438 = vld [vmem:[%s5 + $0x150] sm:$0xff]
    %v4439 = vld [vmem:[%s5 + $0x158] sm:$0xff]
    %v4440 = vld [vmem:[%s5 + $0x160] sm:$0xff]
    %v4441 = vld [vmem:[%s5 + $0x168] sm:$0xff]
    %v4442 = vld [vmem:[%s5 + $0x170] sm:$0xff]
    %v4443 = vld [vmem:[%s5 + $0x178] sm:$0xff]
    %v4444 = vld [vmem:[%s5 + $0x180] sm:$0xff]
    %v4445 = vld [vmem:[%s5 + $0x188] sm:$0xff]
    %v4446 = vld [vmem:[%s5 + $0x190] sm:$0xff]
    %v4447 = vld [vmem:[%s5 + $0x198] sm:$0xff]
    %v4448 = vld [vmem:[%s5 + $0x1a0] sm:$0xff]
    %v4449 = vld [vmem:[%s5 + $0x1a8] sm:$0xff]
    %v4450 = vld [vmem:[%s5 + $0x1b0] sm:$0xff]
    %v4451 = vld [vmem:[%s5 + $0x1b8] sm:$0xff]
    %v4452 = vld [vmem:[%s5 + $0x1c0] sm:$0xff]
    %v4453 = vld [vmem:[%s5 + $0x1c8] sm:$0xff]
    %v4454 = vld [vmem:[%s5 + $0x1d0] sm:$0xff]
    %v4455 = vld [vmem:[%s5 + $0x1d8] sm:$0xff]
    %v4456 = vld [vmem:[%s5 + $0x1e0] sm:$0xff]
    %v4457 = vld [vmem:[%s5 + $0x1e8] sm:$0xff]
    %v4458 = vld [vmem:[%s5 + $0x1f0] sm:$0xff]
    %v4459 = vld [vmem:[%s5 + $0x1f8] sm:$0xff]
    %v4460 = vld [vmem:[%s5 + $0x200] sm:$0xff]
    %v4461 = vld [vmem:[%s5 + $0x208] sm:$0xff]
    %v4462 = vld [vmem:[%s5 + $0x210] sm:$0xff]
    %v4463 = vld [vmem:[%s5 + $0x218] sm:$0xff]
    %v4464 = vld [vmem:[%s5 + $0x220] sm:$0xff]
    %v4465 = vld [vmem:[%s5 + $0x228] sm:$0xff]
    %v4466 = vld [vmem:[%s5 + $0x230] sm:$0xff]
    %v4467 = vld [vmem:[%s5 + $0x238] sm:$0xff]
    %v4468 = vld [vmem:[%s5 + $0x240] sm:$0xff]
    %v4469 = vld [vmem:[%s5 + $0x248] sm:$0xff]
    %v4470 = vld [vmem:[%s5 + $0x250] sm:$0xff]
    %v4471 = vld [vmem:[%s5 + $0x258] sm:$0xff]
    %v4472 = vld [vmem:[%s5 + $0x260] sm:$0xff]
    %v4473 = vld [vmem:[%s5 + $0x268] sm:$0xff]
    %v4474 = vld [vmem:[%s5 + $0x270] sm:$0xff]
    %v4475 = vld [vmem:[%s5 + $0x278] sm:$0xff]
    %v4476 = vld [vmem:[%s5 + $0x280] sm:$0xff]
    %v4477 = vld [vmem:[%s5 + $0x288] sm:$0xff]
    %v4478 = vld [vmem:[%s5 + $0x290] sm:$0xff]
    %v4479 = vld [vmem:[%s5 + $0x298] sm:$0xff]
    %v4480 = vld [vmem:[%s5 + $0x2a0] sm:$0xff]
    %v4481 = vld [vmem:[%s5 + $0x2a8] sm:$0xff]
    %v4482 = vld [vmem:[%s5 + $0x2b0] sm:$0xff]
    %v4483 = vld [vmem:[%s5 + $0x2b8] sm:$0xff]
    %v4484 = vld [vmem:[%s5 + $0x2c0] sm:$0xff]
    %v4485 = vld [vmem:[%s5 + $0x2c8] sm:$0xff]
    %v4486 = vld [vmem:[%s5 + $0x2d0] sm:$0xff]
    %v4487 = vld [vmem:[%s5 + $0x2d8] sm:$0xff]
    %v4488 = vld [vmem:[%s5 + $0x2e0] sm:$0xff]
    %v4489 = vld [vmem:[%s5 + $0x2e8] sm:$0xff]
    %v4490 = vld [vmem:[%s5 + $0x2f0] sm:$0xff]
    %v4491 = vld [vmem:[%s5 + $0x2f8] sm:$0xff]
    %v4492 = vld [vmem:[%s5 + $0x300] sm:$0xff]
    %v4493 = vld [vmem:[%s5 + $0x308] sm:$0xff]
    %v4494 = vld [vmem:[%s5 + $0x310] sm:$0xff]
    %v4495 = vld [vmem:[%s5 + $0x318] sm:$0xff]
    %v4496 = vld [vmem:[%s5 + $0x320] sm:$0xff]
    %v4497 = vld [vmem:[%s5 + $0x328] sm:$0xff]
    %v4498 = vld [vmem:[%s5 + $0x330] sm:$0xff]
    %v4499 = vld [vmem:[%s5 + $0x338] sm:$0xff]
    %v4500 = vld [vmem:[%s5 + $0x340] sm:$0xff]
    %v4501 = vld [vmem:[%s5 + $0x348] sm:$0xff]
    %v4502 = vld [vmem:[%s5 + $0x350] sm:$0xff]
    %v4503 = vld [vmem:[%s5 + $0x358] sm:$0xff]
    %v4504 = vld [vmem:[%s5 + $0x360] sm:$0xff]
    %v4505 = vld [vmem:[%s5 + $0x368] sm:$0xff]
    %v4506 = vld [vmem:[%s5 + $0x370] sm:$0xff]
    %v4507 = vld [vmem:[%s5 + $0x378] sm:$0xff]
    %v4508 = vld [vmem:[%s5 + $0x380] sm:$0xff]
    %v4509 = vld [vmem:[%s5 + $0x388] sm:$0xff]
    %v4510 = vld [vmem:[%s5 + $0x390] sm:$0xff]
    %v4511 = vld [vmem:[%s5 + $0x398] sm:$0xff]
    %v4512 = vld [vmem:[%s5 + $0x3a0] sm:$0xff]
    %v4513 = vld [vmem:[%s5 + $0x3a8] sm:$0xff]
    %v4514 = vld [vmem:[%s5 + $0x3b0] sm:$0xff]
    %v4515 = vld [vmem:[%s5 + $0x3b8] sm:$0xff]
    %v4516 = vld [vmem:[%s5 + $0x3c0] sm:$0xff]
    %v4517 = vld [vmem:[%s5 + $0x3c8] sm:$0xff]
    %v4518 = vld [vmem:[%s5 + $0x3d0] sm:$0xff]
    %v4519 = vld [vmem:[%s5 + $0x3d8] sm:$0xff]
    %v4520 = vld [vmem:[%s5 + $0x3e0] sm:$0xf]
    %4522 = vset.pattern.permute.xlu0 0
    %4523 = vperm.xlu0 %4522, %v4396
    %v4524 = vpop.permute.xlu0 %4523
    %4527 = vset.pattern.permute.xlu0 0
    %4528 = vperm.xlu0 %4527, %v4397
    %v4529 = vpop.permute.xlu0 %4528
    %4532 = vset.pattern.permute.xlu0 0
    %4533 = vperm.xlu0 %4532, %v4398
    %v4534 = vpop.permute.xlu0 %4533
    %4537 = vset.pattern.permute.xlu0 0
    %4538 = vperm.xlu0 %4537, %v4399
    %v4539 = vpop.permute.xlu0 %4538
    %4542 = vset.pattern.permute.xlu0 0
    %4543 = vperm.xlu0 %4542, %v4400
    %v4544 = vpop.permute.xlu0 %4543
    %4547 = vset.pattern.permute.xlu0 0
    %4548 = vperm.xlu0 %4547, %v4401
    %v4549 = vpop.permute.xlu0 %4548
    %4552 = vset.pattern.permute.xlu0 0
    %4553 = vperm.xlu0 %4552, %v4402
    %v4554 = vpop.permute.xlu0 %4553
    %4557 = vset.pattern.permute.xlu0 0
    %4558 = vperm.xlu0 %4557, %v4403
    %v4559 = vpop.permute.xlu0 %4558
    %4562 = vset.pattern.permute.xlu0 0
    %4563 = vperm.xlu0 %4562, %v4404
    %v4564 = vpop.permute.xlu0 %4563
    %4567 = vset.pattern.permute.xlu0 0
    %4568 = vperm.xlu0 %4567, %v4405
    %v4569 = vpop.permute.xlu0 %4568
    %4572 = vset.pattern.permute.xlu0 0
    %4573 = vperm.xlu0 %4572, %v4406
    %v4574 = vpop.permute.xlu0 %4573
    %4577 = vset.pattern.permute.xlu0 0
    %4578 = vperm.xlu0 %4577, %v4407
    %v4579 = vpop.permute.xlu0 %4578
    %4582 = vset.pattern.permute.xlu0 0
    %4583 = vperm.xlu0 %4582, %v4408
    %v4584 = vpop.permute.xlu0 %4583
    %4587 = vset.pattern.permute.xlu0 0
    %4588 = vperm.xlu0 %4587, %v4409
    %v4589 = vpop.permute.xlu0 %4588
    %4592 = vset.pattern.permute.xlu0 0
    %4593 = vperm.xlu0 %4592, %v4410
    %v4594 = vpop.permute.xlu0 %4593
    %4597 = vset.pattern.permute.xlu0 0
    %4598 = vperm.xlu0 %4597, %v4411
    %v4599 = vpop.permute.xlu0 %4598
    %4602 = vset.pattern.permute.xlu0 0
    %4603 = vperm.xlu0 %4602, %v4412
    %v4604 = vpop.permute.xlu0 %4603
    %4607 = vset.pattern.permute.xlu0 0
    %4608 = vperm.xlu0 %4607, %v4413
    %v4609 = vpop.permute.xlu0 %4608
    %4612 = vset.pattern.permute.xlu0 0
    %4613 = vperm.xlu0 %4612, %v4414
    %v4614 = vpop.permute.xlu0 %4613
    %4617 = vset.pattern.permute.xlu0 0
    %4618 = vperm.xlu0 %4617, %v4415
    %v4619 = vpop.permute.xlu0 %4618
    %4622 = vset.pattern.permute.xlu0 0
    %4623 = vperm.xlu0 %4622, %v4416
    %v4624 = vpop.permute.xlu0 %4623
    %4627 = vset.pattern.permute.xlu0 0
    %4628 = vperm.xlu0 %4627, %v4417
    %v4629 = vpop.permute.xlu0 %4628
    %4632 = vset.pattern.permute.xlu0 0
    %4633 = vperm.xlu0 %4632, %v4418
    %v4634 = vpop.permute.xlu0 %4633
    %4637 = vset.pattern.permute.xlu0 0
    %4638 = vperm.xlu0 %4637, %v4419
    %v4639 = vpop.permute.xlu0 %4638
    %4642 = vset.pattern.permute.xlu0 0
    %4643 = vperm.xlu0 %4642, %v4420
    %v4644 = vpop.permute.xlu0 %4643
    %4647 = vset.pattern.permute.xlu0 0
    %4648 = vperm.xlu0 %4647, %v4421
    %v4649 = vpop.permute.xlu0 %4648
    %4652 = vset.pattern.permute.xlu0 0
    %4653 = vperm.xlu0 %4652, %v4422
    %v4654 = vpop.permute.xlu0 %4653
    %4657 = vset.pattern.permute.xlu0 0
    %4658 = vperm.xlu0 %4657, %v4423
    %v4659 = vpop.permute.xlu0 %4658
    %4662 = vset.pattern.permute.xlu0 0
    %4663 = vperm.xlu0 %4662, %v4424
    %v4664 = vpop.permute.xlu0 %4663
    %4667 = vset.pattern.permute.xlu0 0
    %4668 = vperm.xlu0 %4667, %v4425
    %v4669 = vpop.permute.xlu0 %4668
    %4672 = vset.pattern.permute.xlu0 0
    %4673 = vperm.xlu0 %4672, %v4426
    %v4674 = vpop.permute.xlu0 %4673
    %4677 = vset.pattern.permute.xlu0 0
    %4678 = vperm.xlu0 %4677, %v4427
    %v4679 = vpop.permute.xlu0 %4678
    %4682 = vset.pattern.permute.xlu0 0
    %4683 = vperm.xlu0 %4682, %v4428
    %v4684 = vpop.permute.xlu0 %4683
    %4687 = vset.pattern.permute.xlu0 0
    %4688 = vperm.xlu0 %4687, %v4429
    %v4689 = vpop.permute.xlu0 %4688
    %4692 = vset.pattern.permute.xlu0 0
    %4693 = vperm.xlu0 %4692, %v4430
    %v4694 = vpop.permute.xlu0 %4693
    %4697 = vset.pattern.permute.xlu0 0
    %4698 = vperm.xlu0 %4697, %v4431
    %v4699 = vpop.permute.xlu0 %4698
    %4702 = vset.pattern.permute.xlu0 0
    %4703 = vperm.xlu0 %4702, %v4432
    %v4704 = vpop.permute.xlu0 %4703
    %4707 = vset.pattern.permute.xlu0 0
    %4708 = vperm.xlu0 %4707, %v4433
    %v4709 = vpop.permute.xlu0 %4708
    %4712 = vset.pattern.permute.xlu0 0
    %4713 = vperm.xlu0 %4712, %v4434
    %v4714 = vpop.permute.xlu0 %4713
    %4717 = vset.pattern.permute.xlu0 0
    %4718 = vperm.xlu0 %4717, %v4435
    %v4719 = vpop.permute.xlu0 %4718
    %4722 = vset.pattern.permute.xlu0 0
    %4723 = vperm.xlu0 %4722, %v4436
    %v4724 = vpop.permute.xlu0 %4723
    %4727 = vset.pattern.permute.xlu0 0
    %4728 = vperm.xlu0 %4727, %v4437
    %v4729 = vpop.permute.xlu0 %4728
    %4732 = vset.pattern.permute.xlu0 0
    %4733 = vperm.xlu0 %4732, %v4438
    %v4734 = vpop.permute.xlu0 %4733
    %4737 = vset.pattern.permute.xlu0 0
    %4738 = vperm.xlu0 %4737, %v4439
    %v4739 = vpop.permute.xlu0 %4738
    %4742 = vset.pattern.permute.xlu0 0
    %4743 = vperm.xlu0 %4742, %v4440
    %v4744 = vpop.permute.xlu0 %4743
    %4747 = vset.pattern.permute.xlu0 0
    %4748 = vperm.xlu0 %4747, %v4441
    %v4749 = vpop.permute.xlu0 %4748
    %4752 = vset.pattern.permute.xlu0 0
    %4753 = vperm.xlu0 %4752, %v4442
    %v4754 = vpop.permute.xlu0 %4753
    %4757 = vset.pattern.permute.xlu0 0
    %4758 = vperm.xlu0 %4757, %v4443
    %v4759 = vpop.permute.xlu0 %4758
    %4762 = vset.pattern.permute.xlu0 0
    %4763 = vperm.xlu0 %4762, %v4444
    %v4764 = vpop.permute.xlu0 %4763
    %4767 = vset.pattern.permute.xlu0 0
    %4768 = vperm.xlu0 %4767, %v4445
    %v4769 = vpop.permute.xlu0 %4768
    %4772 = vset.pattern.permute.xlu0 0
    %4773 = vperm.xlu0 %4772, %v4446
    %v4774 = vpop.permute.xlu0 %4773
    %4777 = vset.pattern.permute.xlu0 0
    %4778 = vperm.xlu0 %4777, %v4447
    %v4779 = vpop.permute.xlu0 %4778
    %4782 = vset.pattern.permute.xlu0 0
    %4783 = vperm.xlu0 %4782, %v4448
    %v4784 = vpop.permute.xlu0 %4783
    %4787 = vset.pattern.permute.xlu0 0
    %4788 = vperm.xlu0 %4787, %v4449
    %v4789 = vpop.permute.xlu0 %4788
    %4792 = vset.pattern.permute.xlu0 0
    %4793 = vperm.xlu0 %4792, %v4450
    %v4794 = vpop.permute.xlu0 %4793
    %4797 = vset.pattern.permute.xlu0 0
    %4798 = vperm.xlu0 %4797, %v4451
    %v4799 = vpop.permute.xlu0 %4798
    %4802 = vset.pattern.permute.xlu0 0
    %4803 = vperm.xlu0 %4802, %v4452
    %v4804 = vpop.permute.xlu0 %4803
    %4807 = vset.pattern.permute.xlu0 0
    %4808 = vperm.xlu0 %4807, %v4453
    %v4809 = vpop.permute.xlu0 %4808
    %4812 = vset.pattern.permute.xlu0 0
    %4813 = vperm.xlu0 %4812, %v4454
    %v4814 = vpop.permute.xlu0 %4813
    %4817 = vset.pattern.permute.xlu0 0
    %4818 = vperm.xlu0 %4817, %v4455
    %v4819 = vpop.permute.xlu0 %4818
    %4822 = vset.pattern.permute.xlu0 0
    %4823 = vperm.xlu0 %4822, %v4456
    %v4824 = vpop.permute.xlu0 %4823
    %4827 = vset.pattern.permute.xlu0 0
    %4828 = vperm.xlu0 %4827, %v4457
    %v4829 = vpop.permute.xlu0 %4828
    %4832 = vset.pattern.permute.xlu0 0
    %4833 = vperm.xlu0 %4832, %v4458
    %v4834 = vpop.permute.xlu0 %4833
    %4837 = vset.pattern.permute.xlu0 0
    %4838 = vperm.xlu0 %4837, %v4459
    %v4839 = vpop.permute.xlu0 %4838
    %4842 = vset.pattern.permute.xlu0 0
    %4843 = vperm.xlu0 %4842, %v4460
    %v4844 = vpop.permute.xlu0 %4843
    %4847 = vset.pattern.permute.xlu0 0
    %4848 = vperm.xlu0 %4847, %v4461
    %v4849 = vpop.permute.xlu0 %4848
    %4852 = vset.pattern.permute.xlu0 0
    %4853 = vperm.xlu0 %4852, %v4462
    %v4854 = vpop.permute.xlu0 %4853
    %4857 = vset.pattern.permute.xlu0 0
    %4858 = vperm.xlu0 %4857, %v4463
    %v4859 = vpop.permute.xlu0 %4858
    %4862 = vset.pattern.permute.xlu0 0
    %4863 = vperm.xlu0 %4862, %v4464
    %v4864 = vpop.permute.xlu0 %4863
    %4867 = vset.pattern.permute.xlu0 0
    %4868 = vperm.xlu0 %4867, %v4465
    %v4869 = vpop.permute.xlu0 %4868
    %4872 = vset.pattern.permute.xlu0 0
    %4873 = vperm.xlu0 %4872, %v4466
    %v4874 = vpop.permute.xlu0 %4873
    %4877 = vset.pattern.permute.xlu0 0
    %4878 = vperm.xlu0 %4877, %v4467
    %v4879 = vpop.permute.xlu0 %4878
    %4882 = vset.pattern.permute.xlu0 0
    %4883 = vperm.xlu0 %4882, %v4468
    %v4884 = vpop.permute.xlu0 %4883
    %4887 = vset.pattern.permute.xlu0 0
    %4888 = vperm.xlu0 %4887, %v4469
    %v4889 = vpop.permute.xlu0 %4888
    %4892 = vset.pattern.permute.xlu0 0
    %4893 = vperm.xlu0 %4892, %v4470
    %v4894 = vpop.permute.xlu0 %4893
    %4897 = vset.pattern.permute.xlu0 0
    %4898 = vperm.xlu0 %4897, %v4471
    %v4899 = vpop.permute.xlu0 %4898
    %4902 = vset.pattern.permute.xlu0 0
    %4903 = vperm.xlu0 %4902, %v4472
    %v4904 = vpop.permute.xlu0 %4903
    %4907 = vset.pattern.permute.xlu0 0
    %4908 = vperm.xlu0 %4907, %v4473
    %v4909 = vpop.permute.xlu0 %4908
    %4912 = vset.pattern.permute.xlu0 0
    %4913 = vperm.xlu0 %4912, %v4474
    %v4914 = vpop.permute.xlu0 %4913
    %4917 = vset.pattern.permute.xlu0 0
    %4918 = vperm.xlu0 %4917, %v4475
    %v4919 = vpop.permute.xlu0 %4918
    %4922 = vset.pattern.permute.xlu0 0
    %4923 = vperm.xlu0 %4922, %v4476
    %v4924 = vpop.permute.xlu0 %4923
    %4927 = vset.pattern.permute.xlu0 0
    %4928 = vperm.xlu0 %4927, %v4477
    %v4929 = vpop.permute.xlu0 %4928
    %4932 = vset.pattern.permute.xlu0 0
    %4933 = vperm.xlu0 %4932, %v4478
    %v4934 = vpop.permute.xlu0 %4933
    %4937 = vset.pattern.permute.xlu0 0
    %4938 = vperm.xlu0 %4937, %v4479
    %v4939 = vpop.permute.xlu0 %4938
    %4942 = vset.pattern.permute.xlu0 0
    %4943 = vperm.xlu0 %4942, %v4480
    %v4944 = vpop.permute.xlu0 %4943
    %4947 = vset.pattern.permute.xlu0 0
    %4948 = vperm.xlu0 %4947, %v4481
    %v4949 = vpop.permute.xlu0 %4948
    %4952 = vset.pattern.permute.xlu0 0
    %4953 = vperm.xlu0 %4952, %v4482
    %v4954 = vpop.permute.xlu0 %4953
    %4957 = vset.pattern.permute.xlu0 0
    %4958 = vperm.xlu0 %4957, %v4483
    %v4959 = vpop.permute.xlu0 %4958
    %4962 = vset.pattern.permute.xlu0 0
    %4963 = vperm.xlu0 %4962, %v4484
    %v4964 = vpop.permute.xlu0 %4963
    %4967 = vset.pattern.permute.xlu0 0
    %4968 = vperm.xlu0 %4967, %v4485
    %v4969 = vpop.permute.xlu0 %4968
    %4972 = vset.pattern.permute.xlu0 0
    %4973 = vperm.xlu0 %4972, %v4486
    %v4974 = vpop.permute.xlu0 %4973
    %4977 = vset.pattern.permute.xlu0 0
    %4978 = vperm.xlu0 %4977, %v4487
    %v4979 = vpop.permute.xlu0 %4978
    %4982 = vset.pattern.permute.xlu0 0
    %4983 = vperm.xlu0 %4982, %v4488
    %v4984 = vpop.permute.xlu0 %4983
    %4987 = vset.pattern.permute.xlu0 0
    %4988 = vperm.xlu0 %4987, %v4489
    %v4989 = vpop.permute.xlu0 %4988
    %4992 = vset.pattern.permute.xlu0 0
    %4993 = vperm.xlu0 %4992, %v4490
    %v4994 = vpop.permute.xlu0 %4993
    %4997 = vset.pattern.permute.xlu0 0
    %4998 = vperm.xlu0 %4997, %v4491
    %v4999 = vpop.permute.xlu0 %4998
    %5002 = vset.pattern.permute.xlu0 0
    %5003 = vperm.xlu0 %5002, %v4492
    %v5004 = vpop.permute.xlu0 %5003
    %5007 = vset.pattern.permute.xlu0 0
    %5008 = vperm.xlu0 %5007, %v4493
    %v5009 = vpop.permute.xlu0 %5008
    %5012 = vset.pattern.permute.xlu0 0
    %5013 = vperm.xlu0 %5012, %v4494
    %v5014 = vpop.permute.xlu0 %5013
    %5017 = vset.pattern.permute.xlu0 0
    %5018 = vperm.xlu0 %5017, %v4495
    %v5019 = vpop.permute.xlu0 %5018
    %5022 = vset.pattern.permute.xlu0 0
    %5023 = vperm.xlu0 %5022, %v4496
    %v5024 = vpop.permute.xlu0 %5023
    %5027 = vset.pattern.permute.xlu0 0
    %5028 = vperm.xlu0 %5027, %v4497
    %v5029 = vpop.permute.xlu0 %5028
    %5032 = vset.pattern.permute.xlu0 0
    %5033 = vperm.xlu0 %5032, %v4498
    %v5034 = vpop.permute.xlu0 %5033
    %5037 = vset.pattern.permute.xlu0 0
    %5038 = vperm.xlu0 %5037, %v4499
    %v5039 = vpop.permute.xlu0 %5038
    %5042 = vset.pattern.permute.xlu0 0
    %5043 = vperm.xlu0 %5042, %v4500
    %v5044 = vpop.permute.xlu0 %5043
    %5047 = vset.pattern.permute.xlu0 0
    %5048 = vperm.xlu0 %5047, %v4501
    %v5049 = vpop.permute.xlu0 %5048
    %5052 = vset.pattern.permute.xlu0 0
    %5053 = vperm.xlu0 %5052, %v4502
    %v5054 = vpop.permute.xlu0 %5053
    %5057 = vset.pattern.permute.xlu0 0
    %5058 = vperm.xlu0 %5057, %v4503
    %v5059 = vpop.permute.xlu0 %5058
    %5062 = vset.pattern.permute.xlu0 0
    %5063 = vperm.xlu0 %5062, %v4504
    %v5064 = vpop.permute.xlu0 %5063
    %5067 = vset.pattern.permute.xlu0 0
    %5068 = vperm.xlu0 %5067, %v4505
    %v5069 = vpop.permute.xlu0 %5068
    %5072 = vset.pattern.permute.xlu0 0
    %5073 = vperm.xlu0 %5072, %v4506
    %v5074 = vpop.permute.xlu0 %5073
    %5077 = vset.pattern.permute.xlu0 0
    %5078 = vperm.xlu0 %5077, %v4507
    %v5079 = vpop.permute.xlu0 %5078
    %5082 = vset.pattern.permute.xlu0 0
    %5083 = vperm.xlu0 %5082, %v4508
    %v5084 = vpop.permute.xlu0 %5083
    %5087 = vset.pattern.permute.xlu0 0
    %5088 = vperm.xlu0 %5087, %v4509
    %v5089 = vpop.permute.xlu0 %5088
    %5092 = vset.pattern.permute.xlu0 0
    %5093 = vperm.xlu0 %5092, %v4510
    %v5094 = vpop.permute.xlu0 %5093
    %5097 = vset.pattern.permute.xlu0 0
    %5098 = vperm.xlu0 %5097, %v4511
    %v5099 = vpop.permute.xlu0 %5098
    %5102 = vset.pattern.permute.xlu0 0
    %5103 = vperm.xlu0 %5102, %v4512
    %v5104 = vpop.permute.xlu0 %5103
    %5107 = vset.pattern.permute.xlu0 0
    %5108 = vperm.xlu0 %5107, %v4513
    %v5109 = vpop.permute.xlu0 %5108
    %5112 = vset.pattern.permute.xlu0 0
    %5113 = vperm.xlu0 %5112, %v4514
    %v5114 = vpop.permute.xlu0 %5113
    %5117 = vset.pattern.permute.xlu0 0
    %5118 = vperm.xlu0 %5117, %v4515
    %v5119 = vpop.permute.xlu0 %5118
    %5122 = vset.pattern.permute.xlu0 0
    %5123 = vperm.xlu0 %5122, %v4516
    %v5124 = vpop.permute.xlu0 %5123
    %5127 = vset.pattern.permute.xlu0 0
    %5128 = vperm.xlu0 %5127, %v4517
    %v5129 = vpop.permute.xlu0 %5128
    %5132 = vset.pattern.permute.xlu0 0
    %5133 = vperm.xlu0 %5132, %v4518
    %v5134 = vpop.permute.xlu0 %5133
    %5137 = vset.pattern.permute.xlu0 0
    %5138 = vperm.xlu0 %5137, %v4519
    %v5139 = vpop.permute.xlu0 %5138
    %5142 = vset.pattern.permute.xlu0 0
    %5143 = vperm.xlu0 %5142, %v4520
    %v5144 = vpop.permute.xlu0 %5143
    %v5146 = vmul.f32 %v4271, %v4524
    %v5147 = vmul.f32 %v4272, %v4529
    %v5148 = vmul.f32 %v4273, %v4534
    %v5149 = vmul.f32 %v4274, %v4539
    %v5150 = vmul.f32 %v4275, %v4544
    %v5151 = vmul.f32 %v4276, %v4549
    %v5152 = vmul.f32 %v4277, %v4554
    %v5153 = vmul.f32 %v4278, %v4559
    %v5154 = vmul.f32 %v4279, %v4564
    %v5155 = vmul.f32 %v4280, %v4569
    %v5156 = vmul.f32 %v4281, %v4574
    %v5157 = vmul.f32 %v4282, %v4579
    %v5158 = vmul.f32 %v4283, %v4584
    %v5159 = vmul.f32 %v4284, %v4589
    %v5160 = vmul.f32 %v4285, %v4594
    %v5161 = vmul.f32 %v4286, %v4599
    %v5162 = vmul.f32 %v4287, %v4604
    %v5163 = vmul.f32 %v4288, %v4609
    %v5164 = vmul.f32 %v4289, %v4614
    %v5165 = vmul.f32 %v4290, %v4619
    %v5166 = vmul.f32 %v4291, %v4624
    %v5167 = vmul.f32 %v4292, %v4629
    %v5168 = vmul.f32 %v4293, %v4634
    %v5169 = vmul.f32 %v4294, %v4639
    %v5170 = vmul.f32 %v4295, %v4644
    %v5171 = vmul.f32 %v4296, %v4649
    %v5172 = vmul.f32 %v4297, %v4654
    %v5173 = vmul.f32 %v4298, %v4659
    %v5174 = vmul.f32 %v4299, %v4664
    %v5175 = vmul.f32 %v4300, %v4669
    %v5176 = vmul.f32 %v4301, %v4674
    %v5177 = vmul.f32 %v4302, %v4679
    %v5178 = vmul.f32 %v4303, %v4684
    %v5179 = vmul.f32 %v4304, %v4689
    %v5180 = vmul.f32 %v4305, %v4694
    %v5181 = vmul.f32 %v4306, %v4699
    %v5182 = vmul.f32 %v4307, %v4704
    %v5183 = vmul.f32 %v4308, %v4709
    %v5184 = vmul.f32 %v4309, %v4714
    %v5185 = vmul.f32 %v4310, %v4719
    %v5186 = vmul.f32 %v4311, %v4724
    %v5187 = vmul.f32 %v4312, %v4729
    %v5188 = vmul.f32 %v4313, %v4734
    %v5189 = vmul.f32 %v4314, %v4739
    %v5190 = vmul.f32 %v4315, %v4744
    %v5191 = vmul.f32 %v4316, %v4749
    %v5192 = vmul.f32 %v4317, %v4754
    %v5193 = vmul.f32 %v4318, %v4759
    %v5194 = vmul.f32 %v4319, %v4764
    %v5195 = vmul.f32 %v4320, %v4769
    %v5196 = vmul.f32 %v4321, %v4774
    %v5197 = vmul.f32 %v4322, %v4779
    %v5198 = vmul.f32 %v4323, %v4784
    %v5199 = vmul.f32 %v4324, %v4789
    %v5200 = vmul.f32 %v4325, %v4794
    %v5201 = vmul.f32 %v4326, %v4799
    %v5202 = vmul.f32 %v4327, %v4804
    %v5203 = vmul.f32 %v4328, %v4809
    %v5204 = vmul.f32 %v4329, %v4814
    %v5205 = vmul.f32 %v4330, %v4819
    %v5206 = vmul.f32 %v4331, %v4824
    %v5207 = vmul.f32 %v4332, %v4829
    %v5208 = vmul.f32 %v4333, %v4834
    %v5209 = vmul.f32 %v4334, %v4839
    %v5210 = vmul.f32 %v4335, %v4844
    %v5211 = vmul.f32 %v4336, %v4849
    %v5212 = vmul.f32 %v4337, %v4854
    %v5213 = vmul.f32 %v4338, %v4859
    %v5214 = vmul.f32 %v4339, %v4864
    %v5215 = vmul.f32 %v4340, %v4869
    %v5216 = vmul.f32 %v4341, %v4874
    %v5217 = vmul.f32 %v4342, %v4879
    %v5218 = vmul.f32 %v4343, %v4884
    %v5219 = vmul.f32 %v4344, %v4889
    %v5220 = vmul.f32 %v4345, %v4894
    %v5221 = vmul.f32 %v4346, %v4899
    %v5222 = vmul.f32 %v4347, %v4904
    %v5223 = vmul.f32 %v4348, %v4909
    %v5224 = vmul.f32 %v4349, %v4914
    %v5225 = vmul.f32 %v4350, %v4919
    %v5226 = vmul.f32 %v4351, %v4924
    %v5227 = vmul.f32 %v4352, %v4929
    %v5228 = vmul.f32 %v4353, %v4934
    %v5229 = vmul.f32 %v4354, %v4939
    %v5230 = vmul.f32 %v4355, %v4944
    %v5231 = vmul.f32 %v4356, %v4949
    %v5232 = vmul.f32 %v4357, %v4954
    %v5233 = vmul.f32 %v4358, %v4959
    %v5234 = vmul.f32 %v4359, %v4964
    %v5235 = vmul.f32 %v4360, %v4969
    %v5236 = vmul.f32 %v4361, %v4974
    %v5237 = vmul.f32 %v4362, %v4979
    %v5238 = vmul.f32 %v4363, %v4984
    %v5239 = vmul.f32 %v4364, %v4989
    %v5240 = vmul.f32 %v4365, %v4994
    %v5241 = vmul.f32 %v4366, %v4999
    %v5242 = vmul.f32 %v4367, %v5004
    %v5243 = vmul.f32 %v4368, %v5009
    %v5244 = vmul.f32 %v4369, %v5014
    %v5245 = vmul.f32 %v4370, %v5019
    %v5246 = vmul.f32 %v4371, %v5024
    %v5247 = vmul.f32 %v4372, %v5029
    %v5248 = vmul.f32 %v4373, %v5034
    %v5249 = vmul.f32 %v4374, %v5039
    %v5250 = vmul.f32 %v4375, %v5044
    %v5251 = vmul.f32 %v4376, %v5049
    %v5252 = vmul.f32 %v4377, %v5054
    %v5253 = vmul.f32 %v4378, %v5059
    %v5254 = vmul.f32 %v4379, %v5064
    %v5255 = vmul.f32 %v4380, %v5069
    %v5256 = vmul.f32 %v4381, %v5074
    %v5257 = vmul.f32 %v4382, %v5079
    %v5258 = vmul.f32 %v4383, %v5084
    %v5259 = vmul.f32 %v4384, %v5089
    %v5260 = vmul.f32 %v4385, %v5094
    %v5261 = vmul.f32 %v4386, %v5099
    %v5262 = vmul.f32 %v4387, %v5104
    %v5263 = vmul.f32 %v4388, %v5109
    %v5264 = vmul.f32 %v4389, %v5114
    %v5265 = vmul.f32 %v4390, %v5119
    %v5266 = vmul.f32 %v4391, %v5124
    %v5267 = vmul.f32 %v4392, %v5129
    %v5268 = vmul.f32 %v4393, %v5134
    %v5269 = vmul.f32 %v4394, %v5139
    %v5270 = vmul.f32 %v4395, %v5144
    %vm5271 = vcmask 261120
    %v5272 = vsel %vm5271, %v5146, 0.0
    %v5273 = vsel %vm5271, %v5147, 0.0
    %v5274 = vadd.f32 %v5272, %v5273
    %v5275 = vsel %vm5271, %v5148, 0.0
    %v5276 = vadd.f32 %v5274, %v5275
    %v5277 = vsel %vm5271, %v5149, 0.0
    %v5278 = vadd.f32 %v5276, %v5277
    %v5279 = vsel %vm5271, %v5150, 0.0
    %v5280 = vadd.f32 %v5278, %v5279
    %v5281 = vsel %vm5271, %v5151, 0.0
    %v5282 = vadd.f32 %v5280, %v5281
    %v5283 = vsel %vm5271, %v5152, 0.0
    %v5284 = vadd.f32 %v5282, %v5283
    %v5285 = vsel %vm5271, %v5153, 0.0
    %v5286 = vadd.f32 %v5284, %v5285
    %v5287 = vsel %vm5271, %v5154, 0.0
    %v5288 = vadd.f32 %v5286, %v5287
    %v5289 = vsel %vm5271, %v5155, 0.0
    %v5290 = vadd.f32 %v5288, %v5289
    %v5291 = vsel %vm5271, %v5156, 0.0
    %v5292 = vadd.f32 %v5290, %v5291
    %v5293 = vsel %vm5271, %v5157, 0.0
    %v5294 = vadd.f32 %v5292, %v5293
    %v5295 = vsel %vm5271, %v5158, 0.0
    %v5296 = vadd.f32 %v5294, %v5295
    %v5297 = vsel %vm5271, %v5159, 0.0
    %v5298 = vadd.f32 %v5296, %v5297
    %v5299 = vsel %vm5271, %v5160, 0.0
    %v5300 = vadd.f32 %v5298, %v5299
    %v5301 = vsel %vm5271, %v5161, 0.0
    %v5302 = vadd.f32 %v5300, %v5301
    %v5303 = vsel %vm5271, %v5162, 0.0
    %v5304 = vadd.f32 %v5302, %v5303
    %v5305 = vsel %vm5271, %v5163, 0.0
    %v5306 = vadd.f32 %v5304, %v5305
    %v5307 = vsel %vm5271, %v5164, 0.0
    %v5308 = vadd.f32 %v5306, %v5307
    %v5309 = vsel %vm5271, %v5165, 0.0
    %v5310 = vadd.f32 %v5308, %v5309
    %v5311 = vsel %vm5271, %v5166, 0.0
    %v5312 = vadd.f32 %v5310, %v5311
    %v5313 = vsel %vm5271, %v5167, 0.0
    %v5314 = vadd.f32 %v5312, %v5313
    %v5315 = vsel %vm5271, %v5168, 0.0
    %v5316 = vadd.f32 %v5314, %v5315
    %v5317 = vsel %vm5271, %v5169, 0.0
    %v5318 = vadd.f32 %v5316, %v5317
    %v5319 = vsel %vm5271, %v5170, 0.0
    %v5320 = vadd.f32 %v5318, %v5319
    %v5321 = vsel %vm5271, %v5171, 0.0
    %v5322 = vadd.f32 %v5320, %v5321
    %v5323 = vsel %vm5271, %v5172, 0.0
    %v5324 = vadd.f32 %v5322, %v5323
    %v5325 = vsel %vm5271, %v5173, 0.0
    %v5326 = vadd.f32 %v5324, %v5325
    %v5327 = vsel %vm5271, %v5174, 0.0
    %v5328 = vadd.f32 %v5326, %v5327
    %v5329 = vsel %vm5271, %v5175, 0.0
    %v5330 = vadd.f32 %v5328, %v5329
    %v5331 = vsel %vm5271, %v5176, 0.0
    %v5332 = vadd.f32 %v5330, %v5331
    %v5333 = vsel %vm5271, %v5177, 0.0
    %v5334 = vadd.f32 %v5332, %v5333
    %v5335 = vsel %vm5271, %v5178, 0.0
    %v5336 = vadd.f32 %v5334, %v5335
    %v5337 = vsel %vm5271, %v5179, 0.0
    %v5338 = vadd.f32 %v5336, %v5337
    %v5339 = vsel %vm5271, %v5180, 0.0
    %v5340 = vadd.f32 %v5338, %v5339
    %v5341 = vsel %vm5271, %v5181, 0.0
    %v5342 = vadd.f32 %v5340, %v5341
    %v5343 = vsel %vm5271, %v5182, 0.0
    %v5344 = vadd.f32 %v5342, %v5343
    %v5345 = vsel %vm5271, %v5183, 0.0
    %v5346 = vadd.f32 %v5344, %v5345
    %v5347 = vsel %vm5271, %v5184, 0.0
    %v5348 = vadd.f32 %v5346, %v5347
    %v5349 = vsel %vm5271, %v5185, 0.0
    %v5350 = vadd.f32 %v5348, %v5349
    %v5351 = vsel %vm5271, %v5186, 0.0
    %v5352 = vadd.f32 %v5350, %v5351
    %v5353 = vsel %vm5271, %v5187, 0.0
    %v5354 = vadd.f32 %v5352, %v5353
    %v5355 = vsel %vm5271, %v5188, 0.0
    %v5356 = vadd.f32 %v5354, %v5355
    %v5357 = vsel %vm5271, %v5189, 0.0
    %v5358 = vadd.f32 %v5356, %v5357
    %v5359 = vsel %vm5271, %v5190, 0.0
    %v5360 = vadd.f32 %v5358, %v5359
    %v5361 = vsel %vm5271, %v5191, 0.0
    %v5362 = vadd.f32 %v5360, %v5361
    %v5363 = vsel %vm5271, %v5192, 0.0
    %v5364 = vadd.f32 %v5362, %v5363
    %v5365 = vsel %vm5271, %v5193, 0.0
    %v5366 = vadd.f32 %v5364, %v5365
    %v5367 = vsel %vm5271, %v5194, 0.0
    %v5368 = vadd.f32 %v5366, %v5367
    %v5369 = vsel %vm5271, %v5195, 0.0
    %v5370 = vadd.f32 %v5368, %v5369
    %v5371 = vsel %vm5271, %v5196, 0.0
    %v5372 = vadd.f32 %v5370, %v5371
    %v5373 = vsel %vm5271, %v5197, 0.0
    %v5374 = vadd.f32 %v5372, %v5373
    %v5375 = vsel %vm5271, %v5198, 0.0
    %v5376 = vadd.f32 %v5374, %v5375
    %v5377 = vsel %vm5271, %v5199, 0.0
    %v5378 = vadd.f32 %v5376, %v5377
    %v5379 = vsel %vm5271, %v5200, 0.0
    %v5380 = vadd.f32 %v5378, %v5379
    %v5381 = vsel %vm5271, %v5201, 0.0
    %v5382 = vadd.f32 %v5380, %v5381
    %v5383 = vsel %vm5271, %v5202, 0.0
    %v5384 = vadd.f32 %v5382, %v5383
    %v5385 = vsel %vm5271, %v5203, 0.0
    %v5386 = vadd.f32 %v5384, %v5385
    %v5387 = vsel %vm5271, %v5204, 0.0
    %v5388 = vadd.f32 %v5386, %v5387
    %v5389 = vsel %vm5271, %v5205, 0.0
    %v5390 = vadd.f32 %v5388, %v5389
    %v5391 = vsel %vm5271, %v5206, 0.0
    %v5392 = vadd.f32 %v5390, %v5391
    %v5393 = vsel %vm5271, %v5207, 0.0
    %v5394 = vadd.f32 %v5392, %v5393
    %v5395 = vsel %vm5271, %v5208, 0.0
    %v5396 = vadd.f32 %v5394, %v5395
    %v5397 = vsel %vm5271, %v5209, 0.0
    %v5398 = vadd.f32 %v5396, %v5397
    %v5399 = vsel %vm5271, %v5210, 0.0
    %v5400 = vadd.f32 %v5398, %v5399
    %v5401 = vsel %vm5271, %v5211, 0.0
    %v5402 = vadd.f32 %v5400, %v5401
    %v5403 = vsel %vm5271, %v5212, 0.0
    %v5404 = vadd.f32 %v5402, %v5403
    %v5405 = vsel %vm5271, %v5213, 0.0
    %v5406 = vadd.f32 %v5404, %v5405
    %v5407 = vsel %vm5271, %v5214, 0.0
    %v5408 = vadd.f32 %v5406, %v5407
    %v5409 = vsel %vm5271, %v5215, 0.0
    %v5410 = vadd.f32 %v5408, %v5409
    %v5411 = vsel %vm5271, %v5216, 0.0
    %v5412 = vadd.f32 %v5410, %v5411
    %v5413 = vsel %vm5271, %v5217, 0.0
    %v5414 = vadd.f32 %v5412, %v5413
    %v5415 = vsel %vm5271, %v5218, 0.0
    %v5416 = vadd.f32 %v5414, %v5415
    %v5417 = vsel %vm5271, %v5219, 0.0
    %v5418 = vadd.f32 %v5416, %v5417
    %v5419 = vsel %vm5271, %v5220, 0.0
    %v5420 = vadd.f32 %v5418, %v5419
    %v5421 = vsel %vm5271, %v5221, 0.0
    %v5422 = vadd.f32 %v5420, %v5421
    %v5423 = vsel %vm5271, %v5222, 0.0
    %v5424 = vadd.f32 %v5422, %v5423
    %v5425 = vsel %vm5271, %v5223, 0.0
    %v5426 = vadd.f32 %v5424, %v5425
    %v5427 = vsel %vm5271, %v5224, 0.0
    %v5428 = vadd.f32 %v5426, %v5427
    %v5429 = vsel %vm5271, %v5225, 0.0
    %v5430 = vadd.f32 %v5428, %v5429
    %v5431 = vsel %vm5271, %v5226, 0.0
    %v5432 = vadd.f32 %v5430, %v5431
    %v5433 = vsel %vm5271, %v5227, 0.0
    %v5434 = vadd.f32 %v5432, %v5433
    %v5435 = vsel %vm5271, %v5228, 0.0
    %v5436 = vadd.f32 %v5434, %v5435
    %v5437 = vsel %vm5271, %v5229, 0.0
    %v5438 = vadd.f32 %v5436, %v5437
    %v5439 = vsel %vm5271, %v5230, 0.0
    %v5440 = vadd.f32 %v5438, %v5439
    %v5441 = vsel %vm5271, %v5231, 0.0
    %v5442 = vadd.f32 %v5440, %v5441
    %v5443 = vsel %vm5271, %v5232, 0.0
    %v5444 = vadd.f32 %v5442, %v5443
    %v5445 = vsel %vm5271, %v5233, 0.0
    %v5446 = vadd.f32 %v5444, %v5445
    %v5447 = vsel %vm5271, %v5234, 0.0
    %v5448 = vadd.f32 %v5446, %v5447
    %v5449 = vsel %vm5271, %v5235, 0.0
    %v5450 = vadd.f32 %v5448, %v5449
    %v5451 = vsel %vm5271, %v5236, 0.0
    %v5452 = vadd.f32 %v5450, %v5451
    %v5453 = vsel %vm5271, %v5237, 0.0
    %v5454 = vadd.f32 %v5452, %v5453
    %v5455 = vsel %vm5271, %v5238, 0.0
    %v5456 = vadd.f32 %v5454, %v5455
    %v5457 = vsel %vm5271, %v5239, 0.0
    %v5458 = vadd.f32 %v5456, %v5457
    %v5459 = vsel %vm5271, %v5240, 0.0
    %v5460 = vadd.f32 %v5458, %v5459
    %v5461 = vsel %vm5271, %v5241, 0.0
    %v5462 = vadd.f32 %v5460, %v5461
    %v5463 = vsel %vm5271, %v5242, 0.0
    %v5464 = vadd.f32 %v5462, %v5463
    %v5465 = vsel %vm5271, %v5243, 0.0
    %v5466 = vadd.f32 %v5464, %v5465
    %v5467 = vsel %vm5271, %v5244, 0.0
    %v5468 = vadd.f32 %v5466, %v5467
    %v5469 = vsel %vm5271, %v5245, 0.0
    %v5470 = vadd.f32 %v5468, %v5469
    %v5471 = vsel %vm5271, %v5246, 0.0
    %v5472 = vadd.f32 %v5470, %v5471
    %v5473 = vsel %vm5271, %v5247, 0.0
    %v5474 = vadd.f32 %v5472, %v5473
    %v5475 = vsel %vm5271, %v5248, 0.0
    %v5476 = vadd.f32 %v5474, %v5475
    %v5477 = vsel %vm5271, %v5249, 0.0
    %v5478 = vadd.f32 %v5476, %v5477
    %v5479 = vsel %vm5271, %v5250, 0.0
    %v5480 = vadd.f32 %v5478, %v5479
    %v5481 = vsel %vm5271, %v5251, 0.0
    %v5482 = vadd.f32 %v5480, %v5481
    %v5483 = vsel %vm5271, %v5252, 0.0
    %v5484 = vadd.f32 %v5482, %v5483
    %v5485 = vsel %vm5271, %v5253, 0.0
    %v5486 = vadd.f32 %v5484, %v5485
    %v5487 = vsel %vm5271, %v5254, 0.0
    %v5488 = vadd.f32 %v5486, %v5487
    %v5489 = vsel %vm5271, %v5255, 0.0
    %v5490 = vadd.f32 %v5488, %v5489
    %v5491 = vsel %vm5271, %v5256, 0.0
    %v5492 = vadd.f32 %v5490, %v5491
    %v5493 = vsel %vm5271, %v5257, 0.0
    %v5494 = vadd.f32 %v5492, %v5493
    %v5495 = vsel %vm5271, %v5258, 0.0
    %v5496 = vadd.f32 %v5494, %v5495
    %v5497 = vsel %vm5271, %v5259, 0.0
    %v5498 = vadd.f32 %v5496, %v5497
    %v5499 = vsel %vm5271, %v5260, 0.0
    %v5500 = vadd.f32 %v5498, %v5499
    %v5501 = vsel %vm5271, %v5261, 0.0
    %v5502 = vadd.f32 %v5500, %v5501
    %v5503 = vsel %vm5271, %v5262, 0.0
    %v5504 = vadd.f32 %v5502, %v5503
    %v5505 = vsel %vm5271, %v5263, 0.0
    %v5506 = vadd.f32 %v5504, %v5505
    %v5507 = vsel %vm5271, %v5264, 0.0
    %v5508 = vadd.f32 %v5506, %v5507
    %v5509 = vsel %vm5271, %v5265, 0.0
    %v5510 = vadd.f32 %v5508, %v5509
    %v5511 = vsel %vm5271, %v5266, 0.0
    %v5512 = vadd.f32 %v5510, %v5511
    %v5513 = vsel %vm5271, %v5267, 0.0
    %v5514 = vadd.f32 %v5512, %v5513
    %v5515 = vsel %vm5271, %v5268, 0.0
    %v5516 = vadd.f32 %v5514, %v5515
    %v5517 = vsel %vm5271, %v5269, 0.0
    %v5518 = vadd.f32 %v5516, %v5517
    %vm5519 = vcmask 257024
    %v5520 = vsel %vm5519, %v5270, 0.0
    %v5521 = vadd.f32 %v5518, %v5520
    %v5522 = vrot.slane %v5521, 4
    %v5523 = vadd.f32 %v5521, %v5522
    %v5524 = vrot.slane %v5523, 2
    %v5525 = vadd.f32 %v5523, %v5524
    %v5526 = vrot.slane %v5525, 1
    %v5527 = vadd.f32 %v5525, %v5526
    %v5528 = vmul.f32 %v5527, 0.0010080645
    %v5529 = vmul.f32 %v5146, %v4271
    %v5530 = vmul.f32 %v5147, %v4272
    %v5531 = vmul.f32 %v5148, %v4273
    %v5532 = vmul.f32 %v5149, %v4274
    %v5533 = vmul.f32 %v5150, %v4275
    %v5534 = vmul.f32 %v5151, %v4276
    %v5535 = vmul.f32 %v5152, %v4277
    %v5536 = vmul.f32 %v5153, %v4278
    %v5537 = vmul.f32 %v5154, %v4279
    %v5538 = vmul.f32 %v5155, %v4280
    %v5539 = vmul.f32 %v5156, %v4281
    %v5540 = vmul.f32 %v5157, %v4282
    %v5541 = vmul.f32 %v5158, %v4283
    %v5542 = vmul.f32 %v5159, %v4284
    %v5543 = vmul.f32 %v5160, %v4285
    %v5544 = vmul.f32 %v5161, %v4286
    %v5545 = vmul.f32 %v5162, %v4287
    %v5546 = vmul.f32 %v5163, %v4288
    %v5547 = vmul.f32 %v5164, %v4289
    %v5548 = vmul.f32 %v5165, %v4290
    %v5549 = vmul.f32 %v5166, %v4291
    %v5550 = vmul.f32 %v5167, %v4292
    %v5551 = vmul.f32 %v5168, %v4293
    %v5552 = vmul.f32 %v5169, %v4294
    %v5553 = vmul.f32 %v5170, %v4295
    %v5554 = vmul.f32 %v5171, %v4296
    %v5555 = vmul.f32 %v5172, %v4297
    %v5556 = vmul.f32 %v5173, %v4298
    %v5557 = vmul.f32 %v5174, %v4299
    %v5558 = vmul.f32 %v5175, %v4300
    %v5559 = vmul.f32 %v5176, %v4301
    %v5560 = vmul.f32 %v5177, %v4302
    %v5561 = vmul.f32 %v5178, %v4303
    %v5562 = vmul.f32 %v5179, %v4304
    %v5563 = vmul.f32 %v5180, %v4305
    %v5564 = vmul.f32 %v5181, %v4306
    %v5565 = vmul.f32 %v5182, %v4307
    %v5566 = vmul.f32 %v5183, %v4308
    %v5567 = vmul.f32 %v5184, %v4309
    %v5568 = vmul.f32 %v5185, %v4310
    %v5569 = vmul.f32 %v5186, %v4311
    %v5570 = vmul.f32 %v5187, %v4312
    %v5571 = vmul.f32 %v5188, %v4313
    %v5572 = vmul.f32 %v5189, %v4314
    %v5573 = vmul.f32 %v5190, %v4315
    %v5574 = vmul.f32 %v5191, %v4316
    %v5575 = vmul.f32 %v5192, %v4317
    %v5576 = vmul.f32 %v5193, %v4318
    %v5577 = vmul.f32 %v5194, %v4319
    %v5578 = vmul.f32 %v5195, %v4320
    %v5579 = vmul.f32 %v5196, %v4321
    %v5580 = vmul.f32 %v5197, %v4322
    %v5581 = vmul.f32 %v5198, %v4323
    %v5582 = vmul.f32 %v5199, %v4324
    %v5583 = vmul.f32 %v5200, %v4325
    %v5584 = vmul.f32 %v5201, %v4326
    %v5585 = vmul.f32 %v5202, %v4327
    %v5586 = vmul.f32 %v5203, %v4328
    %v5587 = vmul.f32 %v5204, %v4329
    %v5588 = vmul.f32 %v5205, %v4330
    %v5589 = vmul.f32 %v5206, %v4331
    %v5590 = vmul.f32 %v5207, %v4332
    %v5591 = vmul.f32 %v5208, %v4333
    %v5592 = vmul.f32 %v5209, %v4334
    %v5593 = vmul.f32 %v5210, %v4335
    %v5594 = vmul.f32 %v5211, %v4336
    %v5595 = vmul.f32 %v5212, %v4337
    %v5596 = vmul.f32 %v5213, %v4338
    %v5597 = vmul.f32 %v5214, %v4339
    %v5598 = vmul.f32 %v5215, %v4340
    %v5599 = vmul.f32 %v5216, %v4341
    %v5600 = vmul.f32 %v5217, %v4342
    %v5601 = vmul.f32 %v5218, %v4343
    %v5602 = vmul.f32 %v5219, %v4344
    %v5603 = vmul.f32 %v5220, %v4345
    %v5604 = vmul.f32 %v5221, %v4346
    %v5605 = vmul.f32 %v5222, %v4347
    %v5606 = vmul.f32 %v5223, %v4348
    %v5607 = vmul.f32 %v5224, %v4349
    %v5608 = vmul.f32 %v5225, %v4350
    %v5609 = vmul.f32 %v5226, %v4351
    %v5610 = vmul.f32 %v5227, %v4352
    %v5611 = vmul.f32 %v5228, %v4353
    %v5612 = vmul.f32 %v5229, %v4354
    %v5613 = vmul.f32 %v5230, %v4355
    %v5614 = vmul.f32 %v5231, %v4356
    %v5615 = vmul.f32 %v5232, %v4357
    %v5616 = vmul.f32 %v5233, %v4358
    %v5617 = vmul.f32 %v5234, %v4359
    %v5618 = vmul.f32 %v5235, %v4360
    %v5619 = vmul.f32 %v5236, %v4361
    %v5620 = vmul.f32 %v5237, %v4362
    %v5621 = vmul.f32 %v5238, %v4363
    %v5622 = vmul.f32 %v5239, %v4364
    %v5623 = vmul.f32 %v5240, %v4365
    %v5624 = vmul.f32 %v5241, %v4366
    %v5625 = vmul.f32 %v5242, %v4367
    %v5626 = vmul.f32 %v5243, %v4368
    %v5627 = vmul.f32 %v5244, %v4369
    %v5628 = vmul.f32 %v5245, %v4370
    %v5629 = vmul.f32 %v5246, %v4371
    %v5630 = vmul.f32 %v5247, %v4372
    %v5631 = vmul.f32 %v5248, %v4373
    %v5632 = vmul.f32 %v5249, %v4374
    %v5633 = vmul.f32 %v5250, %v4375
    %v5634 = vmul.f32 %v5251, %v4376
    %v5635 = vmul.f32 %v5252, %v4377
    %v5636 = vmul.f32 %v5253, %v4378
    %v5637 = vmul.f32 %v5254, %v4379
    %v5638 = vmul.f32 %v5255, %v4380
    %v5639 = vmul.f32 %v5256, %v4381
    %v5640 = vmul.f32 %v5257, %v4382
    %v5641 = vmul.f32 %v5258, %v4383
    %v5642 = vmul.f32 %v5259, %v4384
    %v5643 = vmul.f32 %v5260, %v4385
    %v5644 = vmul.f32 %v5261, %v4386
    %v5645 = vmul.f32 %v5262, %v4387
    %v5646 = vmul.f32 %v5263, %v4388
    %v5647 = vmul.f32 %v5264, %v4389
    %v5648 = vmul.f32 %v5265, %v4390
    %v5649 = vmul.f32 %v5266, %v4391
    %v5650 = vmul.f32 %v5267, %v4392
    %v5651 = vmul.f32 %v5268, %v4393
    %v5652 = vmul.f32 %v5269, %v4394
    %v5653 = vmul.f32 %v5270, %v4395
    %v5654 = vsel %vm5271, %v5529, 0.0
    %v5655 = vsel %vm5271, %v5530, 0.0
    %v5656 = vadd.f32 %v5654, %v5655
    %v5657 = vsel %vm5271, %v5531, 0.0
    %v5658 = vadd.f32 %v5656, %v5657
    %v5659 = vsel %vm5271, %v5532, 0.0
    %v5660 = vadd.f32 %v5658, %v5659
    %v5661 = vsel %vm5271, %v5533, 0.0
    %v5662 = vadd.f32 %v5660, %v5661
    %v5663 = vsel %vm5271, %v5534, 0.0
    %v5664 = vadd.f32 %v5662, %v5663
    %v5665 = vsel %vm5271, %v5535, 0.0
    %v5666 = vadd.f32 %v5664, %v5665
    %v5667 = vsel %vm5271, %v5536, 0.0
    %v5668 = vadd.f32 %v5666, %v5667
    %v5669 = vsel %vm5271, %v5537, 0.0
    %v5670 = vadd.f32 %v5668, %v5669
    %v5671 = vsel %vm5271, %v5538, 0.0
    %v5672 = vadd.f32 %v5670, %v5671
    %v5673 = vsel %vm5271, %v5539, 0.0
    %v5674 = vadd.f32 %v5672, %v5673
    %v5675 = vsel %vm5271, %v5540, 0.0
    %v5676 = vadd.f32 %v5674, %v5675
    %v5677 = vsel %vm5271, %v5541, 0.0
    %v5678 = vadd.f32 %v5676, %v5677
    %v5679 = vsel %vm5271, %v5542, 0.0
    %v5680 = vadd.f32 %v5678, %v5679
    %v5681 = vsel %vm5271, %v5543, 0.0
    %v5682 = vadd.f32 %v5680, %v5681
    %v5683 = vsel %vm5271, %v5544, 0.0
    %v5684 = vadd.f32 %v5682, %v5683
    %v5685 = vsel %vm5271, %v5545, 0.0
    %v5686 = vadd.f32 %v5684, %v5685
    %v5687 = vsel %vm5271, %v5546, 0.0
    %v5688 = vadd.f32 %v5686, %v5687
    %v5689 = vsel %vm5271, %v5547, 0.0
    %v5690 = vadd.f32 %v5688, %v5689
    %v5691 = vsel %vm5271, %v5548, 0.0
    %v5692 = vadd.f32 %v5690, %v5691
    %v5693 = vsel %vm5271, %v5549, 0.0
    %v5694 = vadd.f32 %v5692, %v5693
    %v5695 = vsel %vm5271, %v5550, 0.0
    %v5696 = vadd.f32 %v5694, %v5695
    %v5697 = vsel %vm5271, %v5551, 0.0
    %v5698 = vadd.f32 %v5696, %v5697
    %v5699 = vsel %vm5271, %v5552, 0.0
    %v5700 = vadd.f32 %v5698, %v5699
    %v5701 = vsel %vm5271, %v5553, 0.0
    %v5702 = vadd.f32 %v5700, %v5701
    %v5703 = vsel %vm5271, %v5554, 0.0
    %v5704 = vadd.f32 %v5702, %v5703
    %v5705 = vsel %vm5271, %v5555, 0.0
    %v5706 = vadd.f32 %v5704, %v5705
    %v5707 = vsel %vm5271, %v5556, 0.0
    %v5708 = vadd.f32 %v5706, %v5707
    %v5709 = vsel %vm5271, %v5557, 0.0
    %v5710 = vadd.f32 %v5708, %v5709
    %v5711 = vsel %vm5271, %v5558, 0.0
    %v5712 = vadd.f32 %v5710, %v5711
    %v5713 = vsel %vm5271, %v5559, 0.0
    %v5714 = vadd.f32 %v5712, %v5713
    %v5715 = vsel %vm5271, %v5560, 0.0
    %v5716 = vadd.f32 %v5714, %v5715
    %v5717 = vsel %vm5271, %v5561, 0.0
    %v5718 = vadd.f32 %v5716, %v5717
    %v5719 = vsel %vm5271, %v5562, 0.0
    %v5720 = vadd.f32 %v5718, %v5719
    %v5721 = vsel %vm5271, %v5563, 0.0
    %v5722 = vadd.f32 %v5720, %v5721
    %v5723 = vsel %vm5271, %v5564, 0.0
    %v5724 = vadd.f32 %v5722, %v5723
    %v5725 = vsel %vm5271, %v5565, 0.0
    %v5726 = vadd.f32 %v5724, %v5725
    %v5727 = vsel %vm5271, %v5566, 0.0
    %v5728 = vadd.f32 %v5726, %v5727
    %v5729 = vsel %vm5271, %v5567, 0.0
    %v5730 = vadd.f32 %v5728, %v5729
    %v5731 = vsel %vm5271, %v5568, 0.0
    %v5732 = vadd.f32 %v5730, %v5731
    %v5733 = vsel %vm5271, %v5569, 0.0
    %v5734 = vadd.f32 %v5732, %v5733
    %v5735 = vsel %vm5271, %v5570, 0.0
    %v5736 = vadd.f32 %v5734, %v5735
    %v5737 = vsel %vm5271, %v5571, 0.0
    %v5738 = vadd.f32 %v5736, %v5737
    %v5739 = vsel %vm5271, %v5572, 0.0
    %v5740 = vadd.f32 %v5738, %v5739
    %v5741 = vsel %vm5271, %v5573, 0.0
    %v5742 = vadd.f32 %v5740, %v5741
    %v5743 = vsel %vm5271, %v5574, 0.0
    %v5744 = vadd.f32 %v5742, %v5743
    %v5745 = vsel %vm5271, %v5575, 0.0
    %v5746 = vadd.f32 %v5744, %v5745
    %v5747 = vsel %vm5271, %v5576, 0.0
    %v5748 = vadd.f32 %v5746, %v5747
    %v5749 = vsel %vm5271, %v5577, 0.0
    %v5750 = vadd.f32 %v5748, %v5749
    %v5751 = vsel %vm5271, %v5578, 0.0
    %v5752 = vadd.f32 %v5750, %v5751
    %v5753 = vsel %vm5271, %v5579, 0.0
    %v5754 = vadd.f32 %v5752, %v5753
    %v5755 = vsel %vm5271, %v5580, 0.0
    %v5756 = vadd.f32 %v5754, %v5755
    %v5757 = vsel %vm5271, %v5581, 0.0
    %v5758 = vadd.f32 %v5756, %v5757
    %v5759 = vsel %vm5271, %v5582, 0.0
    %v5760 = vadd.f32 %v5758, %v5759
    %v5761 = vsel %vm5271, %v5583, 0.0
    %v5762 = vadd.f32 %v5760, %v5761
    %v5763 = vsel %vm5271, %v5584, 0.0
    %v5764 = vadd.f32 %v5762, %v5763
    %v5765 = vsel %vm5271, %v5585, 0.0
    %v5766 = vadd.f32 %v5764, %v5765
    %v5767 = vsel %vm5271, %v5586, 0.0
    %v5768 = vadd.f32 %v5766, %v5767
    %v5769 = vsel %vm5271, %v5587, 0.0
    %v5770 = vadd.f32 %v5768, %v5769
    %v5771 = vsel %vm5271, %v5588, 0.0
    %v5772 = vadd.f32 %v5770, %v5771
    %v5773 = vsel %vm5271, %v5589, 0.0
    %v5774 = vadd.f32 %v5772, %v5773
    %v5775 = vsel %vm5271, %v5590, 0.0
    %v5776 = vadd.f32 %v5774, %v5775
    %v5777 = vsel %vm5271, %v5591, 0.0
    %v5778 = vadd.f32 %v5776, %v5777
    %v5779 = vsel %vm5271, %v5592, 0.0
    %v5780 = vadd.f32 %v5778, %v5779
    %v5781 = vsel %vm5271, %v5593, 0.0
    %v5782 = vadd.f32 %v5780, %v5781
    %v5783 = vsel %vm5271, %v5594, 0.0
    %v5784 = vadd.f32 %v5782, %v5783
    %v5785 = vsel %vm5271, %v5595, 0.0
    %v5786 = vadd.f32 %v5784, %v5785
    %v5787 = vsel %vm5271, %v5596, 0.0
    %v5788 = vadd.f32 %v5786, %v5787
    %v5789 = vsel %vm5271, %v5597, 0.0
    %v5790 = vadd.f32 %v5788, %v5789
    %v5791 = vsel %vm5271, %v5598, 0.0
    %v5792 = vadd.f32 %v5790, %v5791
    %v5793 = vsel %vm5271, %v5599, 0.0
    %v5794 = vadd.f32 %v5792, %v5793
    %v5795 = vsel %vm5271, %v5600, 0.0
    %v5796 = vadd.f32 %v5794, %v5795
    %v5797 = vsel %vm5271, %v5601, 0.0
    %v5798 = vadd.f32 %v5796, %v5797
    %v5799 = vsel %vm5271, %v5602, 0.0
    %v5800 = vadd.f32 %v5798, %v5799
    %v5801 = vsel %vm5271, %v5603, 0.0
    %v5802 = vadd.f32 %v5800, %v5801
    %v5803 = vsel %vm5271, %v5604, 0.0
    %v5804 = vadd.f32 %v5802, %v5803
    %v5805 = vsel %vm5271, %v5605, 0.0
    %v5806 = vadd.f32 %v5804, %v5805
    %v5807 = vsel %vm5271, %v5606, 0.0
    %v5808 = vadd.f32 %v5806, %v5807
    %v5809 = vsel %vm5271, %v5607, 0.0
    %v5810 = vadd.f32 %v5808, %v5809
    %v5811 = vsel %vm5271, %v5608, 0.0
    %v5812 = vadd.f32 %v5810, %v5811
    %v5813 = vsel %vm5271, %v5609, 0.0
    %v5814 = vadd.f32 %v5812, %v5813
    %v5815 = vsel %vm5271, %v5610, 0.0
    %v5816 = vadd.f32 %v5814, %v5815
    %v5817 = vsel %vm5271, %v5611, 0.0
    %v5818 = vadd.f32 %v5816, %v5817
    %v5819 = vsel %vm5271, %v5612, 0.0
    %v5820 = vadd.f32 %v5818, %v5819
    %v5821 = vsel %vm5271, %v5613, 0.0
    %v5822 = vadd.f32 %v5820, %v5821
    %v5823 = vsel %vm5271, %v5614, 0.0
    %v5824 = vadd.f32 %v5822, %v5823
    %v5825 = vsel %vm5271, %v5615, 0.0
    %v5826 = vadd.f32 %v5824, %v5825
    %v5827 = vsel %vm5271, %v5616, 0.0
    %v5828 = vadd.f32 %v5826, %v5827
    %v5829 = vsel %vm5271, %v5617, 0.0
    %v5830 = vadd.f32 %v5828, %v5829
    %v5831 = vsel %vm5271, %v5618, 0.0
    %v5832 = vadd.f32 %v5830, %v5831
    %v5833 = vsel %vm5271, %v5619, 0.0
    %v5834 = vadd.f32 %v5832, %v5833
    %v5835 = vsel %vm5271, %v5620, 0.0
    %v5836 = vadd.f32 %v5834, %v5835
    %v5837 = vsel %vm5271, %v5621, 0.0
    %v5838 = vadd.f32 %v5836, %v5837
    %v5839 = vsel %vm5271, %v5622, 0.0
    %v5840 = vadd.f32 %v5838, %v5839
    %v5841 = vsel %vm5271, %v5623, 0.0
    %v5842 = vadd.f32 %v5840, %v5841
    %v5843 = vsel %vm5271, %v5624, 0.0
    %v5844 = vadd.f32 %v5842, %v5843
    %v5845 = vsel %vm5271, %v5625, 0.0
    %v5846 = vadd.f32 %v5844, %v5845
    %v5847 = vsel %vm5271, %v5626, 0.0
    %v5848 = vadd.f32 %v5846, %v5847
    %v5849 = vsel %vm5271, %v5627, 0.0
    %v5850 = vadd.f32 %v5848, %v5849
    %v5851 = vsel %vm5271, %v5628, 0.0
    %v5852 = vadd.f32 %v5850, %v5851
    %v5853 = vsel %vm5271, %v5629, 0.0
    %v5854 = vadd.f32 %v5852, %v5853
    %v5855 = vsel %vm5271, %v5630, 0.0
    %v5856 = vadd.f32 %v5854, %v5855
    %v5857 = vsel %vm5271, %v5631, 0.0
    %v5858 = vadd.f32 %v5856, %v5857
    %v5859 = vsel %vm5271, %v5632, 0.0
    %v5860 = vadd.f32 %v5858, %v5859
    %v5861 = vsel %vm5271, %v5633, 0.0
    %v5862 = vadd.f32 %v5860, %v5861
    %v5863 = vsel %vm5271, %v5634, 0.0
    %v5864 = vadd.f32 %v5862, %v5863
    %v5865 = vsel %vm5271, %v5635, 0.0
    %v5866 = vadd.f32 %v5864, %v5865
    %v5867 = vsel %vm5271, %v5636, 0.0
    %v5868 = vadd.f32 %v5866, %v5867
    %v5869 = vsel %vm5271, %v5637, 0.0
    %v5870 = vadd.f32 %v5868, %v5869
    %v5871 = vsel %vm5271, %v5638, 0.0
    %v5872 = vadd.f32 %v5870, %v5871
    %v5873 = vsel %vm5271, %v5639, 0.0
    %v5874 = vadd.f32 %v5872, %v5873
    %v5875 = vsel %vm5271, %v5640, 0.0
    %v5876 = vadd.f32 %v5874, %v5875
    %v5877 = vsel %vm5271, %v5641, 0.0
    %v5878 = vadd.f32 %v5876, %v5877
    %v5879 = vsel %vm5271, %v5642, 0.0
    %v5880 = vadd.f32 %v5878, %v5879
    %v5881 = vsel %vm5271, %v5643, 0.0
    %v5882 = vadd.f32 %v5880, %v5881
    %v5883 = vsel %vm5271, %v5644, 0.0
    %v5884 = vadd.f32 %v5882, %v5883
    %v5885 = vsel %vm5271, %v5645, 0.0
    %v5886 = vadd.f32 %v5884, %v5885
    %v5887 = vsel %vm5271, %v5646, 0.0
    %v5888 = vadd.f32 %v5886, %v5887
    %v5889 = vsel %vm5271, %v5647, 0.0
    %v5890 = vadd.f32 %v5888, %v5889
    %v5891 = vsel %vm5271, %v5648, 0.0
    %v5892 = vadd.f32 %v5890, %v5891
    %v5893 = vsel %vm5271, %v5649, 0.0
    %v5894 = vadd.f32 %v5892, %v5893
    %v5895 = vsel %vm5271, %v5650, 0.0
    %v5896 = vadd.f32 %v5894, %v5895
    %v5897 = vsel %vm5271, %v5651, 0.0
    %v5898 = vadd.f32 %v5896, %v5897
    %v5899 = vsel %vm5271, %v5652, 0.0
    %v5900 = vadd.f32 %v5898, %v5899
    %v5901 = vsel %vm5519, %v5653, 0.0
    %v5902 = vadd.f32 %v5900, %v5901
    %v5903 = vrot.slane %v5902, 4
    %v5904 = vadd.f32 %v5902, %v5903
    %v5905 = vrot.slane %v5904, 2
    %v5906 = vadd.f32 %v5904, %v5905
    %v5907 = vrot.slane %v5906, 1
    %v5908 = vadd.f32 %v5906, %v5907
    %v5909 = vmul.f32 %v5908, 0.0010080645
    %v5910 = vmul.f32 %v5528, %v5528
    %v5911 = vsub.f32 %v5909, %v5910
    %v5912 = vld [vmem:[%s3] sm:$0x1]
    %v5913 = vadd.f32 %v5911, 1e-05
    %v5914 = vrsqrt.pop %v5913
    %v5915 = vmul.f32 %v5914, %v5913
    %v5916 = vmul.f32 %v5915, %v5914
    %v5917 = vmul.f32 0.5, %v5916
    %v5918 = vsub.f32 1.5, %v5917
    %v5919 = vmul.f32 %v5914, %v5918
    %vm5920 = vweird.f32 %v5913
    %vm5921 = vweird.f32 %v5914
    %vm5922 = vmor %vm5920, %vm5921
    %v5923 = vsel %vm5922, %v5914, %v5919
    %v5924 = vmul.f32 %v5912, %v5923
    %v5925 = vld [vmem:[%s4] sm:$0x1]
    %v5926 = vmul.f32 %v5528, %v5924
    %v5927 = vsub.f32 %v5925, %v5926
    %v5929 = vperm.slane %v5924, 0
    %v5931 = vmul.f32 %v4271, %v5929
    %v5932 = vmul.f32 %v4272, %v5929
    %v5933 = vmul.f32 %v4273, %v5929
    %v5934 = vmul.f32 %v4274, %v5929
    %v5935 = vmul.f32 %v4275, %v5929
    %v5936 = vmul.f32 %v4276, %v5929
    %v5937 = vmul.f32 %v4277, %v5929
    %v5938 = vmul.f32 %v4278, %v5929
    %v5939 = vmul.f32 %v4279, %v5929
    %v5940 = vmul.f32 %v4280, %v5929
    %v5941 = vmul.f32 %v4281, %v5929
    %v5942 = vmul.f32 %v4282, %v5929
    %v5943 = vmul.f32 %v4283, %v5929
    %v5944 = vmul.f32 %v4284, %v5929
    %v5945 = vmul.f32 %v4285, %v5929
    %v5946 = vmul.f32 %v4286, %v5929
    %v5947 = vmul.f32 %v4287, %v5929
    %v5948 = vmul.f32 %v4288, %v5929
    %v5949 = vmul.f32 %v4289, %v5929
    %v5950 = vmul.f32 %v4290, %v5929
    %v5951 = vmul.f32 %v4291, %v5929
    %v5952 = vmul.f32 %v4292, %v5929
    %v5953 = vmul.f32 %v4293, %v5929
    %v5954 = vmul.f32 %v4294, %v5929
    %v5955 = vmul.f32 %v4295, %v5929
    %v5956 = vmul.f32 %v4296, %v5929
    %v5957 = vmul.f32 %v4297, %v5929
    %v5958 = vmul.f32 %v4298, %v5929
    %v5959 = vmul.f32 %v4299, %v5929
    %v5960 = vmul.f32 %v4300, %v5929
    %v5961 = vmul.f32 %v4301, %v5929
    %v5962 = vmul.f32 %v4302, %v5929
    %v5963 = vmul.f32 %v4303, %v5929
    %v5964 = vmul.f32 %v4304, %v5929
    %v5965 = vmul.f32 %v4305, %v5929
    %v5966 = vmul.f32 %v4306, %v5929
    %v5967 = vmul.f32 %v4307, %v5929
    %v5968 = vmul.f32 %v4308, %v5929
    %v5969 = vmul.f32 %v4309, %v5929
    %v5970 = vmul.f32 %v4310, %v5929
    %v5971 = vmul.f32 %v4311, %v5929
    %v5972 = vmul.f32 %v4312, %v5929
    %v5973 = vmul.f32 %v4313, %v5929
    %v5974 = vmul.f32 %v4314, %v5929
    %v5975 = vmul.f32 %v4315, %v5929
    %v5976 = vmul.f32 %v4316, %v5929
    %v5977 = vmul.f32 %v4317, %v5929
    %v5978 = vmul.f32 %v4318, %v5929
    %v5979 = vmul.f32 %v4319, %v5929
    %v5980 = vmul.f32 %v4320, %v5929
    %v5981 = vmul.f32 %v4321, %v5929
    %v5982 = vmul.f32 %v4322, %v5929
    %v5983 = vmul.f32 %v4323, %v5929
    %v5984 = vmul.f32 %v4324, %v5929
    %v5985 = vmul.f32 %v4325, %v5929
    %v5986 = vmul.f32 %v4326, %v5929
    %v5987 = vmul.f32 %v4327, %v5929
    %v5988 = vmul.f32 %v4328, %v5929
    %v5989 = vmul.f32 %v4329, %v5929
    %v5990 = vmul.f32 %v4330, %v5929
    %v5991 = vmul.f32 %v4331, %v5929
    %v5992 = vmul.f32 %v4332, %v5929
    %v5993 = vmul.f32 %v4333, %v5929
    %v5994 = vmul.f32 %v4334, %v5929
    %v5995 = vmul.f32 %v4335, %v5929
    %v5996 = vmul.f32 %v4336, %v5929
    %v5997 = vmul.f32 %v4337, %v5929
    %v5998 = vmul.f32 %v4338, %v5929
    %v5999 = vmul.f32 %v4339, %v5929
    %v6000 = vmul.f32 %v4340, %v5929
    %v6001 = vmul.f32 %v4341, %v5929
    %v6002 = vmul.f32 %v4342, %v5929
    %v6003 = vmul.f32 %v4343, %v5929
    %v6004 = vmul.f32 %v4344, %v5929
    %v6005 = vmul.f32 %v4345, %v5929
    %v6006 = vmul.f32 %v4346, %v5929
    %v6007 = vmul.f32 %v4347, %v5929
    %v6008 = vmul.f32 %v4348, %v5929
    %v6009 = vmul.f32 %v4349, %v5929
    %v6010 = vmul.f32 %v4350, %v5929
    %v6011 = vmul.f32 %v4351, %v5929
    %v6012 = vmul.f32 %v4352, %v5929
    %v6013 = vmul.f32 %v4353, %v5929
    %v6014 = vmul.f32 %v4354, %v5929
    %v6015 = vmul.f32 %v4355, %v5929
    %v6016 = vmul.f32 %v4356, %v5929
    %v6017 = vmul.f32 %v4357, %v5929
    %v6018 = vmul.f32 %v4358, %v5929
    %v6019 = vmul.f32 %v4359, %v5929
    %v6020 = vmul.f32 %v4360, %v5929
    %v6021 = vmul.f32 %v4361, %v5929
    %v6022 = vmul.f32 %v4362, %v5929
    %v6023 = vmul.f32 %v4363, %v5929
    %v6024 = vmul.f32 %v4364, %v5929
    %v6025 = vmul.f32 %v4365, %v5929
    %v6026 = vmul.f32 %v4366, %v5929
    %v6027 = vmul.f32 %v4367, %v5929
    %v6028 = vmul.f32 %v4368, %v5929
    %v6029 = vmul.f32 %v4369, %v5929
    %v6030 = vmul.f32 %v4370, %v5929
    %v6031 = vmul.f32 %v4371, %v5929
    %v6032 = vmul.f32 %v4372, %v5929
    %v6033 = vmul.f32 %v4373, %v5929
    %v6034 = vmul.f32 %v4374, %v5929
    %v6035 = vmul.f32 %v4375, %v5929
    %v6036 = vmul.f32 %v4376, %v5929
    %v6037 = vmul.f32 %v4377, %v5929
    %v6038 = vmul.f32 %v4378, %v5929
    %v6039 = vmul.f32 %v4379, %v5929
    %v6040 = vmul.f32 %v4380, %v5929
    %v6041 = vmul.f32 %v4381, %v5929
    %v6042 = vmul.f32 %v4382, %v5929
    %v6043 = vmul.f32 %v4383, %v5929
    %v6044 = vmul.f32 %v4384, %v5929
    %v6045 = vmul.f32 %v4385, %v5929
    %v6046 = vmul.f32 %v4386, %v5929
    %v6047 = vmul.f32 %v4387, %v5929
    %v6048 = vmul.f32 %v4388, %v5929
    %v6049 = vmul.f32 %v4389, %v5929
    %v6050 = vmul.f32 %v4390, %v5929
    %v6051 = vmul.f32 %v4391, %v5929
    %v6052 = vmul.f32 %v4392, %v5929
    %v6053 = vmul.f32 %v4393, %v5929
    %v6054 = vmul.f32 %v4394, %v5929
    %v6055 = vmul.f32 %v4395, %v5929
    %v6057 = vperm.slane %v5927, 0
    %v6059 = vadd.f32 %v5931, %v6057
    %v6060 = vadd.f32 %v5932, %v6057
    %v6061 = vadd.f32 %v5933, %v6057
    %v6062 = vadd.f32 %v5934, %v6057
    %v6063 = vadd.f32 %v5935, %v6057
    %v6064 = vadd.f32 %v5936, %v6057
    %v6065 = vadd.f32 %v5937, %v6057
    %v6066 = vadd.f32 %v5938, %v6057
    %v6067 = vadd.f32 %v5939, %v6057
    %v6068 = vadd.f32 %v5940, %v6057
    %v6069 = vadd.f32 %v5941, %v6057
    %v6070 = vadd.f32 %v5942, %v6057
    %v6071 = vadd.f32 %v5943, %v6057
    %v6072 = vadd.f32 %v5944, %v6057
    %v6073 = vadd.f32 %v5945, %v6057
    %v6074 = vadd.f32 %v5946, %v6057
    %v6075 = vadd.f32 %v5947, %v6057
    %v6076 = vadd.f32 %v5948, %v6057
    %v6077 = vadd.f32 %v5949, %v6057
    %v6078 = vadd.f32 %v5950, %v6057
    %v6079 = vadd.f32 %v5951, %v6057
    %v6080 = vadd.f32 %v5952, %v6057
    %v6081 = vadd.f32 %v5953, %v6057
    %v6082 = vadd.f32 %v5954, %v6057
    %v6083 = vadd.f32 %v5955, %v6057
    %v6084 = vadd.f32 %v5956, %v6057
    %v6085 = vadd.f32 %v5957, %v6057
    %v6086 = vadd.f32 %v5958, %v6057
    %v6087 = vadd.f32 %v5959, %v6057
    %v6088 = vadd.f32 %v5960, %v6057
    %v6089 = vadd.f32 %v5961, %v6057
    %v6090 = vadd.f32 %v5962, %v6057
    %v6091 = vadd.f32 %v5963, %v6057
    %v6092 = vadd.f32 %v5964, %v6057
    %v6093 = vadd.f32 %v5965, %v6057
    %v6094 = vadd.f32 %v5966, %v6057
    %v6095 = vadd.f32 %v5967, %v6057
    %v6096 = vadd.f32 %v5968, %v6057
    %v6097 = vadd.f32 %v5969, %v6057
    %v6098 = vadd.f32 %v5970, %v6057
    %v6099 = vadd.f32 %v5971, %v6057
    %v6100 = vadd.f32 %v5972, %v6057
    %v6101 = vadd.f32 %v5973, %v6057
    %v6102 = vadd.f32 %v5974, %v6057
    %v6103 = vadd.f32 %v5975, %v6057
    %v6104 = vadd.f32 %v5976, %v6057
    %v6105 = vadd.f32 %v5977, %v6057
    %v6106 = vadd.f32 %v5978, %v6057
    %v6107 = vadd.f32 %v5979, %v6057
    %v6108 = vadd.f32 %v5980, %v6057
    %v6109 = vadd.f32 %v5981, %v6057
    %v6110 = vadd.f32 %v5982, %v6057
    %v6111 = vadd.f32 %v5983, %v6057
    %v6112 = vadd.f32 %v5984, %v6057
    %v6113 = vadd.f32 %v5985, %v6057
    %v6114 = vadd.f32 %v5986, %v6057
    %v6115 = vadd.f32 %v5987, %v6057
    %v6116 = vadd.f32 %v5988, %v6057
    %v6117 = vadd.f32 %v5989, %v6057
    %v6118 = vadd.f32 %v5990, %v6057
    %v6119 = vadd.f32 %v5991, %v6057
    %v6120 = vadd.f32 %v5992, %v6057
    %v6121 = vadd.f32 %v5993, %v6057
    %v6122 = vadd.f32 %v5994, %v6057
    %v6123 = vadd.f32 %v5995, %v6057
    %v6124 = vadd.f32 %v5996, %v6057
    %v6125 = vadd.f32 %v5997, %v6057
    %v6126 = vadd.f32 %v5998, %v6057
    %v6127 = vadd.f32 %v5999, %v6057
    %v6128 = vadd.f32 %v6000, %v6057
    %v6129 = vadd.f32 %v6001, %v6057
    %v6130 = vadd.f32 %v6002, %v6057
    %v6131 = vadd.f32 %v6003, %v6057
    %v6132 = vadd.f32 %v6004, %v6057
    %v6133 = vadd.f32 %v6005, %v6057
    %v6134 = vadd.f32 %v6006, %v6057
    %v6135 = vadd.f32 %v6007, %v6057
    %v6136 = vadd.f32 %v6008, %v6057
    %v6137 = vadd.f32 %v6009, %v6057
    %v6138 = vadd.f32 %v6010, %v6057
    %v6139 = vadd.f32 %v6011, %v6057
    %v6140 = vadd.f32 %v6012, %v6057
    %v6141 = vadd.f32 %v6013, %v6057
    %v6142 = vadd.f32 %v6014, %v6057
    %v6143 = vadd.f32 %v6015, %v6057
    %v6144 = vadd.f32 %v6016, %v6057
    %v6145 = vadd.f32 %v6017, %v6057
    %v6146 = vadd.f32 %v6018, %v6057
    %v6147 = vadd.f32 %v6019, %v6057
    %v6148 = vadd.f32 %v6020, %v6057
    %v6149 = vadd.f32 %v6021, %v6057
    %v6150 = vadd.f32 %v6022, %v6057
    %v6151 = vadd.f32 %v6023, %v6057
    %v6152 = vadd.f32 %v6024, %v6057
    %v6153 = vadd.f32 %v6025, %v6057
    %v6154 = vadd.f32 %v6026, %v6057
    %v6155 = vadd.f32 %v6027, %v6057
    %v6156 = vadd.f32 %v6028, %v6057
    %v6157 = vadd.f32 %v6029, %v6057
    %v6158 = vadd.f32 %v6030, %v6057
    %v6159 = vadd.f32 %v6031, %v6057
    %v6160 = vadd.f32 %v6032, %v6057
    %v6161 = vadd.f32 %v6033, %v6057
    %v6162 = vadd.f32 %v6034, %v6057
    %v6163 = vadd.f32 %v6035, %v6057
    %v6164 = vadd.f32 %v6036, %v6057
    %v6165 = vadd.f32 %v6037, %v6057
    %v6166 = vadd.f32 %v6038, %v6057
    %v6167 = vadd.f32 %v6039, %v6057
    %v6168 = vadd.f32 %v6040, %v6057
    %v6169 = vadd.f32 %v6041, %v6057
    %v6170 = vadd.f32 %v6042, %v6057
    %v6171 = vadd.f32 %v6043, %v6057
    %v6172 = vadd.f32 %v6044, %v6057
    %v6173 = vadd.f32 %v6045, %v6057
    %v6174 = vadd.f32 %v6046, %v6057
    %v6175 = vadd.f32 %v6047, %v6057
    %v6176 = vadd.f32 %v6048, %v6057
    %v6177 = vadd.f32 %v6049, %v6057
    %v6178 = vadd.f32 %v6050, %v6057
    %v6179 = vadd.f32 %v6051, %v6057
    %v6180 = vadd.f32 %v6052, %v6057
    %v6181 = vadd.f32 %v6053, %v6057
    %v6182 = vadd.f32 %v6054, %v6057
    %v6183 = vadd.f32 %v6055, %v6057
    %v6184 = vmax.f32 %v6059, 0.0
    %v6185 = vmax.f32 %v6060, 0.0
    %v6186 = vmax.f32 %v6061, 0.0
    %v6187 = vmax.f32 %v6062, 0.0
    %v6188 = vmax.f32 %v6063, 0.0
    %v6189 = vmax.f32 %v6064, 0.0
    %v6190 = vmax.f32 %v6065, 0.0
    %v6191 = vmax.f32 %v6066, 0.0
    %v6192 = vmax.f32 %v6067, 0.0
    %v6193 = vmax.f32 %v6068, 0.0
    %v6194 = vmax.f32 %v6069, 0.0
    %v6195 = vmax.f32 %v6070, 0.0
    %v6196 = vmax.f32 %v6071, 0.0
    %v6197 = vmax.f32 %v6072, 0.0
    %v6198 = vmax.f32 %v6073, 0.0
    %v6199 = vmax.f32 %v6074, 0.0
    %v6200 = vmax.f32 %v6075, 0.0
    %v6201 = vmax.f32 %v6076, 0.0
    %v6202 = vmax.f32 %v6077, 0.0
    %v6203 = vmax.f32 %v6078, 0.0
    %v6204 = vmax.f32 %v6079, 0.0
    %v6205 = vmax.f32 %v6080, 0.0
    %v6206 = vmax.f32 %v6081, 0.0
    %v6207 = vmax.f32 %v6082, 0.0
    %v6208 = vmax.f32 %v6083, 0.0
    %v6209 = vmax.f32 %v6084, 0.0
    %v6210 = vmax.f32 %v6085, 0.0
    %v6211 = vmax.f32 %v6086, 0.0
    %v6212 = vmax.f32 %v6087, 0.0
    %v6213 = vmax.f32 %v6088, 0.0
    %v6214 = vmax.f32 %v6089, 0.0
    %v6215 = vmax.f32 %v6090, 0.0
    %v6216 = vmax.f32 %v6091, 0.0
    %v6217 = vmax.f32 %v6092, 0.0
    %v6218 = vmax.f32 %v6093, 0.0
    %v6219 = vmax.f32 %v6094, 0.0
    %v6220 = vmax.f32 %v6095, 0.0
    %v6221 = vmax.f32 %v6096, 0.0
    %v6222 = vmax.f32 %v6097, 0.0
    %v6223 = vmax.f32 %v6098, 0.0
    %v6224 = vmax.f32 %v6099, 0.0
    %v6225 = vmax.f32 %v6100, 0.0
    %v6226 = vmax.f32 %v6101, 0.0
    %v6227 = vmax.f32 %v6102, 0.0
    %v6228 = vmax.f32 %v6103, 0.0
    %v6229 = vmax.f32 %v6104, 0.0
    %v6230 = vmax.f32 %v6105, 0.0
    %v6231 = vmax.f32 %v6106, 0.0
    %v6232 = vmax.f32 %v6107, 0.0
    %v6233 = vmax.f32 %v6108, 0.0
    %v6234 = vmax.f32 %v6109, 0.0
    %v6235 = vmax.f32 %v6110, 0.0
    %v6236 = vmax.f32 %v6111, 0.0
    %v6237 = vmax.f32 %v6112, 0.0
    %v6238 = vmax.f32 %v6113, 0.0
    %v6239 = vmax.f32 %v6114, 0.0
    %v6240 = vmax.f32 %v6115, 0.0
    %v6241 = vmax.f32 %v6116, 0.0
    %v6242 = vmax.f32 %v6117, 0.0
    %v6243 = vmax.f32 %v6118, 0.0
    %v6244 = vmax.f32 %v6119, 0.0
    %v6245 = vmax.f32 %v6120, 0.0
    %v6246 = vmax.f32 %v6121, 0.0
    %v6247 = vmax.f32 %v6122, 0.0
    %v6248 = vmax.f32 %v6123, 0.0
    %v6249 = vmax.f32 %v6124, 0.0
    %v6250 = vmax.f32 %v6125, 0.0
    %v6251 = vmax.f32 %v6126, 0.0
    %v6252 = vmax.f32 %v6127, 0.0
    %v6253 = vmax.f32 %v6128, 0.0
    %v6254 = vmax.f32 %v6129, 0.0
    %v6255 = vmax.f32 %v6130, 0.0
    %v6256 = vmax.f32 %v6131, 0.0
    %v6257 = vmax.f32 %v6132, 0.0
    %v6258 = vmax.f32 %v6133, 0.0
    %v6259 = vmax.f32 %v6134, 0.0
    %v6260 = vmax.f32 %v6135, 0.0
    %v6261 = vmax.f32 %v6136, 0.0
    %v6262 = vmax.f32 %v6137, 0.0
    %v6263 = vmax.f32 %v6138, 0.0
    %v6264 = vmax.f32 %v6139, 0.0
    %v6265 = vmax.f32 %v6140, 0.0
    %v6266 = vmax.f32 %v6141, 0.0
    %v6267 = vmax.f32 %v6142, 0.0
    %v6268 = vmax.f32 %v6143, 0.0
    %v6269 = vmax.f32 %v6144, 0.0
    %v6270 = vmax.f32 %v6145, 0.0
    %v6271 = vmax.f32 %v6146, 0.0
    %v6272 = vmax.f32 %v6147, 0.0
    %v6273 = vmax.f32 %v6148, 0.0
    %v6274 = vmax.f32 %v6149, 0.0
    %v6275 = vmax.f32 %v6150, 0.0
    %v6276 = vmax.f32 %v6151, 0.0
    %v6277 = vmax.f32 %v6152, 0.0
    %v6278 = vmax.f32 %v6153, 0.0
    %v6279 = vmax.f32 %v6154, 0.0
    %v6280 = vmax.f32 %v6155, 0.0
    %v6281 = vmax.f32 %v6156, 0.0
    %v6282 = vmax.f32 %v6157, 0.0
    %v6283 = vmax.f32 %v6158, 0.0
    %v6284 = vmax.f32 %v6159, 0.0
    %v6285 = vmax.f32 %v6160, 0.0
    %v6286 = vmax.f32 %v6161, 0.0
    %v6287 = vmax.f32 %v6162, 0.0
    %v6288 = vmax.f32 %v6163, 0.0
    %v6289 = vmax.f32 %v6164, 0.0
    %v6290 = vmax.f32 %v6165, 0.0
    %v6291 = vmax.f32 %v6166, 0.0
    %v6292 = vmax.f32 %v6167, 0.0
    %v6293 = vmax.f32 %v6168, 0.0
    %v6294 = vmax.f32 %v6169, 0.0
    %v6295 = vmax.f32 %v6170, 0.0
    %v6296 = vmax.f32 %v6171, 0.0
    %v6297 = vmax.f32 %v6172, 0.0
    %v6298 = vmax.f32 %v6173, 0.0
    %v6299 = vmax.f32 %v6174, 0.0
    %v6300 = vmax.f32 %v6175, 0.0
    %v6301 = vmax.f32 %v6176, 0.0
    %v6302 = vmax.f32 %v6177, 0.0
    %v6303 = vmax.f32 %v6178, 0.0
    %v6304 = vmax.f32 %v6179, 0.0
    %v6305 = vmax.f32 %v6180, 0.0
    %v6306 = vmax.f32 %v6181, 0.0
    %v6307 = vmax.f32 %v6182, 0.0
    %v6308 = vmax.f32 %v6183, 0.0
    %vm6434 = vcmask 1046528
    %v6435 = vrot.slane %v6184, 1
    %v6436 = vrot.slane %v6185, 1
    %v6437 = vsel %vm6434, %v6435, %v6436
    %v6438 = vrot.slane %v6186, 1
    %v6439 = vsel %vm6434, %v6436, %v6438
    %v6440 = vrot.slane %v6187, 1
    %v6441 = vsel %vm6434, %v6438, %v6440
    %v6442 = vrot.slane %v6188, 1
    %v6443 = vsel %vm6434, %v6440, %v6442
    %v6444 = vrot.slane %v6189, 1
    %v6445 = vsel %vm6434, %v6442, %v6444
    %v6446 = vrot.slane %v6190, 1
    %v6447 = vsel %vm6434, %v6444, %v6446
    %v6448 = vrot.slane %v6191, 1
    %v6449 = vsel %vm6434, %v6446, %v6448
    %v6450 = vrot.slane %v6192, 1
    %v6451 = vsel %vm6434, %v6448, %v6450
    %v6452 = vrot.slane %v6193, 1
    %v6453 = vsel %vm6434, %v6450, %v6452
    %v6454 = vrot.slane %v6194, 1
    %v6455 = vsel %vm6434, %v6452, %v6454
    %v6456 = vrot.slane %v6195, 1
    %v6457 = vsel %vm6434, %v6454, %v6456
    %v6458 = vrot.slane %v6196, 1
    %v6459 = vsel %vm6434, %v6456, %v6458
    %v6460 = vrot.slane %v6197, 1
    %v6461 = vsel %vm6434, %v6458, %v6460
    %v6462 = vrot.slane %v6198, 1
    %v6463 = vsel %vm6434, %v6460, %v6462
    %v6464 = vrot.slane %v6199, 1
    %v6465 = vsel %vm6434, %v6462, %v6464
    %v6466 = vrot.slane %v6200, 1
    %v6467 = vsel %vm6434, %v6464, %v6466
    %v6468 = vrot.slane %v6201, 1
    %v6469 = vsel %vm6434, %v6466, %v6468
    %v6470 = vrot.slane %v6202, 1
    %v6471 = vsel %vm6434, %v6468, %v6470
    %v6472 = vrot.slane %v6203, 1
    %v6473 = vsel %vm6434, %v6470, %v6472
    %v6474 = vrot.slane %v6204, 1
    %v6475 = vsel %vm6434, %v6472, %v6474
    %v6476 = vrot.slane %v6205, 1
    %v6477 = vsel %vm6434, %v6474, %v6476
    %v6478 = vrot.slane %v6206, 1
    %v6479 = vsel %vm6434, %v6476, %v6478
    %v6480 = vrot.slane %v6207, 1
    %v6481 = vsel %vm6434, %v6478, %v6480
    %v6482 = vrot.slane %v6208, 1
    %v6483 = vsel %vm6434, %v6480, %v6482
    %v6484 = vrot.slane %v6209, 1
    %v6485 = vsel %vm6434, %v6482, %v6484
    %v6486 = vrot.slane %v6210, 1
    %v6487 = vsel %vm6434, %v6484, %v6486
    %v6488 = vrot.slane %v6211, 1
    %v6489 = vsel %vm6434, %v6486, %v6488
    %v6490 = vrot.slane %v6212, 1
    %v6491 = vsel %vm6434, %v6488, %v6490
    %v6492 = vrot.slane %v6213, 1
    %v6493 = vsel %vm6434, %v6490, %v6492
    %v6494 = vrot.slane %v6214, 1
    %v6495 = vsel %vm6434, %v6492, %v6494
    %v6496 = vrot.slane %v6215, 1
    %v6497 = vsel %vm6434, %v6494, %v6496
    %v6498 = vrot.slane %v6216, 1
    %v6499 = vsel %vm6434, %v6496, %v6498
    %v6500 = vrot.slane %v6217, 1
    %v6501 = vsel %vm6434, %v6498, %v6500
    %v6502 = vrot.slane %v6218, 1
    %v6503 = vsel %vm6434, %v6500, %v6502
    %v6504 = vrot.slane %v6219, 1
    %v6505 = vsel %vm6434, %v6502, %v6504
    %v6506 = vrot.slane %v6220, 1
    %v6507 = vsel %vm6434, %v6504, %v6506
    %v6508 = vrot.slane %v6221, 1
    %v6509 = vsel %vm6434, %v6506, %v6508
    %v6510 = vrot.slane %v6222, 1
    %v6511 = vsel %vm6434, %v6508, %v6510
    %v6512 = vrot.slane %v6223, 1
    %v6513 = vsel %vm6434, %v6510, %v6512
    %v6514 = vrot.slane %v6224, 1
    %v6515 = vsel %vm6434, %v6512, %v6514
    %v6516 = vrot.slane %v6225, 1
    %v6517 = vsel %vm6434, %v6514, %v6516
    %v6518 = vrot.slane %v6226, 1
    %v6519 = vsel %vm6434, %v6516, %v6518
    %v6520 = vrot.slane %v6227, 1
    %v6521 = vsel %vm6434, %v6518, %v6520
    %v6522 = vrot.slane %v6228, 1
    %v6523 = vsel %vm6434, %v6520, %v6522
    %v6524 = vrot.slane %v6229, 1
    %v6525 = vsel %vm6434, %v6522, %v6524
    %v6526 = vrot.slane %v6230, 1
    %v6527 = vsel %vm6434, %v6524, %v6526
    %v6528 = vrot.slane %v6231, 1
    %v6529 = vsel %vm6434, %v6526, %v6528
    %v6530 = vrot.slane %v6232, 1
    %v6531 = vsel %vm6434, %v6528, %v6530
    %v6532 = vrot.slane %v6233, 1
    %v6533 = vsel %vm6434, %v6530, %v6532
    %v6534 = vrot.slane %v6234, 1
    %v6535 = vsel %vm6434, %v6532, %v6534
    %v6536 = vrot.slane %v6235, 1
    %v6537 = vsel %vm6434, %v6534, %v6536
    %v6538 = vrot.slane %v6236, 1
    %v6539 = vsel %vm6434, %v6536, %v6538
    %v6540 = vrot.slane %v6237, 1
    %v6541 = vsel %vm6434, %v6538, %v6540
    %v6542 = vrot.slane %v6238, 1
    %v6543 = vsel %vm6434, %v6540, %v6542
    %v6544 = vrot.slane %v6239, 1
    %v6545 = vsel %vm6434, %v6542, %v6544
    %v6546 = vrot.slane %v6240, 1
    %v6547 = vsel %vm6434, %v6544, %v6546
    %v6548 = vrot.slane %v6241, 1
    %v6549 = vsel %vm6434, %v6546, %v6548
    %v6550 = vrot.slane %v6242, 1
    %v6551 = vsel %vm6434, %v6548, %v6550
    %v6552 = vrot.slane %v6243, 1
    %v6553 = vsel %vm6434, %v6550, %v6552
    %v6554 = vrot.slane %v6244, 1
    %v6555 = vsel %vm6434, %v6552, %v6554
    %v6556 = vrot.slane %v6245, 1
    %v6557 = vsel %vm6434, %v6554, %v6556
    %v6558 = vrot.slane %v6246, 1
    %v6559 = vsel %vm6434, %v6556, %v6558
    %v6560 = vrot.slane %v6247, 1
    %v6561 = vsel %vm6434, %v6558, %v6560
    %v6562 = vrot.slane %v6248, 1
    %v6563 = vsel %vm6434, %v6560, %v6562
    %v6564 = vrot.slane %v6249, 1
    %v6565 = vsel %vm6434, %v6562, %v6564
    %v6566 = vrot.slane %v6250, 1
    %v6567 = vsel %vm6434, %v6564, %v6566
    %v6568 = vrot.slane %v6251, 1
    %v6569 = vsel %vm6434, %v6566, %v6568
    %v6570 = vrot.slane %v6252, 1
    %v6571 = vsel %vm6434, %v6568, %v6570
    %v6572 = vrot.slane %v6253, 1
    %v6573 = vsel %vm6434, %v6570, %v6572
    %v6574 = vrot.slane %v6254, 1
    %v6575 = vsel %vm6434, %v6572, %v6574
    %v6576 = vrot.slane %v6255, 1
    %v6577 = vsel %vm6434, %v6574, %v6576
    %v6578 = vrot.slane %v6256, 1
    %v6579 = vsel %vm6434, %v6576, %v6578
    %v6580 = vrot.slane %v6257, 1
    %v6581 = vsel %vm6434, %v6578, %v6580
    %v6582 = vrot.slane %v6258, 1
    %v6583 = vsel %vm6434, %v6580, %v6582
    %v6584 = vrot.slane %v6259, 1
    %v6585 = vsel %vm6434, %v6582, %v6584
    %v6586 = vrot.slane %v6260, 1
    %v6587 = vsel %vm6434, %v6584, %v6586
    %v6588 = vrot.slane %v6261, 1
    %v6589 = vsel %vm6434, %v6586, %v6588
    %v6590 = vrot.slane %v6262, 1
    %v6591 = vsel %vm6434, %v6588, %v6590
    %v6592 = vrot.slane %v6263, 1
    %v6593 = vsel %vm6434, %v6590, %v6592
    %v6594 = vrot.slane %v6264, 1
    %v6595 = vsel %vm6434, %v6592, %v6594
    %v6596 = vrot.slane %v6265, 1
    %v6597 = vsel %vm6434, %v6594, %v6596
    %v6598 = vrot.slane %v6266, 1
    %v6599 = vsel %vm6434, %v6596, %v6598
    %v6600 = vrot.slane %v6267, 1
    %v6601 = vsel %vm6434, %v6598, %v6600
    %v6602 = vrot.slane %v6268, 1
    %v6603 = vsel %vm6434, %v6600, %v6602
    %v6604 = vrot.slane %v6269, 1
    %v6605 = vsel %vm6434, %v6602, %v6604
    %v6606 = vrot.slane %v6270, 1
    %v6607 = vsel %vm6434, %v6604, %v6606
    %v6608 = vrot.slane %v6271, 1
    %v6609 = vsel %vm6434, %v6606, %v6608
    %v6610 = vrot.slane %v6272, 1
    %v6611 = vsel %vm6434, %v6608, %v6610
    %v6612 = vrot.slane %v6273, 1
    %v6613 = vsel %vm6434, %v6610, %v6612
    %v6614 = vrot.slane %v6274, 1
    %v6615 = vsel %vm6434, %v6612, %v6614
    %v6616 = vrot.slane %v6275, 1
    %v6617 = vsel %vm6434, %v6614, %v6616
    %v6618 = vrot.slane %v6276, 1
    %v6619 = vsel %vm6434, %v6616, %v6618
    %v6620 = vrot.slane %v6277, 1
    %v6621 = vsel %vm6434, %v6618, %v6620
    %v6622 = vrot.slane %v6278, 1
    %v6623 = vsel %vm6434, %v6620, %v6622
    %v6624 = vrot.slane %v6279, 1
    %v6625 = vsel %vm6434, %v6622, %v6624
    %v6626 = vrot.slane %v6280, 1
    %v6627 = vsel %vm6434, %v6624, %v6626
    %v6628 = vrot.slane %v6281, 1
    %v6629 = vsel %vm6434, %v6626, %v6628
    %v6630 = vrot.slane %v6282, 1
    %v6631 = vsel %vm6434, %v6628, %v6630
    %v6632 = vrot.slane %v6283, 1
    %v6633 = vsel %vm6434, %v6630, %v6632
    %v6634 = vrot.slane %v6284, 1
    %v6635 = vsel %vm6434, %v6632, %v6634
    %v6636 = vrot.slane %v6285, 1
    %v6637 = vsel %vm6434, %v6634, %v6636
    %v6638 = vrot.slane %v6286, 1
    %v6639 = vsel %vm6434, %v6636, %v6638
    %v6640 = vrot.slane %v6287, 1
    %v6641 = vsel %vm6434, %v6638, %v6640
    %v6642 = vrot.slane %v6288, 1
    %v6643 = vsel %vm6434, %v6640, %v6642
    %v6644 = vrot.slane %v6289, 1
    %v6645 = vsel %vm6434, %v6642, %v6644
    %v6646 = vrot.slane %v6290, 1
    %v6647 = vsel %vm6434, %v6644, %v6646
    %v6648 = vrot.slane %v6291, 1
    %v6649 = vsel %vm6434, %v6646, %v6648
    %v6650 = vrot.slane %v6292, 1
    %v6651 = vsel %vm6434, %v6648, %v6650
    %v6652 = vrot.slane %v6293, 1
    %v6653 = vsel %vm6434, %v6650, %v6652
    %v6654 = vrot.slane %v6294, 1
    %v6655 = vsel %vm6434, %v6652, %v6654
    %v6656 = vrot.slane %v6295, 1
    %v6657 = vsel %vm6434, %v6654, %v6656
    %v6658 = vrot.slane %v6296, 1
    %v6659 = vsel %vm6434, %v6656, %v6658
    %v6660 = vrot.slane %v6297, 1
    %v6661 = vsel %vm6434, %v6658, %v6660
    %v6662 = vrot.slane %v6298, 1
    %v6663 = vsel %vm6434, %v6660, %v6662
    %v6664 = vrot.slane %v6299, 1
    %v6665 = vsel %vm6434, %v6662, %v6664
    %v6666 = vrot.slane %v6300, 1
    %v6667 = vsel %vm6434, %v6664, %v6666
    %v6668 = vrot.slane %v6301, 1
    %v6669 = vsel %vm6434, %v6666, %v6668
    %v6670 = vrot.slane %v6302, 1
    %v6671 = vsel %vm6434, %v6668, %v6670
    %v6672 = vrot.slane %v6303, 1
    %v6673 = vsel %vm6434, %v6670, %v6672
    %v6674 = vrot.slane %v6304, 1
    %v6675 = vsel %vm6434, %v6672, %v6674
    %v6676 = vrot.slane %v6305, 1
    %v6677 = vsel %vm6434, %v6674, %v6676
    %v6678 = vrot.slane %v6306, 1
    %v6679 = vsel %vm6434, %v6676, %v6678
    %v6680 = vrot.slane %v6307, 1
    %v6681 = vsel %vm6434, %v6678, %v6680
    %v6682 = vrot.slane %v6308, 1
    %v6683 = vsel %vm6434, %v6680, %v6682
    %v6809 = vmax.f32 %v6184, %v6437
    %v6810 = vmax.f32 %v6185, %v6439
    %v6811 = vmax.f32 %v6186, %v6441
    %v6812 = vmax.f32 %v6187, %v6443
    %v6813 = vmax.f32 %v6188, %v6445
    %v6814 = vmax.f32 %v6189, %v6447
    %v6815 = vmax.f32 %v6190, %v6449
    %v6816 = vmax.f32 %v6191, %v6451
    %v6817 = vmax.f32 %v6192, %v6453
    %v6818 = vmax.f32 %v6193, %v6455
    %v6819 = vmax.f32 %v6194, %v6457
    %v6820 = vmax.f32 %v6195, %v6459
    %v6821 = vmax.f32 %v6196, %v6461
    %v6822 = vmax.f32 %v6197, %v6463
    %v6823 = vmax.f32 %v6198, %v6465
    %v6824 = vmax.f32 %v6199, %v6467
    %v6825 = vmax.f32 %v6200, %v6469
    %v6826 = vmax.f32 %v6201, %v6471
    %v6827 = vmax.f32 %v6202, %v6473
    %v6828 = vmax.f32 %v6203, %v6475
    %v6829 = vmax.f32 %v6204, %v6477
    %v6830 = vmax.f32 %v6205, %v6479
    %v6831 = vmax.f32 %v6206, %v6481
    %v6832 = vmax.f32 %v6207, %v6483
    %v6833 = vmax.f32 %v6208, %v6485
    %v6834 = vmax.f32 %v6209, %v6487
    %v6835 = vmax.f32 %v6210, %v6489
    %v6836 = vmax.f32 %v6211, %v6491
    %v6837 = vmax.f32 %v6212, %v6493
    %v6838 = vmax.f32 %v6213, %v6495
    %v6839 = vmax.f32 %v6214, %v6497
    %v6840 = vmax.f32 %v6215, %v6499
    %v6841 = vmax.f32 %v6216, %v6501
    %v6842 = vmax.f32 %v6217, %v6503
    %v6843 = vmax.f32 %v6218, %v6505
    %v6844 = vmax.f32 %v6219, %v6507
    %v6845 = vmax.f32 %v6220, %v6509
    %v6846 = vmax.f32 %v6221, %v6511
    %v6847 = vmax.f32 %v6222, %v6513
    %v6848 = vmax.f32 %v6223, %v6515
    %v6849 = vmax.f32 %v6224, %v6517
    %v6850 = vmax.f32 %v6225, %v6519
    %v6851 = vmax.f32 %v6226, %v6521
    %v6852 = vmax.f32 %v6227, %v6523
    %v6853 = vmax.f32 %v6228, %v6525
    %v6854 = vmax.f32 %v6229, %v6527
    %v6855 = vmax.f32 %v6230, %v6529
    %v6856 = vmax.f32 %v6231, %v6531
    %v6857 = vmax.f32 %v6232, %v6533
    %v6858 = vmax.f32 %v6233, %v6535
    %v6859 = vmax.f32 %v6234, %v6537
    %v6860 = vmax.f32 %v6235, %v6539
    %v6861 = vmax.f32 %v6236, %v6541
    %v6862 = vmax.f32 %v6237, %v6543
    %v6863 = vmax.f32 %v6238, %v6545
    %v6864 = vmax.f32 %v6239, %v6547
    %v6865 = vmax.f32 %v6240, %v6549
    %v6866 = vmax.f32 %v6241, %v6551
    %v6867 = vmax.f32 %v6242, %v6553
    %v6868 = vmax.f32 %v6243, %v6555
    %v6869 = vmax.f32 %v6244, %v6557
    %v6870 = vmax.f32 %v6245, %v6559
    %v6871 = vmax.f32 %v6246, %v6561
    %v6872 = vmax.f32 %v6247, %v6563
    %v6873 = vmax.f32 %v6248, %v6565
    %v6874 = vmax.f32 %v6249, %v6567
    %v6875 = vmax.f32 %v6250, %v6569
    %v6876 = vmax.f32 %v6251, %v6571
    %v6877 = vmax.f32 %v6252, %v6573
    %v6878 = vmax.f32 %v6253, %v6575
    %v6879 = vmax.f32 %v6254, %v6577
    %v6880 = vmax.f32 %v6255, %v6579
    %v6881 = vmax.f32 %v6256, %v6581
    %v6882 = vmax.f32 %v6257, %v6583
    %v6883 = vmax.f32 %v6258, %v6585
    %v6884 = vmax.f32 %v6259, %v6587
    %v6885 = vmax.f32 %v6260, %v6589
    %v6886 = vmax.f32 %v6261, %v6591
    %v6887 = vmax.f32 %v6262, %v6593
    %v6888 = vmax.f32 %v6263, %v6595
    %v6889 = vmax.f32 %v6264, %v6597
    %v6890 = vmax.f32 %v6265, %v6599
    %v6891 = vmax.f32 %v6266, %v6601
    %v6892 = vmax.f32 %v6267, %v6603
    %v6893 = vmax.f32 %v6268, %v6605
    %v6894 = vmax.f32 %v6269, %v6607
    %v6895 = vmax.f32 %v6270, %v6609
    %v6896 = vmax.f32 %v6271, %v6611
    %v6897 = vmax.f32 %v6272, %v6613
    %v6898 = vmax.f32 %v6273, %v6615
    %v6899 = vmax.f32 %v6274, %v6617
    %v6900 = vmax.f32 %v6275, %v6619
    %v6901 = vmax.f32 %v6276, %v6621
    %v6902 = vmax.f32 %v6277, %v6623
    %v6903 = vmax.f32 %v6278, %v6625
    %v6904 = vmax.f32 %v6279, %v6627
    %v6905 = vmax.f32 %v6280, %v6629
    %v6906 = vmax.f32 %v6281, %v6631
    %v6907 = vmax.f32 %v6282, %v6633
    %v6908 = vmax.f32 %v6283, %v6635
    %v6909 = vmax.f32 %v6284, %v6637
    %v6910 = vmax.f32 %v6285, %v6639
    %v6911 = vmax.f32 %v6286, %v6641
    %v6912 = vmax.f32 %v6287, %v6643
    %v6913 = vmax.f32 %v6288, %v6645
    %v6914 = vmax.f32 %v6289, %v6647
    %v6915 = vmax.f32 %v6290, %v6649
    %v6916 = vmax.f32 %v6291, %v6651
    %v6917 = vmax.f32 %v6292, %v6653
    %v6918 = vmax.f32 %v6293, %v6655
    %v6919 = vmax.f32 %v6294, %v6657
    %v6920 = vmax.f32 %v6295, %v6659
    %v6921 = vmax.f32 %v6296, %v6661
    %v6922 = vmax.f32 %v6297, %v6663
    %v6923 = vmax.f32 %v6298, %v6665
    %v6924 = vmax.f32 %v6299, %v6667
    %v6925 = vmax.f32 %v6300, %v6669
    %v6926 = vmax.f32 %v6301, %v6671
    %v6927 = vmax.f32 %v6302, %v6673
    %v6928 = vmax.f32 %v6303, %v6675
    %v6929 = vmax.f32 %v6304, %v6677
    %v6930 = vmax.f32 %v6305, %v6679
    %v6931 = vmax.f32 %v6306, %v6681
    %v6932 = vmax.f32 %v6307, %v6683
    %v6933 = vmax.f32 %v6308, %v6682
    %vm7059 = vcmask 1045504
    %v7060 = vrot.slane %v6809, 2
    %v7061 = vrot.slane %v6810, 2
    %v7062 = vsel %vm7059, %v7060, %v7061
    %v7063 = vrot.slane %v6811, 2
    %v7064 = vsel %vm7059, %v7061, %v7063
    %v7065 = vrot.slane %v6812, 2
    %v7066 = vsel %vm7059, %v7063, %v7065
    %v7067 = vrot.slane %v6813, 2
    %v7068 = vsel %vm7059, %v7065, %v7067
    %v7069 = vrot.slane %v6814, 2
    %v7070 = vsel %vm7059, %v7067, %v7069
    %v7071 = vrot.slane %v6815, 2
    %v7072 = vsel %vm7059, %v7069, %v7071
    %v7073 = vrot.slane %v6816, 2
    %v7074 = vsel %vm7059, %v7071, %v7073
    %v7075 = vrot.slane %v6817, 2
    %v7076 = vsel %vm7059, %v7073, %v7075
    %v7077 = vrot.slane %v6818, 2
    %v7078 = vsel %vm7059, %v7075, %v7077
    %v7079 = vrot.slane %v6819, 2
    %v7080 = vsel %vm7059, %v7077, %v7079
    %v7081 = vrot.slane %v6820, 2
    %v7082 = vsel %vm7059, %v7079, %v7081
    %v7083 = vrot.slane %v6821, 2
    %v7084 = vsel %vm7059, %v7081, %v7083
    %v7085 = vrot.slane %v6822, 2
    %v7086 = vsel %vm7059, %v7083, %v7085
    %v7087 = vrot.slane %v6823, 2
    %v7088 = vsel %vm7059, %v7085, %v7087
    %v7089 = vrot.slane %v6824, 2
    %v7090 = vsel %vm7059, %v7087, %v7089
    %v7091 = vrot.slane %v6825, 2
    %v7092 = vsel %vm7059, %v7089, %v7091
    %v7093 = vrot.slane %v6826, 2
    %v7094 = vsel %vm7059, %v7091, %v7093
    %v7095 = vrot.slane %v6827, 2
    %v7096 = vsel %vm7059, %v7093, %v7095
    %v7097 = vrot.slane %v6828, 2
    %v7098 = vsel %vm7059, %v7095, %v7097
    %v7099 = vrot.slane %v6829, 2
    %v7100 = vsel %vm7059, %v7097, %v7099
    %v7101 = vrot.slane %v6830, 2
    %v7102 = vsel %vm7059, %v7099, %v7101
    %v7103 = vrot.slane %v6831, 2
    %v7104 = vsel %vm7059, %v7101, %v7103
    %v7105 = vrot.slane %v6832, 2
    %v7106 = vsel %vm7059, %v7103, %v7105
    %v7107 = vrot.slane %v6833, 2
    %v7108 = vsel %vm7059, %v7105, %v7107
    %v7109 = vrot.slane %v6834, 2
    %v7110 = vsel %vm7059, %v7107, %v7109
    %v7111 = vrot.slane %v6835, 2
    %v7112 = vsel %vm7059, %v7109, %v7111
    %v7113 = vrot.slane %v6836, 2
    %v7114 = vsel %vm7059, %v7111, %v7113
    %v7115 = vrot.slane %v6837, 2
    %v7116 = vsel %vm7059, %v7113, %v7115
    %v7117 = vrot.slane %v6838, 2
    %v7118 = vsel %vm7059, %v7115, %v7117
    %v7119 = vrot.slane %v6839, 2
    %v7120 = vsel %vm7059, %v7117, %v7119
    %v7121 = vrot.slane %v6840, 2
    %v7122 = vsel %vm7059, %v7119, %v7121
    %v7123 = vrot.slane %v6841, 2
    %v7124 = vsel %vm7059, %v7121, %v7123
    %v7125 = vrot.slane %v6842, 2
    %v7126 = vsel %vm7059, %v7123, %v7125
    %v7127 = vrot.slane %v6843, 2
    %v7128 = vsel %vm7059, %v7125, %v7127
    %v7129 = vrot.slane %v6844, 2
    %v7130 = vsel %vm7059, %v7127, %v7129
    %v7131 = vrot.slane %v6845, 2
    %v7132 = vsel %vm7059, %v7129, %v7131
    %v7133 = vrot.slane %v6846, 2
    %v7134 = vsel %vm7059, %v7131, %v7133
    %v7135 = vrot.slane %v6847, 2
    %v7136 = vsel %vm7059, %v7133, %v7135
    %v7137 = vrot.slane %v6848, 2
    %v7138 = vsel %vm7059, %v7135, %v7137
    %v7139 = vrot.slane %v6849, 2
    %v7140 = vsel %vm7059, %v7137, %v7139
    %v7141 = vrot.slane %v6850, 2
    %v7142 = vsel %vm7059, %v7139, %v7141
    %v7143 = vrot.slane %v6851, 2
    %v7144 = vsel %vm7059, %v7141, %v7143
    %v7145 = vrot.slane %v6852, 2
    %v7146 = vsel %vm7059, %v7143, %v7145
    %v7147 = vrot.slane %v6853, 2
    %v7148 = vsel %vm7059, %v7145, %v7147
    %v7149 = vrot.slane %v6854, 2
    %v7150 = vsel %vm7059, %v7147, %v7149
    %v7151 = vrot.slane %v6855, 2
    %v7152 = vsel %vm7059, %v7149, %v7151
    %v7153 = vrot.slane %v6856, 2
    %v7154 = vsel %vm7059, %v7151, %v7153
    %v7155 = vrot.slane %v6857, 2
    %v7156 = vsel %vm7059, %v7153, %v7155
    %v7157 = vrot.slane %v6858, 2
    %v7158 = vsel %vm7059, %v7155, %v7157
    %v7159 = vrot.slane %v6859, 2
    %v7160 = vsel %vm7059, %v7157, %v7159
    %v7161 = vrot.slane %v6860, 2
    %v7162 = vsel %vm7059, %v7159, %v7161
    %v7163 = vrot.slane %v6861, 2
    %v7164 = vsel %vm7059, %v7161, %v7163
    %v7165 = vrot.slane %v6862, 2
    %v7166 = vsel %vm7059, %v7163, %v7165
    %v7167 = vrot.slane %v6863, 2
    %v7168 = vsel %vm7059, %v7165, %v7167
    %v7169 = vrot.slane %v6864, 2
    %v7170 = vsel %vm7059, %v7167, %v7169
    %v7171 = vrot.slane %v6865, 2
    %v7172 = vsel %vm7059, %v7169, %v7171
    %v7173 = vrot.slane %v6866, 2
    %v7174 = vsel %vm7059, %v7171, %v7173
    %v7175 = vrot.slane %v6867, 2
    %v7176 = vsel %vm7059, %v7173, %v7175
    %v7177 = vrot.slane %v6868, 2
    %v7178 = vsel %vm7059, %v7175, %v7177
    %v7179 = vrot.slane %v6869, 2
    %v7180 = vsel %vm7059, %v7177, %v7179
    %v7181 = vrot.slane %v6870, 2
    %v7182 = vsel %vm7059, %v7179, %v7181
    %v7183 = vrot.slane %v6871, 2
    %v7184 = vsel %vm7059, %v7181, %v7183
    %v7185 = vrot.slane %v6872, 2
    %v7186 = vsel %vm7059, %v7183, %v7185
    %v7187 = vrot.slane %v6873, 2
    %v7188 = vsel %vm7059, %v7185, %v7187
    %v7189 = vrot.slane %v6874, 2
    %v7190 = vsel %vm7059, %v7187, %v7189
    %v7191 = vrot.slane %v6875, 2
    %v7192 = vsel %vm7059, %v7189, %v7191
    %v7193 = vrot.slane %v6876, 2
    %v7194 = vsel %vm7059, %v7191, %v7193
    %v7195 = vrot.slane %v6877, 2
    %v7196 = vsel %vm7059, %v7193, %v7195
    %v7197 = vrot.slane %v6878, 2
    %v7198 = vsel %vm7059, %v7195, %v7197
    %v7199 = vrot.slane %v6879, 2
    %v7200 = vsel %vm7059, %v7197, %v7199
    %v7201 = vrot.slane %v6880, 2
    %v7202 = vsel %vm7059, %v7199, %v7201
    %v7203 = vrot.slane %v6881, 2
    %v7204 = vsel %vm7059, %v7201, %v7203
    %v7205 = vrot.slane %v6882, 2
    %v7206 = vsel %vm7059, %v7203, %v7205
    %v7207 = vrot.slane %v6883, 2
    %v7208 = vsel %vm7059, %v7205, %v7207
    %v7209 = vrot.slane %v6884, 2
    %v7210 = vsel %vm7059, %v7207, %v7209
    %v7211 = vrot.slane %v6885, 2
    %v7212 = vsel %vm7059, %v7209, %v7211
    %v7213 = vrot.slane %v6886, 2
    %v7214 = vsel %vm7059, %v7211, %v7213
    %v7215 = vrot.slane %v6887, 2
    %v7216 = vsel %vm7059, %v7213, %v7215
    %v7217 = vrot.slane %v6888, 2
    %v7218 = vsel %vm7059, %v7215, %v7217
    %v7219 = vrot.slane %v6889, 2
    %v7220 = vsel %vm7059, %v7217, %v7219
    %v7221 = vrot.slane %v6890, 2
    %v7222 = vsel %vm7059, %v7219, %v7221
    %v7223 = vrot.slane %v6891, 2
    %v7224 = vsel %vm7059, %v7221, %v7223
    %v7225 = vrot.slane %v6892, 2
    %v7226 = vsel %vm7059, %v7223, %v7225
    %v7227 = vrot.slane %v6893, 2
    %v7228 = vsel %vm7059, %v7225, %v7227
    %v7229 = vrot.slane %v6894, 2
    %v7230 = vsel %vm7059, %v7227, %v7229
    %v7231 = vrot.slane %v6895, 2
    %v7232 = vsel %vm7059, %v7229, %v7231
    %v7233 = vrot.slane %v6896, 2
    %v7234 = vsel %vm7059, %v7231, %v7233
    %v7235 = vrot.slane %v6897, 2
    %v7236 = vsel %vm7059, %v7233, %v7235
    %v7237 = vrot.slane %v6898, 2
    %v7238 = vsel %vm7059, %v7235, %v7237
    %v7239 = vrot.slane %v6899, 2
    %v7240 = vsel %vm7059, %v7237, %v7239
    %v7241 = vrot.slane %v6900, 2
    %v7242 = vsel %vm7059, %v7239, %v7241
    %v7243 = vrot.slane %v6901, 2
    %v7244 = vsel %vm7059, %v7241, %v7243
    %v7245 = vrot.slane %v6902, 2
    %v7246 = vsel %vm7059, %v7243, %v7245
    %v7247 = vrot.slane %v6903, 2
    %v7248 = vsel %vm7059, %v7245, %v7247
    %v7249 = vrot.slane %v6904, 2
    %v7250 = vsel %vm7059, %v7247, %v7249
    %v7251 = vrot.slane %v6905, 2
    %v7252 = vsel %vm7059, %v7249, %v7251
    %v7253 = vrot.slane %v6906, 2
    %v7254 = vsel %vm7059, %v7251, %v7253
    %v7255 = vrot.slane %v6907, 2
    %v7256 = vsel %vm7059, %v7253, %v7255
    %v7257 = vrot.slane %v6908, 2
    %v7258 = vsel %vm7059, %v7255, %v7257
    %v7259 = vrot.slane %v6909, 2
    %v7260 = vsel %vm7059, %v7257, %v7259
    %v7261 = vrot.slane %v6910, 2
    %v7262 = vsel %vm7059, %v7259, %v7261
    %v7263 = vrot.slane %v6911, 2
    %v7264 = vsel %vm7059, %v7261, %v7263
    %v7265 = vrot.slane %v6912, 2
    %v7266 = vsel %vm7059, %v7263, %v7265
    %v7267 = vrot.slane %v6913, 2
    %v7268 = vsel %vm7059, %v7265, %v7267
    %v7269 = vrot.slane %v6914, 2
    %v7270 = vsel %vm7059, %v7267, %v7269
    %v7271 = vrot.slane %v6915, 2
    %v7272 = vsel %vm7059, %v7269, %v7271
    %v7273 = vrot.slane %v6916, 2
    %v7274 = vsel %vm7059, %v7271, %v7273
    %v7275 = vrot.slane %v6917, 2
    %v7276 = vsel %vm7059, %v7273, %v7275
    %v7277 = vrot.slane %v6918, 2
    %v7278 = vsel %vm7059, %v7275, %v7277
    %v7279 = vrot.slane %v6919, 2
    %v7280 = vsel %vm7059, %v7277, %v7279
    %v7281 = vrot.slane %v6920, 2
    %v7282 = vsel %vm7059, %v7279, %v7281
    %v7283 = vrot.slane %v6921, 2
    %v7284 = vsel %vm7059, %v7281, %v7283
    %v7285 = vrot.slane %v6922, 2
    %v7286 = vsel %vm7059, %v7283, %v7285
    %v7287 = vrot.slane %v6923, 2
    %v7288 = vsel %vm7059, %v7285, %v7287
    %v7289 = vrot.slane %v6924, 2
    %v7290 = vsel %vm7059, %v7287, %v7289
    %v7291 = vrot.slane %v6925, 2
    %v7292 = vsel %vm7059, %v7289, %v7291
    %v7293 = vrot.slane %v6926, 2
    %v7294 = vsel %vm7059, %v7291, %v7293
    %v7295 = vrot.slane %v6927, 2
    %v7296 = vsel %vm7059, %v7293, %v7295
    %v7297 = vrot.slane %v6928, 2
    %v7298 = vsel %vm7059, %v7295, %v7297
    %v7299 = vrot.slane %v6929, 2
    %v7300 = vsel %vm7059, %v7297, %v7299
    %v7301 = vrot.slane %v6930, 2
    %v7302 = vsel %vm7059, %v7299, %v7301
    %v7303 = vrot.slane %v6931, 2
    %v7304 = vsel %vm7059, %v7301, %v7303
    %v7305 = vrot.slane %v6932, 2
    %v7306 = vsel %vm7059, %v7303, %v7305
    %v7307 = vrot.slane %v6933, 2
    %v7308 = vsel %vm7059, %v7305, %v7307
    %v7434 = vmax.f32 %v6809, %v7062
    %v7435 = vmax.f32 %v6810, %v7064
    %v7436 = vmax.f32 %v6811, %v7066
    %v7437 = vmax.f32 %v6812, %v7068
    %v7438 = vmax.f32 %v6813, %v7070
    %v7439 = vmax.f32 %v6814, %v7072
    %v7440 = vmax.f32 %v6815, %v7074
    %v7441 = vmax.f32 %v6816, %v7076
    %v7442 = vmax.f32 %v6817, %v7078
    %v7443 = vmax.f32 %v6818, %v7080
    %v7444 = vmax.f32 %v6819, %v7082
    %v7445 = vmax.f32 %v6820, %v7084
    %v7446 = vmax.f32 %v6821, %v7086
    %v7447 = vmax.f32 %v6822, %v7088
    %v7448 = vmax.f32 %v6823, %v7090
    %v7449 = vmax.f32 %v6824, %v7092
    %v7450 = vmax.f32 %v6825, %v7094
    %v7451 = vmax.f32 %v6826, %v7096
    %v7452 = vmax.f32 %v6827, %v7098
    %v7453 = vmax.f32 %v6828, %v7100
    %v7454 = vmax.f32 %v6829, %v7102
    %v7455 = vmax.f32 %v6830, %v7104
    %v7456 = vmax.f32 %v6831, %v7106
    %v7457 = vmax.f32 %v6832, %v7108
    %v7458 = vmax.f32 %v6833, %v7110
    %v7459 = vmax.f32 %v6834, %v7112
    %v7460 = vmax.f32 %v6835, %v7114
    %v7461 = vmax.f32 %v6836, %v7116
    %v7462 = vmax.f32 %v6837, %v7118
    %v7463 = vmax.f32 %v6838, %v7120
    %v7464 = vmax.f32 %v6839, %v7122
    %v7465 = vmax.f32 %v6840, %v7124
    %v7466 = vmax.f32 %v6841, %v7126
    %v7467 = vmax.f32 %v6842, %v7128
    %v7468 = vmax.f32 %v6843, %v7130
    %v7469 = vmax.f32 %v6844, %v7132
    %v7470 = vmax.f32 %v6845, %v7134
    %v7471 = vmax.f32 %v6846, %v7136
    %v7472 = vmax.f32 %v6847, %v7138
    %v7473 = vmax.f32 %v6848, %v7140
    %v7474 = vmax.f32 %v6849, %v7142
    %v7475 = vmax.f32 %v6850, %v7144
    %v7476 = vmax.f32 %v6851, %v7146
    %v7477 = vmax.f32 %v6852, %v7148
    %v7478 = vmax.f32 %v6853, %v7150
    %v7479 = vmax.f32 %v6854, %v7152
    %v7480 = vmax.f32 %v6855, %v7154
    %v7481 = vmax.f32 %v6856, %v7156
    %v7482 = vmax.f32 %v6857, %v7158
    %v7483 = vmax.f32 %v6858, %v7160
    %v7484 = vmax.f32 %v6859, %v7162
    %v7485 = vmax.f32 %v6860, %v7164
    %v7486 = vmax.f32 %v6861, %v7166
    %v7487 = vmax.f32 %v6862, %v7168
    %v7488 = vmax.f32 %v6863, %v7170
    %v7489 = vmax.f32 %v6864, %v7172
    %v7490 = vmax.f32 %v6865, %v7174
    %v7491 = vmax.f32 %v6866, %v7176
    %v7492 = vmax.f32 %v6867, %v7178
    %v7493 = vmax.f32 %v6868, %v7180
    %v7494 = vmax.f32 %v6869, %v7182
    %v7495 = vmax.f32 %v6870, %v7184
    %v7496 = vmax.f32 %v6871, %v7186
    %v7497 = vmax.f32 %v6872, %v7188
    %v7498 = vmax.f32 %v6873, %v7190
    %v7499 = vmax.f32 %v6874, %v7192
    %v7500 = vmax.f32 %v6875, %v7194
    %v7501 = vmax.f32 %v6876, %v7196
    %v7502 = vmax.f32 %v6877, %v7198
    %v7503 = vmax.f32 %v6878, %v7200
    %v7504 = vmax.f32 %v6879, %v7202
    %v7505 = vmax.f32 %v6880, %v7204
    %v7506 = vmax.f32 %v6881, %v7206
    %v7507 = vmax.f32 %v6882, %v7208
    %v7508 = vmax.f32 %v6883, %v7210
    %v7509 = vmax.f32 %v6884, %v7212
    %v7510 = vmax.f32 %v6885, %v7214
    %v7511 = vmax.f32 %v6886, %v7216
    %v7512 = vmax.f32 %v6887, %v7218
    %v7513 = vmax.f32 %v6888, %v7220
    %v7514 = vmax.f32 %v6889, %v7222
    %v7515 = vmax.f32 %v6890, %v7224
    %v7516 = vmax.f32 %v6891, %v7226
    %v7517 = vmax.f32 %v6892, %v7228
    %v7518 = vmax.f32 %v6893, %v7230
    %v7519 = vmax.f32 %v6894, %v7232
    %v7520 = vmax.f32 %v6895, %v7234
    %v7521 = vmax.f32 %v6896, %v7236
    %v7522 = vmax.f32 %v6897, %v7238
    %v7523 = vmax.f32 %v6898, %v7240
    %v7524 = vmax.f32 %v6899, %v7242
    %v7525 = vmax.f32 %v6900, %v7244
    %v7526 = vmax.f32 %v6901, %v7246
    %v7527 = vmax.f32 %v6902, %v7248
    %v7528 = vmax.f32 %v6903, %v7250
    %v7529 = vmax.f32 %v6904, %v7252
    %v7530 = vmax.f32 %v6905, %v7254
    %v7531 = vmax.f32 %v6906, %v7256
    %v7532 = vmax.f32 %v6907, %v7258
    %v7533 = vmax.f32 %v6908, %v7260
    %v7534 = vmax.f32 %v6909, %v7262
    %v7535 = vmax.f32 %v6910, %v7264
    %v7536 = vmax.f32 %v6911, %v7266
    %v7537 = vmax.f32 %v6912, %v7268
    %v7538 = vmax.f32 %v6913, %v7270
    %v7539 = vmax.f32 %v6914, %v7272
    %v7540 = vmax.f32 %v6915, %v7274
    %v7541 = vmax.f32 %v6916, %v7276
    %v7542 = vmax.f32 %v6917, %v7278
    %v7543 = vmax.f32 %v6918, %v7280
    %v7544 = vmax.f32 %v6919, %v7282
    %v7545 = vmax.f32 %v6920, %v7284
    %v7546 = vmax.f32 %v6921, %v7286
    %v7547 = vmax.f32 %v6922, %v7288
    %v7548 = vmax.f32 %v6923, %v7290
    %v7549 = vmax.f32 %v6924, %v7292
    %v7550 = vmax.f32 %v6925, %v7294
    %v7551 = vmax.f32 %v6926, %v7296
    %v7552 = vmax.f32 %v6927, %v7298
    %v7553 = vmax.f32 %v6928, %v7300
    %v7554 = vmax.f32 %v6929, %v7302
    %v7555 = vmax.f32 %v6930, %v7304
    %v7556 = vmax.f32 %v6931, %v7306
    %v7557 = vmax.f32 %v6932, %v7308
    %v7558 = vmax.f32 %v6933, %v7307
    %v7559 = vld [vmem:[%s6] sm:$0xff]
    %v7560 = vld [vmem:[%s6 + $0x8] sm:$0xff]
    %v7561 = vld [vmem:[%s6 + $0x10] sm:$0xff]
    %v7562 = vld [vmem:[%s6 + $0x18] sm:$0xff]
    %v7563 = vld [vmem:[%s6 + $0x20] sm:$0xff]
    %v7564 = vld [vmem:[%s6 + $0x28] sm:$0xff]
    %v7565 = vld [vmem:[%s6 + $0x30] sm:$0xff]
    %v7566 = vld [vmem:[%s6 + $0x38] sm:$0xff]
    %v7567 = vld [vmem:[%s6 + $0x40] sm:$0xff]
    %v7568 = vld [vmem:[%s6 + $0x48] sm:$0xff]
    %v7569 = vld [vmem:[%s6 + $0x50] sm:$0xff]
    %v7570 = vld [vmem:[%s6 + $0x58] sm:$0xff]
    %v7571 = vld [vmem:[%s6 + $0x60] sm:$0xff]
    %v7572 = vld [vmem:[%s6 + $0x68] sm:$0xff]
    %v7573 = vld [vmem:[%s6 + $0x70] sm:$0xff]
    %v7574 = vld [vmem:[%s6 + $0x78] sm:$0xff]
    %v7575 = vld [vmem:[%s6 + $0x80] sm:$0xff]
    %v7576 = vld [vmem:[%s6 + $0x88] sm:$0xff]
    %v7577 = vld [vmem:[%s6 + $0x90] sm:$0xff]
    %v7578 = vld [vmem:[%s6 + $0x98] sm:$0xff]
    %v7579 = vld [vmem:[%s6 + $0xa0] sm:$0xff]
    %v7580 = vld [vmem:[%s6 + $0xa8] sm:$0xff]
    %v7581 = vld [vmem:[%s6 + $0xb0] sm:$0xff]
    %v7582 = vld [vmem:[%s6 + $0xb8] sm:$0xff]
    %v7583 = vld [vmem:[%s6 + $0xc0] sm:$0xff]
    %v7584 = vld [vmem:[%s6 + $0xc8] sm:$0xff]
    %v7585 = vld [vmem:[%s6 + $0xd0] sm:$0xff]
    %v7586 = vld [vmem:[%s6 + $0xd8] sm:$0xff]
    %v7587 = vld [vmem:[%s6 + $0xe0] sm:$0xff]
    %v7588 = vld [vmem:[%s6 + $0xe8] sm:$0xff]
    %v7589 = vld [vmem:[%s6 + $0xf0] sm:$0xff]
    %v7590 = vld [vmem:[%s6 + $0xf8] sm:$0xff]
    %v7591 = vld [vmem:[%s6 + $0x100] sm:$0xff]
    %v7592 = vld [vmem:[%s6 + $0x108] sm:$0xff]
    %v7593 = vld [vmem:[%s6 + $0x110] sm:$0xff]
    %v7594 = vld [vmem:[%s6 + $0x118] sm:$0xff]
    %v7595 = vld [vmem:[%s6 + $0x120] sm:$0xff]
    %v7596 = vld [vmem:[%s6 + $0x128] sm:$0xff]
    %v7597 = vld [vmem:[%s6 + $0x130] sm:$0xff]
    %v7598 = vld [vmem:[%s6 + $0x138] sm:$0xff]
    %v7599 = vld [vmem:[%s6 + $0x140] sm:$0xff]
    %v7600 = vld [vmem:[%s6 + $0x148] sm:$0xff]
    %v7601 = vld [vmem:[%s6 + $0x150] sm:$0xff]
    %v7602 = vld [vmem:[%s6 + $0x158] sm:$0xff]
    %v7603 = vld [vmem:[%s6 + $0x160] sm:$0xff]
    %v7604 = vld [vmem:[%s6 + $0x168] sm:$0xff]
    %v7605 = vld [vmem:[%s6 + $0x170] sm:$0xff]
    %v7606 = vld [vmem:[%s6 + $0x178] sm:$0xff]
    %v7607 = vld [vmem:[%s6 + $0x180] sm:$0xff]
    %v7608 = vld [vmem:[%s6 + $0x188] sm:$0xff]
    %v7609 = vld [vmem:[%s6 + $0x190] sm:$0xff]
    %v7610 = vld [vmem:[%s6 + $0x198] sm:$0xff]
    %v7611 = vld [vmem:[%s6 + $0x1a0] sm:$0xff]
    %v7612 = vld [vmem:[%s6 + $0x1a8] sm:$0xff]
    %v7613 = vld [vmem:[%s6 + $0x1b0] sm:$0xff]
    %v7614 = vld [vmem:[%s6 + $0x1b8] sm:$0xff]
    %v7615 = vld [vmem:[%s6 + $0x1c0] sm:$0xff]
    %v7616 = vld [vmem:[%s6 + $0x1c8] sm:$0xff]
    %v7617 = vld [vmem:[%s6 + $0x1d0] sm:$0xff]
    %v7618 = vld [vmem:[%s6 + $0x1d8] sm:$0xff]
    %v7619 = vld [vmem:[%s6 + $0x1e0] sm:$0xff]
    %v7620 = vld [vmem:[%s6 + $0x1e8] sm:$0xff]
    %v7621 = vld [vmem:[%s6 + $0x1f0] sm:$0xff]
    %v7622 = vld [vmem:[%s6 + $0x1f8] sm:$0xff]
    %v7623 = vld [vmem:[%s6 + $0x200] sm:$0xff]
    %v7624 = vld [vmem:[%s6 + $0x208] sm:$0xff]
    %v7625 = vld [vmem:[%s6 + $0x210] sm:$0xff]
    %v7626 = vld [vmem:[%s6 + $0x218] sm:$0xff]
    %v7627 = vld [vmem:[%s6 + $0x220] sm:$0xff]
    %v7628 = vld [vmem:[%s6 + $0x228] sm:$0xff]
    %v7629 = vld [vmem:[%s6 + $0x230] sm:$0xff]
    %v7630 = vld [vmem:[%s6 + $0x238] sm:$0xff]
    %v7631 = vld [vmem:[%s6 + $0x240] sm:$0xff]
    %v7632 = vld [vmem:[%s6 + $0x248] sm:$0xff]
    %v7633 = vld [vmem:[%s6 + $0x250] sm:$0xff]
    %v7634 = vld [vmem:[%s6 + $0x258] sm:$0xff]
    %v7635 = vld [vmem:[%s6 + $0x260] sm:$0xff]
    %v7636 = vld [vmem:[%s6 + $0x268] sm:$0xff]
    %v7637 = vld [vmem:[%s6 + $0x270] sm:$0xff]
    %v7638 = vld [vmem:[%s6 + $0x278] sm:$0xff]
    %v7639 = vld [vmem:[%s6 + $0x280] sm:$0xff]
    %v7640 = vld [vmem:[%s6 + $0x288] sm:$0xff]
    %v7641 = vld [vmem:[%s6 + $0x290] sm:$0xff]
    %v7642 = vld [vmem:[%s6 + $0x298] sm:$0xff]
    %v7643 = vld [vmem:[%s6 + $0x2a0] sm:$0xff]
    %v7644 = vld [vmem:[%s6 + $0x2a8] sm:$0xff]
    %v7645 = vld [vmem:[%s6 + $0x2b0] sm:$0xff]
    %v7646 = vld [vmem:[%s6 + $0x2b8] sm:$0xff]
    %v7647 = vld [vmem:[%s6 + $0x2c0] sm:$0xff]
    %v7648 = vld [vmem:[%s6 + $0x2c8] sm:$0xff]
    %v7649 = vld [vmem:[%s6 + $0x2d0] sm:$0xff]
    %v7650 = vld [vmem:[%s6 + $0x2d8] sm:$0xff]
    %v7651 = vld [vmem:[%s6 + $0x2e0] sm:$0xff]
    %v7652 = vld [vmem:[%s6 + $0x2e8] sm:$0xff]
    %v7653 = vld [vmem:[%s6 + $0x2f0] sm:$0xff]
    %v7654 = vld [vmem:[%s6 + $0x2f8] sm:$0xff]
    %v7655 = vld [vmem:[%s6 + $0x300] sm:$0xff]
    %v7656 = vld [vmem:[%s6 + $0x308] sm:$0xff]
    %v7657 = vld [vmem:[%s6 + $0x310] sm:$0xff]
    %v7658 = vld [vmem:[%s6 + $0x318] sm:$0xff]
    %v7659 = vld [vmem:[%s6 + $0x320] sm:$0xff]
    %v7660 = vld [vmem:[%s6 + $0x328] sm:$0xff]
    %v7661 = vld [vmem:[%s6 + $0x330] sm:$0xff]
    %v7662 = vld [vmem:[%s6 + $0x338] sm:$0xff]
    %v7663 = vld [vmem:[%s6 + $0x340] sm:$0xff]
    %v7664 = vld [vmem:[%s6 + $0x348] sm:$0xff]
    %v7665 = vld [vmem:[%s6 + $0x350] sm:$0xff]
    %v7666 = vld [vmem:[%s6 + $0x358] sm:$0xff]
    %v7667 = vld [vmem:[%s6 + $0x360] sm:$0xff]
    %v7668 = vld [vmem:[%s6 + $0x368] sm:$0xff]
    %v7669 = vld [vmem:[%s6 + $0x370] sm:$0xff]
    %v7670 = vld [vmem:[%s6 + $0x378] sm:$0xff]
    %v7671 = vld [vmem:[%s6 + $0x380] sm:$0xff]
    %v7672 = vld [vmem:[%s6 + $0x388] sm:$0xff]
    %v7673 = vld [vmem:[%s6 + $0x390] sm:$0xff]
    %v7674 = vld [vmem:[%s6 + $0x398] sm:$0xff]
    %v7675 = vld [vmem:[%s6 + $0x3a0] sm:$0xff]
    %v7676 = vld [vmem:[%s6 + $0x3a8] sm:$0xff]
    %v7677 = vld [vmem:[%s6 + $0x3b0] sm:$0xff]
    %v7678 = vld [vmem:[%s6 + $0x3b8] sm:$0xff]
    %v7679 = vld [vmem:[%s6 + $0x3c0] sm:$0xff]
    %v7680 = vld [vmem:[%s6 + $0x3c8] sm:$0xff]
    %v7681 = vld [vmem:[%s6 + $0x3d0] sm:$0xff]
    %v7682 = vld [vmem:[%s6 + $0x3d8] sm:$0xff]
    %v7683 = vld [vmem:[%s6 + $0x3e0] sm:$0xff]
    %v7684 = vld [vmem:[%s6 + $0x3e8] sm:$0xff]
    %v7685 = vld [vmem:[%s6 + $0x3f0] sm:$0xff]
    %v7686 = vld [vmem:[%s6 + $0x3f8] sm:$0xff]
    %v7687 = vld [vmem:[%s6 + $0x400] sm:$0xff]
    %v7688 = vld [vmem:[%s6 + $0x408] sm:$0xff]
    %v7689 = vld [vmem:[%s6 + $0x410] sm:$0xff]
    %v7690 = vld [vmem:[%s6 + $0x418] sm:$0xff]
    %v7691 = vld [vmem:[%s6 + $0x420] sm:$0xff]
    %v7692 = vld [vmem:[%s6 + $0x428] sm:$0xff]
    %v7693 = vld [vmem:[%s6 + $0x430] sm:$0xff]
    %v7694 = vld [vmem:[%s6 + $0x438] sm:$0xff]
    %v7695 = vld [vmem:[%s6 + $0x440] sm:$0xff]
    %v7696 = vld [vmem:[%s6 + $0x448] sm:$0xff]
    %v7697 = vld [vmem:[%s6 + $0x450] sm:$0xff]
    %v7698 = vld [vmem:[%s6 + $0x458] sm:$0xff]
    %v7699 = vld [vmem:[%s6 + $0x460] sm:$0xff]
    %v7700 = vld [vmem:[%s6 + $0x468] sm:$0xff]
    %v7701 = vld [vmem:[%s6 + $0x470] sm:$0xff]
    %v7702 = vld [vmem:[%s6 + $0x478] sm:$0xff]
    %v7703 = vld [vmem:[%s6 + $0x480] sm:$0xff]
    %v7704 = vld [vmem:[%s6 + $0x488] sm:$0xff]
    %v7705 = vld [vmem:[%s6 + $0x490] sm:$0xff]
    %v7706 = vld [vmem:[%s6 + $0x498] sm:$0xff]
    %v7707 = vld [vmem:[%s6 + $0x4a0] sm:$0xff]
    %v7708 = vld [vmem:[%s6 + $0x4a8] sm:$0xff]
    %v7709 = vld [vmem:[%s6 + $0x4b0] sm:$0xff]
    %v7710 = vld [vmem:[%s6 + $0x4b8] sm:$0xff]
    %v7711 = vld [vmem:[%s6 + $0x4c0] sm:$0xff]
    %v7712 = vld [vmem:[%s6 + $0x4c8] sm:$0xff]
    %v7713 = vld [vmem:[%s6 + $0x4d0] sm:$0xff]
    %v7714 = vld [vmem:[%s6 + $0x4d8] sm:$0xff]
    %v7715 = vld [vmem:[%s6 + $0x4e0] sm:$0xff]
    %v7716 = vld [vmem:[%s6 + $0x4e8] sm:$0xff]
    %v7717 = vld [vmem:[%s6 + $0x4f0] sm:$0xff]
    %v7718 = vld [vmem:[%s6 + $0x4f8] sm:$0xff]
    %v7719 = vld [vmem:[%s6 + $0x500] sm:$0xff]
    %v7720 = vld [vmem:[%s6 + $0x508] sm:$0xff]
    %v7721 = vld [vmem:[%s6 + $0x510] sm:$0xff]
    %v7722 = vld [vmem:[%s6 + $0x518] sm:$0xff]
    %v7723 = vld [vmem:[%s6 + $0x520] sm:$0xff]
    %v7724 = vld [vmem:[%s6 + $0x528] sm:$0xff]
    %v7725 = vld [vmem:[%s6 + $0x530] sm:$0xff]
    %v7726 = vld [vmem:[%s6 + $0x538] sm:$0xff]
    %v7727 = vld [vmem:[%s6 + $0x540] sm:$0xff]
    %v7728 = vld [vmem:[%s6 + $0x548] sm:$0xff]
    %v7729 = vld [vmem:[%s6 + $0x550] sm:$0xff]
    %v7730 = vld [vmem:[%s6 + $0x558] sm:$0xff]
    %v7731 = vld [vmem:[%s6 + $0x560] sm:$0xff]
    %v7732 = vld [vmem:[%s6 + $0x568] sm:$0xff]
    %v7733 = vld [vmem:[%s6 + $0x570] sm:$0xff]
    %v7734 = vld [vmem:[%s6 + $0x578] sm:$0xff]
    %v7735 = vld [vmem:[%s6 + $0x580] sm:$0xff]
    %v7736 = vld [vmem:[%s6 + $0x588] sm:$0xff]
    %v7737 = vld [vmem:[%s6 + $0x590] sm:$0xff]
    %v7738 = vld [vmem:[%s6 + $0x598] sm:$0xff]
    %v7739 = vld [vmem:[%s6 + $0x5a0] sm:$0xff]
    %v7740 = vld [vmem:[%s6 + $0x5a8] sm:$0xff]
    %v7741 = vld [vmem:[%s6 + $0x5b0] sm:$0xff]
    %v7742 = vld [vmem:[%s6 + $0x5b8] sm:$0xff]
    %v7743 = vld [vmem:[%s6 + $0x5c0] sm:$0xff]
    %v7744 = vld [vmem:[%s6 + $0x5c8] sm:$0xff]
    %v7745 = vld [vmem:[%s6 + $0x5d0] sm:$0xff]
    %v7746 = vld [vmem:[%s6 + $0x5d8] sm:$0xff]
    %v7747 = vld [vmem:[%s6 + $0x5e0] sm:$0xff]
    %v7748 = vld [vmem:[%s6 + $0x5e8] sm:$0xff]
    %v7749 = vld [vmem:[%s6 + $0x5f0] sm:$0xff]
    %v7750 = vld [vmem:[%s6 + $0x5f8] sm:$0xff]
    %v7751 = vld [vmem:[%s6 + $0x600] sm:$0xff]
    %v7752 = vld [vmem:[%s6 + $0x608] sm:$0xff]
    %v7753 = vld [vmem:[%s6 + $0x610] sm:$0xff]
    %v7754 = vld [vmem:[%s6 + $0x618] sm:$0xff]
    %v7755 = vld [vmem:[%s6 + $0x620] sm:$0xff]
    %v7756 = vld [vmem:[%s6 + $0x628] sm:$0xff]
    %v7757 = vld [vmem:[%s6 + $0x630] sm:$0xff]
    %v7758 = vld [vmem:[%s6 + $0x638] sm:$0xff]
    %v7759 = vld [vmem:[%s6 + $0x640] sm:$0xff]
    %v7760 = vld [vmem:[%s6 + $0x648] sm:$0xff]
    %v7761 = vld [vmem:[%s6 + $0x650] sm:$0xff]
    %v7762 = vld [vmem:[%s6 + $0x658] sm:$0xff]
    %v7763 = vld [vmem:[%s6 + $0x660] sm:$0xff]
    %v7764 = vld [vmem:[%s6 + $0x668] sm:$0xff]
    %v7765 = vld [vmem:[%s6 + $0x670] sm:$0xff]
    %v7766 = vld [vmem:[%s6 + $0x678] sm:$0xff]
    %v7767 = vld [vmem:[%s6 + $0x680] sm:$0xff]
    %v7768 = vld [vmem:[%s6 + $0x688] sm:$0xff]
    %v7769 = vld [vmem:[%s6 + $0x690] sm:$0xff]
    %v7770 = vld [vmem:[%s6 + $0x698] sm:$0xff]
    %v7771 = vld [vmem:[%s6 + $0x6a0] sm:$0xff]
    %v7772 = vld [vmem:[%s6 + $0x6a8] sm:$0xff]
    %v7773 = vld [vmem:[%s6 + $0x6b0] sm:$0xff]
    %v7774 = vld [vmem:[%s6 + $0x6b8] sm:$0xff]
    %v7775 = vld [vmem:[%s6 + $0x6c0] sm:$0xff]
    %v7776 = vld [vmem:[%s6 + $0x6c8] sm:$0xff]
    %v7777 = vld [vmem:[%s6 + $0x6d0] sm:$0xff]
    %v7778 = vld [vmem:[%s6 + $0x6d8] sm:$0xff]
    %v7779 = vld [vmem:[%s6 + $0x6e0] sm:$0xff]
    %v7780 = vld [vmem:[%s6 + $0x6e8] sm:$0xff]
    %v7781 = vld [vmem:[%s6 + $0x6f0] sm:$0xff]
    %v7782 = vld [vmem:[%s6 + $0x6f8] sm:$0xff]
    %v7783 = vld [vmem:[%s6 + $0x700] sm:$0xff]
    %v7784 = vld [vmem:[%s6 + $0x708] sm:$0xff]
    %v7785 = vld [vmem:[%s6 + $0x710] sm:$0xff]
    %v7786 = vld [vmem:[%s6 + $0x718] sm:$0xff]
    %v7787 = vld [vmem:[%s6 + $0x720] sm:$0xff]
    %v7788 = vld [vmem:[%s6 + $0x728] sm:$0xff]
    %v7789 = vld [vmem:[%s6 + $0x730] sm:$0xff]
    %v7790 = vld [vmem:[%s6 + $0x738] sm:$0xff]
    %v7791 = vld [vmem:[%s6 + $0x740] sm:$0xff]
    %v7792 = vld [vmem:[%s6 + $0x748] sm:$0xff]
    %v7793 = vld [vmem:[%s6 + $0x750] sm:$0xff]
    %v7794 = vld [vmem:[%s6 + $0x758] sm:$0xff]
    %v7795 = vld [vmem:[%s6 + $0x760] sm:$0xff]
    %v7796 = vld [vmem:[%s6 + $0x768] sm:$0xff]
    %v7797 = vld [vmem:[%s6 + $0x770] sm:$0xff]
    %v7798 = vld [vmem:[%s6 + $0x778] sm:$0xff]
    %v7799 = vld [vmem:[%s6 + $0x780] sm:$0xff]
    %v7800 = vld [vmem:[%s6 + $0x788] sm:$0xff]
    %v7801 = vld [vmem:[%s6 + $0x790] sm:$0xff]
    %v7802 = vld [vmem:[%s6 + $0x798] sm:$0xff]
    %v7803 = vld [vmem:[%s6 + $0x7a0] sm:$0xff]
    %v7804 = vld [vmem:[%s6 + $0x7a8] sm:$0xff]
    %v7805 = vld [vmem:[%s6 + $0x7b0] sm:$0xff]
    %v7806 = vld [vmem:[%s6 + $0x7b8] sm:$0xff]
    %vm7807 = vcmask 793600
    %v7809 = vsel %vm7807, %v7566, 0
    %v7812 = vsel %vm7807, %v7574, 0
    %v7815 = vsel %vm7807, %v7582, 0
    %v7818 = vsel %vm7807, %v7590, 0
    %v7821 = vsel %vm7807, %v7598, 0
    %v7824 = vsel %vm7807, %v7606, 0
    %v7827 = vsel %vm7807, %v7614, 0
    %v7830 = vsel %vm7807, %v7622, 0
    %v7833 = vsel %vm7807, %v7630, 0
    %v7836 = vsel %vm7807, %v7638, 0
    %v7839 = vsel %vm7807, %v7646, 0
    %v7842 = vsel %vm7807, %v7654, 0
    %v7845 = vsel %vm7807, %v7662, 0
    %v7848 = vsel %vm7807, %v7670, 0
    %v7851 = vsel %vm7807, %v7678, 0
    %v7854 = vsel %vm7807, %v7686, 0
    %v7857 = vsel %vm7807, %v7694, 0
    %v7860 = vsel %vm7807, %v7702, 0
    %v7863 = vsel %vm7807, %v7710, 0
    %v7866 = vsel %vm7807, %v7718, 0
    %v7869 = vsel %vm7807, %v7726, 0
    %v7872 = vsel %vm7807, %v7734, 0
    %v7875 = vsel %vm7807, %v7742, 0
    %v7878 = vsel %vm7807, %v7750, 0
    %v7881 = vsel %vm7807, %v7758, 0
    %v7884 = vsel %vm7807, %v7766, 0
    %v7887 = vsel %vm7807, %v7774, 0
    %v7890 = vsel %vm7807, %v7782, 0
    %v7893 = vsel %vm7807, %v7790, 0
    %v7896 = vsel %vm7807, %v7798, 0
    %v7899 = vsel %vm7807, %v7806, 0
    %vm7901 = vcmask 1040384
    %v7903 = vsel %vm7901, %v7558, 0
    %7905 = vmatpush.msra.mxu0 %v7449
    %7906 = vmatpush.msra.mxu0 %v7448
    %7907 = vmatpush.msra.mxu0 %v7447
    %7908 = vmatpush.msra.mxu0 %v7446
    %7909 = vmatpush.msra.mxu0 %v7445
    %7910 = vmatpush.msra.mxu0 %v7444
    %7911 = vmatpush.msra.mxu0 %v7443
    %7912 = vmatpush.msra.mxu0 %v7442
    %7913 = vmatpush.msra.mxu0 %v7441
    %7914 = vmatpush.msra.mxu0 %v7440
    %7915 = vmatpush.msra.mxu0 %v7439
    %7916 = vmatpush.msra.mxu0 %v7438
    %7917 = vmatpush.msra.mxu0 %v7437
    %7918 = vmatpush.msra.mxu0 %v7436
    %7919 = vmatpush.msra.mxu0 %v7435
    %7920 = vmatpush.msra.mxu0 %v7434
    %7921 = vmatmul.f32.gmra.mxu0 %v7559
    %v7922 = vpop.f32.mrf.mxu0
    %v7923 = vadd.f32 0.0, %v7922
    %7924 = vmatmul.f32.gmra.mxu0 %v7567
    %v7925 = vpop.f32.mrf.mxu0
    %v7926 = vadd.f32 0.0, %v7925
    %7927 = vmatmul.f32.gmra.mxu0 %v7575
    %v7928 = vpop.f32.mrf.mxu0
    %v7929 = vadd.f32 0.0, %v7928
    %7930 = vmatmul.f32.gmra.mxu0 %v7583
    %v7931 = vpop.f32.mrf.mxu0
    %v7932 = vadd.f32 0.0, %v7931
    %7933 = vmatmul.f32.gmra.mxu0 %v7591
    %v7934 = vpop.f32.mrf.mxu0
    %v7935 = vadd.f32 0.0, %v7934
    %7936 = vmatmul.f32.gmra.mxu0 %v7599
    %v7937 = vpop.f32.mrf.mxu0
    %v7938 = vadd.f32 0.0, %v7937
    %7939 = vmatmul.f32.gmra.mxu0 %v7607
    %v7940 = vpop.f32.mrf.mxu0
    %v7941 = vadd.f32 0.0, %v7940
    %7942 = vmatmul.f32.gmra.mxu0 %v7615
    %v7943 = vpop.f32.mrf.mxu0
    %v7944 = vadd.f32 0.0, %v7943
    %7945 = vmatmul.f32.gmra.mxu0 %v7623
    %v7946 = vpop.f32.mrf.mxu0
    %v7947 = vadd.f32 0.0, %v7946
    %7948 = vmatmul.f32.gmra.mxu0 %v7631
    %v7949 = vpop.f32.mrf.mxu0
    %v7950 = vadd.f32 0.0, %v7949
    %7951 = vmatmul.f32.gmra.mxu0 %v7639
    %v7952 = vpop.f32.mrf.mxu0
    %v7953 = vadd.f32 0.0, %v7952
    %7954 = vmatmul.f32.gmra.mxu0 %v7647
    %v7955 = vpop.f32.mrf.mxu0
    %v7956 = vadd.f32 0.0, %v7955
    %7957 = vmatmul.f32.gmra.mxu0 %v7655
    %v7958 = vpop.f32.mrf.mxu0
    %v7959 = vadd.f32 0.0, %v7958
    %7960 = vmatmul.f32.gmra.mxu0 %v7663
    %v7961 = vpop.f32.mrf.mxu0
    %v7962 = vadd.f32 0.0, %v7961
    %7963 = vmatmul.f32.gmra.mxu0 %v7671
    %v7964 = vpop.f32.mrf.mxu0
    %v7965 = vadd.f32 0.0, %v7964
    %7966 = vmatmul.f32.gmra.mxu0 %v7679
    %v7967 = vpop.f32.mrf.mxu0
    %v7968 = vadd.f32 0.0, %v7967
    %7969 = vmatmul.f32.gmra.mxu0 %v7687
    %v7970 = vpop.f32.mrf.mxu0
    %v7971 = vadd.f32 0.0, %v7970
    %7972 = vmatmul.f32.gmra.mxu0 %v7695
    %v7973 = vpop.f32.mrf.mxu0
    %v7974 = vadd.f32 0.0, %v7973
    %7975 = vmatmul.f32.gmra.mxu0 %v7703
    %v7976 = vpop.f32.mrf.mxu0
    %v7977 = vadd.f32 0.0, %v7976
    %7978 = vmatmul.f32.gmra.mxu0 %v7711
    %v7979 = vpop.f32.mrf.mxu0
    %v7980 = vadd.f32 0.0, %v7979
    %7981 = vmatmul.f32.gmra.mxu0 %v7719
    %v7982 = vpop.f32.mrf.mxu0
    %v7983 = vadd.f32 0.0, %v7982
    %7984 = vmatmul.f32.gmra.mxu0 %v7727
    %v7985 = vpop.f32.mrf.mxu0
    %v7986 = vadd.f32 0.0, %v7985
    %7987 = vmatmul.f32.gmra.mxu0 %v7735
    %v7988 = vpop.f32.mrf.mxu0
    %v7989 = vadd.f32 0.0, %v7988
    %7990 = vmatmul.f32.gmra.mxu0 %v7743
    %v7991 = vpop.f32.mrf.mxu0
    %v7992 = vadd.f32 0.0, %v7991
    %7993 = vmatmul.f32.gmra.mxu0 %v7751
    %v7994 = vpop.f32.mrf.mxu0
    %v7995 = vadd.f32 0.0, %v7994
    %7996 = vmatmul.f32.gmra.mxu0 %v7759
    %v7997 = vpop.f32.mrf.mxu0
    %v7998 = vadd.f32 0.0, %v7997
    %7999 = vmatmul.f32.gmra.mxu0 %v7767
    %v8000 = vpop.f32.mrf.mxu0
    %v8001 = vadd.f32 0.0, %v8000
    %8002 = vmatmul.f32.gmra.mxu0 %v7775
    %v8003 = vpop.f32.mrf.mxu0
    %v8004 = vadd.f32 0.0, %v8003
    %8005 = vmatmul.f32.gmra.mxu0 %v7783
    %v8006 = vpop.f32.mrf.mxu0
    %v8007 = vadd.f32 0.0, %v8006
    %8008 = vmatmul.f32.gmra.mxu0 %v7791
    %v8009 = vpop.f32.mrf.mxu0
    %v8010 = vadd.f32 0.0, %v8009
    %8011 = vmatmul.f32.gmra.mxu0 %v7799
    %v8012 = vpop.f32.mrf.mxu0
    %v8013 = vadd.f32 0.0, %v8012
    %8014 = vdwg.mxu0
    %8015 = vmatpush.msra.mxu0 %v7465
    %8016 = vmatpush.msra.mxu0 %v7464
    %8017 = vmatpush.msra.mxu0 %v7463
    %8018 = vmatpush.msra.mxu0 %v7462
    %8019 = vmatpush.msra.mxu0 %v7461
    %8020 = vmatpush.msra.mxu0 %v7460
    %8021 = vmatpush.msra.mxu0 %v7459
    %8022 = vmatpush.msra.mxu0 %v7458
    %8023 = vmatpush.msra.mxu0 %v7457
    %8024 = vmatpush.msra.mxu0 %v7456
    %8025 = vmatpush.msra.mxu0 %v7455
    %8026 = vmatpush.msra.mxu0 %v7454
    %8027 = vmatpush.msra.mxu0 %v7453
    %8028 = vmatpush.msra.mxu0 %v7452
    %8029 = vmatpush.msra.mxu0 %v7451
    %8030 = vmatpush.msra.mxu0 %v7450
    %8031 = vmatmul.f32.gmra.mxu0 %v7560
    %v8032 = vpop.f32.mrf.mxu0
    %v8033 = vadd.f32 %v7923, %v8032
    %8034 = vmatmul.f32.gmra.mxu0 %v7568
    %v8035 = vpop.f32.mrf.mxu0
    %v8036 = vadd.f32 %v7926, %v8035
    %8037 = vmatmul.f32.gmra.mxu0 %v7576
    %v8038 = vpop.f32.mrf.mxu0
    %v8039 = vadd.f32 %v7929, %v8038
    %8040 = vmatmul.f32.gmra.mxu0 %v7584
    %v8041 = vpop.f32.mrf.mxu0
    %v8042 = vadd.f32 %v7932, %v8041
    %8043 = vmatmul.f32.gmra.mxu0 %v7592
    %v8044 = vpop.f32.mrf.mxu0
    %v8045 = vadd.f32 %v7935, %v8044
    %8046 = vmatmul.f32.gmra.mxu0 %v7600
    %v8047 = vpop.f32.mrf.mxu0
    %v8048 = vadd.f32 %v7938, %v8047
    %8049 = vmatmul.f32.gmra.mxu0 %v7608
    %v8050 = vpop.f32.mrf.mxu0
    %v8051 = vadd.f32 %v7941, %v8050
    %8052 = vmatmul.f32.gmra.mxu0 %v7616
    %v8053 = vpop.f32.mrf.mxu0
    %v8054 = vadd.f32 %v7944, %v8053
    %8055 = vmatmul.f32.gmra.mxu0 %v7624
    %v8056 = vpop.f32.mrf.mxu0
    %v8057 = vadd.f32 %v7947, %v8056
    %8058 = vmatmul.f32.gmra.mxu0 %v7632
    %v8059 = vpop.f32.mrf.mxu0
    %v8060 = vadd.f32 %v7950, %v8059
    %8061 = vmatmul.f32.gmra.mxu0 %v7640
    %v8062 = vpop.f32.mrf.mxu0
    %v8063 = vadd.f32 %v7953, %v8062
    %8064 = vmatmul.f32.gmra.mxu0 %v7648
    %v8065 = vpop.f32.mrf.mxu0
    %v8066 = vadd.f32 %v7956, %v8065
    %8067 = vmatmul.f32.gmra.mxu0 %v7656
    %v8068 = vpop.f32.mrf.mxu0
    %v8069 = vadd.f32 %v7959, %v8068
    %8070 = vmatmul.f32.gmra.mxu0 %v7664
    %v8071 = vpop.f32.mrf.mxu0
    %v8072 = vadd.f32 %v7962, %v8071
    %8073 = vmatmul.f32.gmra.mxu0 %v7672
    %v8074 = vpop.f32.mrf.mxu0
    %v8075 = vadd.f32 %v7965, %v8074
    %8076 = vmatmul.f32.gmra.mxu0 %v7680
    %v8077 = vpop.f32.mrf.mxu0
    %v8078 = vadd.f32 %v7968, %v8077
    %8079 = vmatmul.f32.gmra.mxu0 %v7688
    %v8080 = vpop.f32.mrf.mxu0
    %v8081 = vadd.f32 %v7971, %v8080
    %8082 = vmatmul.f32.gmra.mxu0 %v7696
    %v8083 = vpop.f32.mrf.mxu0
    %v8084 = vadd.f32 %v7974, %v8083
    %8085 = vmatmul.f32.gmra.mxu0 %v7704
    %v8086 = vpop.f32.mrf.mxu0
    %v8087 = vadd.f32 %v7977, %v8086
    %8088 = vmatmul.f32.gmra.mxu0 %v7712
    %v8089 = vpop.f32.mrf.mxu0
    %v8090 = vadd.f32 %v7980, %v8089
    %8091 = vmatmul.f32.gmra.mxu0 %v7720
    %v8092 = vpop.f32.mrf.mxu0
    %v8093 = vadd.f32 %v7983, %v8092
    %8094 = vmatmul.f32.gmra.mxu0 %v7728
    %v8095 = vpop.f32.mrf.mxu0
    %v8096 = vadd.f32 %v7986, %v8095
    %8097 = vmatmul.f32.gmra.mxu0 %v7736
    %v8098 = vpop.f32.mrf.mxu0
    %v8099 = vadd.f32 %v7989, %v8098
    %8100 = vmatmul.f32.gmra.mxu0 %v7744
    %v8101 = vpop.f32.mrf.mxu0
    %v8102 = vadd.f32 %v7992, %v8101
    %8103 = vmatmul.f32.gmra.mxu0 %v7752
    %v8104 = vpop.f32.mrf.mxu0
    %v8105 = vadd.f32 %v7995, %v8104
    %8106 = vmatmul.f32.gmra.mxu0 %v7760
    %v8107 = vpop.f32.mrf.mxu0
    %v8108 = vadd.f32 %v7998, %v8107
    %8109 = vmatmul.f32.gmra.mxu0 %v7768
    %v8110 = vpop.f32.mrf.mxu0
    %v8111 = vadd.f32 %v8001, %v8110
    %8112 = vmatmul.f32.gmra.mxu0 %v7776
    %v8113 = vpop.f32.mrf.mxu0
    %v8114 = vadd.f32 %v8004, %v8113
    %8115 = vmatmul.f32.gmra.mxu0 %v7784
    %v8116 = vpop.f32.mrf.mxu0
    %v8117 = vadd.f32 %v8007, %v8116
    %8118 = vmatmul.f32.gmra.mxu0 %v7792
    %v8119 = vpop.f32.mrf.mxu0
    %v8120 = vadd.f32 %v8010, %v8119
    %8121 = vmatmul.f32.gmra.mxu0 %v7800
    %v8122 = vpop.f32.mrf.mxu0
    %v8123 = vadd.f32 %v8013, %v8122
    %8124 = vdwg.mxu0
    %8125 = vmatpush.msra.mxu0 %v7481
    %8126 = vmatpush.msra.mxu0 %v7480
    %8127 = vmatpush.msra.mxu0 %v7479
    %8128 = vmatpush.msra.mxu0 %v7478
    %8129 = vmatpush.msra.mxu0 %v7477
    %8130 = vmatpush.msra.mxu0 %v7476
    %8131 = vmatpush.msra.mxu0 %v7475
    %8132 = vmatpush.msra.mxu0 %v7474
    %8133 = vmatpush.msra.mxu0 %v7473
    %8134 = vmatpush.msra.mxu0 %v7472
    %8135 = vmatpush.msra.mxu0 %v7471
    %8136 = vmatpush.msra.mxu0 %v7470
    %8137 = vmatpush.msra.mxu0 %v7469
    %8138 = vmatpush.msra.mxu0 %v7468
    %8139 = vmatpush.msra.mxu0 %v7467
    %8140 = vmatpush.msra.mxu0 %v7466
    %8141 = vmatmul.f32.gmra.mxu0 %v7561
    %v8142 = vpop.f32.mrf.mxu0
    %v8143 = vadd.f32 %v8033, %v8142
    %8144 = vmatmul.f32.gmra.mxu0 %v7569
    %v8145 = vpop.f32.mrf.mxu0
    %v8146 = vadd.f32 %v8036, %v8145
    %8147 = vmatmul.f32.gmra.mxu0 %v7577
    %v8148 = vpop.f32.mrf.mxu0
    %v8149 = vadd.f32 %v8039, %v8148
    %8150 = vmatmul.f32.gmra.mxu0 %v7585
    %v8151 = vpop.f32.mrf.mxu0
    %v8152 = vadd.f32 %v8042, %v8151
    %8153 = vmatmul.f32.gmra.mxu0 %v7593
    %v8154 = vpop.f32.mrf.mxu0
    %v8155 = vadd.f32 %v8045, %v8154
    %8156 = vmatmul.f32.gmra.mxu0 %v7601
    %v8157 = vpop.f32.mrf.mxu0
    %v8158 = vadd.f32 %v8048, %v8157
    %8159 = vmatmul.f32.gmra.mxu0 %v7609
    %v8160 = vpop.f32.mrf.mxu0
    %v8161 = vadd.f32 %v8051, %v8160
    %8162 = vmatmul.f32.gmra.mxu0 %v7617
    %v8163 = vpop.f32.mrf.mxu0
    %v8164 = vadd.f32 %v8054, %v8163
    %8165 = vmatmul.f32.gmra.mxu0 %v7625
    %v8166 = vpop.f32.mrf.mxu0
    %v8167 = vadd.f32 %v8057, %v8166
    %8168 = vmatmul.f32.gmra.mxu0 %v7633
    %v8169 = vpop.f32.mrf.mxu0
    %v8170 = vadd.f32 %v8060, %v8169
    %8171 = vmatmul.f32.gmra.mxu0 %v7641
    %v8172 = vpop.f32.mrf.mxu0
    %v8173 = vadd.f32 %v8063, %v8172
    %8174 = vmatmul.f32.gmra.mxu0 %v7649
    %v8175 = vpop.f32.mrf.mxu0
    %v8176 = vadd.f32 %v8066, %v8175
    %8177 = vmatmul.f32.gmra.mxu0 %v7657
    %v8178 = vpop.f32.mrf.mxu0
    %v8179 = vadd.f32 %v8069, %v8178
    %8180 = vmatmul.f32.gmra.mxu0 %v7665
    %v8181 = vpop.f32.mrf.mxu0
    %v8182 = vadd.f32 %v8072, %v8181
    %8183 = vmatmul.f32.gmra.mxu0 %v7673
    %v8184 = vpop.f32.mrf.mxu0
    %v8185 = vadd.f32 %v8075, %v8184
    %8186 = vmatmul.f32.gmra.mxu0 %v7681
    %v8187 = vpop.f32.mrf.mxu0
    %v8188 = vadd.f32 %v8078, %v8187
    %8189 = vmatmul.f32.gmra.mxu0 %v7689
    %v8190 = vpop.f32.mrf.mxu0
    %v8191 = vadd.f32 %v8081, %v8190
    %8192 = vmatmul.f32.gmra.mxu0 %v7697
    %v8193 = vpop.f32.mrf.mxu0
    %v8194 = vadd.f32 %v8084, %v8193
    %8195 = vmatmul.f32.gmra.mxu0 %v7705
    %v8196 = vpop.f32.mrf.mxu0
    %v8197 = vadd.f32 %v8087, %v8196
    %8198 = vmatmul.f32.gmra.mxu0 %v7713
    %v8199 = vpop.f32.mrf.mxu0
    %v8200 = vadd.f32 %v8090, %v8199
    %8201 = vmatmul.f32.gmra.mxu0 %v7721
    %v8202 = vpop.f32.mrf.mxu0
    %v8203 = vadd.f32 %v8093, %v8202
    %8204 = vmatmul.f32.gmra.mxu0 %v7729
    %v8205 = vpop.f32.mrf.mxu0
    %v8206 = vadd.f32 %v8096, %v8205
    %8207 = vmatmul.f32.gmra.mxu0 %v7737
    %v8208 = vpop.f32.mrf.mxu0
    %v8209 = vadd.f32 %v8099, %v8208
    %8210 = vmatmul.f32.gmra.mxu0 %v7745
    %v8211 = vpop.f32.mrf.mxu0
    %v8212 = vadd.f32 %v8102, %v8211
    %8213 = vmatmul.f32.gmra.mxu0 %v7753
    %v8214 = vpop.f32.mrf.mxu0
    %v8215 = vadd.f32 %v8105, %v8214
    %8216 = vmatmul.f32.gmra.mxu0 %v7761
    %v8217 = vpop.f32.mrf.mxu0
    %v8218 = vadd.f32 %v8108, %v8217
    %8219 = vmatmul.f32.gmra.mxu0 %v7769
    %v8220 = vpop.f32.mrf.mxu0
    %v8221 = vadd.f32 %v8111, %v8220
    %8222 = vmatmul.f32.gmra.mxu0 %v7777
    %v8223 = vpop.f32.mrf.mxu0
    %v8224 = vadd.f32 %v8114, %v8223
    %8225 = vmatmul.f32.gmra.mxu0 %v7785
    %v8226 = vpop.f32.mrf.mxu0
    %v8227 = vadd.f32 %v8117, %v8226
    %8228 = vmatmul.f32.gmra.mxu0 %v7793
    %v8229 = vpop.f32.mrf.mxu0
    %v8230 = vadd.f32 %v8120, %v8229
    %8231 = vmatmul.f32.gmra.mxu0 %v7801
    %v8232 = vpop.f32.mrf.mxu0
    %v8233 = vadd.f32 %v8123, %v8232
    %8234 = vdwg.mxu0
    %8235 = vmatpush.msra.mxu0 %v7497
    %8236 = vmatpush.msra.mxu0 %v7496
    %8237 = vmatpush.msra.mxu0 %v7495
    %8238 = vmatpush.msra.mxu0 %v7494
    %8239 = vmatpush.msra.mxu0 %v7493
    %8240 = vmatpush.msra.mxu0 %v7492
    %8241 = vmatpush.msra.mxu0 %v7491
    %8242 = vmatpush.msra.mxu0 %v7490
    %8243 = vmatpush.msra.mxu0 %v7489
    %8244 = vmatpush.msra.mxu0 %v7488
    %8245 = vmatpush.msra.mxu0 %v7487
    %8246 = vmatpush.msra.mxu0 %v7486
    %8247 = vmatpush.msra.mxu0 %v7485
    %8248 = vmatpush.msra.mxu0 %v7484
    %8249 = vmatpush.msra.mxu0 %v7483
    %8250 = vmatpush.msra.mxu0 %v7482
    %8251 = vmatmul.f32.gmra.mxu0 %v7562
    %v8252 = vpop.f32.mrf.mxu0
    %v8253 = vadd.f32 %v8143, %v8252
    %8254 = vmatmul.f32.gmra.mxu0 %v7570
    %v8255 = vpop.f32.mrf.mxu0
    %v8256 = vadd.f32 %v8146, %v8255
    %8257 = vmatmul.f32.gmra.mxu0 %v7578
    %v8258 = vpop.f32.mrf.mxu0
    %v8259 = vadd.f32 %v8149, %v8258
    %8260 = vmatmul.f32.gmra.mxu0 %v7586
    %v8261 = vpop.f32.mrf.mxu0
    %v8262 = vadd.f32 %v8152, %v8261
    %8263 = vmatmul.f32.gmra.mxu0 %v7594
    %v8264 = vpop.f32.mrf.mxu0
    %v8265 = vadd.f32 %v8155, %v8264
    %8266 = vmatmul.f32.gmra.mxu0 %v7602
    %v8267 = vpop.f32.mrf.mxu0
    %v8268 = vadd.f32 %v8158, %v8267
    %8269 = vmatmul.f32.gmra.mxu0 %v7610
    %v8270 = vpop.f32.mrf.mxu0
    %v8271 = vadd.f32 %v8161, %v8270
    %8272 = vmatmul.f32.gmra.mxu0 %v7618
    %v8273 = vpop.f32.mrf.mxu0
    %v8274 = vadd.f32 %v8164, %v8273
    %8275 = vmatmul.f32.gmra.mxu0 %v7626
    %v8276 = vpop.f32.mrf.mxu0
    %v8277 = vadd.f32 %v8167, %v8276
    %8278 = vmatmul.f32.gmra.mxu0 %v7634
    %v8279 = vpop.f32.mrf.mxu0
    %v8280 = vadd.f32 %v8170, %v8279
    %8281 = vmatmul.f32.gmra.mxu0 %v7642
    %v8282 = vpop.f32.mrf.mxu0
    %v8283 = vadd.f32 %v8173, %v8282
    %8284 = vmatmul.f32.gmra.mxu0 %v7650
    %v8285 = vpop.f32.mrf.mxu0
    %v8286 = vadd.f32 %v8176, %v8285
    %8287 = vmatmul.f32.gmra.mxu0 %v7658
    %v8288 = vpop.f32.mrf.mxu0
    %v8289 = vadd.f32 %v8179, %v8288
    %8290 = vmatmul.f32.gmra.mxu0 %v7666
    %v8291 = vpop.f32.mrf.mxu0
    %v8292 = vadd.f32 %v8182, %v8291
    %8293 = vmatmul.f32.gmra.mxu0 %v7674
    %v8294 = vpop.f32.mrf.mxu0
    %v8295 = vadd.f32 %v8185, %v8294
    %8296 = vmatmul.f32.gmra.mxu0 %v7682
    %v8297 = vpop.f32.mrf.mxu0
    %v8298 = vadd.f32 %v8188, %v8297
    %8299 = vmatmul.f32.gmra.mxu0 %v7690
    %v8300 = vpop.f32.mrf.mxu0
    %v8301 = vadd.f32 %v8191, %v8300
    %8302 = vmatmul.f32.gmra.mxu0 %v7698
    %v8303 = vpop.f32.mrf.mxu0
    %v8304 = vadd.f32 %v8194, %v8303
    %8305 = vmatmul.f32.gmra.mxu0 %v7706
    %v8306 = vpop.f32.mrf.mxu0
    %v8307 = vadd.f32 %v8197, %v8306
    %8308 = vmatmul.f32.gmra.mxu0 %v7714
    %v8309 = vpop.f32.mrf.mxu0
    %v8310 = vadd.f32 %v8200, %v8309
    %8311 = vmatmul.f32.gmra.mxu0 %v7722
    %v8312 = vpop.f32.mrf.mxu0
    %v8313 = vadd.f32 %v8203, %v8312
    %8314 = vmatmul.f32.gmra.mxu0 %v7730
    %v8315 = vpop.f32.mrf.mxu0
    %v8316 = vadd.f32 %v8206, %v8315
    %8317 = vmatmul.f32.gmra.mxu0 %v7738
    %v8318 = vpop.f32.mrf.mxu0
    %v8319 = vadd.f32 %v8209, %v8318
    %8320 = vmatmul.f32.gmra.mxu0 %v7746
    %v8321 = vpop.f32.mrf.mxu0
    %v8322 = vadd.f32 %v8212, %v8321
    %8323 = vmatmul.f32.gmra.mxu0 %v7754
    %v8324 = vpop.f32.mrf.mxu0
    %v8325 = vadd.f32 %v8215, %v8324
    %8326 = vmatmul.f32.gmra.mxu0 %v7762
    %v8327 = vpop.f32.mrf.mxu0
    %v8328 = vadd.f32 %v8218, %v8327
    %8329 = vmatmul.f32.gmra.mxu0 %v7770
    %v8330 = vpop.f32.mrf.mxu0
    %v8331 = vadd.f32 %v8221, %v8330
    %8332 = vmatmul.f32.gmra.mxu0 %v7778
    %v8333 = vpop.f32.mrf.mxu0
    %v8334 = vadd.f32 %v8224, %v8333
    %8335 = vmatmul.f32.gmra.mxu0 %v7786
    %v8336 = vpop.f32.mrf.mxu0
    %v8337 = vadd.f32 %v8227, %v8336
    %8338 = vmatmul.f32.gmra.mxu0 %v7794
    %v8339 = vpop.f32.mrf.mxu0
    %v8340 = vadd.f32 %v8230, %v8339
    %8341 = vmatmul.f32.gmra.mxu0 %v7802
    %v8342 = vpop.f32.mrf.mxu0
    %v8343 = vadd.f32 %v8233, %v8342
    %8344 = vdwg.mxu0
    %8345 = vmatpush.msra.mxu0 %v7513
    %8346 = vmatpush.msra.mxu0 %v7512
    %8347 = vmatpush.msra.mxu0 %v7511
    %8348 = vmatpush.msra.mxu0 %v7510
    %8349 = vmatpush.msra.mxu0 %v7509
    %8350 = vmatpush.msra.mxu0 %v7508
    %8351 = vmatpush.msra.mxu0 %v7507
    %8352 = vmatpush.msra.mxu0 %v7506
    %8353 = vmatpush.msra.mxu0 %v7505
    %8354 = vmatpush.msra.mxu0 %v7504
    %8355 = vmatpush.msra.mxu0 %v7503
    %8356 = vmatpush.msra.mxu0 %v7502
    %8357 = vmatpush.msra.mxu0 %v7501
    %8358 = vmatpush.msra.mxu0 %v7500
    %8359 = vmatpush.msra.mxu0 %v7499
    %8360 = vmatpush.msra.mxu0 %v7498
    %8361 = vmatmul.f32.gmra.mxu0 %v7563
    %v8362 = vpop.f32.mrf.mxu0
    %v8363 = vadd.f32 %v8253, %v8362
    %8364 = vmatmul.f32.gmra.mxu0 %v7571
    %v8365 = vpop.f32.mrf.mxu0
    %v8366 = vadd.f32 %v8256, %v8365
    %8367 = vmatmul.f32.gmra.mxu0 %v7579
    %v8368 = vpop.f32.mrf.mxu0
    %v8369 = vadd.f32 %v8259, %v8368
    %8370 = vmatmul.f32.gmra.mxu0 %v7587
    %v8371 = vpop.f32.mrf.mxu0
    %v8372 = vadd.f32 %v8262, %v8371
    %8373 = vmatmul.f32.gmra.mxu0 %v7595
    %v8374 = vpop.f32.mrf.mxu0
    %v8375 = vadd.f32 %v8265, %v8374
    %8376 = vmatmul.f32.gmra.mxu0 %v7603
    %v8377 = vpop.f32.mrf.mxu0
    %v8378 = vadd.f32 %v8268, %v8377
    %8379 = vmatmul.f32.gmra.mxu0 %v7611
    %v8380 = vpop.f32.mrf.mxu0
    %v8381 = vadd.f32 %v8271, %v8380
    %8382 = vmatmul.f32.gmra.mxu0 %v7619
    %v8383 = vpop.f32.mrf.mxu0
    %v8384 = vadd.f32 %v8274, %v8383
    %8385 = vmatmul.f32.gmra.mxu0 %v7627
    %v8386 = vpop.f32.mrf.mxu0
    %v8387 = vadd.f32 %v8277, %v8386
    %8388 = vmatmul.f32.gmra.mxu0 %v7635
    %v8389 = vpop.f32.mrf.mxu0
    %v8390 = vadd.f32 %v8280, %v8389
    %8391 = vmatmul.f32.gmra.mxu0 %v7643
    %v8392 = vpop.f32.mrf.mxu0
    %v8393 = vadd.f32 %v8283, %v8392
    %8394 = vmatmul.f32.gmra.mxu0 %v7651
    %v8395 = vpop.f32.mrf.mxu0
    %v8396 = vadd.f32 %v8286, %v8395
    %8397 = vmatmul.f32.gmra.mxu0 %v7659
    %v8398 = vpop.f32.mrf.mxu0
    %v8399 = vadd.f32 %v8289, %v8398
    %8400 = vmatmul.f32.gmra.mxu0 %v7667
    %v8401 = vpop.f32.mrf.mxu0
    %v8402 = vadd.f32 %v8292, %v8401
    %8403 = vmatmul.f32.gmra.mxu0 %v7675
    %v8404 = vpop.f32.mrf.mxu0
    %v8405 = vadd.f32 %v8295, %v8404
    %8406 = vmatmul.f32.gmra.mxu0 %v7683
    %v8407 = vpop.f32.mrf.mxu0
    %v8408 = vadd.f32 %v8298, %v8407
    %8409 = vmatmul.f32.gmra.mxu0 %v7691
    %v8410 = vpop.f32.mrf.mxu0
    %v8411 = vadd.f32 %v8301, %v8410
    %8412 = vmatmul.f32.gmra.mxu0 %v7699
    %v8413 = vpop.f32.mrf.mxu0
    %v8414 = vadd.f32 %v8304, %v8413
    %8415 = vmatmul.f32.gmra.mxu0 %v7707
    %v8416 = vpop.f32.mrf.mxu0
    %v8417 = vadd.f32 %v8307, %v8416
    %8418 = vmatmul.f32.gmra.mxu0 %v7715
    %v8419 = vpop.f32.mrf.mxu0
    %v8420 = vadd.f32 %v8310, %v8419
    %8421 = vmatmul.f32.gmra.mxu0 %v7723
    %v8422 = vpop.f32.mrf.mxu0
    %v8423 = vadd.f32 %v8313, %v8422
    %8424 = vmatmul.f32.gmra.mxu0 %v7731
    %v8425 = vpop.f32.mrf.mxu0
    %v8426 = vadd.f32 %v8316, %v8425
    %8427 = vmatmul.f32.gmra.mxu0 %v7739
    %v8428 = vpop.f32.mrf.mxu0
    %v8429 = vadd.f32 %v8319, %v8428
    %8430 = vmatmul.f32.gmra.mxu0 %v7747
    %v8431 = vpop.f32.mrf.mxu0
    %v8432 = vadd.f32 %v8322, %v8431
    %8433 = vmatmul.f32.gmra.mxu0 %v7755
    %v8434 = vpop.f32.mrf.mxu0
    %v8435 = vadd.f32 %v8325, %v8434
    %8436 = vmatmul.f32.gmra.mxu0 %v7763
    %v8437 = vpop.f32.mrf.mxu0
    %v8438 = vadd.f32 %v8328, %v8437
    %8439 = vmatmul.f32.gmra.mxu0 %v7771
    %v8440 = vpop.f32.mrf.mxu0
    %v8441 = vadd.f32 %v8331, %v8440
    %8442 = vmatmul.f32.gmra.mxu0 %v7779
    %v8443 = vpop.f32.mrf.mxu0
    %v8444 = vadd.f32 %v8334, %v8443
    %8445 = vmatmul.f32.gmra.mxu0 %v7787
    %v8446 = vpop.f32.mrf.mxu0
    %v8447 = vadd.f32 %v8337, %v8446
    %8448 = vmatmul.f32.gmra.mxu0 %v7795
    %v8449 = vpop.f32.mrf.mxu0
    %v8450 = vadd.f32 %v8340, %v8449
    %8451 = vmatmul.f32.gmra.mxu0 %v7803
    %v8452 = vpop.f32.mrf.mxu0
    %v8453 = vadd.f32 %v8343, %v8452
    %8454 = vdwg.mxu0
    %8455 = vmatpush.msra.mxu0 %v7529
    %8456 = vmatpush.msra.mxu0 %v7528
    %8457 = vmatpush.msra.mxu0 %v7527
    %8458 = vmatpush.msra.mxu0 %v7526
    %8459 = vmatpush.msra.mxu0 %v7525
    %8460 = vmatpush.msra.mxu0 %v7524
    %8461 = vmatpush.msra.mxu0 %v7523
    %8462 = vmatpush.msra.mxu0 %v7522
    %8463 = vmatpush.msra.mxu0 %v7521
    %8464 = vmatpush.msra.mxu0 %v7520
    %8465 = vmatpush.msra.mxu0 %v7519
    %8466 = vmatpush.msra.mxu0 %v7518
    %8467 = vmatpush.msra.mxu0 %v7517
    %8468 = vmatpush.msra.mxu0 %v7516
    %8469 = vmatpush.msra.mxu0 %v7515
    %8470 = vmatpush.msra.mxu0 %v7514
    %8471 = vmatmul.f32.gmra.mxu0 %v7564
    %v8472 = vpop.f32.mrf.mxu0
    %v8473 = vadd.f32 %v8363, %v8472
    %8474 = vmatmul.f32.gmra.mxu0 %v7572
    %v8475 = vpop.f32.mrf.mxu0
    %v8476 = vadd.f32 %v8366, %v8475
    %8477 = vmatmul.f32.gmra.mxu0 %v7580
    %v8478 = vpop.f32.mrf.mxu0
    %v8479 = vadd.f32 %v8369, %v8478
    %8480 = vmatmul.f32.gmra.mxu0 %v7588
    %v8481 = vpop.f32.mrf.mxu0
    %v8482 = vadd.f32 %v8372, %v8481
    %8483 = vmatmul.f32.gmra.mxu0 %v7596
    %v8484 = vpop.f32.mrf.mxu0
    %v8485 = vadd.f32 %v8375, %v8484
    %8486 = vmatmul.f32.gmra.mxu0 %v7604
    %v8487 = vpop.f32.mrf.mxu0
    %v8488 = vadd.f32 %v8378, %v8487
    %8489 = vmatmul.f32.gmra.mxu0 %v7612
    %v8490 = vpop.f32.mrf.mxu0
    %v8491 = vadd.f32 %v8381, %v8490
    %8492 = vmatmul.f32.gmra.mxu0 %v7620
    %v8493 = vpop.f32.mrf.mxu0
    %v8494 = vadd.f32 %v8384, %v8493
    %8495 = vmatmul.f32.gmra.mxu0 %v7628
    %v8496 = vpop.f32.mrf.mxu0
    %v8497 = vadd.f32 %v8387, %v8496
    %8498 = vmatmul.f32.gmra.mxu0 %v7636
    %v8499 = vpop.f32.mrf.mxu0
    %v8500 = vadd.f32 %v8390, %v8499
    %8501 = vmatmul.f32.gmra.mxu0 %v7644
    %v8502 = vpop.f32.mrf.mxu0
    %v8503 = vadd.f32 %v8393, %v8502
    %8504 = vmatmul.f32.gmra.mxu0 %v7652
    %v8505 = vpop.f32.mrf.mxu0
    %v8506 = vadd.f32 %v8396, %v8505
    %8507 = vmatmul.f32.gmra.mxu0 %v7660
    %v8508 = vpop.f32.mrf.mxu0
    %v8509 = vadd.f32 %v8399, %v8508
    %8510 = vmatmul.f32.gmra.mxu0 %v7668
    %v8511 = vpop.f32.mrf.mxu0
    %v8512 = vadd.f32 %v8402, %v8511
    %8513 = vmatmul.f32.gmra.mxu0 %v7676
    %v8514 = vpop.f32.mrf.mxu0
    %v8515 = vadd.f32 %v8405, %v8514
    %8516 = vmatmul.f32.gmra.mxu0 %v7684
    %v8517 = vpop.f32.mrf.mxu0
    %v8518 = vadd.f32 %v8408, %v8517
    %8519 = vmatmul.f32.gmra.mxu0 %v7692
    %v8520 = vpop.f32.mrf.mxu0
    %v8521 = vadd.f32 %v8411, %v8520
    %8522 = vmatmul.f32.gmra.mxu0 %v7700
    %v8523 = vpop.f32.mrf.mxu0
    %v8524 = vadd.f32 %v8414, %v8523
    %8525 = vmatmul.f32.gmra.mxu0 %v7708
    %v8526 = vpop.f32.mrf.mxu0
    %v8527 = vadd.f32 %v8417, %v8526
    %8528 = vmatmul.f32.gmra.mxu0 %v7716
    %v8529 = vpop.f32.mrf.mxu0
    %v8530 = vadd.f32 %v8420, %v8529
    %8531 = vmatmul.f32.gmra.mxu0 %v7724
    %v8532 = vpop.f32.mrf.mxu0
    %v8533 = vadd.f32 %v8423, %v8532
    %8534 = vmatmul.f32.gmra.mxu0 %v7732
    %v8535 = vpop.f32.mrf.mxu0
    %v8536 = vadd.f32 %v8426, %v8535
    %8537 = vmatmul.f32.gmra.mxu0 %v7740
    %v8538 = vpop.f32.mrf.mxu0
    %v8539 = vadd.f32 %v8429, %v8538
    %8540 = vmatmul.f32.gmra.mxu0 %v7748
    %v8541 = vpop.f32.mrf.mxu0
    %v8542 = vadd.f32 %v8432, %v8541
    %8543 = vmatmul.f32.gmra.mxu0 %v7756
    %v8544 = vpop.f32.mrf.mxu0
    %v8545 = vadd.f32 %v8435, %v8544
    %8546 = vmatmul.f32.gmra.mxu0 %v7764
    %v8547 = vpop.f32.mrf.mxu0
    %v8548 = vadd.f32 %v8438, %v8547
    %8549 = vmatmul.f32.gmra.mxu0 %v7772
    %v8550 = vpop.f32.mrf.mxu0
    %v8551 = vadd.f32 %v8441, %v8550
    %8552 = vmatmul.f32.gmra.mxu0 %v7780
    %v8553 = vpop.f32.mrf.mxu0
    %v8554 = vadd.f32 %v8444, %v8553
    %8555 = vmatmul.f32.gmra.mxu0 %v7788
    %v8556 = vpop.f32.mrf.mxu0
    %v8557 = vadd.f32 %v8447, %v8556
    %8558 = vmatmul.f32.gmra.mxu0 %v7796
    %v8559 = vpop.f32.mrf.mxu0
    %v8560 = vadd.f32 %v8450, %v8559
    %8561 = vmatmul.f32.gmra.mxu0 %v7804
    %v8562 = vpop.f32.mrf.mxu0
    %v8563 = vadd.f32 %v8453, %v8562
    %8564 = vdwg.mxu0
    %8565 = vmatpush.msra.mxu0 %v7545
    %8566 = vmatpush.msra.mxu0 %v7544
    %8567 = vmatpush.msra.mxu0 %v7543
    %8568 = vmatpush.msra.mxu0 %v7542
    %8569 = vmatpush.msra.mxu0 %v7541
    %8570 = vmatpush.msra.mxu0 %v7540
    %8571 = vmatpush.msra.mxu0 %v7539
    %8572 = vmatpush.msra.mxu0 %v7538
    %8573 = vmatpush.msra.mxu0 %v7537
    %8574 = vmatpush.msra.mxu0 %v7536
    %8575 = vmatpush.msra.mxu0 %v7535
    %8576 = vmatpush.msra.mxu0 %v7534
    %8577 = vmatpush.msra.mxu0 %v7533
    %8578 = vmatpush.msra.mxu0 %v7532
    %8579 = vmatpush.msra.mxu0 %v7531
    %8580 = vmatpush.msra.mxu0 %v7530
    %8581 = vmatmul.f32.gmra.mxu0 %v7565
    %v8582 = vpop.f32.mrf.mxu0
    %v8583 = vadd.f32 %v8473, %v8582
    %8584 = vmatmul.f32.gmra.mxu0 %v7573
    %v8585 = vpop.f32.mrf.mxu0
    %v8586 = vadd.f32 %v8476, %v8585
    %8587 = vmatmul.f32.gmra.mxu0 %v7581
    %v8588 = vpop.f32.mrf.mxu0
    %v8589 = vadd.f32 %v8479, %v8588
    %8590 = vmatmul.f32.gmra.mxu0 %v7589
    %v8591 = vpop.f32.mrf.mxu0
    %v8592 = vadd.f32 %v8482, %v8591
    %8593 = vmatmul.f32.gmra.mxu0 %v7597
    %v8594 = vpop.f32.mrf.mxu0
    %v8595 = vadd.f32 %v8485, %v8594
    %8596 = vmatmul.f32.gmra.mxu0 %v7605
    %v8597 = vpop.f32.mrf.mxu0
    %v8598 = vadd.f32 %v8488, %v8597
    %8599 = vmatmul.f32.gmra.mxu0 %v7613
    %v8600 = vpop.f32.mrf.mxu0
    %v8601 = vadd.f32 %v8491, %v8600
    %8602 = vmatmul.f32.gmra.mxu0 %v7621
    %v8603 = vpop.f32.mrf.mxu0
    %v8604 = vadd.f32 %v8494, %v8603
    %8605 = vmatmul.f32.gmra.mxu0 %v7629
    %v8606 = vpop.f32.mrf.mxu0
    %v8607 = vadd.f32 %v8497, %v8606
    %8608 = vmatmul.f32.gmra.mxu0 %v7637
    %v8609 = vpop.f32.mrf.mxu0
    %v8610 = vadd.f32 %v8500, %v8609
    %8611 = vmatmul.f32.gmra.mxu0 %v7645
    %v8612 = vpop.f32.mrf.mxu0
    %v8613 = vadd.f32 %v8503, %v8612
    %8614 = vmatmul.f32.gmra.mxu0 %v7653
    %v8615 = vpop.f32.mrf.mxu0
    %v8616 = vadd.f32 %v8506, %v8615
    %8617 = vmatmul.f32.gmra.mxu0 %v7661
    %v8618 = vpop.f32.mrf.mxu0
    %v8619 = vadd.f32 %v8509, %v8618
    %8620 = vmatmul.f32.gmra.mxu0 %v7669
    %v8621 = vpop.f32.mrf.mxu0
    %v8622 = vadd.f32 %v8512, %v8621
    %8623 = vmatmul.f32.gmra.mxu0 %v7677
    %v8624 = vpop.f32.mrf.mxu0
    %v8625 = vadd.f32 %v8515, %v8624
    %8626 = vmatmul.f32.gmra.mxu0 %v7685
    %v8627 = vpop.f32.mrf.mxu0
    %v8628 = vadd.f32 %v8518, %v8627
    %8629 = vmatmul.f32.gmra.mxu0 %v7693
    %v8630 = vpop.f32.mrf.mxu0
    %v8631 = vadd.f32 %v8521, %v8630
    %8632 = vmatmul.f32.gmra.mxu0 %v7701
    %v8633 = vpop.f32.mrf.mxu0
    %v8634 = vadd.f32 %v8524, %v8633
    %8635 = vmatmul.f32.gmra.mxu0 %v7709
    %v8636 = vpop.f32.mrf.mxu0
    %v8637 = vadd.f32 %v8527, %v8636
    %8638 = vmatmul.f32.gmra.mxu0 %v7717
    %v8639 = vpop.f32.mrf.mxu0
    %v8640 = vadd.f32 %v8530, %v8639
    %8641 = vmatmul.f32.gmra.mxu0 %v7725
    %v8642 = vpop.f32.mrf.mxu0
    %v8643 = vadd.f32 %v8533, %v8642
    %8644 = vmatmul.f32.gmra.mxu0 %v7733
    %v8645 = vpop.f32.mrf.mxu0
    %v8646 = vadd.f32 %v8536, %v8645
    %8647 = vmatmul.f32.gmra.mxu0 %v7741
    %v8648 = vpop.f32.mrf.mxu0
    %v8649 = vadd.f32 %v8539, %v8648
    %8650 = vmatmul.f32.gmra.mxu0 %v7749
    %v8651 = vpop.f32.mrf.mxu0
    %v8652 = vadd.f32 %v8542, %v8651
    %8653 = vmatmul.f32.gmra.mxu0 %v7757
    %v8654 = vpop.f32.mrf.mxu0
    %v8655 = vadd.f32 %v8545, %v8654
    %8656 = vmatmul.f32.gmra.mxu0 %v7765
    %v8657 = vpop.f32.mrf.mxu0
    %v8658 = vadd.f32 %v8548, %v8657
    %8659 = vmatmul.f32.gmra.mxu0 %v7773
    %v8660 = vpop.f32.mrf.mxu0
    %v8661 = vadd.f32 %v8551, %v8660
    %8662 = vmatmul.f32.gmra.mxu0 %v7781
    %v8663 = vpop.f32.mrf.mxu0
    %v8664 = vadd.f32 %v8554, %v8663
    %8665 = vmatmul.f32.gmra.mxu0 %v7789
    %v8666 = vpop.f32.mrf.mxu0
    %v8667 = vadd.f32 %v8557, %v8666
    %8668 = vmatmul.f32.gmra.mxu0 %v7797
    %v8669 = vpop.f32.mrf.mxu0
    %v8670 = vadd.f32 %v8560, %v8669
    %8671 = vmatmul.f32.gmra.mxu0 %v7805
    %v8672 = vpop.f32.mrf.mxu0
    %v8673 = vadd.f32 %v8563, %v8672
    %8674 = vdwg.mxu0
    %8675 = vmatpush.msra.mxu0 0.0
    %8676 = vmatpush.msra.mxu0 0.0
    %8677 = vmatpush.msra.mxu0 0.0
    %8678 = vmatpush.msra.mxu0 %v7903
    %8679 = vmatpush.msra.mxu0 %v7557
    %8680 = vmatpush.msra.mxu0 %v7556
    %8681 = vmatpush.msra.mxu0 %v7555
    %8682 = vmatpush.msra.mxu0 %v7554
    %8683 = vmatpush.msra.mxu0 %v7553
    %8684 = vmatpush.msra.mxu0 %v7552
    %8685 = vmatpush.msra.mxu0 %v7551
    %8686 = vmatpush.msra.mxu0 %v7550
    %8687 = vmatpush.msra.mxu0 %v7549
    %8688 = vmatpush.msra.mxu0 %v7548
    %8689 = vmatpush.msra.mxu0 %v7547
    %8690 = vmatpush.msra.mxu0 %v7546
    %8691 = vmatmul.f32.gmra.mxu0 %v7809
    %v8692 = vpop.f32.mrf.mxu0
    %v8693 = vadd.f32 %v8583, %v8692
    %8694 = vmatmul.f32.gmra.mxu0 %v7812
    %v8695 = vpop.f32.mrf.mxu0
    %v8696 = vadd.f32 %v8586, %v8695
    %8697 = vmatmul.f32.gmra.mxu0 %v7815
    %v8698 = vpop.f32.mrf.mxu0
    %v8699 = vadd.f32 %v8589, %v8698
    %8700 = vmatmul.f32.gmra.mxu0 %v7818
    %v8701 = vpop.f32.mrf.mxu0
    %v8702 = vadd.f32 %v8592, %v8701
    %8703 = vmatmul.f32.gmra.mxu0 %v7821
    %v8704 = vpop.f32.mrf.mxu0
    %v8705 = vadd.f32 %v8595, %v8704
    %8706 = vmatmul.f32.gmra.mxu0 %v7824
    %v8707 = vpop.f32.mrf.mxu0
    %v8708 = vadd.f32 %v8598, %v8707
    %8709 = vmatmul.f32.gmra.mxu0 %v7827
    %v8710 = vpop.f32.mrf.mxu0
    %v8711 = vadd.f32 %v8601, %v8710
    %8712 = vmatmul.f32.gmra.mxu0 %v7830
    %v8713 = vpop.f32.mrf.mxu0
    %v8714 = vadd.f32 %v8604, %v8713
    %8715 = vmatmul.f32.gmra.mxu0 %v7833
    %v8716 = vpop.f32.mrf.mxu0
    %v8717 = vadd.f32 %v8607, %v8716
    %8718 = vmatmul.f32.gmra.mxu0 %v7836
    %v8719 = vpop.f32.mrf.mxu0
    %v8720 = vadd.f32 %v8610, %v8719
    %8721 = vmatmul.f32.gmra.mxu0 %v7839
    %v8722 = vpop.f32.mrf.mxu0
    %v8723 = vadd.f32 %v8613, %v8722
    %8724 = vmatmul.f32.gmra.mxu0 %v7842
    %v8725 = vpop.f32.mrf.mxu0
    %v8726 = vadd.f32 %v8616, %v8725
    %8727 = vmatmul.f32.gmra.mxu0 %v7845
    %v8728 = vpop.f32.mrf.mxu0
    %v8729 = vadd.f32 %v8619, %v8728
    %8730 = vmatmul.f32.gmra.mxu0 %v7848
    %v8731 = vpop.f32.mrf.mxu0
    %v8732 = vadd.f32 %v8622, %v8731
    %8733 = vmatmul.f32.gmra.mxu0 %v7851
    %v8734 = vpop.f32.mrf.mxu0
    %v8735 = vadd.f32 %v8625, %v8734
    %8736 = vmatmul.f32.gmra.mxu0 %v7854
    %v8737 = vpop.f32.mrf.mxu0
    %v8738 = vadd.f32 %v8628, %v8737
    %8739 = vmatmul.f32.gmra.mxu0 %v7857
    %v8740 = vpop.f32.mrf.mxu0
    %v8741 = vadd.f32 %v8631, %v8740
    %8742 = vmatmul.f32.gmra.mxu0 %v7860
    %v8743 = vpop.f32.mrf.mxu0
    %v8744 = vadd.f32 %v8634, %v8743
    %8745 = vmatmul.f32.gmra.mxu0 %v7863
    %v8746 = vpop.f32.mrf.mxu0
    %v8747 = vadd.f32 %v8637, %v8746
    %8748 = vmatmul.f32.gmra.mxu0 %v7866
    %v8749 = vpop.f32.mrf.mxu0
    %v8750 = vadd.f32 %v8640, %v8749
    %8751 = vmatmul.f32.gmra.mxu0 %v7869
    %v8752 = vpop.f32.mrf.mxu0
    %v8753 = vadd.f32 %v8643, %v8752
    %8754 = vmatmul.f32.gmra.mxu0 %v7872
    %v8755 = vpop.f32.mrf.mxu0
    %v8756 = vadd.f32 %v8646, %v8755
    %8757 = vmatmul.f32.gmra.mxu0 %v7875
    %v8758 = vpop.f32.mrf.mxu0
    %v8759 = vadd.f32 %v8649, %v8758
    %8760 = vmatmul.f32.gmra.mxu0 %v7878
    %v8761 = vpop.f32.mrf.mxu0
    %v8762 = vadd.f32 %v8652, %v8761
    %8763 = vmatmul.f32.gmra.mxu0 %v7881
    %v8764 = vpop.f32.mrf.mxu0
    %v8765 = vadd.f32 %v8655, %v8764
    %8766 = vmatmul.f32.gmra.mxu0 %v7884
    %v8767 = vpop.f32.mrf.mxu0
    %v8768 = vadd.f32 %v8658, %v8767
    %8769 = vmatmul.f32.gmra.mxu0 %v7887
    %v8770 = vpop.f32.mrf.mxu0
    %v8771 = vadd.f32 %v8661, %v8770
    %8772 = vmatmul.f32.gmra.mxu0 %v7890
    %v8773 = vpop.f32.mrf.mxu0
    %v8774 = vadd.f32 %v8664, %v8773
    %8775 = vmatmul.f32.gmra.mxu0 %v7893
    %v8776 = vpop.f32.mrf.mxu0
    %v8777 = vadd.f32 %v8667, %v8776
    %8778 = vmatmul.f32.gmra.mxu0 %v7896
    %v8779 = vpop.f32.mrf.mxu0
    %v8780 = vadd.f32 %v8670, %v8779
    %8781 = vmatmul.f32.gmra.mxu0 %v7899
    %v8782 = vpop.f32.mrf.mxu0
    %v8783 = vadd.f32 %v8673, %v8782
    %8784 = vdwg.mxu0
    %v8785 = vpack.c.bf16 %v8696, %v8693
    %v8786 = vpack.c.bf16 %v8702, %v8699
    %v8787 = vpack.c.bf16 %v8708, %v8705
    %v8788 = vpack.c.bf16 %v8714, %v8711
    %v8789 = vpack.c.bf16 %v8720, %v8717
    %v8790 = vpack.c.bf16 %v8726, %v8723
    %v8791 = vpack.c.bf16 %v8732, %v8729
    %v8792 = vpack.c.bf16 %v8738, %v8735
    %v8793 = vpack.c.bf16 %v8744, %v8741
    %v8794 = vpack.c.bf16 %v8750, %v8747
    %v8795 = vpack.c.bf16 %v8756, %v8753
    %v8796 = vpack.c.bf16 %v8762, %v8759
    %v8797 = vpack.c.bf16 %v8768, %v8765
    %v8798 = vpack.c.bf16 %v8774, %v8771
    %v8799 = vpack.c.bf16 %v8780, %v8777
    %v8800 = vpack.c.bf16 %v8783, %v8783
    %v8801 = vld [vmem:[%s7] sm:$0xf]
    %v8802 = vld [vmem:[%s7 + $0x4] sm:$0xf]
    %v8803 = vld [vmem:[%s7 + $0x8] sm:$0xf]
    %v8804 = vld [vmem:[%s7 + $0xc] sm:$0xf]
    %s8805 = scalar_lea.vmem %s7, 16
    %v8806 = vld [vmem:[%s8805] sm:$0xf]
    %v8807 = vld [vmem:[%s8805 + $0x4] sm:$0xf]
    %v8808 = vld [vmem:[%s8805 + $0x8] sm:$0xf]
    %v8809 = vld [vmem:[%s8805 + $0xc] sm:$0xf]
    %v8811 = vshrl.u32 %v8785, 16
    %v8813 = vshll.u32 %v8785, 16
    %v8815 = vrot.slane %v8813, 1
    %v8816 = vor.u32 %v8811, %v8815
    %v8818 = vshll.u32 %v8786, 16
    %v8820 = vrot.slane %v8818, 1
    %v8821 = vsel %vm284, %v8816, %v8820
    %v8822 = vshrl.u32 %v8786, 16
    %v8824 = vor.u32 %v8822, %v8820
    %v8826 = vshll.u32 %v8787, 16
    %v8828 = vrot.slane %v8826, 1
    %v8829 = vsel %vm284, %v8824, %v8828
    %v8830 = vshrl.u32 %v8787, 16
    %v8832 = vor.u32 %v8830, %v8828
    %v8834 = vshll.u32 %v8788, 16
    %v8836 = vrot.slane %v8834, 1
    %v8837 = vsel %vm284, %v8832, %v8836
    %v8838 = vshrl.u32 %v8788, 16
    %v8840 = vor.u32 %v8838, %v8836
    %v8842 = vshll.u32 %v8789, 16
    %v8844 = vrot.slane %v8842, 1
    %v8845 = vsel %vm284, %v8840, %v8844
    %v8846 = vshrl.u32 %v8789, 16
    %v8848 = vor.u32 %v8846, %v8844
    %v8850 = vshll.u32 %v8790, 16
    %v8852 = vrot.slane %v8850, 1
    %v8853 = vsel %vm284, %v8848, %v8852
    %v8854 = vshrl.u32 %v8790, 16
    %v8856 = vor.u32 %v8854, %v8852
    %v8858 = vshll.u32 %v8791, 16
    %v8860 = vrot.slane %v8858, 1
    %v8861 = vsel %vm284, %v8856, %v8860
    %v8862 = vshrl.u32 %v8791, 16
    %v8864 = vor.u32 %v8862, %v8860
    %v8866 = vshll.u32 %v8792, 16
    %v8868 = vrot.slane %v8866, 1
    %v8869 = vsel %vm284, %v8864, %v8868
    %v8870 = vshrl.u32 %v8792, 16
    %v8872 = vor.u32 %v8870, %v8868
    %v8874 = vshll.u32 %v8793, 16
    %v8876 = vrot.slane %v8874, 1
    %v8877 = vsel %vm284, %v8872, %v8876
    %v8878 = vshrl.u32 %v8793, 16
    %v8880 = vor.u32 %v8878, %v8876
    %v8882 = vshll.u32 %v8794, 16
    %v8884 = vrot.slane %v8882, 1
    %v8885 = vsel %vm284, %v8880, %v8884
    %v8886 = vshrl.u32 %v8794, 16
    %v8888 = vor.u32 %v8886, %v8884
    %v8890 = vshll.u32 %v8795, 16
    %v8892 = vrot.slane %v8890, 1
    %v8893 = vsel %vm284, %v8888, %v8892
    %v8894 = vshrl.u32 %v8795, 16
    %v8896 = vor.u32 %v8894, %v8892
    %v8898 = vshll.u32 %v8796, 16
    %v8900 = vrot.slane %v8898, 1
    %v8901 = vsel %vm284, %v8896, %v8900
    %v8902 = vshrl.u32 %v8796, 16
    %v8904 = vor.u32 %v8902, %v8900
    %v8906 = vshll.u32 %v8797, 16
    %v8908 = vrot.slane %v8906, 1
    %v8909 = vsel %vm284, %v8904, %v8908
    %v8910 = vshrl.u32 %v8797, 16
    %v8912 = vor.u32 %v8910, %v8908
    %v8914 = vshll.u32 %v8798, 16
    %v8916 = vrot.slane %v8914, 1
    %v8917 = vsel %vm284, %v8912, %v8916
    %v8918 = vshrl.u32 %v8798, 16
    %v8920 = vor.u32 %v8918, %v8916
    %v8922 = vshll.u32 %v8799, 16
    %v8924 = vrot.slane %v8922, 1
    %v8925 = vsel %vm284, %v8920, %v8924
    %v8926 = vshrl.u32 %v8799, 16
    %v8928 = vor.u32 %v8926, %v8924
    %v8930 = vshll.u32 %v8800, 16
    %v8932 = vrot.slane %v8930, 1
    %v8933 = vsel %vm284, %v8928, %v8932
    %v8934 = vshrl.u32 %v8800, 16
    %v8936 = vor.u32 %v8934, %v8932
    %v8941 = vunpack.c.l.b16 %v8806
    %v8942 = vunpack.c.l.b16 %v8807
    %v8943 = vunpack.c.l.b16 %v8808
    %v8944 = vunpack.c.l.b16 %v8809
    %v8945 = vpack.c.b16 %v8942, %v8941
    %v8946 = vpack.c.b16 %v8944, %v8943
    %v8950 = vsel %vm5271, %v8821, 0
    %v8953 = vsel %vm5271, %v8829, 0
    %v8956 = vsel %vm5271, %v8837, 0
    %v8959 = vsel %vm5271, %v8845, 0
    %v8962 = vsel %vm5271, %v8853, 0
    %v8965 = vsel %vm5271, %v8861, 0
    %v8968 = vsel %vm5271, %v8869, 0
    %v8971 = vsel %vm5271, %v8877, 0
    %v8974 = vsel %vm5271, %v8885, 0
    %v8977 = vsel %vm5271, %v8893, 0
    %v8980 = vsel %vm5271, %v8901, 0
    %v8983 = vsel %vm5271, %v8909, 0
    %v8986 = vsel %vm5271, %v8917, 0
    %v8989 = vsel %vm5271, %v8925, 0
    %v8992 = vsel %vm5271, %v8933, 0
    %v8995 = vsel %vm5271, %v8936, 0
    %8997 = vmatpush.bf16.msra.mxu0 0
    %8998 = vmatpush.bf16.msra.mxu0 0
    %8999 = vmatpush.bf16.msra.mxu0 0
    %9000 = vmatpush.bf16.msra.mxu0 0
    %9001 = vmatpush.bf16.msra.mxu0 0
    %9002 = vmatpush.bf16.msra.mxu0 0
    %9003 = vmatpush.bf16.msra.mxu0 %v8946
    %9004 = vmatpush.bf16.msra.mxu0 %v8945
    %9005 = vmatmul.bf16.gmra.mxu0 %v8950
    %v9006 = vpop.f32.mrf.mxu0
    %v9007 = vadd.f32 0.0, %v9006
    %v9008 = vpop.f32.mrf.mxu0
    %v9009 = vadd.f32 0.0, %v9008
    %9010 = vmatmul.bf16.gmra.mxu0 %v8953
    %v9011 = vpop.f32.mrf.mxu0
    %v9012 = vadd.f32 0.0, %v9011
    %v9013 = vpop.f32.mrf.mxu0
    %v9014 = vadd.f32 0.0, %v9013
    %9015 = vmatmul.bf16.gmra.mxu0 %v8956
    %v9016 = vpop.f32.mrf.mxu0
    %v9017 = vadd.f32 0.0, %v9016
    %v9018 = vpop.f32.mrf.mxu0
    %v9019 = vadd.f32 0.0, %v9018
    %9020 = vmatmul.bf16.gmra.mxu0 %v8959
    %v9021 = vpop.f32.mrf.mxu0
    %v9022 = vadd.f32 0.0, %v9021
    %v9023 = vpop.f32.mrf.mxu0
    %v9024 = vadd.f32 0.0, %v9023
    %9025 = vmatmul.bf16.gmra.mxu0 %v8962
    %v9026 = vpop.f32.mrf.mxu0
    %v9027 = vadd.f32 0.0, %v9026
    %v9028 = vpop.f32.mrf.mxu0
    %v9029 = vadd.f32 0.0, %v9028
    %9030 = vmatmul.bf16.gmra.mxu0 %v8965
    %v9031 = vpop.f32.mrf.mxu0
    %v9032 = vadd.f32 0.0, %v9031
    %v9033 = vpop.f32.mrf.mxu0
    %v9034 = vadd.f32 0.0, %v9033
    %9035 = vmatmul.bf16.gmra.mxu0 %v8968
    %v9036 = vpop.f32.mrf.mxu0
    %v9037 = vadd.f32 0.0, %v9036
    %v9038 = vpop.f32.mrf.mxu0
    %v9039 = vadd.f32 0.0, %v9038
    %9040 = vmatmul.bf16.gmra.mxu0 %v8971
    %v9041 = vpop.f32.mrf.mxu0
    %v9042 = vadd.f32 0.0, %v9041
    %v9043 = vpop.f32.mrf.mxu0
    %v9044 = vadd.f32 0.0, %v9043
    %9045 = vmatmul.bf16.gmra.mxu0 %v8974
    %v9046 = vpop.f32.mrf.mxu0
    %v9047 = vadd.f32 0.0, %v9046
    %v9048 = vpop.f32.mrf.mxu0
    %v9049 = vadd.f32 0.0, %v9048
    %9050 = vmatmul.bf16.gmra.mxu0 %v8977
    %v9051 = vpop.f32.mrf.mxu0
    %v9052 = vadd.f32 0.0, %v9051
    %v9053 = vpop.f32.mrf.mxu0
    %v9054 = vadd.f32 0.0, %v9053
    %9055 = vmatmul.bf16.gmra.mxu0 %v8980
    %v9056 = vpop.f32.mrf.mxu0
    %v9057 = vadd.f32 0.0, %v9056
    %v9058 = vpop.f32.mrf.mxu0
    %v9059 = vadd.f32 0.0, %v9058
    %9060 = vmatmul.bf16.gmra.mxu0 %v8983
    %v9061 = vpop.f32.mrf.mxu0
    %v9062 = vadd.f32 0.0, %v9061
    %v9063 = vpop.f32.mrf.mxu0
    %v9064 = vadd.f32 0.0, %v9063
    %9065 = vmatmul.bf16.gmra.mxu0 %v8986
    %v9066 = vpop.f32.mrf.mxu0
    %v9067 = vadd.f32 0.0, %v9066
    %v9068 = vpop.f32.mrf.mxu0
    %v9069 = vadd.f32 0.0, %v9068
    %9070 = vmatmul.bf16.gmra.mxu0 %v8989
    %v9071 = vpop.f32.mrf.mxu0
    %v9072 = vadd.f32 0.0, %v9071
    %v9073 = vpop.f32.mrf.mxu0
    %v9074 = vadd.f32 0.0, %v9073
    %9075 = vmatmul.bf16.gmra.mxu0 %v8992
    %v9076 = vpop.f32.mrf.mxu0
    %v9077 = vadd.f32 0.0, %v9076
    %v9078 = vpop.f32.mrf.mxu0
    %v9079 = vadd.f32 0.0, %v9078
    %9080 = vmatmul.bf16.gmra.mxu0 %v8995
    %v9081 = vpop.f32.mrf.mxu0
    %v9082 = vadd.f32 0.0, %v9081
    %v9083 = vpop.f32.mrf.mxu0
    %9084 = vdwg.mxu0
    %v9089 = vunpack.c.l.b16 %v8801
    %v9090 = vunpack.c.l.b16 %v8802
    %v9091 = vunpack.c.l.b16 %v8803
    %v9092 = vunpack.c.l.b16 %v8804
    %v9093 = vpack.c.b16 %v9090, %v9089
    %v9094 = vpack.c.b16 %v9092, %v9091
    %v9097 = vsel %vm5271, %v8785, 0
    %v9099 = vsel %vm5271, %v8786, 0
    %v9101 = vsel %vm5271, %v8787, 0
    %v9103 = vsel %vm5271, %v8788, 0
    %v9105 = vsel %vm5271, %v8789, 0
    %v9107 = vsel %vm5271, %v8790, 0
    %v9109 = vsel %vm5271, %v8791, 0
    %v9111 = vsel %vm5271, %v8792, 0
    %v9113 = vsel %vm5271, %v8793, 0
    %v9115 = vsel %vm5271, %v8794, 0
    %v9117 = vsel %vm5271, %v8795, 0
    %v9119 = vsel %vm5271, %v8796, 0
    %v9121 = vsel %vm5271, %v8797, 0
    %v9123 = vsel %vm5271, %v8798, 0
    %v9125 = vsel %vm5271, %v8799, 0
    %v9127 = vsel %vm5271, %v8800, 0
    %9129 = vmatpush.bf16.msra.mxu0 0
    %9130 = vmatpush.bf16.msra.mxu0 0
    %9131 = vmatpush.bf16.msra.mxu0 0
    %9132 = vmatpush.bf16.msra.mxu0 0
    %9133 = vmatpush.bf16.msra.mxu0 0
    %9134 = vmatpush.bf16.msra.mxu0 0
    %9135 = vmatpush.bf16.msra.mxu0 %v9094
    %9136 = vmatpush.bf16.msra.mxu0 %v9093
    %9137 = vmatmul.bf16.gmra.mxu0 %v9097
    %v9138 = vpop.f32.mrf.mxu0
    %v9139 = vadd.f32 %v9007, %v9138
    %v9140 = vpop.f32.mrf.mxu0
    %v9141 = vadd.f32 %v9009, %v9140
    %9142 = vmatmul.bf16.gmra.mxu0 %v9099
    %v9143 = vpop.f32.mrf.mxu0
    %v9144 = vadd.f32 %v9012, %v9143
    %v9145 = vpop.f32.mrf.mxu0
    %v9146 = vadd.f32 %v9014, %v9145
    %9147 = vmatmul.bf16.gmra.mxu0 %v9101
    %v9148 = vpop.f32.mrf.mxu0
    %v9149 = vadd.f32 %v9017, %v9148
    %v9150 = vpop.f32.mrf.mxu0
    %v9151 = vadd.f32 %v9019, %v9150
    %9152 = vmatmul.bf16.gmra.mxu0 %v9103
    %v9153 = vpop.f32.mrf.mxu0
    %v9154 = vadd.f32 %v9022, %v9153
    %v9155 = vpop.f32.mrf.mxu0
    %v9156 = vadd.f32 %v9024, %v9155
    %9157 = vmatmul.bf16.gmra.mxu0 %v9105
    %v9158 = vpop.f32.mrf.mxu0
    %v9159 = vadd.f32 %v9027, %v9158
    %v9160 = vpop.f32.mrf.mxu0
    %v9161 = vadd.f32 %v9029, %v9160
    %9162 = vmatmul.bf16.gmra.mxu0 %v9107
    %v9163 = vpop.f32.mrf.mxu0
    %v9164 = vadd.f32 %v9032, %v9163
    %v9165 = vpop.f32.mrf.mxu0
    %v9166 = vadd.f32 %v9034, %v9165
    %9167 = vmatmul.bf16.gmra.mxu0 %v9109
    %v9168 = vpop.f32.mrf.mxu0
    %v9169 = vadd.f32 %v9037, %v9168
    %v9170 = vpop.f32.mrf.mxu0
    %v9171 = vadd.f32 %v9039, %v9170
    %9172 = vmatmul.bf16.gmra.mxu0 %v9111
    %v9173 = vpop.f32.mrf.mxu0
    %v9174 = vadd.f32 %v9042, %v9173
    %v9175 = vpop.f32.mrf.mxu0
    %v9176 = vadd.f32 %v9044, %v9175
    %9177 = vmatmul.bf16.gmra.mxu0 %v9113
    %v9178 = vpop.f32.mrf.mxu0
    %v9179 = vadd.f32 %v9047, %v9178
    %v9180 = vpop.f32.mrf.mxu0
    %v9181 = vadd.f32 %v9049, %v9180
    %9182 = vmatmul.bf16.gmra.mxu0 %v9115
    %v9183 = vpop.f32.mrf.mxu0
    %v9184 = vadd.f32 %v9052, %v9183
    %v9185 = vpop.f32.mrf.mxu0
    %v9186 = vadd.f32 %v9054, %v9185
    %9187 = vmatmul.bf16.gmra.mxu0 %v9117
    %v9188 = vpop.f32.mrf.mxu0
    %v9189 = vadd.f32 %v9057, %v9188
    %v9190 = vpop.f32.mrf.mxu0
    %v9191 = vadd.f32 %v9059, %v9190
    %9192 = vmatmul.bf16.gmra.mxu0 %v9119
    %v9193 = vpop.f32.mrf.mxu0
    %v9194 = vadd.f32 %v9062, %v9193
    %v9195 = vpop.f32.mrf.mxu0
    %v9196 = vadd.f32 %v9064, %v9195
    %9197 = vmatmul.bf16.gmra.mxu0 %v9121
    %v9198 = vpop.f32.mrf.mxu0
    %v9199 = vadd.f32 %v9067, %v9198
    %v9200 = vpop.f32.mrf.mxu0
    %v9201 = vadd.f32 %v9069, %v9200
    %9202 = vmatmul.bf16.gmra.mxu0 %v9123
    %v9203 = vpop.f32.mrf.mxu0
    %v9204 = vadd.f32 %v9072, %v9203
    %v9205 = vpop.f32.mrf.mxu0
    %v9206 = vadd.f32 %v9074, %v9205
    %9207 = vmatmul.bf16.gmra.mxu0 %v9125
    %v9208 = vpop.f32.mrf.mxu0
    %v9209 = vadd.f32 %v9077, %v9208
    %v9210 = vpop.f32.mrf.mxu0
    %v9211 = vadd.f32 %v9079, %v9210
    %9212 = vmatmul.bf16.gmra.mxu0 %v9127
    %v9213 = vpop.f32.mrf.mxu0
    %v9214 = vadd.f32 %v9082, %v9213
    %v9215 = vpop.f32.mrf.mxu0
    %9216 = vdwg.mxu0
    %s9217 = scalar_lea.vmem %s7, 32
    %v9218 = vld [vmem:[%s9217] sm:$0xf]
    %v9219 = vld [vmem:[%s9217 + $0x4] sm:$0xf]
    %v9220 = vld [vmem:[%s9217 + $0x8] sm:$0xf]
    %v9221 = vld [vmem:[%s9217 + $0xc] sm:$0xf]
    %v9238 = vrot.slane %v8785, 1
    %v9239 = vrot.slane %v8786, 1
    %v9240 = vsel %vm1828, %v9238, %v9239
    %v9241 = vrot.slane %v8787, 1
    %v9242 = vsel %vm1828, %v9239, %v9241
    %v9243 = vrot.slane %v8788, 1
    %v9244 = vsel %vm1828, %v9241, %v9243
    %v9245 = vrot.slane %v8789, 1
    %v9246 = vsel %vm1828, %v9243, %v9245
    %v9247 = vrot.slane %v8790, 1
    %v9248 = vsel %vm1828, %v9245, %v9247
    %v9249 = vrot.slane %v8791, 1
    %v9250 = vsel %vm1828, %v9247, %v9249
    %v9251 = vrot.slane %v8792, 1
    %v9252 = vsel %vm1828, %v9249, %v9251
    %v9253 = vrot.slane %v8793, 1
    %v9254 = vsel %vm1828, %v9251, %v9253
    %v9255 = vrot.slane %v8794, 1
    %v9256 = vsel %vm1828, %v9253, %v9255
    %v9257 = vrot.slane %v8795, 1
    %v9258 = vsel %vm1828, %v9255, %v9257
    %v9259 = vrot.slane %v8796, 1
    %v9260 = vsel %vm1828, %v9257, %v9259
    %v9261 = vrot.slane %v8797, 1
    %v9262 = vsel %vm1828, %v9259, %v9261
    %v9263 = vrot.slane %v8798, 1
    %v9264 = vsel %vm1828, %v9261, %v9263
    %v9265 = vrot.slane %v8799, 1
    %v9266 = vsel %vm1828, %v9263, %v9265
    %v9267 = vrot.slane %v8800, 1
    %v9268 = vsel %vm1828, %v9265, %v9267
    %v9273 = vunpack.c.l.b16 %v9218
    %v9274 = vunpack.c.l.b16 %v9219
    %v9275 = vunpack.c.l.b16 %v9220
    %v9276 = vunpack.c.l.b16 %v9221
    %v9277 = vpack.c.b16 %v9274, %v9273
    %v9278 = vpack.c.b16 %v9276, %v9275
    %v9282 = vsel %vm5271, %v9240, 0
    %v9285 = vsel %vm5271, %v9242, 0
    %v9288 = vsel %vm5271, %v9244, 0
    %v9291 = vsel %vm5271, %v9246, 0
    %v9294 = vsel %vm5271, %v9248, 0
    %v9297 = vsel %vm5271, %v9250, 0
    %v9300 = vsel %vm5271, %v9252, 0
    %v9303 = vsel %vm5271, %v9254, 0
    %v9306 = vsel %vm5271, %v9256, 0
    %v9309 = vsel %vm5271, %v9258, 0
    %v9312 = vsel %vm5271, %v9260, 0
    %v9315 = vsel %vm5271, %v9262, 0
    %v9318 = vsel %vm5271, %v9264, 0
    %v9321 = vsel %vm5271, %v9266, 0
    %v9324 = vsel %vm5271, %v9268, 0
    %v9327 = vsel %vm5271, %v9267, 0
    %9329 = vmatpush.bf16.msra.mxu0 0
    %9330 = vmatpush.bf16.msra.mxu0 0
    %9331 = vmatpush.bf16.msra.mxu0 0
    %9332 = vmatpush.bf16.msra.mxu0 0
    %9333 = vmatpush.bf16.msra.mxu0 0
    %9334 = vmatpush.bf16.msra.mxu0 0
    %9335 = vmatpush.bf16.msra.mxu0 %v9278
    %9336 = vmatpush.bf16.msra.mxu0 %v9277
    %9337 = vmatmul.bf16.gmra.mxu0 %v9282
    %v9338 = vpop.f32.mrf.mxu0
    %v9339 = vadd.f32 0.0, %v9338
    %v9340 = vpop.f32.mrf.mxu0
    %v9341 = vadd.f32 0.0, %v9340
    %9342 = vmatmul.bf16.gmra.mxu0 %v9285
    %v9343 = vpop.f32.mrf.mxu0
    %v9344 = vadd.f32 0.0, %v9343
    %v9345 = vpop.f32.mrf.mxu0
    %v9346 = vadd.f32 0.0, %v9345
    %9347 = vmatmul.bf16.gmra.mxu0 %v9288
    %v9348 = vpop.f32.mrf.mxu0
    %v9349 = vadd.f32 0.0, %v9348
    %v9350 = vpop.f32.mrf.mxu0
    %v9351 = vadd.f32 0.0, %v9350
    %9352 = vmatmul.bf16.gmra.mxu0 %v9291
    %v9353 = vpop.f32.mrf.mxu0
    %v9354 = vadd.f32 0.0, %v9353
    %v9355 = vpop.f32.mrf.mxu0
    %v9356 = vadd.f32 0.0, %v9355
    %9357 = vmatmul.bf16.gmra.mxu0 %v9294
    %v9358 = vpop.f32.mrf.mxu0
    %v9359 = vadd.f32 0.0, %v9358
    %v9360 = vpop.f32.mrf.mxu0
    %v9361 = vadd.f32 0.0, %v9360
    %9362 = vmatmul.bf16.gmra.mxu0 %v9297
    %v9363 = vpop.f32.mrf.mxu0
    %v9364 = vadd.f32 0.0, %v9363
    %v9365 = vpop.f32.mrf.mxu0
    %v9366 = vadd.f32 0.0, %v9365
    %9367 = vmatmul.bf16.gmra.mxu0 %v9300
    %v9368 = vpop.f32.mrf.mxu0
    %v9369 = vadd.f32 0.0, %v9368
    %v9370 = vpop.f32.mrf.mxu0
    %v9371 = vadd.f32 0.0, %v9370
    %9372 = vmatmul.bf16.gmra.mxu0 %v9303
    %v9373 = vpop.f32.mrf.mxu0
    %v9374 = vadd.f32 0.0, %v9373
    %v9375 = vpop.f32.mrf.mxu0
    %v9376 = vadd.f32 0.0, %v9375
    %9377 = vmatmul.bf16.gmra.mxu0 %v9306
    %v9378 = vpop.f32.mrf.mxu0
    %v9379 = vadd.f32 0.0, %v9378
    %v9380 = vpop.f32.mrf.mxu0
    %v9381 = vadd.f32 0.0, %v9380
    %9382 = vmatmul.bf16.gmra.mxu0 %v9309
    %v9383 = vpop.f32.mrf.mxu0
    %v9384 = vadd.f32 0.0, %v9383
    %v9385 = vpop.f32.mrf.mxu0
    %v9386 = vadd.f32 0.0, %v9385
    %9387 = vmatmul.bf16.gmra.mxu0 %v9312
    %v9388 = vpop.f32.mrf.mxu0
    %v9389 = vadd.f32 0.0, %v9388
    %v9390 = vpop.f32.mrf.mxu0
    %v9391 = vadd.f32 0.0, %v9390
    %9392 = vmatmul.bf16.gmra.mxu0 %v9315
    %v9393 = vpop.f32.mrf.mxu0
    %v9394 = vadd.f32 0.0, %v9393
    %v9395 = vpop.f32.mrf.mxu0
    %v9396 = vadd.f32 0.0, %v9395
    %9397 = vmatmul.bf16.gmra.mxu0 %v9318
    %v9398 = vpop.f32.mrf.mxu0
    %v9399 = vadd.f32 0.0, %v9398
    %v9400 = vpop.f32.mrf.mxu0
    %v9401 = vadd.f32 0.0, %v9400
    %9402 = vmatmul.bf16.gmra.mxu0 %v9321
    %v9403 = vpop.f32.mrf.mxu0
    %v9404 = vadd.f32 0.0, %v9403
    %v9405 = vpop.f32.mrf.mxu0
    %v9406 = vadd.f32 0.0, %v9405
    %9407 = vmatmul.bf16.gmra.mxu0 %v9324
    %v9408 = vpop.f32.mrf.mxu0
    %v9409 = vadd.f32 0.0, %v9408
    %v9410 = vpop.f32.mrf.mxu0
    %v9411 = vadd.f32 0.0, %v9410
    %9412 = vmatmul.bf16.gmra.mxu0 %v9327
    %v9413 = vpop.f32.mrf.mxu0
    %v9414 = vadd.f32 0.0, %v9413
    %v9415 = vpop.f32.mrf.mxu0
    %9416 = vdwg.mxu0
    %v9417 = vadd.f32 %v9139, %v9339
    %v9418 = vadd.f32 %v9141, %v9341
    %v9419 = vadd.f32 %v9144, %v9344
    %v9420 = vadd.f32 %v9146, %v9346
    %v9421 = vadd.f32 %v9149, %v9349
    %v9422 = vadd.f32 %v9151, %v9351
    %v9423 = vadd.f32 %v9154, %v9354
    %v9424 = vadd.f32 %v9156, %v9356
    %v9425 = vadd.f32 %v9159, %v9359
    %v9426 = vadd.f32 %v9161, %v9361
    %v9427 = vadd.f32 %v9164, %v9364
    %v9428 = vadd.f32 %v9166, %v9366
    %v9429 = vadd.f32 %v9169, %v9369
    %v9430 = vadd.f32 %v9171, %v9371
    %v9431 = vadd.f32 %v9174, %v9374
    %v9432 = vadd.f32 %v9176, %v9376
    %v9433 = vadd.f32 %v9179, %v9379
    %v9434 = vadd.f32 %v9181, %v9381
    %v9435 = vadd.f32 %v9184, %v9384
    %v9436 = vadd.f32 %v9186, %v9386
    %v9437 = vadd.f32 %v9189, %v9389
    %v9438 = vadd.f32 %v9191, %v9391
    %v9439 = vadd.f32 %v9194, %v9394
    %v9440 = vadd.f32 %v9196, %v9396
    %v9441 = vadd.f32 %v9199, %v9399
    %v9442 = vadd.f32 %v9201, %v9401
    %v9443 = vadd.f32 %v9204, %v9404
    %v9444 = vadd.f32 %v9206, %v9406
    %v9445 = vadd.f32 %v9209, %v9409
    %v9446 = vadd.f32 %v9211, %v9411
    %v9447 = vadd.f32 %v9214, %v9414
    %v9448 = vld [vmem:[%s8] sm:$0x1]
    %v9450 = vperm.slane %v9448, 0
    %v9452 = vadd.f32 %v9417, %v9450
    %v9453 = vadd.f32 %v9418, %v9450
    %v9454 = vadd.f32 %v9419, %v9450
    %v9455 = vadd.f32 %v9420, %v9450
    %v9456 = vadd.f32 %v9421, %v9450
    %v9457 = vadd.f32 %v9422, %v9450
    %v9458 = vadd.f32 %v9423, %v9450
    %v9459 = vadd.f32 %v9424, %v9450
    %v9460 = vadd.f32 %v9425, %v9450
    %v9461 = vadd.f32 %v9426, %v9450
    %v9462 = vadd.f32 %v9427, %v9450
    %v9463 = vadd.f32 %v9428, %v9450
    %v9464 = vadd.f32 %v9429, %v9450
    %v9465 = vadd.f32 %v9430, %v9450
    %v9466 = vadd.f32 %v9431, %v9450
    %v9467 = vadd.f32 %v9432, %v9450
    %v9468 = vadd.f32 %v9433, %v9450
    %v9469 = vadd.f32 %v9434, %v9450
    %v9470 = vadd.f32 %v9435, %v9450
    %v9471 = vadd.f32 %v9436, %v9450
    %v9472 = vadd.f32 %v9437, %v9450
    %v9473 = vadd.f32 %v9438, %v9450
    %v9474 = vadd.f32 %v9439, %v9450
    %v9475 = vadd.f32 %v9440, %v9450
    %v9476 = vadd.f32 %v9441, %v9450
    %v9477 = vadd.f32 %v9442, %v9450
    %v9478 = vadd.f32 %v9443, %v9450
    %v9479 = vadd.f32 %v9444, %v9450
    %v9480 = vadd.f32 %v9445, %v9450
    %v9481 = vadd.f32 %v9446, %v9450
    %v9482 = vadd.f32 %v9447, %v9450
    %v9483 = vld [vmem:[%s11] sm:$0xff]
    %v9484 = vld [vmem:[%s11 + $0x8] sm:$0xff]
    %v9485 = vld [vmem:[%s11 + $0x10] sm:$0xff]
    %v9486 = vld [vmem:[%s11 + $0x18] sm:$0xff]
    %v9487 = vld [vmem:[%s11 + $0x20] sm:$0xff]
    %v9488 = vld [vmem:[%s11 + $0x28] sm:$0xff]
    %v9489 = vld [vmem:[%s11 + $0x30] sm:$0xff]
    %v9490 = vld [vmem:[%s11 + $0x38] sm:$0xff]
    %v9491 = vld [vmem:[%s11 + $0x40] sm:$0xff]
    %v9492 = vld [vmem:[%s11 + $0x48] sm:$0xff]
    %v9493 = vld [vmem:[%s11 + $0x50] sm:$0xff]
    %v9494 = vld [vmem:[%s11 + $0x58] sm:$0xff]
    %v9495 = vld [vmem:[%s11 + $0x60] sm:$0xff]
    %v9496 = vld [vmem:[%s11 + $0x68] sm:$0xff]
    %v9497 = vld [vmem:[%s11 + $0x70] sm:$0xff]
    %v9498 = vld [vmem:[%s11 + $0x78] sm:$0xff]
    %v9499 = vld [vmem:[%s11 + $0x80] sm:$0xff]
    %v9500 = vld [vmem:[%s11 + $0x88] sm:$0xff]
    %v9501 = vld [vmem:[%s11 + $0x90] sm:$0xff]
    %v9502 = vld [vmem:[%s11 + $0x98] sm:$0xff]
    %v9503 = vld [vmem:[%s11 + $0xa0] sm:$0xff]
    %v9504 = vld [vmem:[%s11 + $0xa8] sm:$0xff]
    %v9505 = vld [vmem:[%s11 + $0xb0] sm:$0xff]
    %v9506 = vld [vmem:[%s11 + $0xb8] sm:$0xff]
    %v9507 = vld [vmem:[%s11 + $0xc0] sm:$0xff]
    %v9508 = vld [vmem:[%s11 + $0xc8] sm:$0xff]
    %v9509 = vld [vmem:[%s11 + $0xd0] sm:$0xff]
    %v9510 = vld [vmem:[%s11 + $0xd8] sm:$0xff]
    %v9511 = vld [vmem:[%s11 + $0xe0] sm:$0xff]
    %v9512 = vld [vmem:[%s11 + $0xe8] sm:$0xff]
    %v9513 = vld [vmem:[%s11 + $0xf0] sm:$0x3f]
    %9515 = vset.pattern.permute.xlu0 0
    %9516 = vperm.xlu0 %9515, %v9483
    %v9517 = vpop.permute.xlu0 %9516
    %9520 = vset.pattern.permute.xlu0 0
    %9521 = vperm.xlu0 %9520, %v9484
    %v9522 = vpop.permute.xlu0 %9521
    %9525 = vset.pattern.permute.xlu0 0
    %9526 = vperm.xlu0 %9525, %v9485
    %v9527 = vpop.permute.xlu0 %9526
    %9530 = vset.pattern.permute.xlu0 0
    %9531 = vperm.xlu0 %9530, %v9486
    %v9532 = vpop.permute.xlu0 %9531
    %9535 = vset.pattern.permute.xlu0 0
    %9536 = vperm.xlu0 %9535, %v9487
    %v9537 = vpop.permute.xlu0 %9536
    %9540 = vset.pattern.permute.xlu0 0
    %9541 = vperm.xlu0 %9540, %v9488
    %v9542 = vpop.permute.xlu0 %9541
    %9545 = vset.pattern.permute.xlu0 0
    %9546 = vperm.xlu0 %9545, %v9489
    %v9547 = vpop.permute.xlu0 %9546
    %9550 = vset.pattern.permute.xlu0 0
    %9551 = vperm.xlu0 %9550, %v9490
    %v9552 = vpop.permute.xlu0 %9551
    %9555 = vset.pattern.permute.xlu0 0
    %9556 = vperm.xlu0 %9555, %v9491
    %v9557 = vpop.permute.xlu0 %9556
    %9560 = vset.pattern.permute.xlu0 0
    %9561 = vperm.xlu0 %9560, %v9492
    %v9562 = vpop.permute.xlu0 %9561
    %9565 = vset.pattern.permute.xlu0 0
    %9566 = vperm.xlu0 %9565, %v9493
    %v9567 = vpop.permute.xlu0 %9566
    %9570 = vset.pattern.permute.xlu0 0
    %9571 = vperm.xlu0 %9570, %v9494
    %v9572 = vpop.permute.xlu0 %9571
    %9575 = vset.pattern.permute.xlu0 0
    %9576 = vperm.xlu0 %9575, %v9495
    %v9577 = vpop.permute.xlu0 %9576
    %9580 = vset.pattern.permute.xlu0 0
    %9581 = vperm.xlu0 %9580, %v9496
    %v9582 = vpop.permute.xlu0 %9581
    %9585 = vset.pattern.permute.xlu0 0
    %9586 = vperm.xlu0 %9585, %v9497
    %v9587 = vpop.permute.xlu0 %9586
    %9590 = vset.pattern.permute.xlu0 0
    %9591 = vperm.xlu0 %9590, %v9498
    %v9592 = vpop.permute.xlu0 %9591
    %9595 = vset.pattern.permute.xlu0 0
    %9596 = vperm.xlu0 %9595, %v9499
    %v9597 = vpop.permute.xlu0 %9596
    %9600 = vset.pattern.permute.xlu0 0
    %9601 = vperm.xlu0 %9600, %v9500
    %v9602 = vpop.permute.xlu0 %9601
    %9605 = vset.pattern.permute.xlu0 0
    %9606 = vperm.xlu0 %9605, %v9501
    %v9607 = vpop.permute.xlu0 %9606
    %9610 = vset.pattern.permute.xlu0 0
    %9611 = vperm.xlu0 %9610, %v9502
    %v9612 = vpop.permute.xlu0 %9611
    %9615 = vset.pattern.permute.xlu0 0
    %9616 = vperm.xlu0 %9615, %v9503
    %v9617 = vpop.permute.xlu0 %9616
    %9620 = vset.pattern.permute.xlu0 0
    %9621 = vperm.xlu0 %9620, %v9504
    %v9622 = vpop.permute.xlu0 %9621
    %9625 = vset.pattern.permute.xlu0 0
    %9626 = vperm.xlu0 %9625, %v9505
    %v9627 = vpop.permute.xlu0 %9626
    %9630 = vset.pattern.permute.xlu0 0
    %9631 = vperm.xlu0 %9630, %v9506
    %v9632 = vpop.permute.xlu0 %9631
    %9635 = vset.pattern.permute.xlu0 0
    %9636 = vperm.xlu0 %9635, %v9507
    %v9637 = vpop.permute.xlu0 %9636
    %9640 = vset.pattern.permute.xlu0 0
    %9641 = vperm.xlu0 %9640, %v9508
    %v9642 = vpop.permute.xlu0 %9641
    %9645 = vset.pattern.permute.xlu0 0
    %9646 = vperm.xlu0 %9645, %v9509
    %v9647 = vpop.permute.xlu0 %9646
    %9650 = vset.pattern.permute.xlu0 0
    %9651 = vperm.xlu0 %9650, %v9510
    %v9652 = vpop.permute.xlu0 %9651
    %9655 = vset.pattern.permute.xlu0 0
    %9656 = vperm.xlu0 %9655, %v9511
    %v9657 = vpop.permute.xlu0 %9656
    %9660 = vset.pattern.permute.xlu0 0
    %9661 = vperm.xlu0 %9660, %v9512
    %v9662 = vpop.permute.xlu0 %9661
    %9665 = vset.pattern.permute.xlu0 0
    %9666 = vperm.xlu0 %9665, %v9513
    %v9667 = vpop.permute.xlu0 %9666
    %v9669 = vmul.f32 %v9452, %v9517
    %v9670 = vmul.f32 %v9453, %v9522
    %v9671 = vmul.f32 %v9454, %v9527
    %v9672 = vmul.f32 %v9455, %v9532
    %v9673 = vmul.f32 %v9456, %v9537
    %v9674 = vmul.f32 %v9457, %v9542
    %v9675 = vmul.f32 %v9458, %v9547
    %v9676 = vmul.f32 %v9459, %v9552
    %v9677 = vmul.f32 %v9460, %v9557
    %v9678 = vmul.f32 %v9461, %v9562
    %v9679 = vmul.f32 %v9462, %v9567
    %v9680 = vmul.f32 %v9463, %v9572
    %v9681 = vmul.f32 %v9464, %v9577
    %v9682 = vmul.f32 %v9465, %v9582
    %v9683 = vmul.f32 %v9466, %v9587
    %v9684 = vmul.f32 %v9467, %v9592
    %v9685 = vmul.f32 %v9468, %v9597
    %v9686 = vmul.f32 %v9469, %v9602
    %v9687 = vmul.f32 %v9470, %v9607
    %v9688 = vmul.f32 %v9471, %v9612
    %v9689 = vmul.f32 %v9472, %v9617
    %v9690 = vmul.f32 %v9473, %v9622
    %v9691 = vmul.f32 %v9474, %v9627
    %v9692 = vmul.f32 %v9475, %v9632
    %v9693 = vmul.f32 %v9476, %v9637
    %v9694 = vmul.f32 %v9477, %v9642
    %v9695 = vmul.f32 %v9478, %v9647
    %v9696 = vmul.f32 %v9479, %v9652
    %v9697 = vmul.f32 %v9480, %v9657
    %v9698 = vmul.f32 %v9481, %v9662
    %v9699 = vmul.f32 %v9482, %v9667
    %v9700 = vsel %vm5271, %v9669, 0.0
    %v9701 = vsel %vm5271, %v9670, 0.0
    %v9702 = vadd.f32 %v9700, %v9701
    %v9703 = vsel %vm5271, %v9671, 0.0
    %v9704 = vadd.f32 %v9702, %v9703
    %v9705 = vsel %vm5271, %v9672, 0.0
    %v9706 = vadd.f32 %v9704, %v9705
    %v9707 = vsel %vm5271, %v9673, 0.0
    %v9708 = vadd.f32 %v9706, %v9707
    %v9709 = vsel %vm5271, %v9674, 0.0
    %v9710 = vadd.f32 %v9708, %v9709
    %v9711 = vsel %vm5271, %v9675, 0.0
    %v9712 = vadd.f32 %v9710, %v9711
    %v9713 = vsel %vm5271, %v9676, 0.0
    %v9714 = vadd.f32 %v9712, %v9713
    %v9715 = vsel %vm5271, %v9677, 0.0
    %v9716 = vadd.f32 %v9714, %v9715
    %v9717 = vsel %vm5271, %v9678, 0.0
    %v9718 = vadd.f32 %v9716, %v9717
    %v9719 = vsel %vm5271, %v9679, 0.0
    %v9720 = vadd.f32 %v9718, %v9719
    %v9721 = vsel %vm5271, %v9680, 0.0
    %v9722 = vadd.f32 %v9720, %v9721
    %v9723 = vsel %vm5271, %v9681, 0.0
    %v9724 = vadd.f32 %v9722, %v9723
    %v9725 = vsel %vm5271, %v9682, 0.0
    %v9726 = vadd.f32 %v9724, %v9725
    %v9727 = vsel %vm5271, %v9683, 0.0
    %v9728 = vadd.f32 %v9726, %v9727
    %v9729 = vsel %vm5271, %v9684, 0.0
    %v9730 = vadd.f32 %v9728, %v9729
    %v9731 = vsel %vm5271, %v9685, 0.0
    %v9732 = vadd.f32 %v9730, %v9731
    %v9733 = vsel %vm5271, %v9686, 0.0
    %v9734 = vadd.f32 %v9732, %v9733
    %v9735 = vsel %vm5271, %v9687, 0.0
    %v9736 = vadd.f32 %v9734, %v9735
    %v9737 = vsel %vm5271, %v9688, 0.0
    %v9738 = vadd.f32 %v9736, %v9737
    %v9739 = vsel %vm5271, %v9689, 0.0
    %v9740 = vadd.f32 %v9738, %v9739
    %v9741 = vsel %vm5271, %v9690, 0.0
    %v9742 = vadd.f32 %v9740, %v9741
    %v9743 = vsel %vm5271, %v9691, 0.0
    %v9744 = vadd.f32 %v9742, %v9743
    %v9745 = vsel %vm5271, %v9692, 0.0
    %v9746 = vadd.f32 %v9744, %v9745
    %v9747 = vsel %vm5271, %v9693, 0.0
    %v9748 = vadd.f32 %v9746, %v9747
    %v9749 = vsel %vm5271, %v9694, 0.0
    %v9750 = vadd.f32 %v9748, %v9749
    %v9751 = vsel %vm5271, %v9695, 0.0
    %v9752 = vadd.f32 %v9750, %v9751
    %v9753 = vsel %vm5271, %v9696, 0.0
    %v9754 = vadd.f32 %v9752, %v9753
    %v9755 = vsel %vm5271, %v9697, 0.0
    %v9756 = vadd.f32 %v9754, %v9755
    %v9757 = vsel %vm5271, %v9698, 0.0
    %v9758 = vadd.f32 %v9756, %v9757
    %vm9759 = vcmask 259072
    %v9760 = vsel %vm9759, %v9699, 0.0
    %v9761 = vadd.f32 %v9758, %v9760
    %v9762 = vrot.slane %v9761, 4
    %v9763 = vadd.f32 %v9761, %v9762
    %v9764 = vrot.slane %v9763, 2
    %v9765 = vadd.f32 %v9763, %v9764
    %v9766 = vrot.slane %v9765, 1
    %v9767 = vadd.f32 %v9765, %v9766
    %v9768 = vmul.f32 %v9767, 0.0040983604
    %v9769 = vmul.f32 %v9669, %v9452
    %v9770 = vmul.f32 %v9670, %v9453
    %v9771 = vmul.f32 %v9671, %v9454
    %v9772 = vmul.f32 %v9672, %v9455
    %v9773 = vmul.f32 %v9673, %v9456
    %v9774 = vmul.f32 %v9674, %v9457
    %v9775 = vmul.f32 %v9675, %v9458
    %v9776 = vmul.f32 %v9676, %v9459
    %v9777 = vmul.f32 %v9677, %v9460
    %v9778 = vmul.f32 %v9678, %v9461
    %v9779 = vmul.f32 %v9679, %v9462
    %v9780 = vmul.f32 %v9680, %v9463
    %v9781 = vmul.f32 %v9681, %v9464
    %v9782 = vmul.f32 %v9682, %v9465
    %v9783 = vmul.f32 %v9683, %v9466
    %v9784 = vmul.f32 %v9684, %v9467
    %v9785 = vmul.f32 %v9685, %v9468
    %v9786 = vmul.f32 %v9686, %v9469
    %v9787 = vmul.f32 %v9687, %v9470
    %v9788 = vmul.f32 %v9688, %v9471
    %v9789 = vmul.f32 %v9689, %v9472
    %v9790 = vmul.f32 %v9690, %v9473
    %v9791 = vmul.f32 %v9691, %v9474
    %v9792 = vmul.f32 %v9692, %v9475
    %v9793 = vmul.f32 %v9693, %v9476
    %v9794 = vmul.f32 %v9694, %v9477
    %v9795 = vmul.f32 %v9695, %v9478
    %v9796 = vmul.f32 %v9696, %v9479
    %v9797 = vmul.f32 %v9697, %v9480
    %v9798 = vmul.f32 %v9698, %v9481
    %v9799 = vmul.f32 %v9699, %v9482
    %v9800 = vsel %vm5271, %v9769, 0.0
    %v9801 = vsel %vm5271, %v9770, 0.0
    %v9802 = vadd.f32 %v9800, %v9801
    %v9803 = vsel %vm5271, %v9771, 0.0
    %v9804 = vadd.f32 %v9802, %v9803
    %v9805 = vsel %vm5271, %v9772, 0.0
    %v9806 = vadd.f32 %v9804, %v9805
    %v9807 = vsel %vm5271, %v9773, 0.0
    %v9808 = vadd.f32 %v9806, %v9807
    %v9809 = vsel %vm5271, %v9774, 0.0
    %v9810 = vadd.f32 %v9808, %v9809
    %v9811 = vsel %vm5271, %v9775, 0.0
    %v9812 = vadd.f32 %v9810, %v9811
    %v9813 = vsel %vm5271, %v9776, 0.0
    %v9814 = vadd.f32 %v9812, %v9813
    %v9815 = vsel %vm5271, %v9777, 0.0
    %v9816 = vadd.f32 %v9814, %v9815
    %v9817 = vsel %vm5271, %v9778, 0.0
    %v9818 = vadd.f32 %v9816, %v9817
    %v9819 = vsel %vm5271, %v9779, 0.0
    %v9820 = vadd.f32 %v9818, %v9819
    %v9821 = vsel %vm5271, %v9780, 0.0
    %v9822 = vadd.f32 %v9820, %v9821
    %v9823 = vsel %vm5271, %v9781, 0.0
    %v9824 = vadd.f32 %v9822, %v9823
    %v9825 = vsel %vm5271, %v9782, 0.0
    %v9826 = vadd.f32 %v9824, %v9825
    %v9827 = vsel %vm5271, %v9783, 0.0
    %v9828 = vadd.f32 %v9826, %v9827
    %v9829 = vsel %vm5271, %v9784, 0.0
    %v9830 = vadd.f32 %v9828, %v9829
    %v9831 = vsel %vm5271, %v9785, 0.0
    %v9832 = vadd.f32 %v9830, %v9831
    %v9833 = vsel %vm5271, %v9786, 0.0
    %v9834 = vadd.f32 %v9832, %v9833
    %v9835 = vsel %vm5271, %v9787, 0.0
    %v9836 = vadd.f32 %v9834, %v9835
    %v9837 = vsel %vm5271, %v9788, 0.0
    %v9838 = vadd.f32 %v9836, %v9837
    %v9839 = vsel %vm5271, %v9789, 0.0
    %v9840 = vadd.f32 %v9838, %v9839
    %v9841 = vsel %vm5271, %v9790, 0.0
    %v9842 = vadd.f32 %v9840, %v9841
    %v9843 = vsel %vm5271, %v9791, 0.0
    %v9844 = vadd.f32 %v9842, %v9843
    %v9845 = vsel %vm5271, %v9792, 0.0
    %v9846 = vadd.f32 %v9844, %v9845
    %v9847 = vsel %vm5271, %v9793, 0.0
    %v9848 = vadd.f32 %v9846, %v9847
    %v9849 = vsel %vm5271, %v9794, 0.0
    %v9850 = vadd.f32 %v9848, %v9849
    %v9851 = vsel %vm5271, %v9795, 0.0
    %v9852 = vadd.f32 %v9850, %v9851
    %v9853 = vsel %vm5271, %v9796, 0.0
    %v9854 = vadd.f32 %v9852, %v9853
    %v9855 = vsel %vm5271, %v9797, 0.0
    %v9856 = vadd.f32 %v9854, %v9855
    %v9857 = vsel %vm5271, %v9798, 0.0
    %v9858 = vadd.f32 %v9856, %v9857
    %v9859 = vsel %vm9759, %v9799, 0.0
    %v9860 = vadd.f32 %v9858, %v9859
    %v9861 = vrot.slane %v9860, 4
    %v9862 = vadd.f32 %v9860, %v9861
    %v9863 = vrot.slane %v9862, 2
    %v9864 = vadd.f32 %v9862, %v9863
    %v9865 = vrot.slane %v9864, 1
    %v9866 = vadd.f32 %v9864, %v9865
    %v9867 = vmul.f32 %v9866, 0.0040983604
    %v9868 = vmul.f32 %v9768, %v9768
    %v9869 = vsub.f32 %v9867, %v9868
    %v9870 = vld [vmem:[%s9] sm:$0x1]
    %v9871 = vadd.f32 %v9869, 1e-05
    %v9872 = vrsqrt.pop %v9871
    %v9873 = vmul.f32 %v9872, %v9871
    %v9874 = vmul.f32 %v9873, %v9872
    %v9875 = vmul.f32 0.5, %v9874
    %v9876 = vsub.f32 1.5, %v9875
    %v9877 = vmul.f32 %v9872, %v9876
    %vm9878 = vweird.f32 %v9871
    %vm9879 = vweird.f32 %v9872
    %vm9880 = vmor %vm9878, %vm9879
    %v9881 = vsel %vm9880, %v9872, %v9877
    %v9882 = vmul.f32 %v9870, %v9881
    %v9883 = vld [vmem:[%s10] sm:$0x1]
    %v9884 = vmul.f32 %v9768, %v9882
    %v9885 = vsub.f32 %v9883, %v9884
    %v9887 = vperm.slane %v9882, 0
    %v9889 = vmul.f32 %v9452, %v9887
    %v9890 = vmul.f32 %v9453, %v9887
    %v9891 = vmul.f32 %v9454, %v9887
    %v9892 = vmul.f32 %v9455, %v9887
    %v9893 = vmul.f32 %v9456, %v9887
    %v9894 = vmul.f32 %v9457, %v9887
    %v9895 = vmul.f32 %v9458, %v9887
    %v9896 = vmul.f32 %v9459, %v9887
    %v9897 = vmul.f32 %v9460, %v9887
    %v9898 = vmul.f32 %v9461, %v9887
    %v9899 = vmul.f32 %v9462, %v9887
    %v9900 = vmul.f32 %v9463, %v9887
    %v9901 = vmul.f32 %v9464, %v9887
    %v9902 = vmul.f32 %v9465, %v9887
    %v9903 = vmul.f32 %v9466, %v9887
    %v9904 = vmul.f32 %v9467, %v9887
    %v9905 = vmul.f32 %v9468, %v9887
    %v9906 = vmul.f32 %v9469, %v9887
    %v9907 = vmul.f32 %v9470, %v9887
    %v9908 = vmul.f32 %v9471, %v9887
    %v9909 = vmul.f32 %v9472, %v9887
    %v9910 = vmul.f32 %v9473, %v9887
    %v9911 = vmul.f32 %v9474, %v9887
    %v9912 = vmul.f32 %v9475, %v9887
    %v9913 = vmul.f32 %v9476, %v9887
    %v9914 = vmul.f32 %v9477, %v9887
    %v9915 = vmul.f32 %v9478, %v9887
    %v9916 = vmul.f32 %v9479, %v9887
    %v9917 = vmul.f32 %v9480, %v9887
    %v9918 = vmul.f32 %v9481, %v9887
    %v9919 = vmul.f32 %v9482, %v9887
    %v9921 = vperm.slane %v9885, 0
    %v9923 = vadd.f32 %v9889, %v9921
    %v9924 = vadd.f32 %v9890, %v9921
    %v9925 = vadd.f32 %v9891, %v9921
    %v9926 = vadd.f32 %v9892, %v9921
    %v9927 = vadd.f32 %v9893, %v9921
    %v9928 = vadd.f32 %v9894, %v9921
    %v9929 = vadd.f32 %v9895, %v9921
    %v9930 = vadd.f32 %v9896, %v9921
    %v9931 = vadd.f32 %v9897, %v9921
    %v9932 = vadd.f32 %v9898, %v9921
    %v9933 = vadd.f32 %v9899, %v9921
    %v9934 = vadd.f32 %v9900, %v9921
    %v9935 = vadd.f32 %v9901, %v9921
    %v9936 = vadd.f32 %v9902, %v9921
    %v9937 = vadd.f32 %v9903, %v9921
    %v9938 = vadd.f32 %v9904, %v9921
    %v9939 = vadd.f32 %v9905, %v9921
    %v9940 = vadd.f32 %v9906, %v9921
    %v9941 = vadd.f32 %v9907, %v9921
    %v9942 = vadd.f32 %v9908, %v9921
    %v9943 = vadd.f32 %v9909, %v9921
    %v9944 = vadd.f32 %v9910, %v9921
    %v9945 = vadd.f32 %v9911, %v9921
    %v9946 = vadd.f32 %v9912, %v9921
    %v9947 = vadd.f32 %v9913, %v9921
    %v9948 = vadd.f32 %v9914, %v9921
    %v9949 = vadd.f32 %v9915, %v9921
    %v9950 = vadd.f32 %v9916, %v9921
    %v9951 = vadd.f32 %v9917, %v9921
    %v9952 = vadd.f32 %v9918, %v9921
    %v9953 = vadd.f32 %v9919, %v9921
    %v9954 = vmax.f32 %v9923, 0.0
    %v9955 = vmax.f32 %v9924, 0.0
    %v9956 = vmax.f32 %v9925, 0.0
    %v9957 = vmax.f32 %v9926, 0.0
    %v9958 = vmax.f32 %v9927, 0.0
    %v9959 = vmax.f32 %v9928, 0.0
    %v9960 = vmax.f32 %v9929, 0.0
    %v9961 = vmax.f32 %v9930, 0.0
    %v9962 = vmax.f32 %v9931, 0.0
    %v9963 = vmax.f32 %v9932, 0.0
    %v9964 = vmax.f32 %v9933, 0.0
    %v9965 = vmax.f32 %v9934, 0.0
    %v9966 = vmax.f32 %v9935, 0.0
    %v9967 = vmax.f32 %v9936, 0.0
    %v9968 = vmax.f32 %v9937, 0.0
    %v9969 = vmax.f32 %v9938, 0.0
    %v9970 = vmax.f32 %v9939, 0.0
    %v9971 = vmax.f32 %v9940, 0.0
    %v9972 = vmax.f32 %v9941, 0.0
    %v9973 = vmax.f32 %v9942, 0.0
    %v9974 = vmax.f32 %v9943, 0.0
    %v9975 = vmax.f32 %v9944, 0.0
    %v9976 = vmax.f32 %v9945, 0.0
    %v9977 = vmax.f32 %v9946, 0.0
    %v9978 = vmax.f32 %v9947, 0.0
    %v9979 = vmax.f32 %v9948, 0.0
    %v9980 = vmax.f32 %v9949, 0.0
    %v9981 = vmax.f32 %v9950, 0.0
    %v9982 = vmax.f32 %v9951, 0.0
    %v9983 = vmax.f32 %v9952, 0.0
    %v9984 = vmax.f32 %v9953, 0.0
    %v10016 = vrot.slane %v9954, 1
    %v10017 = vrot.slane %v9955, 1
    %v10018 = vsel %vm6434, %v10016, %v10017
    %v10019 = vrot.slane %v9956, 1
    %v10020 = vsel %vm6434, %v10017, %v10019
    %v10021 = vrot.slane %v9957, 1
    %v10022 = vsel %vm6434, %v10019, %v10021
    %v10023 = vrot.slane %v9958, 1
    %v10024 = vsel %vm6434, %v10021, %v10023
    %v10025 = vrot.slane %v9959, 1
    %v10026 = vsel %vm6434, %v10023, %v10025
    %v10027 = vrot.slane %v9960, 1
    %v10028 = vsel %vm6434, %v10025, %v10027
    %v10029 = vrot.slane %v9961, 1
    %v10030 = vsel %vm6434, %v10027, %v10029
    %v10031 = vrot.slane %v9962, 1
    %v10032 = vsel %vm6434, %v10029, %v10031
    %v10033 = vrot.slane %v9963, 1
    %v10034 = vsel %vm6434, %v10031, %v10033
    %v10035 = vrot.slane %v9964, 1
    %v10036 = vsel %vm6434, %v10033, %v10035
    %v10037 = vrot.slane %v9965, 1
    %v10038 = vsel %vm6434, %v10035, %v10037
    %v10039 = vrot.slane %v9966, 1
    %v10040 = vsel %vm6434, %v10037, %v10039
    %v10041 = vrot.slane %v9967, 1
    %v10042 = vsel %vm6434, %v10039, %v10041
    %v10043 = vrot.slane %v9968, 1
    %v10044 = vsel %vm6434, %v10041, %v10043
    %v10045 = vrot.slane %v9969, 1
    %v10046 = vsel %vm6434, %v10043, %v10045
    %v10047 = vrot.slane %v9970, 1
    %v10048 = vsel %vm6434, %v10045, %v10047
    %v10049 = vrot.slane %v9971, 1
    %v10050 = vsel %vm6434, %v10047, %v10049
    %v10051 = vrot.slane %v9972, 1
    %v10052 = vsel %vm6434, %v10049, %v10051
    %v10053 = vrot.slane %v9973, 1
    %v10054 = vsel %vm6434, %v10051, %v10053
    %v10055 = vrot.slane %v9974, 1
    %v10056 = vsel %vm6434, %v10053, %v10055
    %v10057 = vrot.slane %v9975, 1
    %v10058 = vsel %vm6434, %v10055, %v10057
    %v10059 = vrot.slane %v9976, 1
    %v10060 = vsel %vm6434, %v10057, %v10059
    %v10061 = vrot.slane %v9977, 1
    %v10062 = vsel %vm6434, %v10059, %v10061
    %v10063 = vrot.slane %v9978, 1
    %v10064 = vsel %vm6434, %v10061, %v10063
    %v10065 = vrot.slane %v9979, 1
    %v10066 = vsel %vm6434, %v10063, %v10065
    %v10067 = vrot.slane %v9980, 1
    %v10068 = vsel %vm6434, %v10065, %v10067
    %v10069 = vrot.slane %v9981, 1
    %v10070 = vsel %vm6434, %v10067, %v10069
    %v10071 = vrot.slane %v9982, 1
    %v10072 = vsel %vm6434, %v10069, %v10071
    %v10073 = vrot.slane %v9983, 1
    %v10074 = vsel %vm6434, %v10071, %v10073
    %v10075 = vrot.slane %v9984, 1
    %v10076 = vsel %vm6434, %v10073, %v10075
    %v10108 = vmax.f32 %v9954, %v10018
    %v10109 = vmax.f32 %v9955, %v10020
    %v10110 = vmax.f32 %v9956, %v10022
    %v10111 = vmax.f32 %v9957, %v10024
    %v10112 = vmax.f32 %v9958, %v10026
    %v10113 = vmax.f32 %v9959, %v10028
    %v10114 = vmax.f32 %v9960, %v10030
    %v10115 = vmax.f32 %v9961, %v10032
    %v10116 = vmax.f32 %v9962, %v10034
    %v10117 = vmax.f32 %v9963, %v10036
    %v10118 = vmax.f32 %v9964, %v10038
    %v10119 = vmax.f32 %v9965, %v10040
    %v10120 = vmax.f32 %v9966, %v10042
    %v10121 = vmax.f32 %v9967, %v10044
    %v10122 = vmax.f32 %v9968, %v10046
    %v10123 = vmax.f32 %v9969, %v10048
    %v10124 = vmax.f32 %v9970, %v10050
    %v10125 = vmax.f32 %v9971, %v10052
    %v10126 = vmax.f32 %v9972, %v10054
    %v10127 = vmax.f32 %v9973, %v10056
    %v10128 = vmax.f32 %v9974, %v10058
    %v10129 = vmax.f32 %v9975, %v10060
    %v10130 = vmax.f32 %v9976, %v10062
    %v10131 = vmax.f32 %v9977, %v10064
    %v10132 = vmax.f32 %v9978, %v10066
    %v10133 = vmax.f32 %v9979, %v10068
    %v10134 = vmax.f32 %v9980, %v10070
    %v10135 = vmax.f32 %v9981, %v10072
    %v10136 = vmax.f32 %v9982, %v10074
    %v10137 = vmax.f32 %v9983, %v10076
    %v10138 = vmax.f32 %v9984, %v10075
    %v10170 = vrot.slane %v10108, 2
    %v10171 = vrot.slane %v10109, 2
    %v10172 = vsel %vm7059, %v10170, %v10171
    %v10173 = vrot.slane %v10110, 2
    %v10174 = vsel %vm7059, %v10171, %v10173
    %v10175 = vrot.slane %v10111, 2
    %v10176 = vsel %vm7059, %v10173, %v10175
    %v10177 = vrot.slane %v10112, 2
    %v10178 = vsel %vm7059, %v10175, %v10177
    %v10179 = vrot.slane %v10113, 2
    %v10180 = vsel %vm7059, %v10177, %v10179
    %v10181 = vrot.slane %v10114, 2
    %v10182 = vsel %vm7059, %v10179, %v10181
    %v10183 = vrot.slane %v10115, 2
    %v10184 = vsel %vm7059, %v10181, %v10183
    %v10185 = vrot.slane %v10116, 2
    %v10186 = vsel %vm7059, %v10183, %v10185
    %v10187 = vrot.slane %v10117, 2
    %v10188 = vsel %vm7059, %v10185, %v10187
    %v10189 = vrot.slane %v10118, 2
    %v10190 = vsel %vm7059, %v10187, %v10189
    %v10191 = vrot.slane %v10119, 2
    %v10192 = vsel %vm7059, %v10189, %v10191
    %v10193 = vrot.slane %v10120, 2
    %v10194 = vsel %vm7059, %v10191, %v10193
    %v10195 = vrot.slane %v10121, 2
    %v10196 = vsel %vm7059, %v10193, %v10195
    %v10197 = vrot.slane %v10122, 2
    %v10198 = vsel %vm7059, %v10195, %v10197
    %v10199 = vrot.slane %v10123, 2
    %v10200 = vsel %vm7059, %v10197, %v10199
    %v10201 = vrot.slane %v10124, 2
    %v10202 = vsel %vm7059, %v10199, %v10201
    %v10203 = vrot.slane %v10125, 2
    %v10204 = vsel %vm7059, %v10201, %v10203
    %v10205 = vrot.slane %v10126, 2
    %v10206 = vsel %vm7059, %v10203, %v10205
    %v10207 = vrot.slane %v10127, 2
    %v10208 = vsel %vm7059, %v10205, %v10207
    %v10209 = vrot.slane %v10128, 2
    %v10210 = vsel %vm7059, %v10207, %v10209
    %v10211 = vrot.slane %v10129, 2
    %v10212 = vsel %vm7059, %v10209, %v10211
    %v10213 = vrot.slane %v10130, 2
    %v10214 = vsel %vm7059, %v10211, %v10213
    %v10215 = vrot.slane %v10131, 2
    %v10216 = vsel %vm7059, %v10213, %v10215
    %v10217 = vrot.slane %v10132, 2
    %v10218 = vsel %vm7059, %v10215, %v10217
    %v10219 = vrot.slane %v10133, 2
    %v10220 = vsel %vm7059, %v10217, %v10219
    %v10221 = vrot.slane %v10134, 2
    %v10222 = vsel %vm7059, %v10219, %v10221
    %v10223 = vrot.slane %v10135, 2
    %v10224 = vsel %vm7059, %v10221, %v10223
    %v10225 = vrot.slane %v10136, 2
    %v10226 = vsel %vm7059, %v10223, %v10225
    %v10227 = vrot.slane %v10137, 2
    %v10228 = vsel %vm7059, %v10225, %v10227
    %v10229 = vrot.slane %v10138, 2
    %v10230 = vsel %vm7059, %v10227, %v10229
    %v10262 = vmax.f32 %v10108, %v10172
    %v10263 = vmax.f32 %v10109, %v10174
    %v10264 = vmax.f32 %v10110, %v10176
    %v10265 = vmax.f32 %v10111, %v10178
    %v10266 = vmax.f32 %v10112, %v10180
    %v10267 = vmax.f32 %v10113, %v10182
    %v10268 = vmax.f32 %v10114, %v10184
    %v10269 = vmax.f32 %v10115, %v10186
    %v10270 = vmax.f32 %v10116, %v10188
    %v10271 = vmax.f32 %v10117, %v10190
    %v10272 = vmax.f32 %v10118, %v10192
    %v10273 = vmax.f32 %v10119, %v10194
    %v10274 = vmax.f32 %v10120, %v10196
    %v10275 = vmax.f32 %v10121, %v10198
    %v10276 = vmax.f32 %v10122, %v10200
    %v10277 = vmax.f32 %v10123, %v10202
    %v10278 = vmax.f32 %v10124, %v10204
    %v10279 = vmax.f32 %v10125, %v10206
    %v10280 = vmax.f32 %v10126, %v10208
    %v10281 = vmax.f32 %v10127, %v10210
    %v10282 = vmax.f32 %v10128, %v10212
    %v10283 = vmax.f32 %v10129, %v10214
    %v10284 = vmax.f32 %v10130, %v10216
    %v10285 = vmax.f32 %v10131, %v10218
    %v10286 = vmax.f32 %v10132, %v10220
    %v10287 = vmax.f32 %v10133, %v10222
    %v10288 = vmax.f32 %v10134, %v10224
    %v10289 = vmax.f32 %v10135, %v10226
    %v10290 = vmax.f32 %v10136, %v10228
    %v10291 = vmax.f32 %v10137, %v10230
    %v10292 = vmax.f32 %v10138, %v10229
    %v10293 = vld [vmem:[%s12] sm:$0xff]
    %v10294 = vld [vmem:[%s12 + $0x8] sm:$0xff]
    %v10295 = vld [vmem:[%s12 + $0x10] sm:$0xff]
    %v10296 = vld [vmem:[%s12 + $0x18] sm:$0xff]
    %v10297 = vld [vmem:[%s12 + $0x20] sm:$0xff]
    %v10298 = vld [vmem:[%s12 + $0x28] sm:$0xff]
    %v10299 = vld [vmem:[%s12 + $0x30] sm:$0xff]
    %v10300 = vld [vmem:[%s12 + $0x38] sm:$0xff]
    %v10301 = vld [vmem:[%s12 + $0x40] sm:$0xff]
    %v10302 = vld [vmem:[%s12 + $0x48] sm:$0xff]
    %v10303 = vld [vmem:[%s12 + $0x50] sm:$0xff]
    %v10304 = vld [vmem:[%s12 + $0x58] sm:$0xff]
    %v10305 = vld [vmem:[%s12 + $0x60] sm:$0xff]
    %v10306 = vld [vmem:[%s12 + $0x68] sm:$0xff]
    %v10307 = vld [vmem:[%s12 + $0x70] sm:$0xf]
    %v10308 = vld [vmem:[%s12 + $0x78] sm:$0xf]
    %vm10309 = vcmask 941056
    %v10311 = vsel %vm10309, %v10294, 0
    %v10314 = vsel %vm10309, %v10296, 0
    %v10317 = vsel %vm10309, %v10298, 0
    %v10320 = vsel %vm10309, %v10300, 0
    %v10323 = vsel %vm10309, %v10302, 0
    %v10326 = vsel %vm10309, %v10304, 0
    %v10329 = vsel %vm10309, %v10306, 0
    %v10332 = vsel %vm10309, %v10308, 0
    %vm10334 = vcmask 1042432
    %v10336 = vsel %vm10334, %v10292, 0
    %10338 = vmatpush.msra.mxu0 %v10277
    %10339 = vmatpush.msra.mxu0 %v10276
    %10340 = vmatpush.msra.mxu0 %v10275
    %10341 = vmatpush.msra.mxu0 %v10274
    %10342 = vmatpush.msra.mxu0 %v10273
    %10343 = vmatpush.msra.mxu0 %v10272
    %10344 = vmatpush.msra.mxu0 %v10271
    %10345 = vmatpush.msra.mxu0 %v10270
    %10346 = vmatpush.msra.mxu0 %v10269
    %10347 = vmatpush.msra.mxu0 %v10268
    %10348 = vmatpush.msra.mxu0 %v10267
    %10349 = vmatpush.msra.mxu0 %v10266
    %10350 = vmatpush.msra.mxu0 %v10265
    %10351 = vmatpush.msra.mxu0 %v10264
    %10352 = vmatpush.msra.mxu0 %v10263
    %10353 = vmatpush.msra.mxu0 %v10262
    %10354 = vmatmul.f32.gmra.mxu0 %v10293
    %v10355 = vpop.f32.mrf.mxu0
    %v10356 = vadd.f32 0.0, %v10355
    %10357 = vmatmul.f32.gmra.mxu0 %v10295
    %v10358 = vpop.f32.mrf.mxu0
    %v10359 = vadd.f32 0.0, %v10358
    %10360 = vmatmul.f32.gmra.mxu0 %v10297
    %v10361 = vpop.f32.mrf.mxu0
    %v10362 = vadd.f32 0.0, %v10361
    %10363 = vmatmul.f32.gmra.mxu0 %v10299
    %v10364 = vpop.f32.mrf.mxu0
    %v10365 = vadd.f32 0.0, %v10364
    %10366 = vmatmul.f32.gmra.mxu0 %v10301
    %v10367 = vpop.f32.mrf.mxu0
    %v10368 = vadd.f32 0.0, %v10367
    %10369 = vmatmul.f32.gmra.mxu0 %v10303
    %v10370 = vpop.f32.mrf.mxu0
    %v10371 = vadd.f32 0.0, %v10370
    %10372 = vmatmul.f32.gmra.mxu0 %v10305
    %v10373 = vpop.f32.mrf.mxu0
    %v10374 = vadd.f32 0.0, %v10373
    %10375 = vmatmul.f32.gmra.mxu0 %v10307
    %v10376 = vpop.f32.mrf.mxu0
    %v10377 = vadd.f32 0.0, %v10376
    %10378 = vdwg.mxu0
    %10379 = vmatpush.msra.mxu0 0.0
    %10380 = vmatpush.msra.mxu0 %v10336
    %10381 = vmatpush.msra.mxu0 %v10291
    %10382 = vmatpush.msra.mxu0 %v10290
    %10383 = vmatpush.msra.mxu0 %v10289
    %10384 = vmatpush.msra.mxu0 %v10288
    %10385 = vmatpush.msra.mxu0 %v10287
    %10386 = vmatpush.msra.mxu0 %v10286
    %10387 = vmatpush.msra.mxu0 %v10285
    %10388 = vmatpush.msra.mxu0 %v10284
    %10389 = vmatpush.msra.mxu0 %v10283
    %10390 = vmatpush.msra.mxu0 %v10282
    %10391 = vmatpush.msra.mxu0 %v10281
    %10392 = vmatpush.msra.mxu0 %v10280
    %10393 = vmatpush.msra.mxu0 %v10279
    %10394 = vmatpush.msra.mxu0 %v10278
    %10395 = vmatmul.f32.gmra.mxu0 %v10311
    %v10396 = vpop.f32.mrf.mxu0
    %v10397 = vadd.f32 %v10356, %v10396
    %10398 = vmatmul.f32.gmra.mxu0 %v10314
    %v10399 = vpop.f32.mrf.mxu0
    %v10400 = vadd.f32 %v10359, %v10399
    %10401 = vmatmul.f32.gmra.mxu0 %v10317
    %v10402 = vpop.f32.mrf.mxu0
    %v10403 = vadd.f32 %v10362, %v10402
    %10404 = vmatmul.f32.gmra.mxu0 %v10320
    %v10405 = vpop.f32.mrf.mxu0
    %v10406 = vadd.f32 %v10365, %v10405
    %10407 = vmatmul.f32.gmra.mxu0 %v10323
    %v10408 = vpop.f32.mrf.mxu0
    %v10409 = vadd.f32 %v10368, %v10408
    %10410 = vmatmul.f32.gmra.mxu0 %v10326
    %v10411 = vpop.f32.mrf.mxu0
    %v10412 = vadd.f32 %v10371, %v10411
    %10413 = vmatmul.f32.gmra.mxu0 %v10329
    %v10414 = vpop.f32.mrf.mxu0
    %v10415 = vadd.f32 %v10374, %v10414
    %10416 = vmatmul.f32.gmra.mxu0 %v10332
    %v10417 = vpop.f32.mrf.mxu0
    %v10418 = vadd.f32 %v10377, %v10417
    %10419 = vdwg.mxu0
    %v10420 = vpack.c.bf16 %v10400, %v10397
    %v10421 = vpack.c.bf16 %v10406, %v10403
    %v10422 = vpack.c.bf16 %v10412, %v10409
    %v10423 = vpack.c.bf16 %v10418, %v10415
    %v10424 = vld [vmem:[%s13] sm:$0xf]
    %v10425 = vld [vmem:[%s13 + $0x4] sm:$0xf]
    %v10426 = vld [vmem:[%s13 + $0x8] sm:$0xf]
    %v10427 = vld [vmem:[%s13 + $0xc] sm:$0xf]
    %s10428 = scalar_lea.vmem %s13, 16
    %v10429 = vld [vmem:[%s10428] sm:$0xf]
    %v10430 = vld [vmem:[%s10428 + $0x4] sm:$0xf]
    %v10431 = vld [vmem:[%s10428 + $0x8] sm:$0xf]
    %v10432 = vld [vmem:[%s10428 + $0xc] sm:$0xf]
    %v10434 = vshrl.u32 %v10420, 16
    %v10436 = vshll.u32 %v10420, 16
    %v10438 = vrot.slane %v10436, 1
    %v10439 = vor.u32 %v10434, %v10438
    %v10441 = vshll.u32 %v10421, 16
    %v10443 = vrot.slane %v10441, 1
    %v10444 = vsel %vm284, %v10439, %v10443
    %v10445 = vshrl.u32 %v10421, 16
    %v10447 = vor.u32 %v10445, %v10443
    %v10449 = vshll.u32 %v10422, 16
    %v10451 = vrot.slane %v10449, 1
    %v10452 = vsel %vm284, %v10447, %v10451
    %v10453 = vshrl.u32 %v10422, 16
    %v10455 = vor.u32 %v10453, %v10451
    %v10457 = vshll.u32 %v10423, 16
    %v10459 = vrot.slane %v10457, 1
    %v10460 = vsel %vm284, %v10455, %v10459
    %v10461 = vshrl.u32 %v10423, 16
    %v10463 = vor.u32 %v10461, %v10459
    %v10468 = vunpack.c.l.b16 %v10429
    %v10469 = vunpack.c.l.b16 %v10430
    %v10470 = vunpack.c.l.b16 %v10431
    %v10471 = vunpack.c.l.b16 %v10432
    %v10472 = vpack.c.b16 %v10469, %v10468
    %v10473 = vpack.c.b16 %v10471, %v10470
    %v10477 = vsel %vm5271, %v10444, 0
    %v10480 = vsel %vm5271, %v10452, 0
    %v10483 = vsel %vm5271, %v10460, 0
    %v10486 = vsel %vm5271, %v10463, 0
    %10488 = vmatpush.bf16.msra.mxu0 0
    %10489 = vmatpush.bf16.msra.mxu0 0
    %10490 = vmatpush.bf16.msra.mxu0 0
    %10491 = vmatpush.bf16.msra.mxu0 0
    %10492 = vmatpush.bf16.msra.mxu0 0
    %10493 = vmatpush.bf16.msra.mxu0 0
    %10494 = vmatpush.bf16.msra.mxu0 %v10473
    %10495 = vmatpush.bf16.msra.mxu0 %v10472
    %10496 = vmatmul.bf16.gmra.mxu0 %v10477
    %v10497 = vpop.f32.mrf.mxu0
    %v10498 = vadd.f32 0.0, %v10497
    %v10499 = vpop.f32.mrf.mxu0
    %v10500 = vadd.f32 0.0, %v10499
    %10501 = vmatmul.bf16.gmra.mxu0 %v10480
    %v10502 = vpop.f32.mrf.mxu0
    %v10503 = vadd.f32 0.0, %v10502
    %v10504 = vpop.f32.mrf.mxu0
    %v10505 = vadd.f32 0.0, %v10504
    %10506 = vmatmul.bf16.gmra.mxu0 %v10483
    %v10507 = vpop.f32.mrf.mxu0
    %v10508 = vadd.f32 0.0, %v10507
    %v10509 = vpop.f32.mrf.mxu0
    %v10510 = vadd.f32 0.0, %v10509
    %10511 = vmatmul.bf16.gmra.mxu0 %v10486
    %v10512 = vpop.f32.mrf.mxu0
    %v10513 = vadd.f32 0.0, %v10512
    %v10514 = vpop.f32.mrf.mxu0
    %v10515 = vadd.f32 0.0, %v10514
    %10516 = vdwg.mxu0
    %v10521 = vunpack.c.l.b16 %v10424
    %v10522 = vunpack.c.l.b16 %v10425
    %v10523 = vunpack.c.l.b16 %v10426
    %v10524 = vunpack.c.l.b16 %v10427
    %v10525 = vpack.c.b16 %v10522, %v10521
    %v10526 = vpack.c.b16 %v10524, %v10523
    %v10529 = vsel %vm5271, %v10420, 0
    %v10531 = vsel %vm5271, %v10421, 0
    %v10533 = vsel %vm5271, %v10422, 0
    %v10535 = vsel %vm5271, %v10423, 0
    %10537 = vmatpush.bf16.msra.mxu0 0
    %10538 = vmatpush.bf16.msra.mxu0 0
    %10539 = vmatpush.bf16.msra.mxu0 0
    %10540 = vmatpush.bf16.msra.mxu0 0
    %10541 = vmatpush.bf16.msra.mxu0 0
    %10542 = vmatpush.bf16.msra.mxu0 0
    %10543 = vmatpush.bf16.msra.mxu0 %v10526
    %10544 = vmatpush.bf16.msra.mxu0 %v10525
    %10545 = vmatmul.bf16.gmra.mxu0 %v10529
    %v10546 = vpop.f32.mrf.mxu0
    %v10547 = vadd.f32 %v10498, %v10546
    %v10548 = vpop.f32.mrf.mxu0
    %v10549 = vadd.f32 %v10500, %v10548
    %10550 = vmatmul.bf16.gmra.mxu0 %v10531
    %v10551 = vpop.f32.mrf.mxu0
    %v10552 = vadd.f32 %v10503, %v10551
    %v10553 = vpop.f32.mrf.mxu0
    %v10554 = vadd.f32 %v10505, %v10553
    %10555 = vmatmul.bf16.gmra.mxu0 %v10533
    %v10556 = vpop.f32.mrf.mxu0
    %v10557 = vadd.f32 %v10508, %v10556
    %v10558 = vpop.f32.mrf.mxu0
    %v10559 = vadd.f32 %v10510, %v10558
    %10560 = vmatmul.bf16.gmra.mxu0 %v10535
    %v10561 = vpop.f32.mrf.mxu0
    %v10562 = vadd.f32 %v10513, %v10561
    %v10563 = vpop.f32.mrf.mxu0
    %v10564 = vadd.f32 %v10515, %v10563
    %10565 = vdwg.mxu0
    %s10566 = scalar_lea.vmem %s13, 32
    %v10567 = vld [vmem:[%s10566] sm:$0xf]
    %v10568 = vld [vmem:[%s10566 + $0x4] sm:$0xf]
    %v10569 = vld [vmem:[%s10566 + $0x8] sm:$0xf]
    %v10570 = vld [vmem:[%s10566 + $0xc] sm:$0xf]
    %v10575 = vrot.slane %v10420, 1
    %v10576 = vrot.slane %v10421, 1
    %v10577 = vsel %vm1828, %v10575, %v10576
    %v10578 = vrot.slane %v10422, 1
    %v10579 = vsel %vm1828, %v10576, %v10578
    %v10580 = vrot.slane %v10423, 1
    %v10581 = vsel %vm1828, %v10578, %v10580
    %v10586 = vunpack.c.l.b16 %v10567
    %v10587 = vunpack.c.l.b16 %v10568
    %v10588 = vunpack.c.l.b16 %v10569
    %v10589 = vunpack.c.l.b16 %v10570
    %v10590 = vpack.c.b16 %v10587, %v10586
    %v10591 = vpack.c.b16 %v10589, %v10588
    %v10595 = vsel %vm5271, %v10577, 0
    %v10598 = vsel %vm5271, %v10579, 0
    %v10601 = vsel %vm5271, %v10581, 0
    %v10604 = vsel %vm5271, %v10580, 0
    %10606 = vmatpush.bf16.msra.mxu0 0
    %10607 = vmatpush.bf16.msra.mxu0 0
    %10608 = vmatpush.bf16.msra.mxu0 0
    %10609 = vmatpush.bf16.msra.mxu0 0
    %10610 = vmatpush.bf16.msra.mxu0 0
    %10611 = vmatpush.bf16.msra.mxu0 0
    %10612 = vmatpush.bf16.msra.mxu0 %v10591
    %10613 = vmatpush.bf16.msra.mxu0 %v10590
    %10614 = vmatmul.bf16.gmra.mxu0 %v10595
    %v10615 = vpop.f32.mrf.mxu0
    %v10616 = vadd.f32 0.0, %v10615
    %v10617 = vpop.f32.mrf.mxu0
    %v10618 = vadd.f32 0.0, %v10617
    %10619 = vmatmul.bf16.gmra.mxu0 %v10598
    %v10620 = vpop.f32.mrf.mxu0
    %v10621 = vadd.f32 0.0, %v10620
    %v10622 = vpop.f32.mrf.mxu0
    %v10623 = vadd.f32 0.0, %v10622
    %10624 = vmatmul.bf16.gmra.mxu0 %v10601
    %v10625 = vpop.f32.mrf.mxu0
    %v10626 = vadd.f32 0.0, %v10625
    %v10627 = vpop.f32.mrf.mxu0
    %v10628 = vadd.f32 0.0, %v10627
    %10629 = vmatmul.bf16.gmra.mxu0 %v10604
    %v10630 = vpop.f32.mrf.mxu0
    %v10631 = vadd.f32 0.0, %v10630
    %v10632 = vpop.f32.mrf.mxu0
    %v10633 = vadd.f32 0.0, %v10632
    %10634 = vdwg.mxu0
    %v10635 = vadd.f32 %v10547, %v10616
    %v10636 = vadd.f32 %v10549, %v10618
    %v10637 = vadd.f32 %v10552, %v10621
    %v10638 = vadd.f32 %v10554, %v10623
    %v10639 = vadd.f32 %v10557, %v10626
    %v10640 = vadd.f32 %v10559, %v10628
    %v10641 = vadd.f32 %v10562, %v10631
    %v10642 = vadd.f32 %v10564, %v10633
    %v10643 = vld [vmem:[%s14] sm:$0x1]
    %v10645 = vperm.slane %v10643, 0
    %v10647 = vadd.f32 %v10635, %v10645
    %v10648 = vadd.f32 %v10636, %v10645
    %v10649 = vadd.f32 %v10637, %v10645
    %v10650 = vadd.f32 %v10638, %v10645
    %v10651 = vadd.f32 %v10639, %v10645
    %v10652 = vadd.f32 %v10640, %v10645
    %v10653 = vadd.f32 %v10641, %v10645
    %v10654 = vadd.f32 %v10642, %v10645
    %v10655 = vld [vmem:[%s17] sm:$0xff]
    %v10656 = vld [vmem:[%s17 + $0x8] sm:$0xff]
    %v10657 = vld [vmem:[%s17 + $0x10] sm:$0xff]
    %v10658 = vld [vmem:[%s17 + $0x18] sm:$0xff]
    %v10659 = vld [vmem:[%s17 + $0x20] sm:$0xff]
    %v10660 = vld [vmem:[%s17 + $0x28] sm:$0xff]
    %v10661 = vld [vmem:[%s17 + $0x30] sm:$0xff]
    %v10662 = vld [vmem:[%s17 + $0x38] sm:$0x3]
    %10664 = vset.pattern.permute.xlu0 0
    %10665 = vperm.xlu0 %10664, %v10655
    %v10666 = vpop.permute.xlu0 %10665
    %10669 = vset.pattern.permute.xlu0 0
    %10670 = vperm.xlu0 %10669, %v10656
    %v10671 = vpop.permute.xlu0 %10670
    %10674 = vset.pattern.permute.xlu0 0
    %10675 = vperm.xlu0 %10674, %v10657
    %v10676 = vpop.permute.xlu0 %10675
    %10679 = vset.pattern.permute.xlu0 0
    %10680 = vperm.xlu0 %10679, %v10658
    %v10681 = vpop.permute.xlu0 %10680
    %10684 = vset.pattern.permute.xlu0 0
    %10685 = vperm.xlu0 %10684, %v10659
    %v10686 = vpop.permute.xlu0 %10685
    %10689 = vset.pattern.permute.xlu0 0
    %10690 = vperm.xlu0 %10689, %v10660
    %v10691 = vpop.permute.xlu0 %10690
    %10694 = vset.pattern.permute.xlu0 0
    %10695 = vperm.xlu0 %10694, %v10661
    %v10696 = vpop.permute.xlu0 %10695
    %10699 = vset.pattern.permute.xlu0 0
    %10700 = vperm.xlu0 %10699, %v10662
    %v10701 = vpop.permute.xlu0 %10700
    %v10703 = vmul.f32 %v10647, %v10666
    %v10704 = vmul.f32 %v10648, %v10671
    %v10705 = vmul.f32 %v10649, %v10676
    %v10706 = vmul.f32 %v10650, %v10681
    %v10707 = vmul.f32 %v10651, %v10686
    %v10708 = vmul.f32 %v10652, %v10691
    %v10709 = vmul.f32 %v10653, %v10696
    %v10710 = vmul.f32 %v10654, %v10701
    %vm10711 = vcmask 523264
    %v10712 = vsel %vm10711, %v10703, 0.0
    %v10713 = vsel %vm10711, %v10704, 0.0
    %v10714 = vadd.f32 %v10712, %v10713
    %v10715 = vsel %vm10711, %v10705, 0.0
    %v10716 = vadd.f32 %v10714, %v10715
    %v10717 = vsel %vm10711, %v10706, 0.0
    %v10718 = vadd.f32 %v10716, %v10717
    %v10719 = vsel %vm10711, %v10707, 0.0
    %v10720 = vadd.f32 %v10718, %v10719
    %v10721 = vsel %vm10711, %v10708, 0.0
    %v10722 = vadd.f32 %v10720, %v10721
    %v10723 = vsel %vm10711, %v10709, 0.0
    %v10724 = vadd.f32 %v10722, %v10723
    %vm10725 = vcmask 517120
    %v10726 = vsel %vm10725, %v10710, 0.0
    %v10727 = vadd.f32 %v10724, %v10726
    %v10728 = vrot.slane %v10727, 4
    %v10729 = vadd.f32 %v10727, %v10728
    %v10730 = vrot.slane %v10729, 2
    %v10731 = vadd.f32 %v10729, %v10730
    %v10732 = vrot.slane %v10731, 1
    %v10733 = vadd.f32 %v10731, %v10732
    %v10734 = vmul.f32 %v10733, 0.017857144
    %v10735 = vmul.f32 %v10703, %v10647
    %v10736 = vmul.f32 %v10704, %v10648
    %v10737 = vmul.f32 %v10705, %v10649
    %v10738 = vmul.f32 %v10706, %v10650
    %v10739 = vmul.f32 %v10707, %v10651
    %v10740 = vmul.f32 %v10708, %v10652
    %v10741 = vmul.f32 %v10709, %v10653
    %v10742 = vmul.f32 %v10710, %v10654
    %v10743 = vsel %vm10711, %v10735, 0.0
    %v10744 = vsel %vm10711, %v10736, 0.0
    %v10745 = vadd.f32 %v10743, %v10744
    %v10746 = vsel %vm10711, %v10737, 0.0
    %v10747 = vadd.f32 %v10745, %v10746
    %v10748 = vsel %vm10711, %v10738, 0.0
    %v10749 = vadd.f32 %v10747, %v10748
    %v10750 = vsel %vm10711, %v10739, 0.0
    %v10751 = vadd.f32 %v10749, %v10750
    %v10752 = vsel %vm10711, %v10740, 0.0
    %v10753 = vadd.f32 %v10751, %v10752
    %v10754 = vsel %vm10711, %v10741, 0.0
    %v10755 = vadd.f32 %v10753, %v10754
    %v10756 = vsel %vm10725, %v10742, 0.0
    %v10757 = vadd.f32 %v10755, %v10756
    %v10758 = vrot.slane %v10757, 4
    %v10759 = vadd.f32 %v10757, %v10758
    %v10760 = vrot.slane %v10759, 2
    %v10761 = vadd.f32 %v10759, %v10760
    %v10762 = vrot.slane %v10761, 1
    %v10763 = vadd.f32 %v10761, %v10762
    %v10764 = vmul.f32 %v10763, 0.017857144
    %v10765 = vmul.f32 %v10734, %v10734
    %v10766 = vsub.f32 %v10764, %v10765
    %v10767 = vld [vmem:[%s15] sm:$0x1]
    %v10768 = vadd.f32 %v10766, 1e-05
    %v10769 = vrsqrt.pop %v10768
    %v10770 = vmul.f32 %v10769, %v10768
    %v10771 = vmul.f32 %v10770, %v10769
    %v10772 = vmul.f32 0.5, %v10771
    %v10773 = vsub.f32 1.5, %v10772
    %v10774 = vmul.f32 %v10769, %v10773
    %vm10775 = vweird.f32 %v10768
    %vm10776 = vweird.f32 %v10769
    %vm10777 = vmor %vm10775, %vm10776
    %v10778 = vsel %vm10777, %v10769, %v10774
    %v10779 = vmul.f32 %v10767, %v10778
    %v10780 = vld [vmem:[%s16] sm:$0x1]
    %v10781 = vmul.f32 %v10734, %v10779
    %v10782 = vsub.f32 %v10780, %v10781
    %v10784 = vperm.slane %v10779, 0
    %v10786 = vmul.f32 %v10647, %v10784
    %v10787 = vmul.f32 %v10648, %v10784
    %v10788 = vmul.f32 %v10649, %v10784
    %v10789 = vmul.f32 %v10650, %v10784
    %v10790 = vmul.f32 %v10651, %v10784
    %v10791 = vmul.f32 %v10652, %v10784
    %v10792 = vmul.f32 %v10653, %v10784
    %v10793 = vmul.f32 %v10654, %v10784
    %v10795 = vperm.slane %v10782, 0
    %v10797 = vadd.f32 %v10786, %v10795
    %v10798 = vadd.f32 %v10787, %v10795
    %v10799 = vadd.f32 %v10788, %v10795
    %v10800 = vadd.f32 %v10789, %v10795
    %v10801 = vadd.f32 %v10790, %v10795
    %v10802 = vadd.f32 %v10791, %v10795
    %v10803 = vadd.f32 %v10792, %v10795
    %v10804 = vadd.f32 %v10793, %v10795
    %v10805 = vmax.f32 %v10797, 0.0
    %v10806 = vmax.f32 %v10798, 0.0
    %v10807 = vmax.f32 %v10799, 0.0
    %v10808 = vmax.f32 %v10800, 0.0
    %v10809 = vmax.f32 %v10801, 0.0
    %v10810 = vmax.f32 %v10802, 0.0
    %v10811 = vmax.f32 %v10803, 0.0
    %v10812 = vmax.f32 %v10804, 0.0
    %v10820 = vrot.slane %v10805, 1
    %v10821 = vrot.slane %v10806, 1
    %v10822 = vsel %vm6434, %v10820, %v10821
    %v10823 = vrot.slane %v10807, 1
    %v10824 = vsel %vm6434, %v10821, %v10823
    %v10825 = vrot.slane %v10808, 1
    %v10826 = vsel %vm6434, %v10823, %v10825
    %v10827 = vrot.slane %v10809, 1
    %v10828 = vsel %vm6434, %v10825, %v10827
    %v10829 = vrot.slane %v10810, 1
    %v10830 = vsel %vm6434, %v10827, %v10829
    %v10831 = vrot.slane %v10811, 1
    %v10832 = vsel %vm6434, %v10829, %v10831
    %v10840 = vmax.f32 %v10805, %v10822
    %v10841 = vmax.f32 %v10806, %v10824
    %v10842 = vmax.f32 %v10807, %v10826
    %v10843 = vmax.f32 %v10808, %v10828
    %v10844 = vmax.f32 %v10809, %v10830
    %v10845 = vmax.f32 %v10810, %v10832
    %v10846 = vmax.f32 %v10811, %v10831
    %v10848 = vrot.slane %v10812, 1
    %v10849 = vsel %vm6434, %v10831, %v10848
    %v10852 = vmax.f32 %v10811, %v10849
    %v10853 = vmax.f32 %v10812, %v10848
    %v10862 = vrot.slane %v10840, 2
    %v10863 = vrot.slane %v10841, 2
    %v10864 = vsel %vm7059, %v10862, %v10863
    %v10865 = vrot.slane %v10842, 2
    %v10866 = vsel %vm7059, %v10863, %v10865
    %v10867 = vrot.slane %v10843, 2
    %v10868 = vsel %vm7059, %v10865, %v10867
    %v10869 = vrot.slane %v10844, 2
    %v10870 = vsel %vm7059, %v10867, %v10869
    %v10871 = vrot.slane %v10845, 2
    %v10872 = vsel %vm7059, %v10869, %v10871
    %v10873 = vrot.slane %v10852, 2
    %v10874 = vsel %vm7059, %v10871, %v10873
    %v10875 = vrot.slane %v10853, 2
    %v10876 = vsel %vm7059, %v10873, %v10875
    %v10884 = vmax.f32 %v10840, %v10864
    %v10885 = vmax.f32 %v10841, %v10866
    %v10886 = vmax.f32 %v10842, %v10868
    %v10887 = vmax.f32 %v10843, %v10870
    %v10888 = vmax.f32 %v10844, %v10872
    %v10889 = vmax.f32 %v10845, %v10874
    %v10890 = vmax.f32 %v10846, %v10876
    %v10891 = vld [vmem:[%s18] sm:$0xff]
    %v10892 = vld [vmem:[%s18 + $0x8] sm:$0x3f]
    %vm10893 = vcmask 449536
    %v10895 = vsel %vm10893, %v10891, 0
    %v10898 = vsel %vm10893, %v10892, 0
    %v10901 = vsel %vm6434, %v10890, 0
    %10903 = vmatpush.msra.mxu0 0.0
    %10904 = vmatpush.msra.mxu0 0.0
    %10905 = vmatpush.msra.mxu0 0.0
    %10906 = vmatpush.msra.mxu0 0.0
    %10907 = vmatpush.msra.mxu0 0.0
    %10908 = vmatpush.msra.mxu0 0.0
    %10909 = vmatpush.msra.mxu0 0.0
    %10910 = vmatpush.msra.mxu0 0.0
    %10911 = vmatpush.msra.mxu0 0.0
    %10912 = vmatpush.msra.mxu0 %v10901
    %10913 = vmatpush.msra.mxu0 %v10889
    %10914 = vmatpush.msra.mxu0 %v10888
    %10915 = vmatpush.msra.mxu0 %v10887
    %10916 = vmatpush.msra.mxu0 %v10886
    %10917 = vmatpush.msra.mxu0 %v10885
    %10918 = vmatpush.msra.mxu0 %v10884
    %10919 = vmatmul.f32.gmra.mxu0 %v10895
    %v10920 = vpop.f32.mrf.mxu0
    %v10921 = vadd.f32 0.0, %v10920
    %10922 = vmatmul.f32.gmra.mxu0 %v10898
    %v10923 = vpop.f32.mrf.mxu0
    %v10924 = vadd.f32 0.0, %v10923
    %10925 = vdwg.mxu0
    %v10926 = vpack.c.bf16 %v10924, %v10921
    %v10927 = vld [vmem:[%s19] sm:$0xf]
    %v10928 = vld [vmem:[%s19 + $0x4] sm:$0xf]
    %v10929 = vld [vmem:[%s19 + $0x8] sm:$0xf]
    %v10930 = vld [vmem:[%s19 + $0xc] sm:$0xf]
    %v10931 = vld [vmem:[%s19 + $0x10] sm:$0xf]
    %v10932 = vld [vmem:[%s19 + $0x14] sm:$0xf]
    %v10933 = vld [vmem:[%s19 + $0x18] sm:$0xf]
    %v10934 = vld [vmem:[%s19 + $0x1c] sm:$0xf]
    %s10935 = scalar_lea.vmem %s19, 32
    %v10936 = vld [vmem:[%s10935] sm:$0xf]
    %v10937 = vld [vmem:[%s10935 + $0x4] sm:$0xf]
    %v10938 = vld [vmem:[%s10935 + $0x8] sm:$0xf]
    %v10939 = vld [vmem:[%s10935 + $0xc] sm:$0xf]
    %v10940 = vld [vmem:[%s10935 + $0x10] sm:$0xf]
    %v10941 = vld [vmem:[%s10935 + $0x14] sm:$0xf]
    %v10942 = vld [vmem:[%s10935 + $0x18] sm:$0xf]
    %v10943 = vld [vmem:[%s10935 + $0x1c] sm:$0xf]
    %v10945 = vshrl.u32 %v10926, 16
    %v10947 = vshll.u32 %v10926, 16
    %v10949 = vrot.slane %v10947, 1
    %v10950 = vor.u32 %v10945, %v10949
    %v10959 = vunpack.c.l.b16 %v10936
    %v10960 = vunpack.c.l.b16 %v10937
    %v10961 = vunpack.c.l.b16 %v10938
    %v10962 = vunpack.c.l.b16 %v10939
    %v10963 = vunpack.c.l.b16 %v10940
    %v10964 = vunpack.c.l.b16 %v10941
    %v10965 = vunpack.c.l.b16 %v10942
    %v10966 = vunpack.c.l.b16 %v10943
    %v10967 = vpack.c.b16 %v10960, %v10959
    %v10968 = vpack.c.b16 %v10962, %v10961
    %v10969 = vpack.c.b16 %v10964, %v10963
    %v10970 = vpack.c.b16 %v10966, %v10965
    %v10976 = vsel %vm10711, %v10950, 0
    %10978 = vmatpush.bf16.msra.mxu0 0
    %10979 = vmatpush.bf16.msra.mxu0 0
    %10980 = vmatpush.bf16.msra.mxu0 0
    %10981 = vmatpush.bf16.msra.mxu0 0
    %10982 = vmatpush.bf16.msra.mxu0 %v10970
    %10983 = vmatpush.bf16.msra.mxu0 %v10969
    %10984 = vmatpush.bf16.msra.mxu0 %v10968
    %10985 = vmatpush.bf16.msra.mxu0 %v10967
    %10986 = vmatmul.bf16.gmra.mxu0 %v10976
    %v10987 = vpop.f32.mrf.mxu0
    %v10988 = vadd.f32 0.0, %v10987
    %v10989 = vpop.f32.mrf.mxu0
    %v10990 = vadd.f32 0.0, %v10989
    %10991 = vdwg.mxu0
    %v11000 = vunpack.c.l.b16 %v10927
    %v11001 = vunpack.c.l.b16 %v10928
    %v11002 = vunpack.c.l.b16 %v10929
    %v11003 = vunpack.c.l.b16 %v10930
    %v11004 = vunpack.c.l.b16 %v10931
    %v11005 = vunpack.c.l.b16 %v10932
    %v11006 = vunpack.c.l.b16 %v10933
    %v11007 = vunpack.c.l.b16 %v10934
    %v11008 = vpack.c.b16 %v11001, %v11000
    %v11009 = vpack.c.b16 %v11003, %v11002
    %v11010 = vpack.c.b16 %v11005, %v11004
    %v11011 = vpack.c.b16 %v11007, %v11006
    %v11016 = vsel %vm10711, %v10926, 0
    %11018 = vmatpush.bf16.msra.mxu0 0
    %11019 = vmatpush.bf16.msra.mxu0 0
    %11020 = vmatpush.bf16.msra.mxu0 0
    %11021 = vmatpush.bf16.msra.mxu0 0
    %11022 = vmatpush.bf16.msra.mxu0 %v11011
    %11023 = vmatpush.bf16.msra.mxu0 %v11010
    %11024 = vmatpush.bf16.msra.mxu0 %v11009
    %11025 = vmatpush.bf16.msra.mxu0 %v11008
    %11026 = vmatmul.bf16.gmra.mxu0 %v11016
    %v11027 = vpop.f32.mrf.mxu0
    %v11028 = vadd.f32 %v10988, %v11027
    %v11029 = vpop.f32.mrf.mxu0
    %v11030 = vadd.f32 %v10990, %v11029
    %11031 = vdwg.mxu0
    %s11032 = scalar_lea.vmem %s19, 64
    %v11033 = vld [vmem:[%s11032] sm:$0xf]
    %v11034 = vld [vmem:[%s11032 + $0x4] sm:$0xf]
    %v11035 = vld [vmem:[%s11032 + $0x8] sm:$0xf]
    %v11036 = vld [vmem:[%s11032 + $0xc] sm:$0xf]
    %v11037 = vld [vmem:[%s11032 + $0x10] sm:$0xf]
    %v11038 = vld [vmem:[%s11032 + $0x14] sm:$0xf]
    %v11039 = vld [vmem:[%s11032 + $0x18] sm:$0xf]
    %v11040 = vld [vmem:[%s11032 + $0x1c] sm:$0xf]
    %v11042 = vrot.slane %v10926, 1
    %v11051 = vunpack.c.l.b16 %v11033
    %v11052 = vunpack.c.l.b16 %v11034
    %v11053 = vunpack.c.l.b16 %v11035
    %v11054 = vunpack.c.l.b16 %v11036
    %v11055 = vunpack.c.l.b16 %v11037
    %v11056 = vunpack.c.l.b16 %v11038
    %v11057 = vunpack.c.l.b16 %v11039
    %v11058 = vunpack.c.l.b16 %v11040
    %v11059 = vpack.c.b16 %v11052, %v11051
    %v11060 = vpack.c.b16 %v11054, %v11053
    %v11061 = vpack.c.b16 %v11056, %v11055
    %v11062 = vpack.c.b16 %v11058, %v11057
    %v11068 = vsel %vm10711, %v11042, 0
    %11070 = vmatpush.bf16.msra.mxu0 0
    %11071 = vmatpush.bf16.msra.mxu0 0
    %11072 = vmatpush.bf16.msra.mxu0 0
    %11073 = vmatpush.bf16.msra.mxu0 0
    %11074 = vmatpush.bf16.msra.mxu0 %v11062
    %11075 = vmatpush.bf16.msra.mxu0 %v11061
    %11076 = vmatpush.bf16.msra.mxu0 %v11060
    %11077 = vmatpush.bf16.msra.mxu0 %v11059
    %11078 = vmatmul.bf16.gmra.mxu0 %v11068
    %v11079 = vpop.f32.mrf.mxu0
    %v11080 = vadd.f32 0.0, %v11079
    %v11081 = vpop.f32.mrf.mxu0
    %v11082 = vadd.f32 0.0, %v11081
    %11083 = vdwg.mxu0
    %v11084 = vadd.f32 %v11028, %v11080
    %v11085 = vadd.f32 %v11030, %v11082
    %v11086 = vld [vmem:[%s20] sm:$0x1]
    %v11088 = vperm.slane %v11086, 0
    %v11090 = vadd.f32 %v11084, %v11088
    %v11091 = vadd.f32 %v11085, %v11088
    %v11092 = vld [vmem:[%s23] sm:$0xff]
    %v11093 = vld [vmem:[%s23 + $0x8] sm:$0xf]
    %11095 = vset.pattern.permute.xlu0 0
    %11096 = vperm.xlu0 %11095, %v11092
    %v11097 = vpop.permute.xlu0 %11096
    %11100 = vset.pattern.permute.xlu0 0
    %11101 = vperm.xlu0 %11100, %v11093
    %v11102 = vpop.permute.xlu0 %11101
    %v11104 = vmul.f32 %v11090, %v11097
    %v11105 = vmul.f32 %v11091, %v11102
    %v11106 = vsel %vm10711, %v11104, 0.0
    %vm11107 = vcmask 519168
    %v11108 = vsel %vm11107, %v11105, 0.0
    %v11109 = vadd.f32 %v11106, %v11108
    %v11110 = vrot.slane %v11109, 4
    %v11111 = vadd.f32 %v11109, %v11110
    %v11112 = vrot.slane %v11111, 2
    %v11113 = vadd.f32 %v11111, %v11112
    %v11114 = vrot.slane %v11113, 1
    %v11115 = vadd.f32 %v11113, %v11114
    %v11116 = vmul.f32 %v11115, 0.1
    %v11117 = vmul.f32 %v11104, %v11090
    %v11118 = vmul.f32 %v11105, %v11091
    %v11119 = vsel %vm10711, %v11117, 0.0
    %v11120 = vsel %vm11107, %v11118, 0.0
    %v11121 = vadd.f32 %v11119, %v11120
    %v11122 = vrot.slane %v11121, 4
    %v11123 = vadd.f32 %v11121, %v11122
    %v11124 = vrot.slane %v11123, 2
    %v11125 = vadd.f32 %v11123, %v11124
    %v11126 = vrot.slane %v11125, 1
    %v11127 = vadd.f32 %v11125, %v11126
    %v11128 = vmul.f32 %v11127, 0.1
    %v11129 = vmul.f32 %v11116, %v11116
    %v11130 = vsub.f32 %v11128, %v11129
    %v11131 = vld [vmem:[%s21] sm:$0x1]
    %v11132 = vadd.f32 %v11130, 1e-05
    %v11133 = vrsqrt.pop %v11132
    %v11134 = vmul.f32 %v11133, %v11132
    %v11135 = vmul.f32 %v11134, %v11133
    %v11136 = vmul.f32 0.5, %v11135
    %v11137 = vsub.f32 1.5, %v11136
    %v11138 = vmul.f32 %v11133, %v11137
    %vm11139 = vweird.f32 %v11132
    %vm11140 = vweird.f32 %v11133
    %vm11141 = vmor %vm11139, %vm11140
    %v11142 = vsel %vm11141, %v11133, %v11138
    %v11143 = vmul.f32 %v11131, %v11142
    %v11144 = vld [vmem:[%s22] sm:$0x1]
    %v11145 = vmul.f32 %v11116, %v11143
    %v11146 = vsub.f32 %v11144, %v11145
    %v11148 = vperm.slane %v11143, 0
    %v11150 = vmul.f32 %v11090, %v11148
    %v11151 = vmul.f32 %v11091, %v11148
    %v11153 = vperm.slane %v11146, 0
    %v11155 = vadd.f32 %v11150, %v11153
    %v11156 = vadd.f32 %v11151, %v11153
    %v11157 = vmax.f32 %v11155, 0.0
    %v11158 = vmax.f32 %v11156, 0.0
    %v11161 = vrot.slane %v11157, 1
    %v11162 = vrot.slane %v11158, 1
    %v11163 = vsel %vm6434, %v11161, %v11162
    %v11166 = vmax.f32 %v11157, %v11163
    %v11167 = vmax.f32 %v11158, %v11162
    %v11170 = vrot.slane %v11166, 2
    %v11171 = vrot.slane %v11167, 2
    %v11172 = vsel %vm7059, %v11170, %v11171
    %v11175 = vmax.f32 %v11166, %v11172
    %v11176 = vmax.f32 %v11167, %v11171
    %v11177 = vld [vmem:[%s24] sm:$0x3]
    %vm11178 = vcmask 72704
    %v11180 = vsel %vm11178, %v11177, 0
    %v11183 = vsel %vm7901, %v11176, 0
    %11185 = vmatpush.msra.mxu0 0.0
    %11186 = vmatpush.msra.mxu0 0.0
    %11187 = vmatpush.msra.mxu0 0.0
    %11188 = vmatpush.msra.mxu0 0.0
    %11189 = vmatpush.msra.mxu0 0.0
    %11190 = vmatpush.msra.mxu0 0.0
    %11191 = vmatpush.msra.mxu0 0.0
    %11192 = vmatpush.msra.mxu0 0.0
    %11193 = vmatpush.msra.mxu0 0.0
    %11194 = vmatpush.msra.mxu0 0.0
    %11195 = vmatpush.msra.mxu0 0.0
    %11196 = vmatpush.msra.mxu0 0.0
    %11197 = vmatpush.msra.mxu0 0.0
    %11198 = vmatpush.msra.mxu0 0.0
    %11199 = vmatpush.msra.mxu0 %v11183
    %11200 = vmatpush.msra.mxu0 %v11175
    %11201 = vmatmul.f32.gmra.mxu0 %v11180
    %v11202 = vpop.f32.mrf.mxu0
    %v11203 = vadd.f32 0.0, %v11202
    %11204 = vdwg.mxu0
    %v11205 = vld [vmem:[%s25] sm:$0x3]
    %vm11206 = vcmask 15360
    %v11208 = vsel %vm11206, %v11205, 0
    %vm11210 = vcmask 1041408
    %v11212 = vsel %vm11210, %v11203, 0
    %11214 = vmatpush.msra.mxu0 0.0
    %11215 = vmatpush.msra.mxu0 0.0
    %11216 = vmatpush.msra.mxu0 0.0
    %11217 = vmatpush.msra.mxu0 0.0
    %11218 = vmatpush.msra.mxu0 0.0
    %11219 = vmatpush.msra.mxu0 0.0
    %11220 = vmatpush.msra.mxu0 0.0
    %11221 = vmatpush.msra.mxu0 0.0
    %11222 = vmatpush.msra.mxu0 0.0
    %11223 = vmatpush.msra.mxu0 0.0
    %11224 = vmatpush.msra.mxu0 0.0
    %11225 = vmatpush.msra.mxu0 0.0
    %11226 = vmatpush.msra.mxu0 0.0
    %11227 = vmatpush.msra.mxu0 0.0
    %11228 = vmatpush.msra.mxu0 0.0
    %11229 = vmatpush.msra.mxu0 %v11212
    %11230 = vmatmul.f32.gmra.mxu0 %v11208
    %v11231 = vpop.f32.mrf.mxu0
    %v11232 = vadd.f32 0.0, %v11231
    %11233 = vdwg.mxu0
    %v11234 = vpack.c.bf16 %v11232, %v11232
    %v11235 = vld [vmem:[%s26] sm:$0xf]
    %v11236 = vld [vmem:[%s26 + $0x4] sm:$0xf]
    %v11237 = vld [vmem:[%s26 + $0x8] sm:$0xf]
    %v11238 = vld [vmem:[%s26 + $0xc] sm:$0xf]
    %v11239 = vld [vmem:[%s26 + $0x10] sm:$0xf]
    %v11240 = vld [vmem:[%s26 + $0x14] sm:$0xf]
    %v11241 = vld [vmem:[%s26 + $0x18] sm:$0xf]
    %v11242 = vld [vmem:[%s26 + $0x1c] sm:$0xf]
    %v11243 = vld [vmem:[%s27] sm:$0x1]
    %v11245 = vperm.slane %v11243, 0
    %v11255 = vunpack.c.l.b16 %v11235
    %v11256 = vunpack.c.l.b16 %v11236
    %v11257 = vunpack.c.l.b16 %v11237
    %v11258 = vunpack.c.l.b16 %v11238
    %v11259 = vunpack.c.l.b16 %v11239
    %v11260 = vunpack.c.l.b16 %v11240
    %v11261 = vunpack.c.l.b16 %v11241
    %v11262 = vunpack.c.l.b16 %v11242
    %v11263 = vpack.c.b16 %v11256, %v11255
    %v11264 = vpack.c.b16 %v11258, %v11257
    %v11265 = vpack.c.b16 %v11260, %v11259
    %v11266 = vpack.c.b16 %v11262, %v11261
    %v11272 = vsel %vm10711, %v11234, 0
    %11274 = vmatpush.bf16.msra.mxu0 0
    %11275 = vmatpush.bf16.msra.mxu0 0
    %11276 = vmatpush.bf16.msra.mxu0 0
    %11277 = vmatpush.bf16.msra.mxu0 0
    %11278 = vmatpush.bf16.msra.mxu0 %v11266
    %11279 = vmatpush.bf16.msra.mxu0 %v11265
    %11280 = vmatpush.bf16.msra.mxu0 %v11264
    %11281 = vmatpush.bf16.msra.mxu0 %v11263
    %11282 = vmatmul.bf16.gmra.mxu0 %v11272
    %v11283 = vpop.f32.mrf.mxu0
    %v11284 = vadd.f32 %v11245, %v11283
    %v11285 = vpop.f32.mrf.mxu0
    %11286 = vdwg.mxu0
    %vm11287 = vcmask 279552
    %v11288 = vsel %vm11287, %v11284, -inf
    %11289 = vmax.xlane.f32.xlu0 %v11288
    %v11290 = vpop.xlane.xlu0 %11289
    %v11291 = vsub.f32 %v11284, %v11290
    %v11292 = vmul.f32 %v11291, 1.442695
    %v11293 = vpow.pop %v11292
    %v11294 = vsel %vm11287, %v11293, 0.0
    %11295 = vadd.xlane.f32.xlu0 %v11294
    %v11296 = vpop.xlane.xlu0 %11295
    %v11297 = vlog2.pop %v11296
    %v11298 = vmul.f32 %v11297, 0.6931472
    %v11299 = vsub.f32 %v11291, %v11298
    %11300 = vst.msk [vmem:[#allocation2] sm:$0x3] %vm11287, %v11299
    // Predicated region
    $region114: #{m5_forward.1} parent=1 // pred_check
      _
    $region115: #{m5_forward.1} parent=1 // pred_check_branch
      %11302 = sbr.rel (0) target = $region117
    $region116: #{m5_forward.1} parent=1 // pred_region
      %11304 = vsyncadd [#allocation3], 0
      %s11306 = sshll.u32 [#allocation2], 4
      %s11307 = int_to_ptr.vmem [resolvable:$true] %s11306
      %s11308 = sshll.u32 %s28, 4
      %s11309 = int_to_ptr.hbm [resolvable:$true] %s11308
      %11311 = dma.vmem_to_hbm [thread:$0]  %s11307, 32, %s11309, [#allocation3]
    $region117: #{m5_forward.1} parent=1 // pred_fallthru
      _
    // Predicated region
    $region118: #{m5_forward.1} parent=1 // pred_check
      _
    $region119: #{m5_forward.1} parent=1 // pred_check_branch
      %11313 = sbr.rel (0) target = $region121
    $region120: #{m5_forward.1} parent=1 // pred_region
      %11315 = dma.done [#allocation3], 32
    $region121: #{m5_forward.1} parent=1 // pred_fallthru
      _
    %11316 = vsyncpa [#allocation3], 1

</llo_original>
